<compile_context>
chip_gen: v7x
topology: tpu7x:2x2x1
jax: 0.10.0
libtpu: 0.0.40
codegen_flags: <defaults>
</compile_context>

<pallas_src>
import functools

import jax
import jax.numpy as jnp
from jax import lax
from jax.experimental import pallas as pl
from jax.experimental.pallas import tpu as pltpu


def _fused_cnn_kernel(p1_ref, *refs, n_layers, width):
    """Fused n_layers x (3x3 'valid' conv [+ ReLU]) on a fixed flattened canvas.

    p1_ref : (M, 9*C0)   layer-1 im2col patch matrix (built in the wrapper)
    refs   : w1, b1, ..., wL, bL, o_ref
             wi : (9*Cin_i, Cout_i), bi : (1, Cout_i)
    o_ref  : (M, Cout_L)
    """
    o_ref = refs[-1]
    wb = refs[:-1]
    m = p1_ref.shape[0]

    # Layer 1: single im2col matmul (patches precomputed in the wrapper).
    x = jnp.dot(p1_ref[...], wb[0][...], preferred_element_type=jnp.float32)
    x = jnp.maximum(x + wb[1][...], 0.0)

    # Layers 2..L: build the (M, 9*Cin) patch matrix with sublane rolls of the
    # fixed canvas (shifted[r] == x[r + dy*W + dx]), then one MXU matmul per layer.
    for i in range(1, n_layers):
        w_ref, b_ref = wb[2 * i], wb[2 * i + 1]
        pieces = []
        for dy in range(3):
            for dx in range(3):
                s = dy * width + dx
                pieces.append(x if s == 0 else pltpu.roll(x, shift=m - s, axis=0))
        patches = jnp.concatenate(pieces, axis=-1)
        x = jnp.dot(patches, w_ref[...], preferred_element_type=jnp.float32)
        x = x + b_ref[...]
        if i < n_layers - 1:
            x = jnp.maximum(x, 0.0)          # ReLU on hidden layers only

    o_ref[...] = x.astype(o_ref.dtype)


def baseline_forward(x_nchw, params):
    """x_nchw: (N, 3, H, W) f32 -> (N, n_classes, H-10, W-10) f32 (PyTorch NCHW)."""
    x = jnp.transpose(x_nchw, (0, 2, 3, 1)).astype(jnp.float32)    # NCHW -> NHWC
    n, h, w, c0 = x.shape
    n_layers = len(params)
    ho, wo = h - 2 * n_layers, w - 2 * n_layers
    n_classes = params[-1][0].shape[-1]
    m = n * h * w

    # Layer-1 im2col (K = 9*C0) on the tiny input, done once in XLA.  Rolls keep
    # every image on its full HxW canvas; wrapped rows are garbage but never feed
    # the valid output region of a 'valid' conv chain.
    xf = x.reshape(n, h * w, c0)
    p1 = jnp.concatenate(
        [jnp.roll(xf, -(dy * w + dx), axis=1) for dy in range(3) for dx in range(3)],
        axis=-1).reshape(m, 9 * c0)

    flat_args = [p1]
    for (wgt, b) in params:
        k = wgt.shape[0] * wgt.shape[1] * wgt.shape[2]               # 9 * Cin
        flat_args.append(wgt.reshape(k, wgt.shape[3]).astype(jnp.float32))
        flat_args.append(b.reshape(1, -1).astype(jnp.float32))       # (1, Cout) row

    kernel = functools.partial(_fused_cnn_kernel, n_layers=n_layers, width=w)

    out_flat = pl.pallas_call(
        kernel,
        out_shape=jax.ShapeDtypeStruct((m, n_classes), jnp.float32),
        in_specs=[pl.BlockSpec(memory_space=pltpu.MemorySpace.VMEM)] * len(flat_args),
        out_specs=pl.BlockSpec(memory_space=pltpu.MemorySpace.VMEM),
    )(*flat_args)

    out = out_flat.reshape(n, h, w, n_classes)[:, :ho, :wo, :]       # valid region
    return jnp.transpose(out, (0, 3, 1, 2))                          # NHWC -> NCHW


def init_params(key, n_classes=1):
    """Deterministic parameter init (kaiming-uniform-ish, HWIO weights)."""
    layer_defs = [  # (Cin, Cout) -- layer 2 corrected to Cin=32 (see TODO above)
        (3, 32),
        (32, 32),
        (32, 64),
        (64, 32),
        (32, n_classes),
    ]
    params = []
    for i, (cin, cout) in enumerate(layer_defs):
        kw, kb = jax.random.split(jax.random.fold_in(key, i))
        fan_in = cin * 3 * 3
        bound = 1.0 / jnp.sqrt(fan_in)
        w = jax.random.uniform(kw, (3, 3, cin, cout), jnp.float32, -bound, bound)
        b = jax.random.uniform(kb, (cout,), jnp.float32, -bound, bound)
        params.append((w, b))
    return params


def _reference_forward(x_nchw, params):
    """Pure-JAX reference (lax.conv) for sanity checking."""
    x = x_nchw
    n_layers = len(params)
    for i, (w, b) in enumerate(params):
        y = lax.conv_general_dilated(
            x, w, window_strides=(1, 1), padding='VALID',
            dimension_numbers=('NCHW', 'HWIO', 'NCHW'))
        y = y + b[None, :, None, None]
        if i < n_layers - 1:
            y = jnp.maximum(y, 0.0)
        x = y
    return x


if __name__ == "__main__":
    key = jax.random.PRNGKey(0)
    k_in, k_par = jax.random.split(key)

    # Small input consistent with the module: batch=2, 3 channels, 16x16 spatial.
    x = jax.random.normal(k_in, (2, 3, 16, 16), dtype=jnp.float32)
    params = init_params(k_par, n_classes=1)

    fwd = jax.jit(baseline_forward)
    out = jax.block_until_ready(fwd(x, params))

    ref = _reference_forward(x, params)
    assert out.shape == (2, 1, 6, 6), out.shape
    assert jnp.allclose(out, ref, atol=1e-3, rtol=1e-3), "mismatch vs JAX reference"

    print("KERNEL_OK")
</pallas_src>

<mosaic_0001>
module attributes {stable_mosaic.version = 11 : i64} {
  func.func @_fused_cnn_kernel(%arg0: memref<512x27xf32, #tpu.memory_space<vmem>>, %arg1: memref<27x32xf32, #tpu.memory_space<vmem>>, %arg2: memref<1x32xf32, #tpu.memory_space<vmem>>, %arg3: memref<288x32xf32, #tpu.memory_space<vmem>>, %arg4: memref<1x32xf32, #tpu.memory_space<vmem>>, %arg5: memref<288x64xf32, #tpu.memory_space<vmem>>, %arg6: memref<1x64xf32, #tpu.memory_space<vmem>>, %arg7: memref<576x32xf32, #tpu.memory_space<vmem>>, %arg8: memref<1x32xf32, #tpu.memory_space<vmem>>, %arg9: memref<288x1xf32, #tpu.memory_space<vmem>>, %arg10: memref<1x1xf32, #tpu.memory_space<vmem>>, %arg11: memref<512x1xf32, #tpu.memory_space<vmem>>) attributes {dimension_semantics = [], scalar_prefetch = 0 : i64, scratch_operands = 0 : i64, tpu.core_type = #tpu.core_type<tc>} {
    %c0 = arith.constant 0 : index
    %c0_0 = arith.constant 0 : index
    %0 = vector.load %arg0[%c0, %c0_0] : memref<512x27xf32, #tpu.memory_space<vmem>>, vector<512x27xf32>
    %c0_1 = arith.constant 0 : index
    %c0_2 = arith.constant 0 : index
    %1 = vector.load %arg1[%c0_1, %c0_2] : memref<27x32xf32, #tpu.memory_space<vmem>>, vector<27x32xf32>
    %cst = arith.constant dense<0.000000e+00> : vector<512x32xf32>
    %2 = tpu.matmul %0, %1, %cst {dimension_numbers = #tpu.dot_dimension_numbers<[1], [0], [0], [1], [0, 0, 1, 1], [], []>} : vector<512x27xf32>, vector<27x32xf32>, vector<512x32xf32> -> vector<512x32xf32>
    %c0_3 = arith.constant 0 : index
    %c0_4 = arith.constant 0 : index
    %3 = vector.load %arg2[%c0_3, %c0_4] : memref<1x32xf32, #tpu.memory_space<vmem>>, vector<1x32xf32>
    %4 = vector.broadcast %3 : vector<1x32xf32> to vector<512x32xf32>
    %5 = arith.addf %2, %4 : vector<512x32xf32>
    %cst_5 = arith.constant 0.000000e+00 : f32
    %6 = vector.broadcast %cst_5 : f32 to vector<512x32xf32>
    %7 = arith.maximumf %5, %6 : vector<512x32xf32>
    %c511_i32 = arith.constant 511 : i32
    %8 = tpu.dynamic_rotate %7 by %c511_i32 dim 0 : vector<512x32xf32>, i32 -> vector<512x32xf32>
    %c510_i32 = arith.constant 510 : i32
    %9 = tpu.dynamic_rotate %7 by %c510_i32 dim 0 : vector<512x32xf32>, i32 -> vector<512x32xf32>
    %c496_i32 = arith.constant 496 : i32
    %10 = tpu.dynamic_rotate %7 by %c496_i32 dim 0 : vector<512x32xf32>, i32 -> vector<512x32xf32>
    %c495_i32 = arith.constant 495 : i32
    %11 = tpu.dynamic_rotate %7 by %c495_i32 dim 0 : vector<512x32xf32>, i32 -> vector<512x32xf32>
    %c494_i32 = arith.constant 494 : i32
    %12 = tpu.dynamic_rotate %7 by %c494_i32 dim 0 : vector<512x32xf32>, i32 -> vector<512x32xf32>
    %c480_i32 = arith.constant 480 : i32
    %13 = tpu.dynamic_rotate %7 by %c480_i32 dim 0 : vector<512x32xf32>, i32 -> vector<512x32xf32>
    %c479_i32 = arith.constant 479 : i32
    %14 = tpu.dynamic_rotate %7 by %c479_i32 dim 0 : vector<512x32xf32>, i32 -> vector<512x32xf32>
    %c478_i32 = arith.constant 478 : i32
    %15 = tpu.dynamic_rotate %7 by %c478_i32 dim 0 : vector<512x32xf32>, i32 -> vector<512x32xf32>
    %16 = tpu.concatenate %7, %8, %9, %10, %11, %12, %13, %14, %15 in 1 : vector<512x32xf32>, vector<512x32xf32>, vector<512x32xf32>, vector<512x32xf32>, vector<512x32xf32>, vector<512x32xf32>, vector<512x32xf32>, vector<512x32xf32>, vector<512x32xf32> -> vector<512x288xf32>
    %c0_6 = arith.constant 0 : index
    %c0_7 = arith.constant 0 : index
    %17 = vector.load %arg3[%c0_6, %c0_7] : memref<288x32xf32, #tpu.memory_space<vmem>>, vector<288x32xf32>
    %cst_8 = arith.constant dense<0.000000e+00> : vector<512x32xf32>
    %18 = tpu.matmul %16, %17, %cst_8 {dimension_numbers = #tpu.dot_dimension_numbers<[1], [0], [0], [1], [0, 0, 1, 1], [], []>} : vector<512x288xf32>, vector<288x32xf32>, vector<512x32xf32> -> vector<512x32xf32>
    %c0_9 = arith.constant 0 : index
    %c0_10 = arith.constant 0 : index
    %19 = vector.load %arg4[%c0_9, %c0_10] : memref<1x32xf32, #tpu.memory_space<vmem>>, vector<1x32xf32>
    %20 = vector.broadcast %19 : vector<1x32xf32> to vector<512x32xf32>
    %21 = arith.addf %18, %20 : vector<512x32xf32>
    %cst_11 = arith.constant 0.000000e+00 : f32
    %22 = vector.broadcast %cst_11 : f32 to vector<512x32xf32>
    %23 = arith.maximumf %21, %22 : vector<512x32xf32>
    %c511_i32_12 = arith.constant 511 : i32
    %24 = tpu.dynamic_rotate %23 by %c511_i32_12 dim 0 : vector<512x32xf32>, i32 -> vector<512x32xf32>
    %c510_i32_13 = arith.constant 510 : i32
    %25 = tpu.dynamic_rotate %23 by %c510_i32_13 dim 0 : vector<512x32xf32>, i32 -> vector<512x32xf32>
    %c496_i32_14 = arith.constant 496 : i32
    %26 = tpu.dynamic_rotate %23 by %c496_i32_14 dim 0 : vector<512x32xf32>, i32 -> vector<512x32xf32>
    %c495_i32_15 = arith.constant 495 : i32
    %27 = tpu.dynamic_rotate %23 by %c495_i32_15 dim 0 : vector<512x32xf32>, i32 -> vector<512x32xf32>
    %c494_i32_16 = arith.constant 494 : i32
    %28 = tpu.dynamic_rotate %23 by %c494_i32_16 dim 0 : vector<512x32xf32>, i32 -> vector<512x32xf32>
    %c480_i32_17 = arith.constant 480 : i32
    %29 = tpu.dynamic_rotate %23 by %c480_i32_17 dim 0 : vector<512x32xf32>, i32 -> vector<512x32xf32>
    %c479_i32_18 = arith.constant 479 : i32
    %30 = tpu.dynamic_rotate %23 by %c479_i32_18 dim 0 : vector<512x32xf32>, i32 -> vector<512x32xf32>
    %c478_i32_19 = arith.constant 478 : i32
    %31 = tpu.dynamic_rotate %23 by %c478_i32_19 dim 0 : vector<512x32xf32>, i32 -> vector<512x32xf32>
    %32 = tpu.concatenate %23, %24, %25, %26, %27, %28, %29, %30, %31 in 1 : vector<512x32xf32>, vector<512x32xf32>, vector<512x32xf32>, vector<512x32xf32>, vector<512x32xf32>, vector<512x32xf32>, vector<512x32xf32>, vector<512x32xf32>, vector<512x32xf32> -> vector<512x288xf32>
    %c0_20 = arith.constant 0 : index
    %c0_21 = arith.constant 0 : index
    %33 = vector.load %arg5[%c0_20, %c0_21] : memref<288x64xf32, #tpu.memory_space<vmem>>, vector<288x64xf32>
    %cst_22 = arith.constant dense<0.000000e+00> : vector<512x64xf32>
    %34 = tpu.matmul %32, %33, %cst_22 {dimension_numbers = #tpu.dot_dimension_numbers<[1], [0], [0], [1], [0, 0, 1, 1], [], []>} : vector<512x288xf32>, vector<288x64xf32>, vector<512x64xf32> -> vector<512x64xf32>
    %c0_23 = arith.constant 0 : index
    %c0_24 = arith.constant 0 : index
    %35 = vector.load %arg6[%c0_23, %c0_24] : memref<1x64xf32, #tpu.memory_space<vmem>>, vector<1x64xf32>
    %36 = vector.broadcast %35 : vector<1x64xf32> to vector<512x64xf32>
    %37 = arith.addf %34, %36 : vector<512x64xf32>
    %cst_25 = arith.constant 0.000000e+00 : f32
    %38 = vector.broadcast %cst_25 : f32 to vector<512x64xf32>
    %39 = arith.maximumf %37, %38 : vector<512x64xf32>
    %c511_i32_26 = arith.constant 511 : i32
    %40 = tpu.dynamic_rotate %39 by %c511_i32_26 dim 0 : vector<512x64xf32>, i32 -> vector<512x64xf32>
    %c510_i32_27 = arith.constant 510 : i32
    %41 = tpu.dynamic_rotate %39 by %c510_i32_27 dim 0 : vector<512x64xf32>, i32 -> vector<512x64xf32>
    %c496_i32_28 = arith.constant 496 : i32
    %42 = tpu.dynamic_rotate %39 by %c496_i32_28 dim 0 : vector<512x64xf32>, i32 -> vector<512x64xf32>
    %c495_i32_29 = arith.constant 495 : i32
    %43 = tpu.dynamic_rotate %39 by %c495_i32_29 dim 0 : vector<512x64xf32>, i32 -> vector<512x64xf32>
    %c494_i32_30 = arith.constant 494 : i32
    %44 = tpu.dynamic_rotate %39 by %c494_i32_30 dim 0 : vector<512x64xf32>, i32 -> vector<512x64xf32>
    %c480_i32_31 = arith.constant 480 : i32
    %45 = tpu.dynamic_rotate %39 by %c480_i32_31 dim 0 : vector<512x64xf32>, i32 -> vector<512x64xf32>
    %c479_i32_32 = arith.constant 479 : i32
    %46 = tpu.dynamic_rotate %39 by %c479_i32_32 dim 0 : vector<512x64xf32>, i32 -> vector<512x64xf32>
    %c478_i32_33 = arith.constant 478 : i32
    %47 = tpu.dynamic_rotate %39 by %c478_i32_33 dim 0 : vector<512x64xf32>, i32 -> vector<512x64xf32>
    %48 = tpu.concatenate %39, %40, %41, %42, %43, %44, %45, %46, %47 in 1 : vector<512x64xf32>, vector<512x64xf32>, vector<512x64xf32>, vector<512x64xf32>, vector<512x64xf32>, vector<512x64xf32>, vector<512x64xf32>, vector<512x64xf32>, vector<512x64xf32> -> vector<512x576xf32>
    %c0_34 = arith.constant 0 : index
    %c0_35 = arith.constant 0 : index
    %49 = vector.load %arg7[%c0_34, %c0_35] : memref<576x32xf32, #tpu.memory_space<vmem>>, vector<576x32xf32>
    %cst_36 = arith.constant dense<0.000000e+00> : vector<512x32xf32>
    %50 = tpu.matmul %48, %49, %cst_36 {dimension_numbers = #tpu.dot_dimension_numbers<[1], [0], [0], [1], [0, 0, 1, 1], [], []>} : vector<512x576xf32>, vector<576x32xf32>, vector<512x32xf32> -> vector<512x32xf32>
    %c0_37 = arith.constant 0 : index
    %c0_38 = arith.constant 0 : index
    %51 = vector.load %arg8[%c0_37, %c0_38] : memref<1x32xf32, #tpu.memory_space<vmem>>, vector<1x32xf32>
    %52 = vector.broadcast %51 : vector<1x32xf32> to vector<512x32xf32>
    %53 = arith.addf %50, %52 : vector<512x32xf32>
    %cst_39 = arith.constant 0.000000e+00 : f32
    %54 = vector.broadcast %cst_39 : f32 to vector<512x32xf32>
    %55 = arith.maximumf %53, %54 : vector<512x32xf32>
    %c511_i32_40 = arith.constant 511 : i32
    %56 = tpu.dynamic_rotate %55 by %c511_i32_40 dim 0 : vector<512x32xf32>, i32 -> vector<512x32xf32>
    %c510_i32_41 = arith.constant 510 : i32
    %57 = tpu.dynamic_rotate %55 by %c510_i32_41 dim 0 : vector<512x32xf32>, i32 -> vector<512x32xf32>
    %c496_i32_42 = arith.constant 496 : i32
    %58 = tpu.dynamic_rotate %55 by %c496_i32_42 dim 0 : vector<512x32xf32>, i32 -> vector<512x32xf32>
    %c495_i32_43 = arith.constant 495 : i32
    %59 = tpu.dynamic_rotate %55 by %c495_i32_43 dim 0 : vector<512x32xf32>, i32 -> vector<512x32xf32>
    %c494_i32_44 = arith.constant 494 : i32
    %60 = tpu.dynamic_rotate %55 by %c494_i32_44 dim 0 : vector<512x32xf32>, i32 -> vector<512x32xf32>
    %c480_i32_45 = arith.constant 480 : i32
    %61 = tpu.dynamic_rotate %55 by %c480_i32_45 dim 0 : vector<512x32xf32>, i32 -> vector<512x32xf32>
    %c479_i32_46 = arith.constant 479 : i32
    %62 = tpu.dynamic_rotate %55 by %c479_i32_46 dim 0 : vector<512x32xf32>, i32 -> vector<512x32xf32>
    %c478_i32_47 = arith.constant 478 : i32
    %63 = tpu.dynamic_rotate %55 by %c478_i32_47 dim 0 : vector<512x32xf32>, i32 -> vector<512x32xf32>
    %64 = tpu.concatenate %55, %56, %57, %58, %59, %60, %61, %62, %63 in 1 : vector<512x32xf32>, vector<512x32xf32>, vector<512x32xf32>, vector<512x32xf32>, vector<512x32xf32>, vector<512x32xf32>, vector<512x32xf32>, vector<512x32xf32>, vector<512x32xf32> -> vector<512x288xf32>
    %c0_48 = arith.constant 0 : index
    %c0_49 = arith.constant 0 : index
    %65 = vector.load %arg9[%c0_48, %c0_49] : memref<288x1xf32, #tpu.memory_space<vmem>>, vector<288x1xf32>
    %cst_50 = arith.constant dense<0.000000e+00> : vector<512x1xf32>
    %66 = tpu.matmul %64, %65, %cst_50 {dimension_numbers = #tpu.dot_dimension_numbers<[1], [0], [0], [1], [0, 0, 1, 1], [], []>} : vector<512x288xf32>, vector<288x1xf32>, vector<512x1xf32> -> vector<512x1xf32>
    %c0_51 = arith.constant 0 : index
    %c0_52 = arith.constant 0 : index
    %67 = vector.load %arg10[%c0_51, %c0_52] : memref<1x1xf32, #tpu.memory_space<vmem>>, vector<1x1xf32>
    %68 = vector.broadcast %67 : vector<1x1xf32> to vector<512x1xf32>
    %69 = arith.addf %66, %68 : vector<512x1xf32>
    %c0_53 = arith.constant 0 : index
    %c0_54 = arith.constant 0 : index
    %70 = vector.load %arg11[%c0_53, %c0_54] : memref<512x1xf32, #tpu.memory_space<vmem>>, vector<512x1xf32>
    tpu.vector_store %arg11[%c0_53, %c0_54], %69 {strides = array<i32>} : memref<512x1xf32, #tpu.memory_space<vmem>>, vector<512x1xf32>,
    return
  }
}

</mosaic_0001>

<llo_original>
// kernel: baseline_forward.1
$region0: #{baseline_forward.1}
  #allocation0 [shape = 'u32[]', space=smem, size = 0x4, offset = 0x4, fixed_abs, tag = 'smem constant byte address 0x4 - core index']
  #allocation1 [shape = 'u32[144,128]{1,0:T(1,128)}', space=vmem, size = 0x12000, scoped, tag = 'internal scratch']
  #allocation2 [shape = 'f32[1,1]{1,0:T(1,128)S(1)}', space=vmem, size = 0x200, scoped, tag = 'scoped memory for baseline_forward.1']
  %s0 = inlined_call_operand.vmem [shape: f32[512,27], index: 0, kind: input, shape index: {}]
  %s1 = inlined_call_operand.vmem [shape: f32[27,32], index: 1, kind: input, shape index: {}]
  %s2 = inlined_call_operand.vmem [shape: f32[1,32], index: 2, kind: input, shape index: {}]
  %s3 = inlined_call_operand.vmem [shape: f32[288,32], index: 3, kind: input, shape index: {}]
  %s4 = inlined_call_operand.vmem [shape: f32[1,32], index: 4, kind: input, shape index: {}]
  %s5 = inlined_call_operand.vmem [shape: f32[288,64], index: 5, kind: input, shape index: {}]
  %s6 = inlined_call_operand.vmem [shape: f32[1,64], index: 6, kind: input, shape index: {}]
  %s7 = inlined_call_operand.vmem [shape: f32[576,32], index: 7, kind: input, shape index: {}]
  %s8 = inlined_call_operand.vmem [shape: f32[1,32], index: 8, kind: input, shape index: {}]
  %s9 = inlined_call_operand.vmem [shape: f32[288,1], index: 9, kind: input, shape index: {}]
  %s10 = inlined_call_operand.<no memory space> [shape: f32[1,1], index: 10, kind: input, shape index: {}]
  %s11 = inlined_call_operand.vmem [shape: f32[512,1], index: 11, kind: output, shape index: {}]
  %s12 = sld [smem:[#allocation0]]
  $region54: #{baseline_forward.1} parent=0
    _
  %s14 = ssub.s32 1, %s12
  %s15 = scalar_select 0, %s14, %s12
  %v16 = vstv %s10
  %17 = vst [vmem:[#allocation2] sm:$0x1] %v16
  // Predicated region
  $region2: #{baseline_forward.1} parent=0 // pred_check
    _
  $region3: #{baseline_forward.1} parent=0 // pred_check_branch
    %19 = sbr.rel (0) target = $region5
  $region4: #{baseline_forward.1} parent=0 // pred_region
    _
  $region5: #{baseline_forward.1} parent=0 // pred_fallthru
    _
  // Predicated region
  $region6: #{baseline_forward.1} parent=0 // pred_check
    _
  $region7: #{baseline_forward.1} parent=0 // pred_check_branch
    %21 = sbr.rel (0) target = $region9
  $region8: #{baseline_forward.1} parent=0 // pred_region
    _
  $region9: #{baseline_forward.1} parent=0 // pred_fallthru
    _
  // Predicated region
  $region10: #{baseline_forward.1} parent=0 // pred_check
    _
  $region11: #{baseline_forward.1} parent=0 // pred_check_branch
    %23 = sbr.rel (0) target = $region13
  $region12: #{baseline_forward.1} parent=0 // pred_region
    _
  $region13: #{baseline_forward.1} parent=0 // pred_fallthru
    _
  // Predicated region
  $region14: #{baseline_forward.1} parent=0 // pred_check
    _
  $region15: #{baseline_forward.1} parent=0 // pred_check_branch
    %25 = sbr.rel (0) target = $region17
  $region16: #{baseline_forward.1} parent=0 // pred_region
    _
  $region17: #{baseline_forward.1} parent=0 // pred_fallthru
    _
  // Predicated region
  $region18: #{baseline_forward.1} parent=0 // pred_check
    _
  $region19: #{baseline_forward.1} parent=0 // pred_check_branch
    %27 = sbr.rel (0) target = $region21
  $region20: #{baseline_forward.1} parent=0 // pred_region
    _
  $region21: #{baseline_forward.1} parent=0 // pred_fallthru
    _
  // Predicated region
  $region22: #{baseline_forward.1} parent=0 // pred_check
    _
  $region23: #{baseline_forward.1} parent=0 // pred_check_branch
    %29 = sbr.rel (0) target = $region25
  $region24: #{baseline_forward.1} parent=0 // pred_region
    _
  $region25: #{baseline_forward.1} parent=0 // pred_fallthru
    _
  // Predicated region
  $region26: #{baseline_forward.1} parent=0 // pred_check
    _
  $region27: #{baseline_forward.1} parent=0 // pred_check_branch
    %31 = sbr.rel (0) target = $region29
  $region28: #{baseline_forward.1} parent=0 // pred_region
    _
  $region29: #{baseline_forward.1} parent=0 // pred_fallthru
    _
  // Predicated region
  $region30: #{baseline_forward.1} parent=0 // pred_check
    _
  $region31: #{baseline_forward.1} parent=0 // pred_check_branch
    %33 = sbr.rel (0) target = $region33
  $region32: #{baseline_forward.1} parent=0 // pred_region
    _
  $region33: #{baseline_forward.1} parent=0 // pred_fallthru
    _
  // Predicated region
  $region34: #{baseline_forward.1} parent=0 // pred_check
    _
  $region35: #{baseline_forward.1} parent=0 // pred_check_branch
    %35 = sbr.rel (0) target = $region37
  $region36: #{baseline_forward.1} parent=0 // pred_region
    _
  $region37: #{baseline_forward.1} parent=0 // pred_fallthru
    _
  // Predicated region
  $region38: #{baseline_forward.1} parent=0 // pred_check
    _
  $region39: #{baseline_forward.1} parent=0 // pred_check_branch
    %37 = sbr.rel (0) target = $region41
  $region40: #{baseline_forward.1} parent=0 // pred_region
    _
  $region41: #{baseline_forward.1} parent=0 // pred_fallthru
    _
  // Predicated region
  $region42: #{baseline_forward.1} parent=0 // pred_check
    _
  $region43: #{baseline_forward.1} parent=0 // pred_check_branch
    %39 = sbr.rel (0) target = $region45
  $region44: #{baseline_forward.1} parent=0 // pred_region
    _
  $region45: #{baseline_forward.1} parent=0 // pred_fallthru
    _
  %v40 = vld [vmem:[%s0] sm:$0xff]
  %v41 = vld [vmem:[%s0 + $0x8] sm:$0xff]
  %v42 = vld [vmem:[%s0 + $0x10] sm:$0xff]
  %v43 = vld [vmem:[%s0 + $0x18] sm:$0xff]
  %v44 = vld [vmem:[%s0 + $0x20] sm:$0xff]
  %v45 = vld [vmem:[%s0 + $0x28] sm:$0xff]
  %v46 = vld [vmem:[%s0 + $0x30] sm:$0xff]
  %v47 = vld [vmem:[%s0 + $0x38] sm:$0xff]
  %v48 = vld [vmem:[%s0 + $0x40] sm:$0xff]
  %v49 = vld [vmem:[%s0 + $0x48] sm:$0xff]
  %v50 = vld [vmem:[%s0 + $0x50] sm:$0xff]
  %v51 = vld [vmem:[%s0 + $0x58] sm:$0xff]
  %v52 = vld [vmem:[%s0 + $0x60] sm:$0xff]
  %v53 = vld [vmem:[%s0 + $0x68] sm:$0xff]
  %v54 = vld [vmem:[%s0 + $0x70] sm:$0xff]
  %v55 = vld [vmem:[%s0 + $0x78] sm:$0xff]
  %v56 = vld [vmem:[%s0 + $0x80] sm:$0xff]
  %v57 = vld [vmem:[%s0 + $0x88] sm:$0xff]
  %v58 = vld [vmem:[%s0 + $0x90] sm:$0xff]
  %v59 = vld [vmem:[%s0 + $0x98] sm:$0xff]
  %v60 = vld [vmem:[%s0 + $0xa0] sm:$0xff]
  %v61 = vld [vmem:[%s0 + $0xa8] sm:$0xff]
  %v62 = vld [vmem:[%s0 + $0xb0] sm:$0xff]
  %v63 = vld [vmem:[%s0 + $0xb8] sm:$0xff]
  %v64 = vld [vmem:[%s0 + $0xc0] sm:$0xff]
  %v65 = vld [vmem:[%s0 + $0xc8] sm:$0xff]
  %v66 = vld [vmem:[%s0 + $0xd0] sm:$0xff]
  %v67 = vld [vmem:[%s0 + $0xd8] sm:$0xff]
  %v68 = vld [vmem:[%s0 + $0xe0] sm:$0xff]
  %v69 = vld [vmem:[%s0 + $0xe8] sm:$0xff]
  %v70 = vld [vmem:[%s0 + $0xf0] sm:$0xff]
  %v71 = vld [vmem:[%s0 + $0xf8] sm:$0xff]
  %v72 = vld [vmem:[%s0 + $0x100] sm:$0xff]
  %v73 = vld [vmem:[%s0 + $0x108] sm:$0xff]
  %v74 = vld [vmem:[%s0 + $0x110] sm:$0xff]
  %v75 = vld [vmem:[%s0 + $0x118] sm:$0xff]
  %v76 = vld [vmem:[%s0 + $0x120] sm:$0xff]
  %v77 = vld [vmem:[%s0 + $0x128] sm:$0xff]
  %v78 = vld [vmem:[%s0 + $0x130] sm:$0xff]
  %v79 = vld [vmem:[%s0 + $0x138] sm:$0xff]
  %v80 = vld [vmem:[%s0 + $0x140] sm:$0xff]
  %v81 = vld [vmem:[%s0 + $0x148] sm:$0xff]
  %v82 = vld [vmem:[%s0 + $0x150] sm:$0xff]
  %v83 = vld [vmem:[%s0 + $0x158] sm:$0xff]
  %v84 = vld [vmem:[%s0 + $0x160] sm:$0xff]
  %v85 = vld [vmem:[%s0 + $0x168] sm:$0xff]
  %v86 = vld [vmem:[%s0 + $0x170] sm:$0xff]
  %v87 = vld [vmem:[%s0 + $0x178] sm:$0xff]
  %v88 = vld [vmem:[%s0 + $0x180] sm:$0xff]
  %v89 = vld [vmem:[%s0 + $0x188] sm:$0xff]
  %v90 = vld [vmem:[%s0 + $0x190] sm:$0xff]
  %v91 = vld [vmem:[%s0 + $0x198] sm:$0xff]
  %v92 = vld [vmem:[%s0 + $0x1a0] sm:$0xff]
  %v93 = vld [vmem:[%s0 + $0x1a8] sm:$0xff]
  %v94 = vld [vmem:[%s0 + $0x1b0] sm:$0xff]
  %v95 = vld [vmem:[%s0 + $0x1b8] sm:$0xff]
  %v96 = vld [vmem:[%s0 + $0x1c0] sm:$0xff]
  %v97 = vld [vmem:[%s0 + $0x1c8] sm:$0xff]
  %v98 = vld [vmem:[%s0 + $0x1d0] sm:$0xff]
  %v99 = vld [vmem:[%s0 + $0x1d8] sm:$0xff]
  %v100 = vld [vmem:[%s0 + $0x1e0] sm:$0xff]
  %v101 = vld [vmem:[%s0 + $0x1e8] sm:$0xff]
  %v102 = vld [vmem:[%s0 + $0x1f0] sm:$0xff]
  %v103 = vld [vmem:[%s0 + $0x1f8] sm:$0xff]
  %v104 = vld [vmem:[%s1] sm:$0xff]
  %v105 = vld [vmem:[%s1 + $0x8] sm:$0xff]
  %v106 = vld [vmem:[%s1 + $0x10] sm:$0xff]
  %v107 = vld [vmem:[%s1 + $0x18] sm:$0x7]
  %v108 = vld [vmem:[%s2] sm:$0x1]
  %v110 = vlaneseq
  %v111 = vshrl.u32 %v110, 7
  %v112 = vsub.s32 0, %v111
  %v113 = vrot.slane %v108, %v112
  %vm115 = vcmask 220160
  %v117 = vsel %vm115, %v40, 0
  %v120 = vsel %vm115, %v41, 0
  %v123 = vsel %vm115, %v42, 0
  %v126 = vsel %vm115, %v43, 0
  %v129 = vsel %vm115, %v44, 0
  %v132 = vsel %vm115, %v45, 0
  %v135 = vsel %vm115, %v46, 0
  %v138 = vsel %vm115, %v47, 0
  %v141 = vsel %vm115, %v48, 0
  %v144 = vsel %vm115, %v49, 0
  %v147 = vsel %vm115, %v50, 0
  %v150 = vsel %vm115, %v51, 0
  %v153 = vsel %vm115, %v52, 0
  %v156 = vsel %vm115, %v53, 0
  %v159 = vsel %vm115, %v54, 0
  %v162 = vsel %vm115, %v55, 0
  %v165 = vsel %vm115, %v56, 0
  %v168 = vsel %vm115, %v57, 0
  %v171 = vsel %vm115, %v58, 0
  %v174 = vsel %vm115, %v59, 0
  %v177 = vsel %vm115, %v60, 0
  %v180 = vsel %vm115, %v61, 0
  %v183 = vsel %vm115, %v62, 0
  %v186 = vsel %vm115, %v63, 0
  %v189 = vsel %vm115, %v64, 0
  %v192 = vsel %vm115, %v65, 0
  %v195 = vsel %vm115, %v66, 0
  %v198 = vsel %vm115, %v67, 0
  %v201 = vsel %vm115, %v68, 0
  %v204 = vsel %vm115, %v69, 0
  %v207 = vsel %vm115, %v70, 0
  %v210 = vsel %vm115, %v71, 0
  %v213 = vsel %vm115, %v72, 0
  %v216 = vsel %vm115, %v73, 0
  %v219 = vsel %vm115, %v74, 0
  %v222 = vsel %vm115, %v75, 0
  %v225 = vsel %vm115, %v76, 0
  %v228 = vsel %vm115, %v77, 0
  %v231 = vsel %vm115, %v78, 0
  %v234 = vsel %vm115, %v79, 0
  %v237 = vsel %vm115, %v80, 0
  %v240 = vsel %vm115, %v81, 0
  %v243 = vsel %vm115, %v82, 0
  %v246 = vsel %vm115, %v83, 0
  %v249 = vsel %vm115, %v84, 0
  %v252 = vsel %vm115, %v85, 0
  %v255 = vsel %vm115, %v86, 0
  %v258 = vsel %vm115, %v87, 0
  %v261 = vsel %vm115, %v88, 0
  %v264 = vsel %vm115, %v89, 0
  %v267 = vsel %vm115, %v90, 0
  %v270 = vsel %vm115, %v91, 0
  %v273 = vsel %vm115, %v92, 0
  %v276 = vsel %vm115, %v93, 0
  %v279 = vsel %vm115, %v94, 0
  %v282 = vsel %vm115, %v95, 0
  %v285 = vsel %vm115, %v96, 0
  %v288 = vsel %vm115, %v97, 0
  %v291 = vsel %vm115, %v98, 0
  %v294 = vsel %vm115, %v99, 0
  %v297 = vsel %vm115, %v100, 0
  %v300 = vsel %vm115, %v101, 0
  %v303 = vsel %vm115, %v102, 0
  %v306 = vsel %vm115, %v103, 0
  %vm308 = vcmask 1042432
  %v310 = vsel %vm308, %v107, 0
  %312 = vmatprep.subr.mxu0 0.0
  %313 = vmatpush1.msra.mxu0 %v104
  %314 = vmatprep.subr.mxu0 0.0
  %315 = vmatpush1.msra.mxu0 %v105
  %316 = vmatprep.subr.mxu0 0.0
  %317 = vmatpush1.msra.mxu0 %v106
  %318 = vmatprep.subr.mxu0 0.0
  %319 = vmatpush1.msra.mxu0 %v310
  %320 = vmatprep.subr.mxu0 0.0
  %321 = vmatpush1.msra.mxu0 0.0
  %322 = vmatprep.subr.mxu0 0.0
  %323 = vmatpush1.msra.mxu0 0.0
  %324 = vmatprep.subr.mxu0 0.0
  %325 = vmatpush1.msra.mxu0 0.0
  %326 = vmatprep.subr.mxu0 0.0
  %327 = vmatpush1.msra.mxu0 0.0
  %328 = vmatprep.subr.mxu0 0.0
  %329 = vmatpush1.msra.mxu0 0.0
  %330 = vmatprep.subr.mxu0 0.0
  %331 = vmatpush1.msra.mxu0 0.0
  %332 = vmatprep.subr.mxu0 0.0
  %333 = vmatpush1.msra.mxu0 0.0
  %334 = vmatprep.subr.mxu0 0.0
  %335 = vmatpush1.msra.mxu0 0.0
  %336 = vmatprep.subr.mxu0 0.0
  %337 = vmatpush1.msra.mxu0 0.0
  %338 = vmatprep.subr.mxu0 0.0
  %339 = vmatpush1.msra.mxu0 0.0
  %340 = vmatprep.subr.mxu0 0.0
  %341 = vmatpush1.msra.mxu0 0.0
  %342 = vmatprep.subr.mxu0 0.0
  %343 = vmatpush1.msra.mxu0 0.0
  %344 = vmatprep.subr.mxu0 0.0
  %345 = vmatpush1.msra.mxu0 0.0
  %346 = vmatprep.subr.mxu0 0.0
  %347 = vmatpush1.msra.mxu0 0.0
  %348 = vmatprep.subr.mxu0 0.0
  %349 = vmatpush1.msra.mxu0 0.0
  %350 = vmatprep.subr.mxu0 0.0
  %351 = vmatpush1.msra.mxu0 0.0
  %352 = vmatprep.subr.mxu0 0.0
  %353 = vmatpush1.msra.mxu0 0.0
  %354 = vmatprep.subr.mxu0 0.0
  %355 = vmatpush1.msra.mxu0 0.0
  %356 = vmatprep.subr.mxu0 0.0
  %357 = vmatpush1.msra.mxu0 0.0
  %358 = vmatprep.subr.mxu0 0.0
  %359 = vmatpush1.msra.mxu0 0.0
  %360 = vmatprep.subr.mxu0 0.0
  %361 = vmatpush1.msra.mxu0 0.0
  %362 = vmatprep.subr.mxu0 0.0
  %363 = vmatpush1.msra.mxu0 0.0
  %364 = vmatprep.subr.mxu0 0.0
  %365 = vmatpush1.msra.mxu0 0.0
  %366 = vmatprep.subr.mxu0 0.0
  %367 = vmatpush1.msra.mxu0 0.0
  %368 = vmatprep.subr.mxu0 0.0
  %369 = vmatpush1.msra.mxu0 0.0
  %370 = vmatprep.subr.mxu0 0.0
  %371 = vmatpush1.msra.mxu0 0.0
  %372 = vmatprep.subr.mxu0 0.0
  %373 = vmatpush1.msra.mxu0 0.0
  %374 = vmatprep.subr.mxu0 0.0
  %375 = vmatpush1.msra.mxu0 0.0
  %376 = vmatprep.mubr.f32.mxu0 0.0
  %377 = vmatmul.mubr.f32.gmra.mrb[0].mxu0 %v117
  %v378 = vpop.f32.mrb[0].mxu0
  %v379 = vadd.f32 %v113, %v378
  %v380 = vpop.f32.mrb[0].mxu0
  %381 = vmatprep.mubr.f32.mxu0 0.0
  %382 = vmatmul.mubr.f32.gmra.mrb[0].mxu0 %v120
  %v383 = vpop.f32.mrb[0].mxu0
  %v384 = vadd.f32 %v113, %v383
  %v385 = vpop.f32.mrb[0].mxu0
  %386 = vmatprep.mubr.f32.mxu0 0.0
  %387 = vmatmul.mubr.f32.gmra.mrb[0].mxu0 %v123
  %v388 = vpop.f32.mrb[0].mxu0
  %v389 = vadd.f32 %v113, %v388
  %v390 = vpop.f32.mrb[0].mxu0
  %391 = vmatprep.mubr.f32.mxu0 0.0
  %392 = vmatmul.mubr.f32.gmra.mrb[0].mxu0 %v126
  %v393 = vpop.f32.mrb[0].mxu0
  %v394 = vadd.f32 %v113, %v393
  %v395 = vpop.f32.mrb[0].mxu0
  %396 = vmatprep.mubr.f32.mxu0 0.0
  %397 = vmatmul.mubr.f32.gmra.mrb[0].mxu0 %v129
  %v398 = vpop.f32.mrb[0].mxu0
  %v399 = vadd.f32 %v113, %v398
  %v400 = vpop.f32.mrb[0].mxu0
  %401 = vmatprep.mubr.f32.mxu0 0.0
  %402 = vmatmul.mubr.f32.gmra.mrb[0].mxu0 %v132
  %v403 = vpop.f32.mrb[0].mxu0
  %v404 = vadd.f32 %v113, %v403
  %v405 = vpop.f32.mrb[0].mxu0
  %406 = vmatprep.mubr.f32.mxu0 0.0
  %407 = vmatmul.mubr.f32.gmra.mrb[0].mxu0 %v135
  %v408 = vpop.f32.mrb[0].mxu0
  %v409 = vadd.f32 %v113, %v408
  %v410 = vpop.f32.mrb[0].mxu0
  %411 = vmatprep.mubr.f32.mxu0 0.0
  %412 = vmatmul.mubr.f32.gmra.mrb[0].mxu0 %v138
  %v413 = vpop.f32.mrb[0].mxu0
  %v414 = vadd.f32 %v113, %v413
  %v415 = vpop.f32.mrb[0].mxu0
  %416 = vmatprep.mubr.f32.mxu0 0.0
  %417 = vmatmul.mubr.f32.gmra.mrb[0].mxu0 %v141
  %v418 = vpop.f32.mrb[0].mxu0
  %v419 = vadd.f32 %v113, %v418
  %v420 = vpop.f32.mrb[0].mxu0
  %421 = vmatprep.mubr.f32.mxu0 0.0
  %422 = vmatmul.mubr.f32.gmra.mrb[0].mxu0 %v144
  %v423 = vpop.f32.mrb[0].mxu0
  %v424 = vadd.f32 %v113, %v423
  %v425 = vpop.f32.mrb[0].mxu0
  %426 = vmatprep.mubr.f32.mxu0 0.0
  %427 = vmatmul.mubr.f32.gmra.mrb[0].mxu0 %v147
  %v428 = vpop.f32.mrb[0].mxu0
  %v429 = vadd.f32 %v113, %v428
  %v430 = vpop.f32.mrb[0].mxu0
  %431 = vmatprep.mubr.f32.mxu0 0.0
  %432 = vmatmul.mubr.f32.gmra.mrb[0].mxu0 %v150
  %v433 = vpop.f32.mrb[0].mxu0
  %v434 = vadd.f32 %v113, %v433
  %v435 = vpop.f32.mrb[0].mxu0
  %436 = vmatprep.mubr.f32.mxu0 0.0
  %437 = vmatmul.mubr.f32.gmra.mrb[0].mxu0 %v153
  %v438 = vpop.f32.mrb[0].mxu0
  %v439 = vadd.f32 %v113, %v438
  %v440 = vpop.f32.mrb[0].mxu0
  %441 = vmatprep.mubr.f32.mxu0 0.0
  %442 = vmatmul.mubr.f32.gmra.mrb[0].mxu0 %v156
  %v443 = vpop.f32.mrb[0].mxu0
  %v444 = vadd.f32 %v113, %v443
  %v445 = vpop.f32.mrb[0].mxu0
  %446 = vmatprep.mubr.f32.mxu0 0.0
  %447 = vmatmul.mubr.f32.gmra.mrb[0].mxu0 %v159
  %v448 = vpop.f32.mrb[0].mxu0
  %v449 = vadd.f32 %v113, %v448
  %v450 = vpop.f32.mrb[0].mxu0
  %451 = vmatprep.mubr.f32.mxu0 0.0
  %452 = vmatmul.mubr.f32.gmra.mrb[0].mxu0 %v162
  %v453 = vpop.f32.mrb[0].mxu0
  %v454 = vadd.f32 %v113, %v453
  %v455 = vpop.f32.mrb[0].mxu0
  %456 = vmatprep.mubr.f32.mxu0 0.0
  %457 = vmatmul.mubr.f32.gmra.mrb[0].mxu0 %v165
  %v458 = vpop.f32.mrb[0].mxu0
  %v459 = vadd.f32 %v113, %v458
  %v460 = vpop.f32.mrb[0].mxu0
  %461 = vmatprep.mubr.f32.mxu0 0.0
  %462 = vmatmul.mubr.f32.gmra.mrb[0].mxu0 %v168
  %v463 = vpop.f32.mrb[0].mxu0
  %v464 = vadd.f32 %v113, %v463
  %v465 = vpop.f32.mrb[0].mxu0
  %466 = vmatprep.mubr.f32.mxu0 0.0
  %467 = vmatmul.mubr.f32.gmra.mrb[0].mxu0 %v171
  %v468 = vpop.f32.mrb[0].mxu0
  %v469 = vadd.f32 %v113, %v468
  %v470 = vpop.f32.mrb[0].mxu0
  %471 = vmatprep.mubr.f32.mxu0 0.0
  %472 = vmatmul.mubr.f32.gmra.mrb[0].mxu0 %v174
  %v473 = vpop.f32.mrb[0].mxu0
  %v474 = vadd.f32 %v113, %v473
  %v475 = vpop.f32.mrb[0].mxu0
  %476 = vmatprep.mubr.f32.mxu0 0.0
  %477 = vmatmul.mubr.f32.gmra.mrb[0].mxu0 %v177
  %v478 = vpop.f32.mrb[0].mxu0
  %v479 = vadd.f32 %v113, %v478
  %v480 = vpop.f32.mrb[0].mxu0
  %481 = vmatprep.mubr.f32.mxu0 0.0
  %482 = vmatmul.mubr.f32.gmra.mrb[0].mxu0 %v180
  %v483 = vpop.f32.mrb[0].mxu0
  %v484 = vadd.f32 %v113, %v483
  %v485 = vpop.f32.mrb[0].mxu0
  %486 = vmatprep.mubr.f32.mxu0 0.0
  %487 = vmatmul.mubr.f32.gmra.mrb[0].mxu0 %v183
  %v488 = vpop.f32.mrb[0].mxu0
  %v489 = vadd.f32 %v113, %v488
  %v490 = vpop.f32.mrb[0].mxu0
  %491 = vmatprep.mubr.f32.mxu0 0.0
  %492 = vmatmul.mubr.f32.gmra.mrb[0].mxu0 %v186
  %v493 = vpop.f32.mrb[0].mxu0
  %v494 = vadd.f32 %v113, %v493
  %v495 = vpop.f32.mrb[0].mxu0
  %496 = vmatprep.mubr.f32.mxu0 0.0
  %497 = vmatmul.mubr.f32.gmra.mrb[0].mxu0 %v189
  %v498 = vpop.f32.mrb[0].mxu0
  %v499 = vadd.f32 %v113, %v498
  %v500 = vpop.f32.mrb[0].mxu0
  %501 = vmatprep.mubr.f32.mxu0 0.0
  %502 = vmatmul.mubr.f32.gmra.mrb[0].mxu0 %v192
  %v503 = vpop.f32.mrb[0].mxu0
  %v504 = vadd.f32 %v113, %v503
  %v505 = vpop.f32.mrb[0].mxu0
  %506 = vmatprep.mubr.f32.mxu0 0.0
  %507 = vmatmul.mubr.f32.gmra.mrb[0].mxu0 %v195
  %v508 = vpop.f32.mrb[0].mxu0
  %v509 = vadd.f32 %v113, %v508
  %v510 = vpop.f32.mrb[0].mxu0
  %511 = vmatprep.mubr.f32.mxu0 0.0
  %512 = vmatmul.mubr.f32.gmra.mrb[0].mxu0 %v198
  %v513 = vpop.f32.mrb[0].mxu0
  %v514 = vadd.f32 %v113, %v513
  %v515 = vpop.f32.mrb[0].mxu0
  %516 = vmatprep.mubr.f32.mxu0 0.0
  %517 = vmatmul.mubr.f32.gmra.mrb[0].mxu0 %v201
  %v518 = vpop.f32.mrb[0].mxu0
  %v519 = vadd.f32 %v113, %v518
  %v520 = vpop.f32.mrb[0].mxu0
  %521 = vmatprep.mubr.f32.mxu0 0.0
  %522 = vmatmul.mubr.f32.gmra.mrb[0].mxu0 %v204
  %v523 = vpop.f32.mrb[0].mxu0
  %v524 = vadd.f32 %v113, %v523
  %v525 = vpop.f32.mrb[0].mxu0
  %526 = vmatprep.mubr.f32.mxu0 0.0
  %527 = vmatmul.mubr.f32.gmra.mrb[0].mxu0 %v207
  %v528 = vpop.f32.mrb[0].mxu0
  %v529 = vadd.f32 %v113, %v528
  %v530 = vpop.f32.mrb[0].mxu0
  %531 = vmatprep.mubr.f32.mxu0 0.0
  %532 = vmatmul.mubr.f32.gmra.mrb[0].mxu0 %v210
  %v533 = vpop.f32.mrb[0].mxu0
  %v534 = vadd.f32 %v113, %v533
  %v535 = vpop.f32.mrb[0].mxu0
  %536 = vmatprep.mubr.f32.mxu0 0.0
  %537 = vmatmul.mubr.f32.gmra.mrb[0].mxu0 %v213
  %v538 = vpop.f32.mrb[0].mxu0
  %v539 = vadd.f32 %v113, %v538
  %v540 = vpop.f32.mrb[0].mxu0
  %541 = vmatprep.mubr.f32.mxu0 0.0
  %542 = vmatmul.mubr.f32.gmra.mrb[0].mxu0 %v216
  %v543 = vpop.f32.mrb[0].mxu0
  %v544 = vadd.f32 %v113, %v543
  %v545 = vpop.f32.mrb[0].mxu0
  %546 = vmatprep.mubr.f32.mxu0 0.0
  %547 = vmatmul.mubr.f32.gmra.mrb[0].mxu0 %v219
  %v548 = vpop.f32.mrb[0].mxu0
  %v549 = vadd.f32 %v113, %v548
  %v550 = vpop.f32.mrb[0].mxu0
  %551 = vmatprep.mubr.f32.mxu0 0.0
  %552 = vmatmul.mubr.f32.gmra.mrb[0].mxu0 %v222
  %v553 = vpop.f32.mrb[0].mxu0
  %v554 = vadd.f32 %v113, %v553
  %v555 = vpop.f32.mrb[0].mxu0
  %556 = vmatprep.mubr.f32.mxu0 0.0
  %557 = vmatmul.mubr.f32.gmra.mrb[0].mxu0 %v225
  %v558 = vpop.f32.mrb[0].mxu0
  %v559 = vadd.f32 %v113, %v558
  %v560 = vpop.f32.mrb[0].mxu0
  %561 = vmatprep.mubr.f32.mxu0 0.0
  %562 = vmatmul.mubr.f32.gmra.mrb[0].mxu0 %v228
  %v563 = vpop.f32.mrb[0].mxu0
  %v564 = vadd.f32 %v113, %v563
  %v565 = vpop.f32.mrb[0].mxu0
  %566 = vmatprep.mubr.f32.mxu0 0.0
  %567 = vmatmul.mubr.f32.gmra.mrb[0].mxu0 %v231
  %v568 = vpop.f32.mrb[0].mxu0
  %v569 = vadd.f32 %v113, %v568
  %v570 = vpop.f32.mrb[0].mxu0
  %571 = vmatprep.mubr.f32.mxu0 0.0
  %572 = vmatmul.mubr.f32.gmra.mrb[0].mxu0 %v234
  %v573 = vpop.f32.mrb[0].mxu0
  %v574 = vadd.f32 %v113, %v573
  %v575 = vpop.f32.mrb[0].mxu0
  %576 = vmatprep.mubr.f32.mxu0 0.0
  %577 = vmatmul.mubr.f32.gmra.mrb[0].mxu0 %v237
  %v578 = vpop.f32.mrb[0].mxu0
  %v579 = vadd.f32 %v113, %v578
  %v580 = vpop.f32.mrb[0].mxu0
  %581 = vmatprep.mubr.f32.mxu0 0.0
  %582 = vmatmul.mubr.f32.gmra.mrb[0].mxu0 %v240
  %v583 = vpop.f32.mrb[0].mxu0
  %v584 = vadd.f32 %v113, %v583
  %v585 = vpop.f32.mrb[0].mxu0
  %586 = vmatprep.mubr.f32.mxu0 0.0
  %587 = vmatmul.mubr.f32.gmra.mrb[0].mxu0 %v243
  %v588 = vpop.f32.mrb[0].mxu0
  %v589 = vadd.f32 %v113, %v588
  %v590 = vpop.f32.mrb[0].mxu0
  %591 = vmatprep.mubr.f32.mxu0 0.0
  %592 = vmatmul.mubr.f32.gmra.mrb[0].mxu0 %v246
  %v593 = vpop.f32.mrb[0].mxu0
  %v594 = vadd.f32 %v113, %v593
  %v595 = vpop.f32.mrb[0].mxu0
  %596 = vmatprep.mubr.f32.mxu0 0.0
  %597 = vmatmul.mubr.f32.gmra.mrb[0].mxu0 %v249
  %v598 = vpop.f32.mrb[0].mxu0
  %v599 = vadd.f32 %v113, %v598
  %v600 = vpop.f32.mrb[0].mxu0
  %601 = vmatprep.mubr.f32.mxu0 0.0
  %602 = vmatmul.mubr.f32.gmra.mrb[0].mxu0 %v252
  %v603 = vpop.f32.mrb[0].mxu0
  %v604 = vadd.f32 %v113, %v603
  %v605 = vpop.f32.mrb[0].mxu0
  %606 = vmatprep.mubr.f32.mxu0 0.0
  %607 = vmatmul.mubr.f32.gmra.mrb[0].mxu0 %v255
  %v608 = vpop.f32.mrb[0].mxu0
  %v609 = vadd.f32 %v113, %v608
  %v610 = vpop.f32.mrb[0].mxu0
  %611 = vmatprep.mubr.f32.mxu0 0.0
  %612 = vmatmul.mubr.f32.gmra.mrb[0].mxu0 %v258
  %v613 = vpop.f32.mrb[0].mxu0
  %v614 = vadd.f32 %v113, %v613
  %v615 = vpop.f32.mrb[0].mxu0
  %616 = vmatprep.mubr.f32.mxu0 0.0
  %617 = vmatmul.mubr.f32.gmra.mrb[0].mxu0 %v261
  %v618 = vpop.f32.mrb[0].mxu0
  %v619 = vadd.f32 %v113, %v618
  %v620 = vpop.f32.mrb[0].mxu0
  %621 = vmatprep.mubr.f32.mxu0 0.0
  %622 = vmatmul.mubr.f32.gmra.mrb[0].mxu0 %v264
  %v623 = vpop.f32.mrb[0].mxu0
  %v624 = vadd.f32 %v113, %v623
  %v625 = vpop.f32.mrb[0].mxu0
  %626 = vmatprep.mubr.f32.mxu0 0.0
  %627 = vmatmul.mubr.f32.gmra.mrb[0].mxu0 %v267
  %v628 = vpop.f32.mrb[0].mxu0
  %v629 = vadd.f32 %v113, %v628
  %v630 = vpop.f32.mrb[0].mxu0
  %631 = vmatprep.mubr.f32.mxu0 0.0
  %632 = vmatmul.mubr.f32.gmra.mrb[0].mxu0 %v270
  %v633 = vpop.f32.mrb[0].mxu0
  %v634 = vadd.f32 %v113, %v633
  %v635 = vpop.f32.mrb[0].mxu0
  %636 = vmatprep.mubr.f32.mxu0 0.0
  %637 = vmatmul.mubr.f32.gmra.mrb[0].mxu0 %v273
  %v638 = vpop.f32.mrb[0].mxu0
  %v639 = vadd.f32 %v113, %v638
  %v640 = vpop.f32.mrb[0].mxu0
  %641 = vmatprep.mubr.f32.mxu0 0.0
  %642 = vmatmul.mubr.f32.gmra.mrb[0].mxu0 %v276
  %v643 = vpop.f32.mrb[0].mxu0
  %v644 = vadd.f32 %v113, %v643
  %v645 = vpop.f32.mrb[0].mxu0
  %646 = vmatprep.mubr.f32.mxu0 0.0
  %647 = vmatmul.mubr.f32.gmra.mrb[0].mxu0 %v279
  %v648 = vpop.f32.mrb[0].mxu0
  %v649 = vadd.f32 %v113, %v648
  %v650 = vpop.f32.mrb[0].mxu0
  %651 = vmatprep.mubr.f32.mxu0 0.0
  %652 = vmatmul.mubr.f32.gmra.mrb[0].mxu0 %v282
  %v653 = vpop.f32.mrb[0].mxu0
  %v654 = vadd.f32 %v113, %v653
  %v655 = vpop.f32.mrb[0].mxu0
  %656 = vmatprep.mubr.f32.mxu0 0.0
  %657 = vmatmul.mubr.f32.gmra.mrb[0].mxu0 %v285
  %v658 = vpop.f32.mrb[0].mxu0
  %v659 = vadd.f32 %v113, %v658
  %v660 = vpop.f32.mrb[0].mxu0
  %661 = vmatprep.mubr.f32.mxu0 0.0
  %662 = vmatmul.mubr.f32.gmra.mrb[0].mxu0 %v288
  %v663 = vpop.f32.mrb[0].mxu0
  %v664 = vadd.f32 %v113, %v663
  %v665 = vpop.f32.mrb[0].mxu0
  %666 = vmatprep.mubr.f32.mxu0 0.0
  %667 = vmatmul.mubr.f32.gmra.mrb[0].mxu0 %v291
  %v668 = vpop.f32.mrb[0].mxu0
  %v669 = vadd.f32 %v113, %v668
  %v670 = vpop.f32.mrb[0].mxu0
  %671 = vmatprep.mubr.f32.mxu0 0.0
  %672 = vmatmul.mubr.f32.gmra.mrb[0].mxu0 %v294
  %v673 = vpop.f32.mrb[0].mxu0
  %v674 = vadd.f32 %v113, %v673
  %v675 = vpop.f32.mrb[0].mxu0
  %676 = vmatprep.mubr.f32.mxu0 0.0
  %677 = vmatmul.mubr.f32.gmra.mrb[0].mxu0 %v297
  %v678 = vpop.f32.mrb[0].mxu0
  %v679 = vadd.f32 %v113, %v678
  %v680 = vpop.f32.mrb[0].mxu0
  %681 = vmatprep.mubr.f32.mxu0 0.0
  %682 = vmatmul.mubr.f32.gmra.mrb[0].mxu0 %v300
  %v683 = vpop.f32.mrb[0].mxu0
  %v684 = vadd.f32 %v113, %v683
  %v685 = vpop.f32.mrb[0].mxu0
  %686 = vmatprep.mubr.f32.mxu0 0.0
  %687 = vmatmul.mubr.f32.gmra.mrb[0].mxu0 %v303
  %v688 = vpop.f32.mrb[0].mxu0
  %v689 = vadd.f32 %v113, %v688
  %v690 = vpop.f32.mrb[0].mxu0
  %691 = vmatprep.mubr.f32.mxu0 0.0
  %692 = vmatmul.mubr.f32.gmra.mrb[0].mxu0 %v306
  %v693 = vpop.f32.mrb[0].mxu0
  %v694 = vadd.f32 %v113, %v693
  %v695 = vpop.f32.mrb[0].mxu0
  %696 = vdwg.mxu0
  %v697 = vmax.f32 %v379, 0.0
  %v698 = vmax.f32 %v384, 0.0
  %v699 = vmax.f32 %v389, 0.0
  %v700 = vmax.f32 %v394, 0.0
  %v701 = vmax.f32 %v399, 0.0
  %v702 = vmax.f32 %v404, 0.0
  %v703 = vmax.f32 %v409, 0.0
  %v704 = vmax.f32 %v414, 0.0
  %v705 = vmax.f32 %v419, 0.0
  %v706 = vmax.f32 %v424, 0.0
  %v707 = vmax.f32 %v429, 0.0
  %v708 = vmax.f32 %v434, 0.0
  %v709 = vmax.f32 %v439, 0.0
  %v710 = vmax.f32 %v444, 0.0
  %v711 = vmax.f32 %v449, 0.0
  %v712 = vmax.f32 %v454, 0.0
  %v713 = vmax.f32 %v459, 0.0
  %v714 = vmax.f32 %v464, 0.0
  %v715 = vmax.f32 %v469, 0.0
  %v716 = vmax.f32 %v474, 0.0
  %v717 = vmax.f32 %v479, 0.0
  %v718 = vmax.f32 %v484, 0.0
  %v719 = vmax.f32 %v489, 0.0
  %v720 = vmax.f32 %v494, 0.0
  %v721 = vmax.f32 %v499, 0.0
  %v722 = vmax.f32 %v504, 0.0
  %v723 = vmax.f32 %v509, 0.0
  %v724 = vmax.f32 %v514, 0.0
  %v725 = vmax.f32 %v519, 0.0
  %v726 = vmax.f32 %v524, 0.0
  %v727 = vmax.f32 %v529, 0.0
  %v728 = vmax.f32 %v534, 0.0
  %v729 = vmax.f32 %v539, 0.0
  %v730 = vmax.f32 %v544, 0.0
  %v731 = vmax.f32 %v549, 0.0
  %v732 = vmax.f32 %v554, 0.0
  %v733 = vmax.f32 %v559, 0.0
  %v734 = vmax.f32 %v564, 0.0
  %v735 = vmax.f32 %v569, 0.0
  %v736 = vmax.f32 %v574, 0.0
  %v737 = vmax.f32 %v579, 0.0
  %v738 = vmax.f32 %v584, 0.0
  %v739 = vmax.f32 %v589, 0.0
  %v740 = vmax.f32 %v594, 0.0
  %v741 = vmax.f32 %v599, 0.0
  %v742 = vmax.f32 %v604, 0.0
  %v743 = vmax.f32 %v609, 0.0
  %v744 = vmax.f32 %v614, 0.0
  %v745 = vmax.f32 %v619, 0.0
  %v746 = vmax.f32 %v624, 0.0
  %v747 = vmax.f32 %v629, 0.0
  %v748 = vmax.f32 %v634, 0.0
  %v749 = vmax.f32 %v639, 0.0
  %v750 = vmax.f32 %v644, 0.0
  %v751 = vmax.f32 %v649, 0.0
  %v752 = vmax.f32 %v654, 0.0
  %v753 = vmax.f32 %v659, 0.0
  %v754 = vmax.f32 %v664, 0.0
  %v755 = vmax.f32 %v669, 0.0
  %v756 = vmax.f32 %v674, 0.0
  %v757 = vmax.f32 %v679, 0.0
  %v758 = vmax.f32 %v684, 0.0
  %v759 = vmax.f32 %v689, 0.0
  %v760 = vmax.f32 %v694, 0.0
  %v761 = vrot.slane %v697, 1
  %v762 = vrot.slane %v698, 1
  %v763 = vrot.slane %v699, 1
  %v764 = vrot.slane %v700, 1
  %v765 = vrot.slane %v701, 1
  %v766 = vrot.slane %v702, 1
  %v767 = vrot.slane %v703, 1
  %v768 = vrot.slane %v704, 1
  %v769 = vrot.slane %v705, 1
  %v770 = vrot.slane %v706, 1
  %v771 = vrot.slane %v707, 1
  %v772 = vrot.slane %v708, 1
  %v773 = vrot.slane %v709, 1
  %v774 = vrot.slane %v710, 1
  %v775 = vrot.slane %v711, 1
  %v776 = vrot.slane %v712, 1
  %v777 = vrot.slane %v713, 1
  %v778 = vrot.slane %v714, 1
  %v779 = vrot.slane %v715, 1
  %v780 = vrot.slane %v716, 1
  %v781 = vrot.slane %v717, 1
  %v782 = vrot.slane %v718, 1
  %v783 = vrot.slane %v719, 1
  %v784 = vrot.slane %v720, 1
  %v785 = vrot.slane %v721, 1
  %v786 = vrot.slane %v722, 1
  %v787 = vrot.slane %v723, 1
  %v788 = vrot.slane %v724, 1
  %v789 = vrot.slane %v725, 1
  %v790 = vrot.slane %v726, 1
  %v791 = vrot.slane %v727, 1
  %v792 = vrot.slane %v728, 1
  %v793 = vrot.slane %v729, 1
  %v794 = vrot.slane %v730, 1
  %v795 = vrot.slane %v731, 1
  %v796 = vrot.slane %v732, 1
  %v797 = vrot.slane %v733, 1
  %v798 = vrot.slane %v734, 1
  %v799 = vrot.slane %v735, 1
  %v800 = vrot.slane %v736, 1
  %v801 = vrot.slane %v737, 1
  %v802 = vrot.slane %v738, 1
  %v803 = vrot.slane %v739, 1
  %v804 = vrot.slane %v740, 1
  %v805 = vrot.slane %v741, 1
  %v806 = vrot.slane %v742, 1
  %v807 = vrot.slane %v743, 1
  %v808 = vrot.slane %v744, 1
  %v809 = vrot.slane %v745, 1
  %v810 = vrot.slane %v746, 1
  %v811 = vrot.slane %v747, 1
  %v812 = vrot.slane %v748, 1
  %v813 = vrot.slane %v749, 1
  %v814 = vrot.slane %v750, 1
  %v815 = vrot.slane %v751, 1
  %v816 = vrot.slane %v752, 1
  %v817 = vrot.slane %v753, 1
  %v818 = vrot.slane %v754, 1
  %v819 = vrot.slane %v755, 1
  %v820 = vrot.slane %v756, 1
  %v821 = vrot.slane %v757, 1
  %v822 = vrot.slane %v758, 1
  %v823 = vrot.slane %v759, 1
  %v824 = vrot.slane %v760, 1
  %v825 = vlaneseq
  %v826 = vshrl.u32 %v825, 7
  %vm827 = vcmp.lt.s32.totalorder %v826, 7
  %v828 = vsel %vm827, %v823, %v824
  %v829 = vsel %vm827, %v822, %v823
  %v830 = vsel %vm827, %v821, %v822
  %v831 = vsel %vm827, %v820, %v821
  %v832 = vsel %vm827, %v819, %v820
  %v833 = vsel %vm827, %v818, %v819
  %v834 = vsel %vm827, %v817, %v818
  %v835 = vsel %vm827, %v816, %v817
  %v836 = vsel %vm827, %v815, %v816
  %v837 = vsel %vm827, %v814, %v815
  %v838 = vsel %vm827, %v813, %v814
  %v839 = vsel %vm827, %v812, %v813
  %v840 = vsel %vm827, %v811, %v812
  %v841 = vsel %vm827, %v810, %v811
  %v842 = vsel %vm827, %v809, %v810
  %v843 = vsel %vm827, %v808, %v809
  %v844 = vsel %vm827, %v807, %v808
  %v845 = vsel %vm827, %v806, %v807
  %v846 = vsel %vm827, %v805, %v806
  %v847 = vsel %vm827, %v804, %v805
  %v848 = vsel %vm827, %v803, %v804
  %v849 = vsel %vm827, %v802, %v803
  %v850 = vsel %vm827, %v801, %v802
  %v851 = vsel %vm827, %v800, %v801
  %v852 = vsel %vm827, %v799, %v800
  %v853 = vsel %vm827, %v798, %v799
  %v854 = vsel %vm827, %v797, %v798
  %v855 = vsel %vm827, %v796, %v797
  %v856 = vsel %vm827, %v795, %v796
  %v857 = vsel %vm827, %v794, %v795
  %v858 = vsel %vm827, %v793, %v794
  %v859 = vsel %vm827, %v792, %v793
  %v860 = vsel %vm827, %v791, %v792
  %v861 = vsel %vm827, %v790, %v791
  %v862 = vsel %vm827, %v789, %v790
  %v863 = vsel %vm827, %v788, %v789
  %v864 = vsel %vm827, %v787, %v788
  %v865 = vsel %vm827, %v786, %v787
  %v866 = vsel %vm827, %v785, %v786
  %v867 = vsel %vm827, %v784, %v785
  %v868 = vsel %vm827, %v783, %v784
  %v869 = vsel %vm827, %v782, %v783
  %v870 = vsel %vm827, %v781, %v782
  %v871 = vsel %vm827, %v780, %v781
  %v872 = vsel %vm827, %v779, %v780
  %v873 = vsel %vm827, %v778, %v779
  %v874 = vsel %vm827, %v777, %v778
  %v875 = vsel %vm827, %v776, %v777
  %v876 = vsel %vm827, %v775, %v776
  %v877 = vsel %vm827, %v774, %v775
  %v878 = vsel %vm827, %v773, %v774
  %v879 = vsel %vm827, %v772, %v773
  %v880 = vsel %vm827, %v771, %v772
  %v881 = vsel %vm827, %v770, %v771
  %v882 = vsel %vm827, %v769, %v770
  %v883 = vsel %vm827, %v768, %v769
  %v884 = vsel %vm827, %v767, %v768
  %v885 = vsel %vm827, %v766, %v767
  %v886 = vsel %vm827, %v765, %v766
  %v887 = vsel %vm827, %v764, %v765
  %v888 = vsel %vm827, %v763, %v764
  %v889 = vsel %vm827, %v762, %v763
  %v890 = vsel %vm827, %v761, %v762
  %v891 = vsel %vm827, %v824, %v761
  %v892 = vrot.slane %v697, 2
  %v893 = vrot.slane %v698, 2
  %v894 = vrot.slane %v699, 2
  %v895 = vrot.slane %v700, 2
  %v896 = vrot.slane %v701, 2
  %v897 = vrot.slane %v702, 2
  %v898 = vrot.slane %v703, 2
  %v899 = vrot.slane %v704, 2
  %v900 = vrot.slane %v705, 2
  %v901 = vrot.slane %v706, 2
  %v902 = vrot.slane %v707, 2
  %v903 = vrot.slane %v708, 2
  %v904 = vrot.slane %v709, 2
  %v905 = vrot.slane %v710, 2
  %v906 = vrot.slane %v711, 2
  %v907 = vrot.slane %v712, 2
  %v908 = vrot.slane %v713, 2
  %v909 = vrot.slane %v714, 2
  %v910 = vrot.slane %v715, 2
  %v911 = vrot.slane %v716, 2
  %v912 = vrot.slane %v717, 2
  %v913 = vrot.slane %v718, 2
  %v914 = vrot.slane %v719, 2
  %v915 = vrot.slane %v720, 2
  %v916 = vrot.slane %v721, 2
  %v917 = vrot.slane %v722, 2
  %v918 = vrot.slane %v723, 2
  %v919 = vrot.slane %v724, 2
  %v920 = vrot.slane %v725, 2
  %v921 = vrot.slane %v726, 2
  %v922 = vrot.slane %v727, 2
  %v923 = vrot.slane %v728, 2
  %v924 = vrot.slane %v729, 2
  %v925 = vrot.slane %v730, 2
  %v926 = vrot.slane %v731, 2
  %v927 = vrot.slane %v732, 2
  %v928 = vrot.slane %v733, 2
  %v929 = vrot.slane %v734, 2
  %v930 = vrot.slane %v735, 2
  %v931 = vrot.slane %v736, 2
  %v932 = vrot.slane %v737, 2
  %v933 = vrot.slane %v738, 2
  %v934 = vrot.slane %v739, 2
  %v935 = vrot.slane %v740, 2
  %v936 = vrot.slane %v741, 2
  %v937 = vrot.slane %v742, 2
  %v938 = vrot.slane %v743, 2
  %v939 = vrot.slane %v744, 2
  %v940 = vrot.slane %v745, 2
  %v941 = vrot.slane %v746, 2
  %v942 = vrot.slane %v747, 2
  %v943 = vrot.slane %v748, 2
  %v944 = vrot.slane %v749, 2
  %v945 = vrot.slane %v750, 2
  %v946 = vrot.slane %v751, 2
  %v947 = vrot.slane %v752, 2
  %v948 = vrot.slane %v753, 2
  %v949 = vrot.slane %v754, 2
  %v950 = vrot.slane %v755, 2
  %v951 = vrot.slane %v756, 2
  %v952 = vrot.slane %v757, 2
  %v953 = vrot.slane %v758, 2
  %v954 = vrot.slane %v759, 2
  %v955 = vrot.slane %v760, 2
  %vm956 = vcmp.lt.s32.totalorder %v826, 6
  %v957 = vsel %vm956, %v954, %v955
  %v958 = vsel %vm956, %v953, %v954
  %v959 = vsel %vm956, %v952, %v953
  %v960 = vsel %vm956, %v951, %v952
  %v961 = vsel %vm956, %v950, %v951
  %v962 = vsel %vm956, %v949, %v950
  %v963 = vsel %vm956, %v948, %v949
  %v964 = vsel %vm956, %v947, %v948
  %v965 = vsel %vm956, %v946, %v947
  %v966 = vsel %vm956, %v945, %v946
  %v967 = vsel %vm956, %v944, %v945
  %v968 = vsel %vm956, %v943, %v944
  %v969 = vsel %vm956, %v942, %v943
  %v970 = vsel %vm956, %v941, %v942
  %v971 = vsel %vm956, %v940, %v941
  %v972 = vsel %vm956, %v939, %v940
  %v973 = vsel %vm956, %v938, %v939
  %v974 = vsel %vm956, %v937, %v938
  %v975 = vsel %vm956, %v936, %v937
  %v976 = vsel %vm956, %v935, %v936
  %v977 = vsel %vm956, %v934, %v935
  %v978 = vsel %vm956, %v933, %v934
  %v979 = vsel %vm956, %v932, %v933
  %v980 = vsel %vm956, %v931, %v932
  %v981 = vsel %vm956, %v930, %v931
  %v982 = vsel %vm956, %v929, %v930
  %v983 = vsel %vm956, %v928, %v929
  %v984 = vsel %vm956, %v927, %v928
  %v985 = vsel %vm956, %v926, %v927
  %v986 = vsel %vm956, %v925, %v926
  %v987 = vsel %vm956, %v924, %v925
  %v988 = vsel %vm956, %v923, %v924
  %v989 = vsel %vm956, %v922, %v923
  %v990 = vsel %vm956, %v921, %v922
  %v991 = vsel %vm956, %v920, %v921
  %v992 = vsel %vm956, %v919, %v920
  %v993 = vsel %vm956, %v918, %v919
  %v994 = vsel %vm956, %v917, %v918
  %v995 = vsel %vm956, %v916, %v917
  %v996 = vsel %vm956, %v915, %v916
  %v997 = vsel %vm956, %v914, %v915
  %v998 = vsel %vm956, %v913, %v914
  %v999 = vsel %vm956, %v912, %v913
  %v1000 = vsel %vm956, %v911, %v912
  %v1001 = vsel %vm956, %v910, %v911
  %v1002 = vsel %vm956, %v909, %v910
  %v1003 = vsel %vm956, %v908, %v909
  %v1004 = vsel %vm956, %v907, %v908
  %v1005 = vsel %vm956, %v906, %v907
  %v1006 = vsel %vm956, %v905, %v906
  %v1007 = vsel %vm956, %v904, %v905
  %v1008 = vsel %vm956, %v903, %v904
  %v1009 = vsel %vm956, %v902, %v903
  %v1010 = vsel %vm956, %v901, %v902
  %v1011 = vsel %vm956, %v900, %v901
  %v1012 = vsel %vm956, %v899, %v900
  %v1013 = vsel %vm956, %v898, %v899
  %v1014 = vsel %vm956, %v897, %v898
  %v1015 = vsel %vm956, %v896, %v897
  %v1016 = vsel %vm956, %v895, %v896
  %v1017 = vsel %vm956, %v894, %v895
  %v1018 = vsel %vm956, %v893, %v894
  %v1019 = vsel %vm956, %v892, %v893
  %v1020 = vsel %vm956, %v955, %v892
  %1085 = vrot.lane.b32.xlu0 %v890, 32
  %v1086 = vpop.permute.xlu0 %1085
  %1087 = vrot.lane.b32.xlu0 %v889, 32
  %v1088 = vpop.permute.xlu0 %1087
  %1089 = vrot.lane.b32.xlu0 %v888, 32
  %v1090 = vpop.permute.xlu0 %1089
  %1091 = vrot.lane.b32.xlu0 %v887, 32
  %v1092 = vpop.permute.xlu0 %1091
  %1093 = vrot.lane.b32.xlu0 %v886, 32
  %v1094 = vpop.permute.xlu0 %1093
  %1095 = vrot.lane.b32.xlu0 %v885, 32
  %v1096 = vpop.permute.xlu0 %1095
  %1097 = vrot.lane.b32.xlu0 %v884, 32
  %v1098 = vpop.permute.xlu0 %1097
  %1099 = vrot.lane.b32.xlu0 %v883, 32
  %v1100 = vpop.permute.xlu0 %1099
  %1101 = vrot.lane.b32.xlu0 %v882, 32
  %v1102 = vpop.permute.xlu0 %1101
  %1103 = vrot.lane.b32.xlu0 %v881, 32
  %v1104 = vpop.permute.xlu0 %1103
  %1105 = vrot.lane.b32.xlu0 %v880, 32
  %v1106 = vpop.permute.xlu0 %1105
  %1107 = vrot.lane.b32.xlu0 %v879, 32
  %v1108 = vpop.permute.xlu0 %1107
  %1109 = vrot.lane.b32.xlu0 %v878, 32
  %v1110 = vpop.permute.xlu0 %1109
  %1111 = vrot.lane.b32.xlu0 %v877, 32
  %v1112 = vpop.permute.xlu0 %1111
  %1113 = vrot.lane.b32.xlu0 %v876, 32
  %v1114 = vpop.permute.xlu0 %1113
  %1115 = vrot.lane.b32.xlu0 %v875, 32
  %v1116 = vpop.permute.xlu0 %1115
  %1117 = vrot.lane.b32.xlu0 %v874, 32
  %v1118 = vpop.permute.xlu0 %1117
  %1119 = vrot.lane.b32.xlu0 %v873, 32
  %v1120 = vpop.permute.xlu0 %1119
  %1121 = vrot.lane.b32.xlu0 %v872, 32
  %v1122 = vpop.permute.xlu0 %1121
  %1123 = vrot.lane.b32.xlu0 %v871, 32
  %v1124 = vpop.permute.xlu0 %1123
  %1125 = vrot.lane.b32.xlu0 %v870, 32
  %v1126 = vpop.permute.xlu0 %1125
  %1127 = vrot.lane.b32.xlu0 %v869, 32
  %v1128 = vpop.permute.xlu0 %1127
  %1129 = vrot.lane.b32.xlu0 %v868, 32
  %v1130 = vpop.permute.xlu0 %1129
  %1131 = vrot.lane.b32.xlu0 %v867, 32
  %v1132 = vpop.permute.xlu0 %1131
  %1133 = vrot.lane.b32.xlu0 %v866, 32
  %v1134 = vpop.permute.xlu0 %1133
  %1135 = vrot.lane.b32.xlu0 %v865, 32
  %v1136 = vpop.permute.xlu0 %1135
  %1137 = vrot.lane.b32.xlu0 %v864, 32
  %v1138 = vpop.permute.xlu0 %1137
  %1139 = vrot.lane.b32.xlu0 %v863, 32
  %v1140 = vpop.permute.xlu0 %1139
  %1141 = vrot.lane.b32.xlu0 %v862, 32
  %v1142 = vpop.permute.xlu0 %1141
  %1143 = vrot.lane.b32.xlu0 %v861, 32
  %v1144 = vpop.permute.xlu0 %1143
  %1145 = vrot.lane.b32.xlu0 %v860, 32
  %v1146 = vpop.permute.xlu0 %1145
  %1147 = vrot.lane.b32.xlu0 %v859, 32
  %v1148 = vpop.permute.xlu0 %1147
  %1149 = vrot.lane.b32.xlu0 %v858, 32
  %v1150 = vpop.permute.xlu0 %1149
  %1151 = vrot.lane.b32.xlu0 %v857, 32
  %v1152 = vpop.permute.xlu0 %1151
  %1153 = vrot.lane.b32.xlu0 %v856, 32
  %v1154 = vpop.permute.xlu0 %1153
  %1155 = vrot.lane.b32.xlu0 %v855, 32
  %v1156 = vpop.permute.xlu0 %1155
  %1157 = vrot.lane.b32.xlu0 %v854, 32
  %v1158 = vpop.permute.xlu0 %1157
  %1159 = vrot.lane.b32.xlu0 %v853, 32
  %v1160 = vpop.permute.xlu0 %1159
  %1161 = vrot.lane.b32.xlu0 %v852, 32
  %v1162 = vpop.permute.xlu0 %1161
  %1163 = vrot.lane.b32.xlu0 %v851, 32
  %v1164 = vpop.permute.xlu0 %1163
  %1165 = vrot.lane.b32.xlu0 %v850, 32
  %v1166 = vpop.permute.xlu0 %1165
  %1167 = vrot.lane.b32.xlu0 %v849, 32
  %v1168 = vpop.permute.xlu0 %1167
  %1169 = vrot.lane.b32.xlu0 %v848, 32
  %v1170 = vpop.permute.xlu0 %1169
  %1171 = vrot.lane.b32.xlu0 %v847, 32
  %v1172 = vpop.permute.xlu0 %1171
  %1173 = vrot.lane.b32.xlu0 %v846, 32
  %v1174 = vpop.permute.xlu0 %1173
  %1175 = vrot.lane.b32.xlu0 %v845, 32
  %v1176 = vpop.permute.xlu0 %1175
  %1177 = vrot.lane.b32.xlu0 %v844, 32
  %v1178 = vpop.permute.xlu0 %1177
  %1179 = vrot.lane.b32.xlu0 %v843, 32
  %v1180 = vpop.permute.xlu0 %1179
  %1181 = vrot.lane.b32.xlu0 %v842, 32
  %v1182 = vpop.permute.xlu0 %1181
  %1183 = vrot.lane.b32.xlu0 %v841, 32
  %v1184 = vpop.permute.xlu0 %1183
  %1185 = vrot.lane.b32.xlu0 %v840, 32
  %v1186 = vpop.permute.xlu0 %1185
  %1187 = vrot.lane.b32.xlu0 %v839, 32
  %v1188 = vpop.permute.xlu0 %1187
  %1189 = vrot.lane.b32.xlu0 %v838, 32
  %v1190 = vpop.permute.xlu0 %1189
  %1191 = vrot.lane.b32.xlu0 %v837, 32
  %v1192 = vpop.permute.xlu0 %1191
  %1193 = vrot.lane.b32.xlu0 %v836, 32
  %v1194 = vpop.permute.xlu0 %1193
  %1195 = vrot.lane.b32.xlu0 %v835, 32
  %v1196 = vpop.permute.xlu0 %1195
  %1197 = vrot.lane.b32.xlu0 %v834, 32
  %v1198 = vpop.permute.xlu0 %1197
  %1199 = vrot.lane.b32.xlu0 %v833, 32
  %v1200 = vpop.permute.xlu0 %1199
  %1201 = vrot.lane.b32.xlu0 %v832, 32
  %v1202 = vpop.permute.xlu0 %1201
  %1203 = vrot.lane.b32.xlu0 %v831, 32
  %v1204 = vpop.permute.xlu0 %1203
  %1205 = vrot.lane.b32.xlu0 %v830, 32
  %v1206 = vpop.permute.xlu0 %1205
  %1207 = vrot.lane.b32.xlu0 %v829, 32
  %v1208 = vpop.permute.xlu0 %1207
  %1209 = vrot.lane.b32.xlu0 %v828, 32
  %v1210 = vpop.permute.xlu0 %1209
  %1211 = vrot.lane.b32.xlu0 %v891, 32
  %v1212 = vpop.permute.xlu0 %1211
  %1341 = vrot.lane.b32.xlu0 %v1019, 64
  %v1342 = vpop.permute.xlu0 %1341
  %1343 = vrot.lane.b32.xlu0 %v1018, 64
  %v1344 = vpop.permute.xlu0 %1343
  %1345 = vrot.lane.b32.xlu0 %v1017, 64
  %v1346 = vpop.permute.xlu0 %1345
  %1347 = vrot.lane.b32.xlu0 %v1016, 64
  %v1348 = vpop.permute.xlu0 %1347
  %1349 = vrot.lane.b32.xlu0 %v1015, 64
  %v1350 = vpop.permute.xlu0 %1349
  %1351 = vrot.lane.b32.xlu0 %v1014, 64
  %v1352 = vpop.permute.xlu0 %1351
  %1353 = vrot.lane.b32.xlu0 %v1013, 64
  %v1354 = vpop.permute.xlu0 %1353
  %1355 = vrot.lane.b32.xlu0 %v1012, 64
  %v1356 = vpop.permute.xlu0 %1355
  %1357 = vrot.lane.b32.xlu0 %v1011, 64
  %v1358 = vpop.permute.xlu0 %1357
  %1359 = vrot.lane.b32.xlu0 %v1010, 64
  %v1360 = vpop.permute.xlu0 %1359
  %1361 = vrot.lane.b32.xlu0 %v1009, 64
  %v1362 = vpop.permute.xlu0 %1361
  %1363 = vrot.lane.b32.xlu0 %v1008, 64
  %v1364 = vpop.permute.xlu0 %1363
  %1365 = vrot.lane.b32.xlu0 %v1007, 64
  %v1366 = vpop.permute.xlu0 %1365
  %1367 = vrot.lane.b32.xlu0 %v1006, 64
  %v1368 = vpop.permute.xlu0 %1367
  %1369 = vrot.lane.b32.xlu0 %v1005, 64
  %v1370 = vpop.permute.xlu0 %1369
  %1371 = vrot.lane.b32.xlu0 %v1004, 64
  %v1372 = vpop.permute.xlu0 %1371
  %1373 = vrot.lane.b32.xlu0 %v1003, 64
  %v1374 = vpop.permute.xlu0 %1373
  %1375 = vrot.lane.b32.xlu0 %v1002, 64
  %v1376 = vpop.permute.xlu0 %1375
  %1377 = vrot.lane.b32.xlu0 %v1001, 64
  %v1378 = vpop.permute.xlu0 %1377
  %1379 = vrot.lane.b32.xlu0 %v1000, 64
  %v1380 = vpop.permute.xlu0 %1379
  %1381 = vrot.lane.b32.xlu0 %v999, 64
  %v1382 = vpop.permute.xlu0 %1381
  %1383 = vrot.lane.b32.xlu0 %v998, 64
  %v1384 = vpop.permute.xlu0 %1383
  %1385 = vrot.lane.b32.xlu0 %v997, 64
  %v1386 = vpop.permute.xlu0 %1385
  %1387 = vrot.lane.b32.xlu0 %v996, 64
  %v1388 = vpop.permute.xlu0 %1387
  %1389 = vrot.lane.b32.xlu0 %v995, 64
  %v1390 = vpop.permute.xlu0 %1389
  %1391 = vrot.lane.b32.xlu0 %v994, 64
  %v1392 = vpop.permute.xlu0 %1391
  %1393 = vrot.lane.b32.xlu0 %v993, 64
  %v1394 = vpop.permute.xlu0 %1393
  %1395 = vrot.lane.b32.xlu0 %v992, 64
  %v1396 = vpop.permute.xlu0 %1395
  %1397 = vrot.lane.b32.xlu0 %v991, 64
  %v1398 = vpop.permute.xlu0 %1397
  %1399 = vrot.lane.b32.xlu0 %v990, 64
  %v1400 = vpop.permute.xlu0 %1399
  %1401 = vrot.lane.b32.xlu0 %v989, 64
  %v1402 = vpop.permute.xlu0 %1401
  %1403 = vrot.lane.b32.xlu0 %v988, 64
  %v1404 = vpop.permute.xlu0 %1403
  %1405 = vrot.lane.b32.xlu0 %v987, 64
  %v1406 = vpop.permute.xlu0 %1405
  %1407 = vrot.lane.b32.xlu0 %v986, 64
  %v1408 = vpop.permute.xlu0 %1407
  %1409 = vrot.lane.b32.xlu0 %v985, 64
  %v1410 = vpop.permute.xlu0 %1409
  %1411 = vrot.lane.b32.xlu0 %v984, 64
  %v1412 = vpop.permute.xlu0 %1411
  %1413 = vrot.lane.b32.xlu0 %v983, 64
  %v1414 = vpop.permute.xlu0 %1413
  %1415 = vrot.lane.b32.xlu0 %v982, 64
  %v1416 = vpop.permute.xlu0 %1415
  %1417 = vrot.lane.b32.xlu0 %v981, 64
  %v1418 = vpop.permute.xlu0 %1417
  %1419 = vrot.lane.b32.xlu0 %v980, 64
  %v1420 = vpop.permute.xlu0 %1419
  %1421 = vrot.lane.b32.xlu0 %v979, 64
  %v1422 = vpop.permute.xlu0 %1421
  %1423 = vrot.lane.b32.xlu0 %v978, 64
  %v1424 = vpop.permute.xlu0 %1423
  %1425 = vrot.lane.b32.xlu0 %v977, 64
  %v1426 = vpop.permute.xlu0 %1425
  %1427 = vrot.lane.b32.xlu0 %v976, 64
  %v1428 = vpop.permute.xlu0 %1427
  %1429 = vrot.lane.b32.xlu0 %v975, 64
  %v1430 = vpop.permute.xlu0 %1429
  %1431 = vrot.lane.b32.xlu0 %v974, 64
  %v1432 = vpop.permute.xlu0 %1431
  %1433 = vrot.lane.b32.xlu0 %v973, 64
  %v1434 = vpop.permute.xlu0 %1433
  %1435 = vrot.lane.b32.xlu0 %v972, 64
  %v1436 = vpop.permute.xlu0 %1435
  %1437 = vrot.lane.b32.xlu0 %v971, 64
  %v1438 = vpop.permute.xlu0 %1437
  %1439 = vrot.lane.b32.xlu0 %v970, 64
  %v1440 = vpop.permute.xlu0 %1439
  %1441 = vrot.lane.b32.xlu0 %v969, 64
  %v1442 = vpop.permute.xlu0 %1441
  %1443 = vrot.lane.b32.xlu0 %v968, 64
  %v1444 = vpop.permute.xlu0 %1443
  %1445 = vrot.lane.b32.xlu0 %v967, 64
  %v1446 = vpop.permute.xlu0 %1445
  %1447 = vrot.lane.b32.xlu0 %v966, 64
  %v1448 = vpop.permute.xlu0 %1447
  %1449 = vrot.lane.b32.xlu0 %v965, 64
  %v1450 = vpop.permute.xlu0 %1449
  %1451 = vrot.lane.b32.xlu0 %v964, 64
  %v1452 = vpop.permute.xlu0 %1451
  %1453 = vrot.lane.b32.xlu0 %v963, 64
  %v1454 = vpop.permute.xlu0 %1453
  %1455 = vrot.lane.b32.xlu0 %v962, 64
  %v1456 = vpop.permute.xlu0 %1455
  %1457 = vrot.lane.b32.xlu0 %v961, 64
  %v1458 = vpop.permute.xlu0 %1457
  %1459 = vrot.lane.b32.xlu0 %v960, 64
  %v1460 = vpop.permute.xlu0 %1459
  %1461 = vrot.lane.b32.xlu0 %v959, 64
  %v1462 = vpop.permute.xlu0 %1461
  %1463 = vrot.lane.b32.xlu0 %v958, 64
  %v1464 = vpop.permute.xlu0 %1463
  %1465 = vrot.lane.b32.xlu0 %v957, 64
  %v1466 = vpop.permute.xlu0 %1465
  %1467 = vrot.lane.b32.xlu0 %v1020, 64
  %v1468 = vpop.permute.xlu0 %1467
  %1597 = vrot.lane.b32.xlu0 %v699, 96
  %v1598 = vpop.permute.xlu0 %1597
  %1599 = vrot.lane.b32.xlu0 %v700, 96
  %v1600 = vpop.permute.xlu0 %1599
  %1601 = vrot.lane.b32.xlu0 %v701, 96
  %v1602 = vpop.permute.xlu0 %1601
  %1603 = vrot.lane.b32.xlu0 %v702, 96
  %v1604 = vpop.permute.xlu0 %1603
  %1605 = vrot.lane.b32.xlu0 %v703, 96
  %v1606 = vpop.permute.xlu0 %1605
  %1607 = vrot.lane.b32.xlu0 %v704, 96
  %v1608 = vpop.permute.xlu0 %1607
  %1609 = vrot.lane.b32.xlu0 %v705, 96
  %v1610 = vpop.permute.xlu0 %1609
  %1611 = vrot.lane.b32.xlu0 %v706, 96
  %v1612 = vpop.permute.xlu0 %1611
  %1613 = vrot.lane.b32.xlu0 %v707, 96
  %v1614 = vpop.permute.xlu0 %1613
  %1615 = vrot.lane.b32.xlu0 %v708, 96
  %v1616 = vpop.permute.xlu0 %1615
  %1617 = vrot.lane.b32.xlu0 %v709, 96
  %v1618 = vpop.permute.xlu0 %1617
  %1619 = vrot.lane.b32.xlu0 %v710, 96
  %v1620 = vpop.permute.xlu0 %1619
  %1621 = vrot.lane.b32.xlu0 %v711, 96
  %v1622 = vpop.permute.xlu0 %1621
  %1623 = vrot.lane.b32.xlu0 %v712, 96
  %v1624 = vpop.permute.xlu0 %1623
  %1625 = vrot.lane.b32.xlu0 %v713, 96
  %v1626 = vpop.permute.xlu0 %1625
  %1627 = vrot.lane.b32.xlu0 %v714, 96
  %v1628 = vpop.permute.xlu0 %1627
  %1629 = vrot.lane.b32.xlu0 %v715, 96
  %v1630 = vpop.permute.xlu0 %1629
  %1631 = vrot.lane.b32.xlu0 %v716, 96
  %v1632 = vpop.permute.xlu0 %1631
  %1633 = vrot.lane.b32.xlu0 %v717, 96
  %v1634 = vpop.permute.xlu0 %1633
  %1635 = vrot.lane.b32.xlu0 %v718, 96
  %v1636 = vpop.permute.xlu0 %1635
  %1637 = vrot.lane.b32.xlu0 %v719, 96
  %v1638 = vpop.permute.xlu0 %1637
  %1639 = vrot.lane.b32.xlu0 %v720, 96
  %v1640 = vpop.permute.xlu0 %1639
  %1641 = vrot.lane.b32.xlu0 %v721, 96
  %v1642 = vpop.permute.xlu0 %1641
  %1643 = vrot.lane.b32.xlu0 %v722, 96
  %v1644 = vpop.permute.xlu0 %1643
  %1645 = vrot.lane.b32.xlu0 %v723, 96
  %v1646 = vpop.permute.xlu0 %1645
  %1647 = vrot.lane.b32.xlu0 %v724, 96
  %v1648 = vpop.permute.xlu0 %1647
  %1649 = vrot.lane.b32.xlu0 %v725, 96
  %v1650 = vpop.permute.xlu0 %1649
  %1651 = vrot.lane.b32.xlu0 %v726, 96
  %v1652 = vpop.permute.xlu0 %1651
  %1653 = vrot.lane.b32.xlu0 %v727, 96
  %v1654 = vpop.permute.xlu0 %1653
  %1655 = vrot.lane.b32.xlu0 %v728, 96
  %v1656 = vpop.permute.xlu0 %1655
  %1657 = vrot.lane.b32.xlu0 %v729, 96
  %v1658 = vpop.permute.xlu0 %1657
  %1659 = vrot.lane.b32.xlu0 %v730, 96
  %v1660 = vpop.permute.xlu0 %1659
  %1661 = vrot.lane.b32.xlu0 %v731, 96
  %v1662 = vpop.permute.xlu0 %1661
  %1663 = vrot.lane.b32.xlu0 %v732, 96
  %v1664 = vpop.permute.xlu0 %1663
  %1665 = vrot.lane.b32.xlu0 %v733, 96
  %v1666 = vpop.permute.xlu0 %1665
  %1667 = vrot.lane.b32.xlu0 %v734, 96
  %v1668 = vpop.permute.xlu0 %1667
  %1669 = vrot.lane.b32.xlu0 %v735, 96
  %v1670 = vpop.permute.xlu0 %1669
  %1671 = vrot.lane.b32.xlu0 %v736, 96
  %v1672 = vpop.permute.xlu0 %1671
  %1673 = vrot.lane.b32.xlu0 %v737, 96
  %v1674 = vpop.permute.xlu0 %1673
  %1675 = vrot.lane.b32.xlu0 %v738, 96
  %v1676 = vpop.permute.xlu0 %1675
  %1677 = vrot.lane.b32.xlu0 %v739, 96
  %v1678 = vpop.permute.xlu0 %1677
  %1679 = vrot.lane.b32.xlu0 %v740, 96
  %v1680 = vpop.permute.xlu0 %1679
  %1681 = vrot.lane.b32.xlu0 %v741, 96
  %v1682 = vpop.permute.xlu0 %1681
  %1683 = vrot.lane.b32.xlu0 %v742, 96
  %v1684 = vpop.permute.xlu0 %1683
  %1685 = vrot.lane.b32.xlu0 %v743, 96
  %v1686 = vpop.permute.xlu0 %1685
  %1687 = vrot.lane.b32.xlu0 %v744, 96
  %v1688 = vpop.permute.xlu0 %1687
  %1689 = vrot.lane.b32.xlu0 %v745, 96
  %v1690 = vpop.permute.xlu0 %1689
  %1691 = vrot.lane.b32.xlu0 %v746, 96
  %v1692 = vpop.permute.xlu0 %1691
  %1693 = vrot.lane.b32.xlu0 %v747, 96
  %v1694 = vpop.permute.xlu0 %1693
  %1695 = vrot.lane.b32.xlu0 %v748, 96
  %v1696 = vpop.permute.xlu0 %1695
  %1697 = vrot.lane.b32.xlu0 %v749, 96
  %v1698 = vpop.permute.xlu0 %1697
  %1699 = vrot.lane.b32.xlu0 %v750, 96
  %v1700 = vpop.permute.xlu0 %1699
  %1701 = vrot.lane.b32.xlu0 %v751, 96
  %v1702 = vpop.permute.xlu0 %1701
  %1703 = vrot.lane.b32.xlu0 %v752, 96
  %v1704 = vpop.permute.xlu0 %1703
  %1705 = vrot.lane.b32.xlu0 %v753, 96
  %v1706 = vpop.permute.xlu0 %1705
  %1707 = vrot.lane.b32.xlu0 %v754, 96
  %v1708 = vpop.permute.xlu0 %1707
  %1709 = vrot.lane.b32.xlu0 %v755, 96
  %v1710 = vpop.permute.xlu0 %1709
  %1711 = vrot.lane.b32.xlu0 %v756, 96
  %v1712 = vpop.permute.xlu0 %1711
  %1713 = vrot.lane.b32.xlu0 %v757, 96
  %v1714 = vpop.permute.xlu0 %1713
  %1715 = vrot.lane.b32.xlu0 %v758, 96
  %v1716 = vpop.permute.xlu0 %1715
  %1717 = vrot.lane.b32.xlu0 %v759, 96
  %v1718 = vpop.permute.xlu0 %1717
  %1719 = vrot.lane.b32.xlu0 %v760, 96
  %v1720 = vpop.permute.xlu0 %1719
  %1721 = vrot.lane.b32.xlu0 %v697, 96
  %v1722 = vpop.permute.xlu0 %1721
  %1723 = vrot.lane.b32.xlu0 %v698, 96
  %v1724 = vpop.permute.xlu0 %1723
  %1789 = vrot.lane.b32.xlu0 %v1017, 32
  %v1790 = vpop.permute.xlu0 %1789
  %1791 = vrot.lane.b32.xlu0 %v1016, 32
  %v1792 = vpop.permute.xlu0 %1791
  %1793 = vrot.lane.b32.xlu0 %v1015, 32
  %v1794 = vpop.permute.xlu0 %1793
  %1795 = vrot.lane.b32.xlu0 %v1014, 32
  %v1796 = vpop.permute.xlu0 %1795
  %1797 = vrot.lane.b32.xlu0 %v1013, 32
  %v1798 = vpop.permute.xlu0 %1797
  %1799 = vrot.lane.b32.xlu0 %v1012, 32
  %v1800 = vpop.permute.xlu0 %1799
  %1801 = vrot.lane.b32.xlu0 %v1011, 32
  %v1802 = vpop.permute.xlu0 %1801
  %1803 = vrot.lane.b32.xlu0 %v1010, 32
  %v1804 = vpop.permute.xlu0 %1803
  %1805 = vrot.lane.b32.xlu0 %v1009, 32
  %v1806 = vpop.permute.xlu0 %1805
  %1807 = vrot.lane.b32.xlu0 %v1008, 32
  %v1808 = vpop.permute.xlu0 %1807
  %1809 = vrot.lane.b32.xlu0 %v1007, 32
  %v1810 = vpop.permute.xlu0 %1809
  %1811 = vrot.lane.b32.xlu0 %v1006, 32
  %v1812 = vpop.permute.xlu0 %1811
  %1813 = vrot.lane.b32.xlu0 %v1005, 32
  %v1814 = vpop.permute.xlu0 %1813
  %1815 = vrot.lane.b32.xlu0 %v1004, 32
  %v1816 = vpop.permute.xlu0 %1815
  %1817 = vrot.lane.b32.xlu0 %v1003, 32
  %v1818 = vpop.permute.xlu0 %1817
  %1819 = vrot.lane.b32.xlu0 %v1002, 32
  %v1820 = vpop.permute.xlu0 %1819
  %1821 = vrot.lane.b32.xlu0 %v1001, 32
  %v1822 = vpop.permute.xlu0 %1821
  %1823 = vrot.lane.b32.xlu0 %v1000, 32
  %v1824 = vpop.permute.xlu0 %1823
  %1825 = vrot.lane.b32.xlu0 %v999, 32
  %v1826 = vpop.permute.xlu0 %1825
  %1827 = vrot.lane.b32.xlu0 %v998, 32
  %v1828 = vpop.permute.xlu0 %1827
  %1829 = vrot.lane.b32.xlu0 %v997, 32
  %v1830 = vpop.permute.xlu0 %1829
  %1831 = vrot.lane.b32.xlu0 %v996, 32
  %v1832 = vpop.permute.xlu0 %1831
  %1833 = vrot.lane.b32.xlu0 %v995, 32
  %v1834 = vpop.permute.xlu0 %1833
  %1835 = vrot.lane.b32.xlu0 %v994, 32
  %v1836 = vpop.permute.xlu0 %1835
  %1837 = vrot.lane.b32.xlu0 %v993, 32
  %v1838 = vpop.permute.xlu0 %1837
  %1839 = vrot.lane.b32.xlu0 %v992, 32
  %v1840 = vpop.permute.xlu0 %1839
  %1841 = vrot.lane.b32.xlu0 %v991, 32
  %v1842 = vpop.permute.xlu0 %1841
  %1843 = vrot.lane.b32.xlu0 %v990, 32
  %v1844 = vpop.permute.xlu0 %1843
  %1845 = vrot.lane.b32.xlu0 %v989, 32
  %v1846 = vpop.permute.xlu0 %1845
  %1847 = vrot.lane.b32.xlu0 %v988, 32
  %v1848 = vpop.permute.xlu0 %1847
  %1849 = vrot.lane.b32.xlu0 %v987, 32
  %v1850 = vpop.permute.xlu0 %1849
  %1851 = vrot.lane.b32.xlu0 %v986, 32
  %v1852 = vpop.permute.xlu0 %1851
  %1853 = vrot.lane.b32.xlu0 %v985, 32
  %v1854 = vpop.permute.xlu0 %1853
  %1855 = vrot.lane.b32.xlu0 %v984, 32
  %v1856 = vpop.permute.xlu0 %1855
  %1857 = vrot.lane.b32.xlu0 %v983, 32
  %v1858 = vpop.permute.xlu0 %1857
  %1859 = vrot.lane.b32.xlu0 %v982, 32
  %v1860 = vpop.permute.xlu0 %1859
  %1861 = vrot.lane.b32.xlu0 %v981, 32
  %v1862 = vpop.permute.xlu0 %1861
  %1863 = vrot.lane.b32.xlu0 %v980, 32
  %v1864 = vpop.permute.xlu0 %1863
  %1865 = vrot.lane.b32.xlu0 %v979, 32
  %v1866 = vpop.permute.xlu0 %1865
  %1867 = vrot.lane.b32.xlu0 %v978, 32
  %v1868 = vpop.permute.xlu0 %1867
  %1869 = vrot.lane.b32.xlu0 %v977, 32
  %v1870 = vpop.permute.xlu0 %1869
  %1871 = vrot.lane.b32.xlu0 %v976, 32
  %v1872 = vpop.permute.xlu0 %1871
  %1873 = vrot.lane.b32.xlu0 %v975, 32
  %v1874 = vpop.permute.xlu0 %1873
  %1875 = vrot.lane.b32.xlu0 %v974, 32
  %v1876 = vpop.permute.xlu0 %1875
  %1877 = vrot.lane.b32.xlu0 %v973, 32
  %v1878 = vpop.permute.xlu0 %1877
  %1879 = vrot.lane.b32.xlu0 %v972, 32
  %v1880 = vpop.permute.xlu0 %1879
  %1881 = vrot.lane.b32.xlu0 %v971, 32
  %v1882 = vpop.permute.xlu0 %1881
  %1883 = vrot.lane.b32.xlu0 %v970, 32
  %v1884 = vpop.permute.xlu0 %1883
  %1885 = vrot.lane.b32.xlu0 %v969, 32
  %v1886 = vpop.permute.xlu0 %1885
  %1887 = vrot.lane.b32.xlu0 %v968, 32
  %v1888 = vpop.permute.xlu0 %1887
  %1889 = vrot.lane.b32.xlu0 %v967, 32
  %v1890 = vpop.permute.xlu0 %1889
  %1891 = vrot.lane.b32.xlu0 %v966, 32
  %v1892 = vpop.permute.xlu0 %1891
  %1893 = vrot.lane.b32.xlu0 %v965, 32
  %v1894 = vpop.permute.xlu0 %1893
  %1895 = vrot.lane.b32.xlu0 %v964, 32
  %v1896 = vpop.permute.xlu0 %1895
  %1897 = vrot.lane.b32.xlu0 %v963, 32
  %v1898 = vpop.permute.xlu0 %1897
  %1899 = vrot.lane.b32.xlu0 %v962, 32
  %v1900 = vpop.permute.xlu0 %1899
  %1901 = vrot.lane.b32.xlu0 %v961, 32
  %v1902 = vpop.permute.xlu0 %1901
  %1903 = vrot.lane.b32.xlu0 %v960, 32
  %v1904 = vpop.permute.xlu0 %1903
  %1905 = vrot.lane.b32.xlu0 %v959, 32
  %v1906 = vpop.permute.xlu0 %1905
  %1907 = vrot.lane.b32.xlu0 %v958, 32
  %v1908 = vpop.permute.xlu0 %1907
  %1909 = vrot.lane.b32.xlu0 %v957, 32
  %v1910 = vpop.permute.xlu0 %1909
  %1911 = vrot.lane.b32.xlu0 %v1020, 32
  %v1912 = vpop.permute.xlu0 %1911
  %1913 = vrot.lane.b32.xlu0 %v1019, 32
  %v1914 = vpop.permute.xlu0 %1913
  %1915 = vrot.lane.b32.xlu0 %v1018, 32
  %v1916 = vpop.permute.xlu0 %1915
  %1981 = vrot.lane.b32.xlu0 %v701, 64
  %v1982 = vpop.permute.xlu0 %1981
  %1983 = vrot.lane.b32.xlu0 %v702, 64
  %v1984 = vpop.permute.xlu0 %1983
  %1985 = vrot.lane.b32.xlu0 %v703, 64
  %v1986 = vpop.permute.xlu0 %1985
  %1987 = vrot.lane.b32.xlu0 %v704, 64
  %v1988 = vpop.permute.xlu0 %1987
  %1989 = vrot.lane.b32.xlu0 %v705, 64
  %v1990 = vpop.permute.xlu0 %1989
  %1991 = vrot.lane.b32.xlu0 %v706, 64
  %v1992 = vpop.permute.xlu0 %1991
  %1993 = vrot.lane.b32.xlu0 %v707, 64
  %v1994 = vpop.permute.xlu0 %1993
  %1995 = vrot.lane.b32.xlu0 %v708, 64
  %v1996 = vpop.permute.xlu0 %1995
  %1997 = vrot.lane.b32.xlu0 %v709, 64
  %v1998 = vpop.permute.xlu0 %1997
  %1999 = vrot.lane.b32.xlu0 %v710, 64
  %v2000 = vpop.permute.xlu0 %1999
  %2001 = vrot.lane.b32.xlu0 %v711, 64
  %v2002 = vpop.permute.xlu0 %2001
  %2003 = vrot.lane.b32.xlu0 %v712, 64
  %v2004 = vpop.permute.xlu0 %2003
  %2005 = vrot.lane.b32.xlu0 %v713, 64
  %v2006 = vpop.permute.xlu0 %2005
  %2007 = vrot.lane.b32.xlu0 %v714, 64
  %v2008 = vpop.permute.xlu0 %2007
  %2009 = vrot.lane.b32.xlu0 %v715, 64
  %v2010 = vpop.permute.xlu0 %2009
  %2011 = vrot.lane.b32.xlu0 %v716, 64
  %v2012 = vpop.permute.xlu0 %2011
  %2013 = vrot.lane.b32.xlu0 %v717, 64
  %v2014 = vpop.permute.xlu0 %2013
  %2015 = vrot.lane.b32.xlu0 %v718, 64
  %v2016 = vpop.permute.xlu0 %2015
  %2017 = vrot.lane.b32.xlu0 %v719, 64
  %v2018 = vpop.permute.xlu0 %2017
  %2019 = vrot.lane.b32.xlu0 %v720, 64
  %v2020 = vpop.permute.xlu0 %2019
  %2021 = vrot.lane.b32.xlu0 %v721, 64
  %v2022 = vpop.permute.xlu0 %2021
  %2023 = vrot.lane.b32.xlu0 %v722, 64
  %v2024 = vpop.permute.xlu0 %2023
  %2025 = vrot.lane.b32.xlu0 %v723, 64
  %v2026 = vpop.permute.xlu0 %2025
  %2027 = vrot.lane.b32.xlu0 %v724, 64
  %v2028 = vpop.permute.xlu0 %2027
  %2029 = vrot.lane.b32.xlu0 %v725, 64
  %v2030 = vpop.permute.xlu0 %2029
  %2031 = vrot.lane.b32.xlu0 %v726, 64
  %v2032 = vpop.permute.xlu0 %2031
  %2033 = vrot.lane.b32.xlu0 %v727, 64
  %v2034 = vpop.permute.xlu0 %2033
  %2035 = vrot.lane.b32.xlu0 %v728, 64
  %v2036 = vpop.permute.xlu0 %2035
  %2037 = vrot.lane.b32.xlu0 %v729, 64
  %v2038 = vpop.permute.xlu0 %2037
  %2039 = vrot.lane.b32.xlu0 %v730, 64
  %v2040 = vpop.permute.xlu0 %2039
  %2041 = vrot.lane.b32.xlu0 %v731, 64
  %v2042 = vpop.permute.xlu0 %2041
  %2043 = vrot.lane.b32.xlu0 %v732, 64
  %v2044 = vpop.permute.xlu0 %2043
  %2045 = vrot.lane.b32.xlu0 %v733, 64
  %v2046 = vpop.permute.xlu0 %2045
  %2047 = vrot.lane.b32.xlu0 %v734, 64
  %v2048 = vpop.permute.xlu0 %2047
  %2049 = vrot.lane.b32.xlu0 %v735, 64
  %v2050 = vpop.permute.xlu0 %2049
  %2051 = vrot.lane.b32.xlu0 %v736, 64
  %v2052 = vpop.permute.xlu0 %2051
  %2053 = vrot.lane.b32.xlu0 %v737, 64
  %v2054 = vpop.permute.xlu0 %2053
  %2055 = vrot.lane.b32.xlu0 %v738, 64
  %v2056 = vpop.permute.xlu0 %2055
  %2057 = vrot.lane.b32.xlu0 %v739, 64
  %v2058 = vpop.permute.xlu0 %2057
  %2059 = vrot.lane.b32.xlu0 %v740, 64
  %v2060 = vpop.permute.xlu0 %2059
  %2061 = vrot.lane.b32.xlu0 %v741, 64
  %v2062 = vpop.permute.xlu0 %2061
  %2063 = vrot.lane.b32.xlu0 %v742, 64
  %v2064 = vpop.permute.xlu0 %2063
  %2065 = vrot.lane.b32.xlu0 %v743, 64
  %v2066 = vpop.permute.xlu0 %2065
  %2067 = vrot.lane.b32.xlu0 %v744, 64
  %v2068 = vpop.permute.xlu0 %2067
  %2069 = vrot.lane.b32.xlu0 %v745, 64
  %v2070 = vpop.permute.xlu0 %2069
  %2071 = vrot.lane.b32.xlu0 %v746, 64
  %v2072 = vpop.permute.xlu0 %2071
  %2073 = vrot.lane.b32.xlu0 %v747, 64
  %v2074 = vpop.permute.xlu0 %2073
  %2075 = vrot.lane.b32.xlu0 %v748, 64
  %v2076 = vpop.permute.xlu0 %2075
  %2077 = vrot.lane.b32.xlu0 %v749, 64
  %v2078 = vpop.permute.xlu0 %2077
  %2079 = vrot.lane.b32.xlu0 %v750, 64
  %v2080 = vpop.permute.xlu0 %2079
  %2081 = vrot.lane.b32.xlu0 %v751, 64
  %v2082 = vpop.permute.xlu0 %2081
  %2083 = vrot.lane.b32.xlu0 %v752, 64
  %v2084 = vpop.permute.xlu0 %2083
  %2085 = vrot.lane.b32.xlu0 %v753, 64
  %v2086 = vpop.permute.xlu0 %2085
  %2087 = vrot.lane.b32.xlu0 %v754, 64
  %v2088 = vpop.permute.xlu0 %2087
  %2089 = vrot.lane.b32.xlu0 %v755, 64
  %v2090 = vpop.permute.xlu0 %2089
  %2091 = vrot.lane.b32.xlu0 %v756, 64
  %v2092 = vpop.permute.xlu0 %2091
  %2093 = vrot.lane.b32.xlu0 %v757, 64
  %v2094 = vpop.permute.xlu0 %2093
  %2095 = vrot.lane.b32.xlu0 %v758, 64
  %v2096 = vpop.permute.xlu0 %2095
  %2097 = vrot.lane.b32.xlu0 %v759, 64
  %v2098 = vpop.permute.xlu0 %2097
  %2099 = vrot.lane.b32.xlu0 %v760, 64
  %v2100 = vpop.permute.xlu0 %2099
  %2101 = vrot.lane.b32.xlu0 %v697, 64
  %v2102 = vpop.permute.xlu0 %2101
  %2103 = vrot.lane.b32.xlu0 %v698, 64
  %v2104 = vpop.permute.xlu0 %2103
  %2105 = vrot.lane.b32.xlu0 %v699, 64
  %v2106 = vpop.permute.xlu0 %2105
  %2107 = vrot.lane.b32.xlu0 %v700, 64
  %v2108 = vpop.permute.xlu0 %2107
  %2173 = vrot.lane.b32.xlu0 %v886, 96
  %v2174 = vpop.permute.xlu0 %2173
  %2175 = vrot.lane.b32.xlu0 %v885, 96
  %v2176 = vpop.permute.xlu0 %2175
  %2177 = vrot.lane.b32.xlu0 %v884, 96
  %v2178 = vpop.permute.xlu0 %2177
  %2179 = vrot.lane.b32.xlu0 %v883, 96
  %v2180 = vpop.permute.xlu0 %2179
  %2181 = vrot.lane.b32.xlu0 %v882, 96
  %v2182 = vpop.permute.xlu0 %2181
  %2183 = vrot.lane.b32.xlu0 %v881, 96
  %v2184 = vpop.permute.xlu0 %2183
  %2185 = vrot.lane.b32.xlu0 %v880, 96
  %v2186 = vpop.permute.xlu0 %2185
  %2187 = vrot.lane.b32.xlu0 %v879, 96
  %v2188 = vpop.permute.xlu0 %2187
  %2189 = vrot.lane.b32.xlu0 %v878, 96
  %v2190 = vpop.permute.xlu0 %2189
  %2191 = vrot.lane.b32.xlu0 %v877, 96
  %v2192 = vpop.permute.xlu0 %2191
  %2193 = vrot.lane.b32.xlu0 %v876, 96
  %v2194 = vpop.permute.xlu0 %2193
  %2195 = vrot.lane.b32.xlu0 %v875, 96
  %v2196 = vpop.permute.xlu0 %2195
  %2197 = vrot.lane.b32.xlu0 %v874, 96
  %v2198 = vpop.permute.xlu0 %2197
  %2199 = vrot.lane.b32.xlu0 %v873, 96
  %v2200 = vpop.permute.xlu0 %2199
  %2201 = vrot.lane.b32.xlu0 %v872, 96
  %v2202 = vpop.permute.xlu0 %2201
  %2203 = vrot.lane.b32.xlu0 %v871, 96
  %v2204 = vpop.permute.xlu0 %2203
  %2205 = vrot.lane.b32.xlu0 %v870, 96
  %v2206 = vpop.permute.xlu0 %2205
  %2207 = vrot.lane.b32.xlu0 %v869, 96
  %v2208 = vpop.permute.xlu0 %2207
  %2209 = vrot.lane.b32.xlu0 %v868, 96
  %v2210 = vpop.permute.xlu0 %2209
  %2211 = vrot.lane.b32.xlu0 %v867, 96
  %v2212 = vpop.permute.xlu0 %2211
  %2213 = vrot.lane.b32.xlu0 %v866, 96
  %v2214 = vpop.permute.xlu0 %2213
  %2215 = vrot.lane.b32.xlu0 %v865, 96
  %v2216 = vpop.permute.xlu0 %2215
  %2217 = vrot.lane.b32.xlu0 %v864, 96
  %v2218 = vpop.permute.xlu0 %2217
  %2219 = vrot.lane.b32.xlu0 %v863, 96
  %v2220 = vpop.permute.xlu0 %2219
  %2221 = vrot.lane.b32.xlu0 %v862, 96
  %v2222 = vpop.permute.xlu0 %2221
  %2223 = vrot.lane.b32.xlu0 %v861, 96
  %v2224 = vpop.permute.xlu0 %2223
  %2225 = vrot.lane.b32.xlu0 %v860, 96
  %v2226 = vpop.permute.xlu0 %2225
  %2227 = vrot.lane.b32.xlu0 %v859, 96
  %v2228 = vpop.permute.xlu0 %2227
  %2229 = vrot.lane.b32.xlu0 %v858, 96
  %v2230 = vpop.permute.xlu0 %2229
  %2231 = vrot.lane.b32.xlu0 %v857, 96
  %v2232 = vpop.permute.xlu0 %2231
  %2233 = vrot.lane.b32.xlu0 %v856, 96
  %v2234 = vpop.permute.xlu0 %2233
  %2235 = vrot.lane.b32.xlu0 %v855, 96
  %v2236 = vpop.permute.xlu0 %2235
  %2237 = vrot.lane.b32.xlu0 %v854, 96
  %v2238 = vpop.permute.xlu0 %2237
  %2239 = vrot.lane.b32.xlu0 %v853, 96
  %v2240 = vpop.permute.xlu0 %2239
  %2241 = vrot.lane.b32.xlu0 %v852, 96
  %v2242 = vpop.permute.xlu0 %2241
  %2243 = vrot.lane.b32.xlu0 %v851, 96
  %v2244 = vpop.permute.xlu0 %2243
  %2245 = vrot.lane.b32.xlu0 %v850, 96
  %v2246 = vpop.permute.xlu0 %2245
  %2247 = vrot.lane.b32.xlu0 %v849, 96
  %v2248 = vpop.permute.xlu0 %2247
  %2249 = vrot.lane.b32.xlu0 %v848, 96
  %v2250 = vpop.permute.xlu0 %2249
  %2251 = vrot.lane.b32.xlu0 %v847, 96
  %v2252 = vpop.permute.xlu0 %2251
  %2253 = vrot.lane.b32.xlu0 %v846, 96
  %v2254 = vpop.permute.xlu0 %2253
  %2255 = vrot.lane.b32.xlu0 %v845, 96
  %v2256 = vpop.permute.xlu0 %2255
  %2257 = vrot.lane.b32.xlu0 %v844, 96
  %v2258 = vpop.permute.xlu0 %2257
  %2259 = vrot.lane.b32.xlu0 %v843, 96
  %v2260 = vpop.permute.xlu0 %2259
  %2261 = vrot.lane.b32.xlu0 %v842, 96
  %v2262 = vpop.permute.xlu0 %2261
  %2263 = vrot.lane.b32.xlu0 %v841, 96
  %v2264 = vpop.permute.xlu0 %2263
  %2265 = vrot.lane.b32.xlu0 %v840, 96
  %v2266 = vpop.permute.xlu0 %2265
  %2267 = vrot.lane.b32.xlu0 %v839, 96
  %v2268 = vpop.permute.xlu0 %2267
  %2269 = vrot.lane.b32.xlu0 %v838, 96
  %v2270 = vpop.permute.xlu0 %2269
  %2271 = vrot.lane.b32.xlu0 %v837, 96
  %v2272 = vpop.permute.xlu0 %2271
  %2273 = vrot.lane.b32.xlu0 %v836, 96
  %v2274 = vpop.permute.xlu0 %2273
  %2275 = vrot.lane.b32.xlu0 %v835, 96
  %v2276 = vpop.permute.xlu0 %2275
  %2277 = vrot.lane.b32.xlu0 %v834, 96
  %v2278 = vpop.permute.xlu0 %2277
  %2279 = vrot.lane.b32.xlu0 %v833, 96
  %v2280 = vpop.permute.xlu0 %2279
  %2281 = vrot.lane.b32.xlu0 %v832, 96
  %v2282 = vpop.permute.xlu0 %2281
  %2283 = vrot.lane.b32.xlu0 %v831, 96
  %v2284 = vpop.permute.xlu0 %2283
  %2285 = vrot.lane.b32.xlu0 %v830, 96
  %v2286 = vpop.permute.xlu0 %2285
  %2287 = vrot.lane.b32.xlu0 %v829, 96
  %v2288 = vpop.permute.xlu0 %2287
  %2289 = vrot.lane.b32.xlu0 %v828, 96
  %v2290 = vpop.permute.xlu0 %2289
  %2291 = vrot.lane.b32.xlu0 %v891, 96
  %v2292 = vpop.permute.xlu0 %2291
  %2293 = vrot.lane.b32.xlu0 %v890, 96
  %v2294 = vpop.permute.xlu0 %2293
  %2295 = vrot.lane.b32.xlu0 %v889, 96
  %v2296 = vpop.permute.xlu0 %2295
  %2297 = vrot.lane.b32.xlu0 %v888, 96
  %v2298 = vpop.permute.xlu0 %2297
  %2299 = vrot.lane.b32.xlu0 %v887, 96
  %v2300 = vpop.permute.xlu0 %2299
  %vm2365 = vcmask 261120
  %v2366 = vsel %vm2365, %v697, %v1086
  %v2367 = vsel %vm2365, %v698, %v1088
  %v2368 = vsel %vm2365, %v699, %v1090
  %v2369 = vsel %vm2365, %v700, %v1092
  %v2370 = vsel %vm2365, %v701, %v1094
  %v2371 = vsel %vm2365, %v702, %v1096
  %v2372 = vsel %vm2365, %v703, %v1098
  %v2373 = vsel %vm2365, %v704, %v1100
  %v2374 = vsel %vm2365, %v705, %v1102
  %v2375 = vsel %vm2365, %v706, %v1104
  %v2376 = vsel %vm2365, %v707, %v1106
  %v2377 = vsel %vm2365, %v708, %v1108
  %v2378 = vsel %vm2365, %v709, %v1110
  %v2379 = vsel %vm2365, %v710, %v1112
  %v2380 = vsel %vm2365, %v711, %v1114
  %v2381 = vsel %vm2365, %v712, %v1116
  %v2382 = vsel %vm2365, %v713, %v1118
  %v2383 = vsel %vm2365, %v714, %v1120
  %v2384 = vsel %vm2365, %v715, %v1122
  %v2385 = vsel %vm2365, %v716, %v1124
  %v2386 = vsel %vm2365, %v717, %v1126
  %v2387 = vsel %vm2365, %v718, %v1128
  %v2388 = vsel %vm2365, %v719, %v1130
  %v2389 = vsel %vm2365, %v720, %v1132
  %v2390 = vsel %vm2365, %v721, %v1134
  %v2391 = vsel %vm2365, %v722, %v1136
  %v2392 = vsel %vm2365, %v723, %v1138
  %v2393 = vsel %vm2365, %v724, %v1140
  %v2394 = vsel %vm2365, %v725, %v1142
  %v2395 = vsel %vm2365, %v726, %v1144
  %v2396 = vsel %vm2365, %v727, %v1146
  %v2397 = vsel %vm2365, %v728, %v1148
  %v2398 = vsel %vm2365, %v729, %v1150
  %v2399 = vsel %vm2365, %v730, %v1152
  %v2400 = vsel %vm2365, %v731, %v1154
  %v2401 = vsel %vm2365, %v732, %v1156
  %v2402 = vsel %vm2365, %v733, %v1158
  %v2403 = vsel %vm2365, %v734, %v1160
  %v2404 = vsel %vm2365, %v735, %v1162
  %v2405 = vsel %vm2365, %v736, %v1164
  %v2406 = vsel %vm2365, %v737, %v1166
  %v2407 = vsel %vm2365, %v738, %v1168
  %v2408 = vsel %vm2365, %v739, %v1170
  %v2409 = vsel %vm2365, %v740, %v1172
  %v2410 = vsel %vm2365, %v741, %v1174
  %v2411 = vsel %vm2365, %v742, %v1176
  %v2412 = vsel %vm2365, %v743, %v1178
  %v2413 = vsel %vm2365, %v744, %v1180
  %v2414 = vsel %vm2365, %v745, %v1182
  %v2415 = vsel %vm2365, %v746, %v1184
  %v2416 = vsel %vm2365, %v747, %v1186
  %v2417 = vsel %vm2365, %v748, %v1188
  %v2418 = vsel %vm2365, %v749, %v1190
  %v2419 = vsel %vm2365, %v750, %v1192
  %v2420 = vsel %vm2365, %v751, %v1194
  %v2421 = vsel %vm2365, %v752, %v1196
  %v2422 = vsel %vm2365, %v753, %v1198
  %v2423 = vsel %vm2365, %v754, %v1200
  %v2424 = vsel %vm2365, %v755, %v1202
  %v2425 = vsel %vm2365, %v756, %v1204
  %v2426 = vsel %vm2365, %v757, %v1206
  %v2427 = vsel %vm2365, %v758, %v1208
  %v2428 = vsel %vm2365, %v759, %v1210
  %v2429 = vsel %vm2365, %v760, %v1212
  %vm2430 = vcmask 523264
  %v2431 = vsel %vm2430, %v2366, %v1342
  %v2432 = vsel %vm2430, %v2367, %v1344
  %v2433 = vsel %vm2430, %v2368, %v1346
  %v2434 = vsel %vm2430, %v2369, %v1348
  %v2435 = vsel %vm2430, %v2370, %v1350
  %v2436 = vsel %vm2430, %v2371, %v1352
  %v2437 = vsel %vm2430, %v2372, %v1354
  %v2438 = vsel %vm2430, %v2373, %v1356
  %v2439 = vsel %vm2430, %v2374, %v1358
  %v2440 = vsel %vm2430, %v2375, %v1360
  %v2441 = vsel %vm2430, %v2376, %v1362
  %v2442 = vsel %vm2430, %v2377, %v1364
  %v2443 = vsel %vm2430, %v2378, %v1366
  %v2444 = vsel %vm2430, %v2379, %v1368
  %v2445 = vsel %vm2430, %v2380, %v1370
  %v2446 = vsel %vm2430, %v2381, %v1372
  %v2447 = vsel %vm2430, %v2382, %v1374
  %v2448 = vsel %vm2430, %v2383, %v1376
  %v2449 = vsel %vm2430, %v2384, %v1378
  %v2450 = vsel %vm2430, %v2385, %v1380
  %v2451 = vsel %vm2430, %v2386, %v1382
  %v2452 = vsel %vm2430, %v2387, %v1384
  %v2453 = vsel %vm2430, %v2388, %v1386
  %v2454 = vsel %vm2430, %v2389, %v1388
  %v2455 = vsel %vm2430, %v2390, %v1390
  %v2456 = vsel %vm2430, %v2391, %v1392
  %v2457 = vsel %vm2430, %v2392, %v1394
  %v2458 = vsel %vm2430, %v2393, %v1396
  %v2459 = vsel %vm2430, %v2394, %v1398
  %v2460 = vsel %vm2430, %v2395, %v1400
  %v2461 = vsel %vm2430, %v2396, %v1402
  %v2462 = vsel %vm2430, %v2397, %v1404
  %v2463 = vsel %vm2430, %v2398, %v1406
  %v2464 = vsel %vm2430, %v2399, %v1408
  %v2465 = vsel %vm2430, %v2400, %v1410
  %v2466 = vsel %vm2430, %v2401, %v1412
  %v2467 = vsel %vm2430, %v2402, %v1414
  %v2468 = vsel %vm2430, %v2403, %v1416
  %v2469 = vsel %vm2430, %v2404, %v1418
  %v2470 = vsel %vm2430, %v2405, %v1420
  %v2471 = vsel %vm2430, %v2406, %v1422
  %v2472 = vsel %vm2430, %v2407, %v1424
  %v2473 = vsel %vm2430, %v2408, %v1426
  %v2474 = vsel %vm2430, %v2409, %v1428
  %v2475 = vsel %vm2430, %v2410, %v1430
  %v2476 = vsel %vm2430, %v2411, %v1432
  %v2477 = vsel %vm2430, %v2412, %v1434
  %v2478 = vsel %vm2430, %v2413, %v1436
  %v2479 = vsel %vm2430, %v2414, %v1438
  %v2480 = vsel %vm2430, %v2415, %v1440
  %v2481 = vsel %vm2430, %v2416, %v1442
  %v2482 = vsel %vm2430, %v2417, %v1444
  %v2483 = vsel %vm2430, %v2418, %v1446
  %v2484 = vsel %vm2430, %v2419, %v1448
  %v2485 = vsel %vm2430, %v2420, %v1450
  %v2486 = vsel %vm2430, %v2421, %v1452
  %v2487 = vsel %vm2430, %v2422, %v1454
  %v2488 = vsel %vm2430, %v2423, %v1456
  %v2489 = vsel %vm2430, %v2424, %v1458
  %v2490 = vsel %vm2430, %v2425, %v1460
  %v2491 = vsel %vm2430, %v2426, %v1462
  %v2492 = vsel %vm2430, %v2427, %v1464
  %v2493 = vsel %vm2430, %v2428, %v1466
  %v2494 = vsel %vm2430, %v2429, %v1468
  %vm2495 = vcmask 785408
  %v2496 = vsel %vm2495, %v2431, %v1598
  %v2497 = vsel %vm2495, %v2432, %v1600
  %v2498 = vsel %vm2495, %v2433, %v1602
  %v2499 = vsel %vm2495, %v2434, %v1604
  %v2500 = vsel %vm2495, %v2435, %v1606
  %v2501 = vsel %vm2495, %v2436, %v1608
  %v2502 = vsel %vm2495, %v2437, %v1610
  %v2503 = vsel %vm2495, %v2438, %v1612
  %v2504 = vsel %vm2495, %v2439, %v1614
  %v2505 = vsel %vm2495, %v2440, %v1616
  %v2506 = vsel %vm2495, %v2441, %v1618
  %v2507 = vsel %vm2495, %v2442, %v1620
  %v2508 = vsel %vm2495, %v2443, %v1622
  %v2509 = vsel %vm2495, %v2444, %v1624
  %v2510 = vsel %vm2495, %v2445, %v1626
  %v2511 = vsel %vm2495, %v2446, %v1628
  %v2512 = vsel %vm2495, %v2447, %v1630
  %v2513 = vsel %vm2495, %v2448, %v1632
  %v2514 = vsel %vm2495, %v2449, %v1634
  %v2515 = vsel %vm2495, %v2450, %v1636
  %v2516 = vsel %vm2495, %v2451, %v1638
  %v2517 = vsel %vm2495, %v2452, %v1640
  %v2518 = vsel %vm2495, %v2453, %v1642
  %v2519 = vsel %vm2495, %v2454, %v1644
  %v2520 = vsel %vm2495, %v2455, %v1646
  %v2521 = vsel %vm2495, %v2456, %v1648
  %v2522 = vsel %vm2495, %v2457, %v1650
  %v2523 = vsel %vm2495, %v2458, %v1652
  %v2524 = vsel %vm2495, %v2459, %v1654
  %v2525 = vsel %vm2495, %v2460, %v1656
  %v2526 = vsel %vm2495, %v2461, %v1658
  %v2527 = vsel %vm2495, %v2462, %v1660
  %v2528 = vsel %vm2495, %v2463, %v1662
  %v2529 = vsel %vm2495, %v2464, %v1664
  %v2530 = vsel %vm2495, %v2465, %v1666
  %v2531 = vsel %vm2495, %v2466, %v1668
  %v2532 = vsel %vm2495, %v2467, %v1670
  %v2533 = vsel %vm2495, %v2468, %v1672
  %v2534 = vsel %vm2495, %v2469, %v1674
  %v2535 = vsel %vm2495, %v2470, %v1676
  %v2536 = vsel %vm2495, %v2471, %v1678
  %v2537 = vsel %vm2495, %v2472, %v1680
  %v2538 = vsel %vm2495, %v2473, %v1682
  %v2539 = vsel %vm2495, %v2474, %v1684
  %v2540 = vsel %vm2495, %v2475, %v1686
  %v2541 = vsel %vm2495, %v2476, %v1688
  %v2542 = vsel %vm2495, %v2477, %v1690
  %v2543 = vsel %vm2495, %v2478, %v1692
  %v2544 = vsel %vm2495, %v2479, %v1694
  %v2545 = vsel %vm2495, %v2480, %v1696
  %v2546 = vsel %vm2495, %v2481, %v1698
  %v2547 = vsel %vm2495, %v2482, %v1700
  %v2548 = vsel %vm2495, %v2483, %v1702
  %v2549 = vsel %vm2495, %v2484, %v1704
  %v2550 = vsel %vm2495, %v2485, %v1706
  %v2551 = vsel %vm2495, %v2486, %v1708
  %v2552 = vsel %vm2495, %v2487, %v1710
  %v2553 = vsel %vm2495, %v2488, %v1712
  %v2554 = vsel %vm2495, %v2489, %v1714
  %v2555 = vsel %vm2495, %v2490, %v1716
  %v2556 = vsel %vm2495, %v2491, %v1718
  %v2557 = vsel %vm2495, %v2492, %v1720
  %v2558 = vsel %vm2495, %v2493, %v1722
  %v2559 = vsel %vm2495, %v2494, %v1724
  %v2560 = vsel %vm2365, %v888, %v1790
  %v2561 = vsel %vm2365, %v887, %v1792
  %v2562 = vsel %vm2365, %v886, %v1794
  %v2563 = vsel %vm2365, %v885, %v1796
  %v2564 = vsel %vm2365, %v884, %v1798
  %v2565 = vsel %vm2365, %v883, %v1800
  %v2566 = vsel %vm2365, %v882, %v1802
  %v2567 = vsel %vm2365, %v881, %v1804
  %v2568 = vsel %vm2365, %v880, %v1806
  %v2569 = vsel %vm2365, %v879, %v1808
  %v2570 = vsel %vm2365, %v878, %v1810
  %v2571 = vsel %vm2365, %v877, %v1812
  %v2572 = vsel %vm2365, %v876, %v1814
  %v2573 = vsel %vm2365, %v875, %v1816
  %v2574 = vsel %vm2365, %v874, %v1818
  %v2575 = vsel %vm2365, %v873, %v1820
  %v2576 = vsel %vm2365, %v872, %v1822
  %v2577 = vsel %vm2365, %v871, %v1824
  %v2578 = vsel %vm2365, %v870, %v1826
  %v2579 = vsel %vm2365, %v869, %v1828
  %v2580 = vsel %vm2365, %v868, %v1830
  %v2581 = vsel %vm2365, %v867, %v1832
  %v2582 = vsel %vm2365, %v866, %v1834
  %v2583 = vsel %vm2365, %v865, %v1836
  %v2584 = vsel %vm2365, %v864, %v1838
  %v2585 = vsel %vm2365, %v863, %v1840
  %v2586 = vsel %vm2365, %v862, %v1842
  %v2587 = vsel %vm2365, %v861, %v1844
  %v2588 = vsel %vm2365, %v860, %v1846
  %v2589 = vsel %vm2365, %v859, %v1848
  %v2590 = vsel %vm2365, %v858, %v1850
  %v2591 = vsel %vm2365, %v857, %v1852
  %v2592 = vsel %vm2365, %v856, %v1854
  %v2593 = vsel %vm2365, %v855, %v1856
  %v2594 = vsel %vm2365, %v854, %v1858
  %v2595 = vsel %vm2365, %v853, %v1860
  %v2596 = vsel %vm2365, %v852, %v1862
  %v2597 = vsel %vm2365, %v851, %v1864
  %v2598 = vsel %vm2365, %v850, %v1866
  %v2599 = vsel %vm2365, %v849, %v1868
  %v2600 = vsel %vm2365, %v848, %v1870
  %v2601 = vsel %vm2365, %v847, %v1872
  %v2602 = vsel %vm2365, %v846, %v1874
  %v2603 = vsel %vm2365, %v845, %v1876
  %v2604 = vsel %vm2365, %v844, %v1878
  %v2605 = vsel %vm2365, %v843, %v1880
  %v2606 = vsel %vm2365, %v842, %v1882
  %v2607 = vsel %vm2365, %v841, %v1884
  %v2608 = vsel %vm2365, %v840, %v1886
  %v2609 = vsel %vm2365, %v839, %v1888
  %v2610 = vsel %vm2365, %v838, %v1890
  %v2611 = vsel %vm2365, %v837, %v1892
  %v2612 = vsel %vm2365, %v836, %v1894
  %v2613 = vsel %vm2365, %v835, %v1896
  %v2614 = vsel %vm2365, %v834, %v1898
  %v2615 = vsel %vm2365, %v833, %v1900
  %v2616 = vsel %vm2365, %v832, %v1902
  %v2617 = vsel %vm2365, %v831, %v1904
  %v2618 = vsel %vm2365, %v830, %v1906
  %v2619 = vsel %vm2365, %v829, %v1908
  %v2620 = vsel %vm2365, %v828, %v1910
  %v2621 = vsel %vm2365, %v891, %v1912
  %v2622 = vsel %vm2365, %v890, %v1914
  %v2623 = vsel %vm2365, %v889, %v1916
  %v2624 = vsel %vm2430, %v2560, %v1982
  %v2625 = vsel %vm2430, %v2561, %v1984
  %v2626 = vsel %vm2430, %v2562, %v1986
  %v2627 = vsel %vm2430, %v2563, %v1988
  %v2628 = vsel %vm2430, %v2564, %v1990
  %v2629 = vsel %vm2430, %v2565, %v1992
  %v2630 = vsel %vm2430, %v2566, %v1994
  %v2631 = vsel %vm2430, %v2567, %v1996
  %v2632 = vsel %vm2430, %v2568, %v1998
  %v2633 = vsel %vm2430, %v2569, %v2000
  %v2634 = vsel %vm2430, %v2570, %v2002
  %v2635 = vsel %vm2430, %v2571, %v2004
  %v2636 = vsel %vm2430, %v2572, %v2006
  %v2637 = vsel %vm2430, %v2573, %v2008
  %v2638 = vsel %vm2430, %v2574, %v2010
  %v2639 = vsel %vm2430, %v2575, %v2012
  %v2640 = vsel %vm2430, %v2576, %v2014
  %v2641 = vsel %vm2430, %v2577, %v2016
  %v2642 = vsel %vm2430, %v2578, %v2018
  %v2643 = vsel %vm2430, %v2579, %v2020
  %v2644 = vsel %vm2430, %v2580, %v2022
  %v2645 = vsel %vm2430, %v2581, %v2024
  %v2646 = vsel %vm2430, %v2582, %v2026
  %v2647 = vsel %vm2430, %v2583, %v2028
  %v2648 = vsel %vm2430, %v2584, %v2030
  %v2649 = vsel %vm2430, %v2585, %v2032
  %v2650 = vsel %vm2430, %v2586, %v2034
  %v2651 = vsel %vm2430, %v2587, %v2036
  %v2652 = vsel %vm2430, %v2588, %v2038
  %v2653 = vsel %vm2430, %v2589, %v2040
  %v2654 = vsel %vm2430, %v2590, %v2042
  %v2655 = vsel %vm2430, %v2591, %v2044
  %v2656 = vsel %vm2430, %v2592, %v2046
  %v2657 = vsel %vm2430, %v2593, %v2048
  %v2658 = vsel %vm2430, %v2594, %v2050
  %v2659 = vsel %vm2430, %v2595, %v2052
  %v2660 = vsel %vm2430, %v2596, %v2054
  %v2661 = vsel %vm2430, %v2597, %v2056
  %v2662 = vsel %vm2430, %v2598, %v2058
  %v2663 = vsel %vm2430, %v2599, %v2060
  %v2664 = vsel %vm2430, %v2600, %v2062
  %v2665 = vsel %vm2430, %v2601, %v2064
  %v2666 = vsel %vm2430, %v2602, %v2066
  %v2667 = vsel %vm2430, %v2603, %v2068
  %v2668 = vsel %vm2430, %v2604, %v2070
  %v2669 = vsel %vm2430, %v2605, %v2072
  %v2670 = vsel %vm2430, %v2606, %v2074
  %v2671 = vsel %vm2430, %v2607, %v2076
  %v2672 = vsel %vm2430, %v2608, %v2078
  %v2673 = vsel %vm2430, %v2609, %v2080
  %v2674 = vsel %vm2430, %v2610, %v2082
  %v2675 = vsel %vm2430, %v2611, %v2084
  %v2676 = vsel %vm2430, %v2612, %v2086
  %v2677 = vsel %vm2430, %v2613, %v2088
  %v2678 = vsel %vm2430, %v2614, %v2090
  %v2679 = vsel %vm2430, %v2615, %v2092
  %v2680 = vsel %vm2430, %v2616, %v2094
  %v2681 = vsel %vm2430, %v2617, %v2096
  %v2682 = vsel %vm2430, %v2618, %v2098
  %v2683 = vsel %vm2430, %v2619, %v2100
  %v2684 = vsel %vm2430, %v2620, %v2102
  %v2685 = vsel %vm2430, %v2621, %v2104
  %v2686 = vsel %vm2430, %v2622, %v2106
  %v2687 = vsel %vm2430, %v2623, %v2108
  %v2688 = vsel %vm2495, %v2624, %v2174
  %v2689 = vsel %vm2495, %v2625, %v2176
  %v2690 = vsel %vm2495, %v2626, %v2178
  %v2691 = vsel %vm2495, %v2627, %v2180
  %v2692 = vsel %vm2495, %v2628, %v2182
  %v2693 = vsel %vm2495, %v2629, %v2184
  %v2694 = vsel %vm2495, %v2630, %v2186
  %v2695 = vsel %vm2495, %v2631, %v2188
  %v2696 = vsel %vm2495, %v2632, %v2190
  %v2697 = vsel %vm2495, %v2633, %v2192
  %v2698 = vsel %vm2495, %v2634, %v2194
  %v2699 = vsel %vm2495, %v2635, %v2196
  %v2700 = vsel %vm2495, %v2636, %v2198
  %v2701 = vsel %vm2495, %v2637, %v2200
  %v2702 = vsel %vm2495, %v2638, %v2202
  %v2703 = vsel %vm2495, %v2639, %v2204
  %v2704 = vsel %vm2495, %v2640, %v2206
  %v2705 = vsel %vm2495, %v2641, %v2208
  %v2706 = vsel %vm2495, %v2642, %v2210
  %v2707 = vsel %vm2495, %v2643, %v2212
  %v2708 = vsel %vm2495, %v2644, %v2214
  %v2709 = vsel %vm2495, %v2645, %v2216
  %v2710 = vsel %vm2495, %v2646, %v2218
  %v2711 = vsel %vm2495, %v2647, %v2220
  %v2712 = vsel %vm2495, %v2648, %v2222
  %v2713 = vsel %vm2495, %v2649, %v2224
  %v2714 = vsel %vm2495, %v2650, %v2226
  %v2715 = vsel %vm2495, %v2651, %v2228
  %v2716 = vsel %vm2495, %v2652, %v2230
  %v2717 = vsel %vm2495, %v2653, %v2232
  %v2718 = vsel %vm2495, %v2654, %v2234
  %v2719 = vsel %vm2495, %v2655, %v2236
  %v2720 = vsel %vm2495, %v2656, %v2238
  %v2721 = vsel %vm2495, %v2657, %v2240
  %v2722 = vsel %vm2495, %v2658, %v2242
  %v2723 = vsel %vm2495, %v2659, %v2244
  %v2724 = vsel %vm2495, %v2660, %v2246
  %v2725 = vsel %vm2495, %v2661, %v2248
  %v2726 = vsel %vm2495, %v2662, %v2250
  %v2727 = vsel %vm2495, %v2663, %v2252
  %v2728 = vsel %vm2495, %v2664, %v2254
  %v2729 = vsel %vm2495, %v2665, %v2256
  %v2730 = vsel %vm2495, %v2666, %v2258
  %v2731 = vsel %vm2495, %v2667, %v2260
  %v2732 = vsel %vm2495, %v2668, %v2262
  %v2733 = vsel %vm2495, %v2669, %v2264
  %v2734 = vsel %vm2495, %v2670, %v2266
  %v2735 = vsel %vm2495, %v2671, %v2268
  %v2736 = vsel %vm2495, %v2672, %v2270
  %v2737 = vsel %vm2495, %v2673, %v2272
  %v2738 = vsel %vm2495, %v2674, %v2274
  %v2739 = vsel %vm2495, %v2675, %v2276
  %v2740 = vsel %vm2495, %v2676, %v2278
  %v2741 = vsel %vm2495, %v2677, %v2280
  %v2742 = vsel %vm2495, %v2678, %v2282
  %v2743 = vsel %vm2495, %v2679, %v2284
  %v2744 = vsel %vm2495, %v2680, %v2286
  %v2745 = vsel %vm2495, %v2681, %v2288
  %v2746 = vsel %vm2495, %v2682, %v2290
  %v2747 = vsel %vm2495, %v2683, %v2292
  %v2748 = vsel %vm2495, %v2684, %v2294
  %v2749 = vsel %vm2495, %v2685, %v2296
  %v2750 = vsel %vm2495, %v2686, %v2298
  %v2751 = vsel %vm2495, %v2687, %v2300
  %v2752 = vld [vmem:[%s3] sm:$0xff]
  %v2753 = vld [vmem:[%s3 + $0x8] sm:$0xff]
  %v2754 = vld [vmem:[%s3 + $0x10] sm:$0xff]
  %v2755 = vld [vmem:[%s3 + $0x18] sm:$0xff]
  %v2756 = vld [vmem:[%s3 + $0x20] sm:$0xff]
  %v2757 = vld [vmem:[%s3 + $0x28] sm:$0xff]
  %v2758 = vld [vmem:[%s3 + $0x30] sm:$0xff]
  %v2759 = vld [vmem:[%s3 + $0x38] sm:$0xff]
  %v2760 = vld [vmem:[%s3 + $0x40] sm:$0xff]
  %v2761 = vld [vmem:[%s3 + $0x48] sm:$0xff]
  %v2762 = vld [vmem:[%s3 + $0x50] sm:$0xff]
  %v2763 = vld [vmem:[%s3 + $0x58] sm:$0xff]
  %v2764 = vld [vmem:[%s3 + $0x60] sm:$0xff]
  %v2765 = vld [vmem:[%s3 + $0x68] sm:$0xff]
  %v2766 = vld [vmem:[%s3 + $0x70] sm:$0xff]
  %v2767 = vld [vmem:[%s3 + $0x78] sm:$0xff]
  %v2768 = vld [vmem:[%s3 + $0x80] sm:$0xff]
  %v2769 = vld [vmem:[%s3 + $0x88] sm:$0xff]
  %v2770 = vld [vmem:[%s3 + $0x90] sm:$0xff]
  %v2771 = vld [vmem:[%s3 + $0x98] sm:$0xff]
  %v2772 = vld [vmem:[%s3 + $0xa0] sm:$0xff]
  %v2773 = vld [vmem:[%s3 + $0xa8] sm:$0xff]
  %v2774 = vld [vmem:[%s3 + $0xb0] sm:$0xff]
  %v2775 = vld [vmem:[%s3 + $0xb8] sm:$0xff]
  %v2776 = vld [vmem:[%s3 + $0xc0] sm:$0xff]
  %v2777 = vld [vmem:[%s3 + $0xc8] sm:$0xff]
  %v2778 = vld [vmem:[%s3 + $0xd0] sm:$0xff]
  %v2779 = vld [vmem:[%s3 + $0xd8] sm:$0xff]
  %v2780 = vld [vmem:[%s3 + $0xe0] sm:$0xff]
  %v2781 = vld [vmem:[%s3 + $0xe8] sm:$0xff]
  %v2782 = vld [vmem:[%s3 + $0xf0] sm:$0xff]
  %v2783 = vld [vmem:[%s3 + $0xf8] sm:$0xff]
  %v2784 = vld [vmem:[%s3 + $0x100] sm:$0xff]
  %v2785 = vld [vmem:[%s3 + $0x108] sm:$0xff]
  %v2786 = vld [vmem:[%s3 + $0x110] sm:$0xff]
  %v2787 = vld [vmem:[%s3 + $0x118] sm:$0xff]
  %v2788 = vld [vmem:[%s4] sm:$0x1]
  %v2790 = vlaneseq
  %v2791 = vshrl.u32 %v2790, 7
  %v2792 = vsub.s32 0, %v2791
  %v2793 = vrot.slane %v2788, %v2792
  %v2795 = vsel %vm2365, %v1015, 0
  %v2797 = vsel %vm2365, %v1014, 0
  %v2799 = vsel %vm2365, %v1013, 0
  %v2801 = vsel %vm2365, %v1012, 0
  %v2803 = vsel %vm2365, %v1011, 0
  %v2805 = vsel %vm2365, %v1010, 0
  %v2807 = vsel %vm2365, %v1009, 0
  %v2809 = vsel %vm2365, %v1008, 0
  %v2811 = vsel %vm2365, %v1007, 0
  %v2813 = vsel %vm2365, %v1006, 0
  %v2815 = vsel %vm2365, %v1005, 0
  %v2817 = vsel %vm2365, %v1004, 0
  %v2819 = vsel %vm2365, %v1003, 0
  %v2821 = vsel %vm2365, %v1002, 0
  %v2823 = vsel %vm2365, %v1001, 0
  %v2825 = vsel %vm2365, %v1000, 0
  %v2827 = vsel %vm2365, %v999, 0
  %v2829 = vsel %vm2365, %v998, 0
  %v2831 = vsel %vm2365, %v997, 0
  %v2833 = vsel %vm2365, %v996, 0
  %v2835 = vsel %vm2365, %v995, 0
  %v2837 = vsel %vm2365, %v994, 0
  %v2839 = vsel %vm2365, %v993, 0
  %v2841 = vsel %vm2365, %v992, 0
  %v2843 = vsel %vm2365, %v991, 0
  %v2845 = vsel %vm2365, %v990, 0
  %v2847 = vsel %vm2365, %v989, 0
  %v2849 = vsel %vm2365, %v988, 0
  %v2851 = vsel %vm2365, %v987, 0
  %v2853 = vsel %vm2365, %v986, 0
  %v2855 = vsel %vm2365, %v985, 0
  %v2857 = vsel %vm2365, %v984, 0
  %v2859 = vsel %vm2365, %v983, 0
  %v2861 = vsel %vm2365, %v982, 0
  %v2863 = vsel %vm2365, %v981, 0
  %v2865 = vsel %vm2365, %v980, 0
  %v2867 = vsel %vm2365, %v979, 0
  %v2869 = vsel %vm2365, %v978, 0
  %v2871 = vsel %vm2365, %v977, 0
  %v2873 = vsel %vm2365, %v976, 0
  %v2875 = vsel %vm2365, %v975, 0
  %v2877 = vsel %vm2365, %v974, 0
  %v2879 = vsel %vm2365, %v973, 0
  %v2881 = vsel %vm2365, %v972, 0
  %v2883 = vsel %vm2365, %v971, 0
  %v2885 = vsel %vm2365, %v970, 0
  %v2887 = vsel %vm2365, %v969, 0
  %v2889 = vsel %vm2365, %v968, 0
  %v2891 = vsel %vm2365, %v967, 0
  %v2893 = vsel %vm2365, %v966, 0
  %v2895 = vsel %vm2365, %v965, 0
  %v2897 = vsel %vm2365, %v964, 0
  %v2899 = vsel %vm2365, %v963, 0
  %v2901 = vsel %vm2365, %v962, 0
  %v2903 = vsel %vm2365, %v961, 0
  %v2905 = vsel %vm2365, %v960, 0
  %v2907 = vsel %vm2365, %v959, 0
  %v2909 = vsel %vm2365, %v958, 0
  %v2911 = vsel %vm2365, %v957, 0
  %v2913 = vsel %vm2365, %v1020, 0
  %v2915 = vsel %vm2365, %v1019, 0
  %v2917 = vsel %vm2365, %v1018, 0
  %v2919 = vsel %vm2365, %v1017, 0
  %v2921 = vsel %vm2365, %v1016, 0
  %2923 = vmatprep.subr.mxu0 0.0
  %2924 = vmatpush1.msra.mxu0 %v2752
  %2925 = vmatprep.subr.mxu0 0.0
  %2926 = vmatpush1.msra.mxu0 %v2753
  %2927 = vmatprep.subr.mxu0 0.0
  %2928 = vmatpush1.msra.mxu0 %v2754
  %2929 = vmatprep.subr.mxu0 0.0
  %2930 = vmatpush1.msra.mxu0 %v2755
  %2931 = vmatprep.subr.mxu0 0.0
  %2932 = vmatpush1.msra.mxu0 %v2756
  %2933 = vmatprep.subr.mxu0 0.0
  %2934 = vmatpush1.msra.mxu0 %v2757
  %2935 = vmatprep.subr.mxu0 0.0
  %2936 = vmatpush1.msra.mxu0 %v2758
  %2937 = vmatprep.subr.mxu0 0.0
  %2938 = vmatpush1.msra.mxu0 %v2759
  %2939 = vmatprep.subr.mxu0 0.0
  %2940 = vmatpush1.msra.mxu0 %v2760
  %2941 = vmatprep.subr.mxu0 0.0
  %2942 = vmatpush1.msra.mxu0 %v2761
  %2943 = vmatprep.subr.mxu0 0.0
  %2944 = vmatpush1.msra.mxu0 %v2762
  %2945 = vmatprep.subr.mxu0 0.0
  %2946 = vmatpush1.msra.mxu0 %v2763
  %2947 = vmatprep.subr.mxu0 0.0
  %2948 = vmatpush1.msra.mxu0 %v2764
  %2949 = vmatprep.subr.mxu0 0.0
  %2950 = vmatpush1.msra.mxu0 %v2765
  %2951 = vmatprep.subr.mxu0 0.0
  %2952 = vmatpush1.msra.mxu0 %v2766
  %2953 = vmatprep.subr.mxu0 0.0
  %2954 = vmatpush1.msra.mxu0 %v2767
  %2955 = vmatprep.subr.mxu0 0.0
  %2956 = vmatpush1.msra.mxu0 %v2768
  %2957 = vmatprep.subr.mxu0 0.0
  %2958 = vmatpush1.msra.mxu0 %v2769
  %2959 = vmatprep.subr.mxu0 0.0
  %2960 = vmatpush1.msra.mxu0 %v2770
  %2961 = vmatprep.subr.mxu0 0.0
  %2962 = vmatpush1.msra.mxu0 %v2771
  %2963 = vmatprep.subr.mxu0 0.0
  %2964 = vmatpush1.msra.mxu0 %v2772
  %2965 = vmatprep.subr.mxu0 0.0
  %2966 = vmatpush1.msra.mxu0 %v2773
  %2967 = vmatprep.subr.mxu0 0.0
  %2968 = vmatpush1.msra.mxu0 %v2774
  %2969 = vmatprep.subr.mxu0 0.0
  %2970 = vmatpush1.msra.mxu0 %v2775
  %2971 = vmatprep.subr.mxu0 0.0
  %2972 = vmatpush1.msra.mxu0 %v2776
  %2973 = vmatprep.subr.mxu0 0.0
  %2974 = vmatpush1.msra.mxu0 %v2777
  %2975 = vmatprep.subr.mxu0 0.0
  %2976 = vmatpush1.msra.mxu0 %v2778
  %2977 = vmatprep.subr.mxu0 0.0
  %2978 = vmatpush1.msra.mxu0 %v2779
  %2979 = vmatprep.subr.mxu0 0.0
  %2980 = vmatpush1.msra.mxu0 %v2780
  %2981 = vmatprep.subr.mxu0 0.0
  %2982 = vmatpush1.msra.mxu0 %v2781
  %2983 = vmatprep.subr.mxu0 0.0
  %2984 = vmatpush1.msra.mxu0 %v2782
  %2985 = vmatprep.subr.mxu0 0.0
  %2986 = vmatpush1.msra.mxu0 %v2783
  %2987 = vmatprep.mubr.f32.mxu0 %v2688
  %2988 = vmatmul.mubr.f32.gmra.mrb[0].mxu0 %v2496
  %v2989 = vpop.f32.mrb[0].mxu0
  %v2990 = vadd.f32 %v2793, %v2989
  %v2991 = vpop.f32.mrb[0].mxu0
  %2992 = vmatprep.mubr.f32.mxu0 %v2689
  %2993 = vmatmul.mubr.f32.gmra.mrb[0].mxu0 %v2497
  %v2994 = vpop.f32.mrb[0].mxu0
  %v2995 = vadd.f32 %v2793, %v2994
  %v2996 = vpop.f32.mrb[0].mxu0
  %2997 = vmatprep.mubr.f32.mxu0 %v2690
  %2998 = vmatmul.mubr.f32.gmra.mrb[0].mxu0 %v2498
  %v2999 = vpop.f32.mrb[0].mxu0
  %v3000 = vadd.f32 %v2793, %v2999
  %v3001 = vpop.f32.mrb[0].mxu0
  %3002 = vmatprep.mubr.f32.mxu0 %v2691
  %3003 = vmatmul.mubr.f32.gmra.mrb[0].mxu0 %v2499
  %v3004 = vpop.f32.mrb[0].mxu0
  %v3005 = vadd.f32 %v2793, %v3004
  %v3006 = vpop.f32.mrb[0].mxu0
  %3007 = vmatprep.mubr.f32.mxu0 %v2692
  %3008 = vmatmul.mubr.f32.gmra.mrb[0].mxu0 %v2500
  %v3009 = vpop.f32.mrb[0].mxu0
  %v3010 = vadd.f32 %v2793, %v3009
  %v3011 = vpop.f32.mrb[0].mxu0
  %3012 = vmatprep.mubr.f32.mxu0 %v2693
  %3013 = vmatmul.mubr.f32.gmra.mrb[0].mxu0 %v2501
  %v3014 = vpop.f32.mrb[0].mxu0
  %v3015 = vadd.f32 %v2793, %v3014
  %v3016 = vpop.f32.mrb[0].mxu0
  %3017 = vmatprep.mubr.f32.mxu0 %v2694
  %3018 = vmatmul.mubr.f32.gmra.mrb[0].mxu0 %v2502
  %v3019 = vpop.f32.mrb[0].mxu0
  %v3020 = vadd.f32 %v2793, %v3019
  %v3021 = vpop.f32.mrb[0].mxu0
  %3022 = vmatprep.mubr.f32.mxu0 %v2695
  %3023 = vmatmul.mubr.f32.gmra.mrb[0].mxu0 %v2503
  %v3024 = vpop.f32.mrb[0].mxu0
  %v3025 = vadd.f32 %v2793, %v3024
  %v3026 = vpop.f32.mrb[0].mxu0
  %3027 = vmatprep.mubr.f32.mxu0 %v2696
  %3028 = vmatmul.mubr.f32.gmra.mrb[0].mxu0 %v2504
  %v3029 = vpop.f32.mrb[0].mxu0
  %v3030 = vadd.f32 %v2793, %v3029
  %v3031 = vpop.f32.mrb[0].mxu0
  %3032 = vmatprep.mubr.f32.mxu0 %v2697
  %3033 = vmatmul.mubr.f32.gmra.mrb[0].mxu0 %v2505
  %v3034 = vpop.f32.mrb[0].mxu0
  %v3035 = vadd.f32 %v2793, %v3034
  %v3036 = vpop.f32.mrb[0].mxu0
  %3037 = vmatprep.mubr.f32.mxu0 %v2698
  %3038 = vmatmul.mubr.f32.gmra.mrb[0].mxu0 %v2506
  %v3039 = vpop.f32.mrb[0].mxu0
  %v3040 = vadd.f32 %v2793, %v3039
  %v3041 = vpop.f32.mrb[0].mxu0
  %3042 = vmatprep.mubr.f32.mxu0 %v2699
  %3043 = vmatmul.mubr.f32.gmra.mrb[0].mxu0 %v2507
  %v3044 = vpop.f32.mrb[0].mxu0
  %v3045 = vadd.f32 %v2793, %v3044
  %v3046 = vpop.f32.mrb[0].mxu0
  %3047 = vmatprep.mubr.f32.mxu0 %v2700
  %3048 = vmatmul.mubr.f32.gmra.mrb[0].mxu0 %v2508
  %v3049 = vpop.f32.mrb[0].mxu0
  %v3050 = vadd.f32 %v2793, %v3049
  %v3051 = vpop.f32.mrb[0].mxu0
  %3052 = vmatprep.mubr.f32.mxu0 %v2701
  %3053 = vmatmul.mubr.f32.gmra.mrb[0].mxu0 %v2509
  %v3054 = vpop.f32.mrb[0].mxu0
  %v3055 = vadd.f32 %v2793, %v3054
  %v3056 = vpop.f32.mrb[0].mxu0
  %3057 = vmatprep.mubr.f32.mxu0 %v2702
  %3058 = vmatmul.mubr.f32.gmra.mrb[0].mxu0 %v2510
  %v3059 = vpop.f32.mrb[0].mxu0
  %v3060 = vadd.f32 %v2793, %v3059
  %v3061 = vpop.f32.mrb[0].mxu0
  %3062 = vmatprep.mubr.f32.mxu0 %v2703
  %3063 = vmatmul.mubr.f32.gmra.mrb[0].mxu0 %v2511
  %v3064 = vpop.f32.mrb[0].mxu0
  %v3065 = vadd.f32 %v2793, %v3064
  %v3066 = vpop.f32.mrb[0].mxu0
  %3067 = vmatprep.mubr.f32.mxu0 %v2704
  %3068 = vmatmul.mubr.f32.gmra.mrb[0].mxu0 %v2512
  %v3069 = vpop.f32.mrb[0].mxu0
  %v3070 = vadd.f32 %v2793, %v3069
  %v3071 = vpop.f32.mrb[0].mxu0
  %3072 = vmatprep.mubr.f32.mxu0 %v2705
  %3073 = vmatmul.mubr.f32.gmra.mrb[0].mxu0 %v2513
  %v3074 = vpop.f32.mrb[0].mxu0
  %v3075 = vadd.f32 %v2793, %v3074
  %v3076 = vpop.f32.mrb[0].mxu0
  %3077 = vmatprep.mubr.f32.mxu0 %v2706
  %3078 = vmatmul.mubr.f32.gmra.mrb[0].mxu0 %v2514
  %v3079 = vpop.f32.mrb[0].mxu0
  %v3080 = vadd.f32 %v2793, %v3079
  %v3081 = vpop.f32.mrb[0].mxu0
  %3082 = vmatprep.mubr.f32.mxu0 %v2707
  %3083 = vmatmul.mubr.f32.gmra.mrb[0].mxu0 %v2515
  %v3084 = vpop.f32.mrb[0].mxu0
  %v3085 = vadd.f32 %v2793, %v3084
  %v3086 = vpop.f32.mrb[0].mxu0
  %3087 = vmatprep.mubr.f32.mxu0 %v2708
  %3088 = vmatmul.mubr.f32.gmra.mrb[0].mxu0 %v2516
  %v3089 = vpop.f32.mrb[0].mxu0
  %v3090 = vadd.f32 %v2793, %v3089
  %v3091 = vpop.f32.mrb[0].mxu0
  %3092 = vmatprep.mubr.f32.mxu0 %v2709
  %3093 = vmatmul.mubr.f32.gmra.mrb[0].mxu0 %v2517
  %v3094 = vpop.f32.mrb[0].mxu0
  %v3095 = vadd.f32 %v2793, %v3094
  %v3096 = vpop.f32.mrb[0].mxu0
  %3097 = vmatprep.mubr.f32.mxu0 %v2710
  %3098 = vmatmul.mubr.f32.gmra.mrb[0].mxu0 %v2518
  %v3099 = vpop.f32.mrb[0].mxu0
  %v3100 = vadd.f32 %v2793, %v3099
  %v3101 = vpop.f32.mrb[0].mxu0
  %3102 = vmatprep.mubr.f32.mxu0 %v2711
  %3103 = vmatmul.mubr.f32.gmra.mrb[0].mxu0 %v2519
  %v3104 = vpop.f32.mrb[0].mxu0
  %v3105 = vadd.f32 %v2793, %v3104
  %v3106 = vpop.f32.mrb[0].mxu0
  %3107 = vmatprep.mubr.f32.mxu0 %v2712
  %3108 = vmatmul.mubr.f32.gmra.mrb[0].mxu0 %v2520
  %v3109 = vpop.f32.mrb[0].mxu0
  %v3110 = vadd.f32 %v2793, %v3109
  %v3111 = vpop.f32.mrb[0].mxu0
  %3112 = vmatprep.mubr.f32.mxu0 %v2713
  %3113 = vmatmul.mubr.f32.gmra.mrb[0].mxu0 %v2521
  %v3114 = vpop.f32.mrb[0].mxu0
  %v3115 = vadd.f32 %v2793, %v3114
  %v3116 = vpop.f32.mrb[0].mxu0
  %3117 = vmatprep.mubr.f32.mxu0 %v2714
  %3118 = vmatmul.mubr.f32.gmra.mrb[0].mxu0 %v2522
  %v3119 = vpop.f32.mrb[0].mxu0
  %v3120 = vadd.f32 %v2793, %v3119
  %v3121 = vpop.f32.mrb[0].mxu0
  %3122 = vmatprep.mubr.f32.mxu0 %v2715
  %3123 = vmatmul.mubr.f32.gmra.mrb[0].mxu0 %v2523
  %v3124 = vpop.f32.mrb[0].mxu0
  %v3125 = vadd.f32 %v2793, %v3124
  %v3126 = vpop.f32.mrb[0].mxu0
  %3127 = vmatprep.mubr.f32.mxu0 %v2716
  %3128 = vmatmul.mubr.f32.gmra.mrb[0].mxu0 %v2524
  %v3129 = vpop.f32.mrb[0].mxu0
  %v3130 = vadd.f32 %v2793, %v3129
  %v3131 = vpop.f32.mrb[0].mxu0
  %3132 = vmatprep.mubr.f32.mxu0 %v2717
  %3133 = vmatmul.mubr.f32.gmra.mrb[0].mxu0 %v2525
  %v3134 = vpop.f32.mrb[0].mxu0
  %v3135 = vadd.f32 %v2793, %v3134
  %v3136 = vpop.f32.mrb[0].mxu0
  %3137 = vmatprep.mubr.f32.mxu0 %v2718
  %3138 = vmatmul.mubr.f32.gmra.mrb[0].mxu0 %v2526
  %v3139 = vpop.f32.mrb[0].mxu0
  %v3140 = vadd.f32 %v2793, %v3139
  %v3141 = vpop.f32.mrb[0].mxu0
  %3142 = vmatprep.mubr.f32.mxu0 %v2719
  %3143 = vmatmul.mubr.f32.gmra.mrb[0].mxu0 %v2527
  %v3144 = vpop.f32.mrb[0].mxu0
  %v3145 = vadd.f32 %v2793, %v3144
  %v3146 = vpop.f32.mrb[0].mxu0
  %3147 = vmatprep.mubr.f32.mxu0 %v2720
  %3148 = vmatmul.mubr.f32.gmra.mrb[0].mxu0 %v2528
  %v3149 = vpop.f32.mrb[0].mxu0
  %v3150 = vadd.f32 %v2793, %v3149
  %v3151 = vpop.f32.mrb[0].mxu0
  %3152 = vmatprep.mubr.f32.mxu0 %v2721
  %3153 = vmatmul.mubr.f32.gmra.mrb[0].mxu0 %v2529
  %v3154 = vpop.f32.mrb[0].mxu0
  %v3155 = vadd.f32 %v2793, %v3154
  %v3156 = vpop.f32.mrb[0].mxu0
  %3157 = vmatprep.mubr.f32.mxu0 %v2722
  %3158 = vmatmul.mubr.f32.gmra.mrb[0].mxu0 %v2530
  %v3159 = vpop.f32.mrb[0].mxu0
  %v3160 = vadd.f32 %v2793, %v3159
  %v3161 = vpop.f32.mrb[0].mxu0
  %3162 = vmatprep.mubr.f32.mxu0 %v2723
  %3163 = vmatmul.mubr.f32.gmra.mrb[0].mxu0 %v2531
  %v3164 = vpop.f32.mrb[0].mxu0
  %v3165 = vadd.f32 %v2793, %v3164
  %v3166 = vpop.f32.mrb[0].mxu0
  %3167 = vmatprep.mubr.f32.mxu0 %v2724
  %3168 = vmatmul.mubr.f32.gmra.mrb[0].mxu0 %v2532
  %v3169 = vpop.f32.mrb[0].mxu0
  %v3170 = vadd.f32 %v2793, %v3169
  %v3171 = vpop.f32.mrb[0].mxu0
  %3172 = vmatprep.mubr.f32.mxu0 %v2725
  %3173 = vmatmul.mubr.f32.gmra.mrb[0].mxu0 %v2533
  %v3174 = vpop.f32.mrb[0].mxu0
  %v3175 = vadd.f32 %v2793, %v3174
  %v3176 = vpop.f32.mrb[0].mxu0
  %3177 = vmatprep.mubr.f32.mxu0 %v2726
  %3178 = vmatmul.mubr.f32.gmra.mrb[0].mxu0 %v2534
  %v3179 = vpop.f32.mrb[0].mxu0
  %v3180 = vadd.f32 %v2793, %v3179
  %v3181 = vpop.f32.mrb[0].mxu0
  %3182 = vmatprep.mubr.f32.mxu0 %v2727
  %3183 = vmatmul.mubr.f32.gmra.mrb[0].mxu0 %v2535
  %v3184 = vpop.f32.mrb[0].mxu0
  %v3185 = vadd.f32 %v2793, %v3184
  %v3186 = vpop.f32.mrb[0].mxu0
  %3187 = vmatprep.mubr.f32.mxu0 %v2728
  %3188 = vmatmul.mubr.f32.gmra.mrb[0].mxu0 %v2536
  %v3189 = vpop.f32.mrb[0].mxu0
  %v3190 = vadd.f32 %v2793, %v3189
  %v3191 = vpop.f32.mrb[0].mxu0
  %3192 = vmatprep.mubr.f32.mxu0 %v2729
  %3193 = vmatmul.mubr.f32.gmra.mrb[0].mxu0 %v2537
  %v3194 = vpop.f32.mrb[0].mxu0
  %v3195 = vadd.f32 %v2793, %v3194
  %v3196 = vpop.f32.mrb[0].mxu0
  %3197 = vmatprep.mubr.f32.mxu0 %v2730
  %3198 = vmatmul.mubr.f32.gmra.mrb[0].mxu0 %v2538
  %v3199 = vpop.f32.mrb[0].mxu0
  %v3200 = vadd.f32 %v2793, %v3199
  %v3201 = vpop.f32.mrb[0].mxu0
  %3202 = vmatprep.mubr.f32.mxu0 %v2731
  %3203 = vmatmul.mubr.f32.gmra.mrb[0].mxu0 %v2539
  %v3204 = vpop.f32.mrb[0].mxu0
  %v3205 = vadd.f32 %v2793, %v3204
  %v3206 = vpop.f32.mrb[0].mxu0
  %3207 = vmatprep.mubr.f32.mxu0 %v2732
  %3208 = vmatmul.mubr.f32.gmra.mrb[0].mxu0 %v2540
  %v3209 = vpop.f32.mrb[0].mxu0
  %v3210 = vadd.f32 %v2793, %v3209
  %v3211 = vpop.f32.mrb[0].mxu0
  %3212 = vmatprep.mubr.f32.mxu0 %v2733
  %3213 = vmatmul.mubr.f32.gmra.mrb[0].mxu0 %v2541
  %v3214 = vpop.f32.mrb[0].mxu0
  %v3215 = vadd.f32 %v2793, %v3214
  %v3216 = vpop.f32.mrb[0].mxu0
  %3217 = vmatprep.mubr.f32.mxu0 %v2734
  %3218 = vmatmul.mubr.f32.gmra.mrb[0].mxu0 %v2542
  %v3219 = vpop.f32.mrb[0].mxu0
  %v3220 = vadd.f32 %v2793, %v3219
  %v3221 = vpop.f32.mrb[0].mxu0
  %3222 = vmatprep.mubr.f32.mxu0 %v2735
  %3223 = vmatmul.mubr.f32.gmra.mrb[0].mxu0 %v2543
  %v3224 = vpop.f32.mrb[0].mxu0
  %v3225 = vadd.f32 %v2793, %v3224
  %v3226 = vpop.f32.mrb[0].mxu0
  %3227 = vmatprep.mubr.f32.mxu0 %v2736
  %3228 = vmatmul.mubr.f32.gmra.mrb[0].mxu0 %v2544
  %v3229 = vpop.f32.mrb[0].mxu0
  %v3230 = vadd.f32 %v2793, %v3229
  %v3231 = vpop.f32.mrb[0].mxu0
  %3232 = vmatprep.mubr.f32.mxu0 %v2737
  %3233 = vmatmul.mubr.f32.gmra.mrb[0].mxu0 %v2545
  %v3234 = vpop.f32.mrb[0].mxu0
  %v3235 = vadd.f32 %v2793, %v3234
  %v3236 = vpop.f32.mrb[0].mxu0
  %3237 = vmatprep.mubr.f32.mxu0 %v2738
  %3238 = vmatmul.mubr.f32.gmra.mrb[0].mxu0 %v2546
  %v3239 = vpop.f32.mrb[0].mxu0
  %v3240 = vadd.f32 %v2793, %v3239
  %v3241 = vpop.f32.mrb[0].mxu0
  %3242 = vmatprep.mubr.f32.mxu0 %v2739
  %3243 = vmatmul.mubr.f32.gmra.mrb[0].mxu0 %v2547
  %v3244 = vpop.f32.mrb[0].mxu0
  %v3245 = vadd.f32 %v2793, %v3244
  %v3246 = vpop.f32.mrb[0].mxu0
  %3247 = vmatprep.mubr.f32.mxu0 %v2740
  %3248 = vmatmul.mubr.f32.gmra.mrb[0].mxu0 %v2548
  %v3249 = vpop.f32.mrb[0].mxu0
  %v3250 = vadd.f32 %v2793, %v3249
  %v3251 = vpop.f32.mrb[0].mxu0
  %3252 = vmatprep.mubr.f32.mxu0 %v2741
  %3253 = vmatmul.mubr.f32.gmra.mrb[0].mxu0 %v2549
  %v3254 = vpop.f32.mrb[0].mxu0
  %v3255 = vadd.f32 %v2793, %v3254
  %v3256 = vpop.f32.mrb[0].mxu0
  %3257 = vmatprep.mubr.f32.mxu0 %v2742
  %3258 = vmatmul.mubr.f32.gmra.mrb[0].mxu0 %v2550
  %v3259 = vpop.f32.mrb[0].mxu0
  %v3260 = vadd.f32 %v2793, %v3259
  %v3261 = vpop.f32.mrb[0].mxu0
  %3262 = vmatprep.mubr.f32.mxu0 %v2743
  %3263 = vmatmul.mubr.f32.gmra.mrb[0].mxu0 %v2551
  %v3264 = vpop.f32.mrb[0].mxu0
  %v3265 = vadd.f32 %v2793, %v3264
  %v3266 = vpop.f32.mrb[0].mxu0
  %3267 = vmatprep.mubr.f32.mxu0 %v2744
  %3268 = vmatmul.mubr.f32.gmra.mrb[0].mxu0 %v2552
  %v3269 = vpop.f32.mrb[0].mxu0
  %v3270 = vadd.f32 %v2793, %v3269
  %v3271 = vpop.f32.mrb[0].mxu0
  %3272 = vmatprep.mubr.f32.mxu0 %v2745
  %3273 = vmatmul.mubr.f32.gmra.mrb[0].mxu0 %v2553
  %v3274 = vpop.f32.mrb[0].mxu0
  %v3275 = vadd.f32 %v2793, %v3274
  %v3276 = vpop.f32.mrb[0].mxu0
  %3277 = vmatprep.mubr.f32.mxu0 %v2746
  %3278 = vmatmul.mubr.f32.gmra.mrb[0].mxu0 %v2554
  %v3279 = vpop.f32.mrb[0].mxu0
  %v3280 = vadd.f32 %v2793, %v3279
  %v3281 = vpop.f32.mrb[0].mxu0
  %3282 = vmatprep.mubr.f32.mxu0 %v2747
  %3283 = vmatmul.mubr.f32.gmra.mrb[0].mxu0 %v2555
  %v3284 = vpop.f32.mrb[0].mxu0
  %v3285 = vadd.f32 %v2793, %v3284
  %v3286 = vpop.f32.mrb[0].mxu0
  %3287 = vmatprep.mubr.f32.mxu0 %v2748
  %3288 = vmatmul.mubr.f32.gmra.mrb[0].mxu0 %v2556
  %v3289 = vpop.f32.mrb[0].mxu0
  %v3290 = vadd.f32 %v2793, %v3289
  %v3291 = vpop.f32.mrb[0].mxu0
  %3292 = vmatprep.mubr.f32.mxu0 %v2749
  %3293 = vmatmul.mubr.f32.gmra.mrb[0].mxu0 %v2557
  %v3294 = vpop.f32.mrb[0].mxu0
  %v3295 = vadd.f32 %v2793, %v3294
  %v3296 = vpop.f32.mrb[0].mxu0
  %3297 = vmatprep.mubr.f32.mxu0 %v2750
  %3298 = vmatmul.mubr.f32.gmra.mrb[0].mxu0 %v2558
  %v3299 = vpop.f32.mrb[0].mxu0
  %v3300 = vadd.f32 %v2793, %v3299
  %v3301 = vpop.f32.mrb[0].mxu0
  %3302 = vmatprep.mubr.f32.mxu0 %v2751
  %3303 = vmatmul.mubr.f32.gmra.mrb[0].mxu0 %v2559
  %v3304 = vpop.f32.mrb[0].mxu0
  %v3305 = vadd.f32 %v2793, %v3304
  %v3306 = vpop.f32.mrb[0].mxu0
  %3307 = vdwg.mxu0
  %3308 = vmatprep.subr.mxu0 0.0
  %3309 = vmatpush1.msra.mxu0 %v2784
  %3310 = vmatprep.subr.mxu0 0.0
  %3311 = vmatpush1.msra.mxu0 %v2785
  %3312 = vmatprep.subr.mxu0 0.0
  %3313 = vmatpush1.msra.mxu0 %v2786
  %3314 = vmatprep.subr.mxu0 0.0
  %3315 = vmatpush1.msra.mxu0 %v2787
  %3316 = vmatprep.subr.mxu0 0.0
  %3317 = vmatpush1.msra.mxu0 0.0
  %3318 = vmatprep.subr.mxu0 0.0
  %3319 = vmatpush1.msra.mxu0 0.0
  %3320 = vmatprep.subr.mxu0 0.0
  %3321 = vmatpush1.msra.mxu0 0.0
  %3322 = vmatprep.subr.mxu0 0.0
  %3323 = vmatpush1.msra.mxu0 0.0
  %3324 = vmatprep.subr.mxu0 0.0
  %3325 = vmatpush1.msra.mxu0 0.0
  %3326 = vmatprep.subr.mxu0 0.0
  %3327 = vmatpush1.msra.mxu0 0.0
  %3328 = vmatprep.subr.mxu0 0.0
  %3329 = vmatpush1.msra.mxu0 0.0
  %3330 = vmatprep.subr.mxu0 0.0
  %3331 = vmatpush1.msra.mxu0 0.0
  %3332 = vmatprep.subr.mxu0 0.0
  %3333 = vmatpush1.msra.mxu0 0.0
  %3334 = vmatprep.subr.mxu0 0.0
  %3335 = vmatpush1.msra.mxu0 0.0
  %3336 = vmatprep.subr.mxu0 0.0
  %3337 = vmatpush1.msra.mxu0 0.0
  %3338 = vmatprep.subr.mxu0 0.0
  %3339 = vmatpush1.msra.mxu0 0.0
  %3340 = vmatprep.subr.mxu0 0.0
  %3341 = vmatpush1.msra.mxu0 0.0
  %3342 = vmatprep.subr.mxu0 0.0
  %3343 = vmatpush1.msra.mxu0 0.0
  %3344 = vmatprep.subr.mxu0 0.0
  %3345 = vmatpush1.msra.mxu0 0.0
  %3346 = vmatprep.subr.mxu0 0.0
  %3347 = vmatpush1.msra.mxu0 0.0
  %3348 = vmatprep.subr.mxu0 0.0
  %3349 = vmatpush1.msra.mxu0 0.0
  %3350 = vmatprep.subr.mxu0 0.0
  %3351 = vmatpush1.msra.mxu0 0.0
  %3352 = vmatprep.subr.mxu0 0.0
  %3353 = vmatpush1.msra.mxu0 0.0
  %3354 = vmatprep.subr.mxu0 0.0
  %3355 = vmatpush1.msra.mxu0 0.0
  %3356 = vmatprep.subr.mxu0 0.0
  %3357 = vmatpush1.msra.mxu0 0.0
  %3358 = vmatprep.subr.mxu0 0.0
  %3359 = vmatpush1.msra.mxu0 0.0
  %3360 = vmatprep.subr.mxu0 0.0
  %3361 = vmatpush1.msra.mxu0 0.0
  %3362 = vmatprep.subr.mxu0 0.0
  %3363 = vmatpush1.msra.mxu0 0.0
  %3364 = vmatprep.subr.mxu0 0.0
  %3365 = vmatpush1.msra.mxu0 0.0
  %3366 = vmatprep.subr.mxu0 0.0
  %3367 = vmatpush1.msra.mxu0 0.0
  %3368 = vmatprep.subr.mxu0 0.0
  %3369 = vmatpush1.msra.mxu0 0.0
  %3370 = vmatprep.subr.mxu0 0.0
  %3371 = vmatpush1.msra.mxu0 0.0
  %3372 = vmatprep.mubr.f32.mxu0 0.0
  %3373 = vmatmul.mubr.f32.gmra.mrb[0].mxu0 %v2795
  %v3374 = vpop.f32.mrb[0].mxu0
  %v3375 = vadd.f32 %v2990, %v3374
  %v3376 = vpop.f32.mrb[0].mxu0
  %3377 = vmatprep.mubr.f32.mxu0 0.0
  %3378 = vmatmul.mubr.f32.gmra.mrb[0].mxu0 %v2797
  %v3379 = vpop.f32.mrb[0].mxu0
  %v3380 = vadd.f32 %v2995, %v3379
  %v3381 = vpop.f32.mrb[0].mxu0
  %3382 = vmatprep.mubr.f32.mxu0 0.0
  %3383 = vmatmul.mubr.f32.gmra.mrb[0].mxu0 %v2799
  %v3384 = vpop.f32.mrb[0].mxu0
  %v3385 = vadd.f32 %v3000, %v3384
  %v3386 = vpop.f32.mrb[0].mxu0
  %3387 = vmatprep.mubr.f32.mxu0 0.0
  %3388 = vmatmul.mubr.f32.gmra.mrb[0].mxu0 %v2801
  %v3389 = vpop.f32.mrb[0].mxu0
  %v3390 = vadd.f32 %v3005, %v3389
  %v3391 = vpop.f32.mrb[0].mxu0
  %3392 = vmatprep.mubr.f32.mxu0 0.0
  %3393 = vmatmul.mubr.f32.gmra.mrb[0].mxu0 %v2803
  %v3394 = vpop.f32.mrb[0].mxu0
  %v3395 = vadd.f32 %v3010, %v3394
  %v3396 = vpop.f32.mrb[0].mxu0
  %3397 = vmatprep.mubr.f32.mxu0 0.0
  %3398 = vmatmul.mubr.f32.gmra.mrb[0].mxu0 %v2805
  %v3399 = vpop.f32.mrb[0].mxu0
  %v3400 = vadd.f32 %v3015, %v3399
  %v3401 = vpop.f32.mrb[0].mxu0
  %3402 = vmatprep.mubr.f32.mxu0 0.0
  %3403 = vmatmul.mubr.f32.gmra.mrb[0].mxu0 %v2807
  %v3404 = vpop.f32.mrb[0].mxu0
  %v3405 = vadd.f32 %v3020, %v3404
  %v3406 = vpop.f32.mrb[0].mxu0
  %3407 = vmatprep.mubr.f32.mxu0 0.0
  %3408 = vmatmul.mubr.f32.gmra.mrb[0].mxu0 %v2809
  %v3409 = vpop.f32.mrb[0].mxu0
  %v3410 = vadd.f32 %v3025, %v3409
  %v3411 = vpop.f32.mrb[0].mxu0
  %3412 = vmatprep.mubr.f32.mxu0 0.0
  %3413 = vmatmul.mubr.f32.gmra.mrb[0].mxu0 %v2811
  %v3414 = vpop.f32.mrb[0].mxu0
  %v3415 = vadd.f32 %v3030, %v3414
  %v3416 = vpop.f32.mrb[0].mxu0
  %3417 = vmatprep.mubr.f32.mxu0 0.0
  %3418 = vmatmul.mubr.f32.gmra.mrb[0].mxu0 %v2813
  %v3419 = vpop.f32.mrb[0].mxu0
  %v3420 = vadd.f32 %v3035, %v3419
  %v3421 = vpop.f32.mrb[0].mxu0
  %3422 = vmatprep.mubr.f32.mxu0 0.0
  %3423 = vmatmul.mubr.f32.gmra.mrb[0].mxu0 %v2815
  %v3424 = vpop.f32.mrb[0].mxu0
  %v3425 = vadd.f32 %v3040, %v3424
  %v3426 = vpop.f32.mrb[0].mxu0
  %3427 = vmatprep.mubr.f32.mxu0 0.0
  %3428 = vmatmul.mubr.f32.gmra.mrb[0].mxu0 %v2817
  %v3429 = vpop.f32.mrb[0].mxu0
  %v3430 = vadd.f32 %v3045, %v3429
  %v3431 = vpop.f32.mrb[0].mxu0
  %3432 = vmatprep.mubr.f32.mxu0 0.0
  %3433 = vmatmul.mubr.f32.gmra.mrb[0].mxu0 %v2819
  %v3434 = vpop.f32.mrb[0].mxu0
  %v3435 = vadd.f32 %v3050, %v3434
  %v3436 = vpop.f32.mrb[0].mxu0
  %3437 = vmatprep.mubr.f32.mxu0 0.0
  %3438 = vmatmul.mubr.f32.gmra.mrb[0].mxu0 %v2821
  %v3439 = vpop.f32.mrb[0].mxu0
  %v3440 = vadd.f32 %v3055, %v3439
  %v3441 = vpop.f32.mrb[0].mxu0
  %3442 = vmatprep.mubr.f32.mxu0 0.0
  %3443 = vmatmul.mubr.f32.gmra.mrb[0].mxu0 %v2823
  %v3444 = vpop.f32.mrb[0].mxu0
  %v3445 = vadd.f32 %v3060, %v3444
  %v3446 = vpop.f32.mrb[0].mxu0
  %3447 = vmatprep.mubr.f32.mxu0 0.0
  %3448 = vmatmul.mubr.f32.gmra.mrb[0].mxu0 %v2825
  %v3449 = vpop.f32.mrb[0].mxu0
  %v3450 = vadd.f32 %v3065, %v3449
  %v3451 = vpop.f32.mrb[0].mxu0
  %3452 = vmatprep.mubr.f32.mxu0 0.0
  %3453 = vmatmul.mubr.f32.gmra.mrb[0].mxu0 %v2827
  %v3454 = vpop.f32.mrb[0].mxu0
  %v3455 = vadd.f32 %v3070, %v3454
  %v3456 = vpop.f32.mrb[0].mxu0
  %3457 = vmatprep.mubr.f32.mxu0 0.0
  %3458 = vmatmul.mubr.f32.gmra.mrb[0].mxu0 %v2829
  %v3459 = vpop.f32.mrb[0].mxu0
  %v3460 = vadd.f32 %v3075, %v3459
  %v3461 = vpop.f32.mrb[0].mxu0
  %3462 = vmatprep.mubr.f32.mxu0 0.0
  %3463 = vmatmul.mubr.f32.gmra.mrb[0].mxu0 %v2831
  %v3464 = vpop.f32.mrb[0].mxu0
  %v3465 = vadd.f32 %v3080, %v3464
  %v3466 = vpop.f32.mrb[0].mxu0
  %3467 = vmatprep.mubr.f32.mxu0 0.0
  %3468 = vmatmul.mubr.f32.gmra.mrb[0].mxu0 %v2833
  %v3469 = vpop.f32.mrb[0].mxu0
  %v3470 = vadd.f32 %v3085, %v3469
  %v3471 = vpop.f32.mrb[0].mxu0
  %3472 = vmatprep.mubr.f32.mxu0 0.0
  %3473 = vmatmul.mubr.f32.gmra.mrb[0].mxu0 %v2835
  %v3474 = vpop.f32.mrb[0].mxu0
  %v3475 = vadd.f32 %v3090, %v3474
  %v3476 = vpop.f32.mrb[0].mxu0
  %3477 = vmatprep.mubr.f32.mxu0 0.0
  %3478 = vmatmul.mubr.f32.gmra.mrb[0].mxu0 %v2837
  %v3479 = vpop.f32.mrb[0].mxu0
  %v3480 = vadd.f32 %v3095, %v3479
  %v3481 = vpop.f32.mrb[0].mxu0
  %3482 = vmatprep.mubr.f32.mxu0 0.0
  %3483 = vmatmul.mubr.f32.gmra.mrb[0].mxu0 %v2839
  %v3484 = vpop.f32.mrb[0].mxu0
  %v3485 = vadd.f32 %v3100, %v3484
  %v3486 = vpop.f32.mrb[0].mxu0
  %3487 = vmatprep.mubr.f32.mxu0 0.0
  %3488 = vmatmul.mubr.f32.gmra.mrb[0].mxu0 %v2841
  %v3489 = vpop.f32.mrb[0].mxu0
  %v3490 = vadd.f32 %v3105, %v3489
  %v3491 = vpop.f32.mrb[0].mxu0
  %3492 = vmatprep.mubr.f32.mxu0 0.0
  %3493 = vmatmul.mubr.f32.gmra.mrb[0].mxu0 %v2843
  %v3494 = vpop.f32.mrb[0].mxu0
  %v3495 = vadd.f32 %v3110, %v3494
  %v3496 = vpop.f32.mrb[0].mxu0
  %3497 = vmatprep.mubr.f32.mxu0 0.0
  %3498 = vmatmul.mubr.f32.gmra.mrb[0].mxu0 %v2845
  %v3499 = vpop.f32.mrb[0].mxu0
  %v3500 = vadd.f32 %v3115, %v3499
  %v3501 = vpop.f32.mrb[0].mxu0
  %3502 = vmatprep.mubr.f32.mxu0 0.0
  %3503 = vmatmul.mubr.f32.gmra.mrb[0].mxu0 %v2847
  %v3504 = vpop.f32.mrb[0].mxu0
  %v3505 = vadd.f32 %v3120, %v3504
  %v3506 = vpop.f32.mrb[0].mxu0
  %3507 = vmatprep.mubr.f32.mxu0 0.0
  %3508 = vmatmul.mubr.f32.gmra.mrb[0].mxu0 %v2849
  %v3509 = vpop.f32.mrb[0].mxu0
  %v3510 = vadd.f32 %v3125, %v3509
  %v3511 = vpop.f32.mrb[0].mxu0
  %3512 = vmatprep.mubr.f32.mxu0 0.0
  %3513 = vmatmul.mubr.f32.gmra.mrb[0].mxu0 %v2851
  %v3514 = vpop.f32.mrb[0].mxu0
  %v3515 = vadd.f32 %v3130, %v3514
  %v3516 = vpop.f32.mrb[0].mxu0
  %3517 = vmatprep.mubr.f32.mxu0 0.0
  %3518 = vmatmul.mubr.f32.gmra.mrb[0].mxu0 %v2853
  %v3519 = vpop.f32.mrb[0].mxu0
  %v3520 = vadd.f32 %v3135, %v3519
  %v3521 = vpop.f32.mrb[0].mxu0
  %3522 = vmatprep.mubr.f32.mxu0 0.0
  %3523 = vmatmul.mubr.f32.gmra.mrb[0].mxu0 %v2855
  %v3524 = vpop.f32.mrb[0].mxu0
  %v3525 = vadd.f32 %v3140, %v3524
  %v3526 = vpop.f32.mrb[0].mxu0
  %3527 = vmatprep.mubr.f32.mxu0 0.0
  %3528 = vmatmul.mubr.f32.gmra.mrb[0].mxu0 %v2857
  %v3529 = vpop.f32.mrb[0].mxu0
  %v3530 = vadd.f32 %v3145, %v3529
  %v3531 = vpop.f32.mrb[0].mxu0
  %3532 = vmatprep.mubr.f32.mxu0 0.0
  %3533 = vmatmul.mubr.f32.gmra.mrb[0].mxu0 %v2859
  %v3534 = vpop.f32.mrb[0].mxu0
  %v3535 = vadd.f32 %v3150, %v3534
  %v3536 = vpop.f32.mrb[0].mxu0
  %3537 = vmatprep.mubr.f32.mxu0 0.0
  %3538 = vmatmul.mubr.f32.gmra.mrb[0].mxu0 %v2861
  %v3539 = vpop.f32.mrb[0].mxu0
  %v3540 = vadd.f32 %v3155, %v3539
  %v3541 = vpop.f32.mrb[0].mxu0
  %3542 = vmatprep.mubr.f32.mxu0 0.0
  %3543 = vmatmul.mubr.f32.gmra.mrb[0].mxu0 %v2863
  %v3544 = vpop.f32.mrb[0].mxu0
  %v3545 = vadd.f32 %v3160, %v3544
  %v3546 = vpop.f32.mrb[0].mxu0
  %3547 = vmatprep.mubr.f32.mxu0 0.0
  %3548 = vmatmul.mubr.f32.gmra.mrb[0].mxu0 %v2865
  %v3549 = vpop.f32.mrb[0].mxu0
  %v3550 = vadd.f32 %v3165, %v3549
  %v3551 = vpop.f32.mrb[0].mxu0
  %3552 = vmatprep.mubr.f32.mxu0 0.0
  %3553 = vmatmul.mubr.f32.gmra.mrb[0].mxu0 %v2867
  %v3554 = vpop.f32.mrb[0].mxu0
  %v3555 = vadd.f32 %v3170, %v3554
  %v3556 = vpop.f32.mrb[0].mxu0
  %3557 = vmatprep.mubr.f32.mxu0 0.0
  %3558 = vmatmul.mubr.f32.gmra.mrb[0].mxu0 %v2869
  %v3559 = vpop.f32.mrb[0].mxu0
  %v3560 = vadd.f32 %v3175, %v3559
  %v3561 = vpop.f32.mrb[0].mxu0
  %3562 = vmatprep.mubr.f32.mxu0 0.0
  %3563 = vmatmul.mubr.f32.gmra.mrb[0].mxu0 %v2871
  %v3564 = vpop.f32.mrb[0].mxu0
  %v3565 = vadd.f32 %v3180, %v3564
  %v3566 = vpop.f32.mrb[0].mxu0
  %3567 = vmatprep.mubr.f32.mxu0 0.0
  %3568 = vmatmul.mubr.f32.gmra.mrb[0].mxu0 %v2873
  %v3569 = vpop.f32.mrb[0].mxu0
  %v3570 = vadd.f32 %v3185, %v3569
  %v3571 = vpop.f32.mrb[0].mxu0
  %3572 = vmatprep.mubr.f32.mxu0 0.0
  %3573 = vmatmul.mubr.f32.gmra.mrb[0].mxu0 %v2875
  %v3574 = vpop.f32.mrb[0].mxu0
  %v3575 = vadd.f32 %v3190, %v3574
  %v3576 = vpop.f32.mrb[0].mxu0
  %3577 = vmatprep.mubr.f32.mxu0 0.0
  %3578 = vmatmul.mubr.f32.gmra.mrb[0].mxu0 %v2877
  %v3579 = vpop.f32.mrb[0].mxu0
  %v3580 = vadd.f32 %v3195, %v3579
  %v3581 = vpop.f32.mrb[0].mxu0
  %3582 = vmatprep.mubr.f32.mxu0 0.0
  %3583 = vmatmul.mubr.f32.gmra.mrb[0].mxu0 %v2879
  %v3584 = vpop.f32.mrb[0].mxu0
  %v3585 = vadd.f32 %v3200, %v3584
  %v3586 = vpop.f32.mrb[0].mxu0
  %3587 = vmatprep.mubr.f32.mxu0 0.0
  %3588 = vmatmul.mubr.f32.gmra.mrb[0].mxu0 %v2881
  %v3589 = vpop.f32.mrb[0].mxu0
  %v3590 = vadd.f32 %v3205, %v3589
  %v3591 = vpop.f32.mrb[0].mxu0
  %3592 = vmatprep.mubr.f32.mxu0 0.0
  %3593 = vmatmul.mubr.f32.gmra.mrb[0].mxu0 %v2883
  %v3594 = vpop.f32.mrb[0].mxu0
  %v3595 = vadd.f32 %v3210, %v3594
  %v3596 = vpop.f32.mrb[0].mxu0
  %3597 = vmatprep.mubr.f32.mxu0 0.0
  %3598 = vmatmul.mubr.f32.gmra.mrb[0].mxu0 %v2885
  %v3599 = vpop.f32.mrb[0].mxu0
  %v3600 = vadd.f32 %v3215, %v3599
  %v3601 = vpop.f32.mrb[0].mxu0
  %3602 = vmatprep.mubr.f32.mxu0 0.0
  %3603 = vmatmul.mubr.f32.gmra.mrb[0].mxu0 %v2887
  %v3604 = vpop.f32.mrb[0].mxu0
  %v3605 = vadd.f32 %v3220, %v3604
  %v3606 = vpop.f32.mrb[0].mxu0
  %3607 = vmatprep.mubr.f32.mxu0 0.0
  %3608 = vmatmul.mubr.f32.gmra.mrb[0].mxu0 %v2889
  %v3609 = vpop.f32.mrb[0].mxu0
  %v3610 = vadd.f32 %v3225, %v3609
  %v3611 = vpop.f32.mrb[0].mxu0
  %3612 = vmatprep.mubr.f32.mxu0 0.0
  %3613 = vmatmul.mubr.f32.gmra.mrb[0].mxu0 %v2891
  %v3614 = vpop.f32.mrb[0].mxu0
  %v3615 = vadd.f32 %v3230, %v3614
  %v3616 = vpop.f32.mrb[0].mxu0
  %3617 = vmatprep.mubr.f32.mxu0 0.0
  %3618 = vmatmul.mubr.f32.gmra.mrb[0].mxu0 %v2893
  %v3619 = vpop.f32.mrb[0].mxu0
  %v3620 = vadd.f32 %v3235, %v3619
  %v3621 = vpop.f32.mrb[0].mxu0
  %3622 = vmatprep.mubr.f32.mxu0 0.0
  %3623 = vmatmul.mubr.f32.gmra.mrb[0].mxu0 %v2895
  %v3624 = vpop.f32.mrb[0].mxu0
  %v3625 = vadd.f32 %v3240, %v3624
  %v3626 = vpop.f32.mrb[0].mxu0
  %3627 = vmatprep.mubr.f32.mxu0 0.0
  %3628 = vmatmul.mubr.f32.gmra.mrb[0].mxu0 %v2897
  %v3629 = vpop.f32.mrb[0].mxu0
  %v3630 = vadd.f32 %v3245, %v3629
  %v3631 = vpop.f32.mrb[0].mxu0
  %3632 = vmatprep.mubr.f32.mxu0 0.0
  %3633 = vmatmul.mubr.f32.gmra.mrb[0].mxu0 %v2899
  %v3634 = vpop.f32.mrb[0].mxu0
  %v3635 = vadd.f32 %v3250, %v3634
  %v3636 = vpop.f32.mrb[0].mxu0
  %3637 = vmatprep.mubr.f32.mxu0 0.0
  %3638 = vmatmul.mubr.f32.gmra.mrb[0].mxu0 %v2901
  %v3639 = vpop.f32.mrb[0].mxu0
  %v3640 = vadd.f32 %v3255, %v3639
  %v3641 = vpop.f32.mrb[0].mxu0
  %3642 = vmatprep.mubr.f32.mxu0 0.0
  %3643 = vmatmul.mubr.f32.gmra.mrb[0].mxu0 %v2903
  %v3644 = vpop.f32.mrb[0].mxu0
  %v3645 = vadd.f32 %v3260, %v3644
  %v3646 = vpop.f32.mrb[0].mxu0
  %3647 = vmatprep.mubr.f32.mxu0 0.0
  %3648 = vmatmul.mubr.f32.gmra.mrb[0].mxu0 %v2905
  %v3649 = vpop.f32.mrb[0].mxu0
  %v3650 = vadd.f32 %v3265, %v3649
  %v3651 = vpop.f32.mrb[0].mxu0
  %3652 = vmatprep.mubr.f32.mxu0 0.0
  %3653 = vmatmul.mubr.f32.gmra.mrb[0].mxu0 %v2907
  %v3654 = vpop.f32.mrb[0].mxu0
  %v3655 = vadd.f32 %v3270, %v3654
  %v3656 = vpop.f32.mrb[0].mxu0
  %3657 = vmatprep.mubr.f32.mxu0 0.0
  %3658 = vmatmul.mubr.f32.gmra.mrb[0].mxu0 %v2909
  %v3659 = vpop.f32.mrb[0].mxu0
  %v3660 = vadd.f32 %v3275, %v3659
  %v3661 = vpop.f32.mrb[0].mxu0
  %3662 = vmatprep.mubr.f32.mxu0 0.0
  %3663 = vmatmul.mubr.f32.gmra.mrb[0].mxu0 %v2911
  %v3664 = vpop.f32.mrb[0].mxu0
  %v3665 = vadd.f32 %v3280, %v3664
  %v3666 = vpop.f32.mrb[0].mxu0
  %3667 = vmatprep.mubr.f32.mxu0 0.0
  %3668 = vmatmul.mubr.f32.gmra.mrb[0].mxu0 %v2913
  %v3669 = vpop.f32.mrb[0].mxu0
  %v3670 = vadd.f32 %v3285, %v3669
  %v3671 = vpop.f32.mrb[0].mxu0
  %3672 = vmatprep.mubr.f32.mxu0 0.0
  %3673 = vmatmul.mubr.f32.gmra.mrb[0].mxu0 %v2915
  %v3674 = vpop.f32.mrb[0].mxu0
  %v3675 = vadd.f32 %v3290, %v3674
  %v3676 = vpop.f32.mrb[0].mxu0
  %3677 = vmatprep.mubr.f32.mxu0 0.0
  %3678 = vmatmul.mubr.f32.gmra.mrb[0].mxu0 %v2917
  %v3679 = vpop.f32.mrb[0].mxu0
  %v3680 = vadd.f32 %v3295, %v3679
  %v3681 = vpop.f32.mrb[0].mxu0
  %3682 = vmatprep.mubr.f32.mxu0 0.0
  %3683 = vmatmul.mubr.f32.gmra.mrb[0].mxu0 %v2919
  %v3684 = vpop.f32.mrb[0].mxu0
  %v3685 = vadd.f32 %v3300, %v3684
  %v3686 = vpop.f32.mrb[0].mxu0
  %3687 = vmatprep.mubr.f32.mxu0 0.0
  %3688 = vmatmul.mubr.f32.gmra.mrb[0].mxu0 %v2921
  %v3689 = vpop.f32.mrb[0].mxu0
  %v3690 = vadd.f32 %v3305, %v3689
  %v3691 = vpop.f32.mrb[0].mxu0
  %3692 = vdwg.mxu0
  %v3693 = vmax.f32 %v3375, 0.0
  %v3694 = vmax.f32 %v3380, 0.0
  %v3695 = vmax.f32 %v3385, 0.0
  %v3696 = vmax.f32 %v3390, 0.0
  %v3697 = vmax.f32 %v3395, 0.0
  %v3698 = vmax.f32 %v3400, 0.0
  %v3699 = vmax.f32 %v3405, 0.0
  %v3700 = vmax.f32 %v3410, 0.0
  %v3701 = vmax.f32 %v3415, 0.0
  %v3702 = vmax.f32 %v3420, 0.0
  %v3703 = vmax.f32 %v3425, 0.0
  %v3704 = vmax.f32 %v3430, 0.0
  %v3705 = vmax.f32 %v3435, 0.0
  %v3706 = vmax.f32 %v3440, 0.0
  %v3707 = vmax.f32 %v3445, 0.0
  %v3708 = vmax.f32 %v3450, 0.0
  %v3709 = vmax.f32 %v3455, 0.0
  %v3710 = vmax.f32 %v3460, 0.0
  %v3711 = vmax.f32 %v3465, 0.0
  %v3712 = vmax.f32 %v3470, 0.0
  %v3713 = vmax.f32 %v3475, 0.0
  %v3714 = vmax.f32 %v3480, 0.0
  %v3715 = vmax.f32 %v3485, 0.0
  %v3716 = vmax.f32 %v3490, 0.0
  %v3717 = vmax.f32 %v3495, 0.0
  %v3718 = vmax.f32 %v3500, 0.0
  %v3719 = vmax.f32 %v3505, 0.0
  %v3720 = vmax.f32 %v3510, 0.0
  %v3721 = vmax.f32 %v3515, 0.0
  %v3722 = vmax.f32 %v3520, 0.0
  %v3723 = vmax.f32 %v3525, 0.0
  %v3724 = vmax.f32 %v3530, 0.0
  %v3725 = vmax.f32 %v3535, 0.0
  %v3726 = vmax.f32 %v3540, 0.0
  %v3727 = vmax.f32 %v3545, 0.0
  %v3728 = vmax.f32 %v3550, 0.0
  %v3729 = vmax.f32 %v3555, 0.0
  %v3730 = vmax.f32 %v3560, 0.0
  %v3731 = vmax.f32 %v3565, 0.0
  %v3732 = vmax.f32 %v3570, 0.0
  %v3733 = vmax.f32 %v3575, 0.0
  %v3734 = vmax.f32 %v3580, 0.0
  %v3735 = vmax.f32 %v3585, 0.0
  %v3736 = vmax.f32 %v3590, 0.0
  %v3737 = vmax.f32 %v3595, 0.0
  %v3738 = vmax.f32 %v3600, 0.0
  %v3739 = vmax.f32 %v3605, 0.0
  %v3740 = vmax.f32 %v3610, 0.0
  %v3741 = vmax.f32 %v3615, 0.0
  %v3742 = vmax.f32 %v3620, 0.0
  %v3743 = vmax.f32 %v3625, 0.0
  %v3744 = vmax.f32 %v3630, 0.0
  %v3745 = vmax.f32 %v3635, 0.0
  %v3746 = vmax.f32 %v3640, 0.0
  %v3747 = vmax.f32 %v3645, 0.0
  %v3748 = vmax.f32 %v3650, 0.0
  %v3749 = vmax.f32 %v3655, 0.0
  %v3750 = vmax.f32 %v3660, 0.0
  %v3751 = vmax.f32 %v3665, 0.0
  %v3752 = vmax.f32 %v3670, 0.0
  %v3753 = vmax.f32 %v3675, 0.0
  %v3754 = vmax.f32 %v3680, 0.0
  %v3755 = vmax.f32 %v3685, 0.0
  %v3756 = vmax.f32 %v3690, 0.0
  %v3757 = vrot.slane %v3693, 1
  %v3758 = vrot.slane %v3694, 1
  %v3759 = vrot.slane %v3695, 1
  %v3760 = vrot.slane %v3696, 1
  %v3761 = vrot.slane %v3697, 1
  %v3762 = vrot.slane %v3698, 1
  %v3763 = vrot.slane %v3699, 1
  %v3764 = vrot.slane %v3700, 1
  %v3765 = vrot.slane %v3701, 1
  %v3766 = vrot.slane %v3702, 1
  %v3767 = vrot.slane %v3703, 1
  %v3768 = vrot.slane %v3704, 1
  %v3769 = vrot.slane %v3705, 1
  %v3770 = vrot.slane %v3706, 1
  %v3771 = vrot.slane %v3707, 1
  %v3772 = vrot.slane %v3708, 1
  %v3773 = vrot.slane %v3709, 1
  %v3774 = vrot.slane %v3710, 1
  %v3775 = vrot.slane %v3711, 1
  %v3776 = vrot.slane %v3712, 1
  %v3777 = vrot.slane %v3713, 1
  %v3778 = vrot.slane %v3714, 1
  %v3779 = vrot.slane %v3715, 1
  %v3780 = vrot.slane %v3716, 1
  %v3781 = vrot.slane %v3717, 1
  %v3782 = vrot.slane %v3718, 1
  %v3783 = vrot.slane %v3719, 1
  %v3784 = vrot.slane %v3720, 1
  %v3785 = vrot.slane %v3721, 1
  %v3786 = vrot.slane %v3722, 1
  %v3787 = vrot.slane %v3723, 1
  %v3788 = vrot.slane %v3724, 1
  %v3789 = vrot.slane %v3725, 1
  %v3790 = vrot.slane %v3726, 1
  %v3791 = vrot.slane %v3727, 1
  %v3792 = vrot.slane %v3728, 1
  %v3793 = vrot.slane %v3729, 1
  %v3794 = vrot.slane %v3730, 1
  %v3795 = vrot.slane %v3731, 1
  %v3796 = vrot.slane %v3732, 1
  %v3797 = vrot.slane %v3733, 1
  %v3798 = vrot.slane %v3734, 1
  %v3799 = vrot.slane %v3735, 1
  %v3800 = vrot.slane %v3736, 1
  %v3801 = vrot.slane %v3737, 1
  %v3802 = vrot.slane %v3738, 1
  %v3803 = vrot.slane %v3739, 1
  %v3804 = vrot.slane %v3740, 1
  %v3805 = vrot.slane %v3741, 1
  %v3806 = vrot.slane %v3742, 1
  %v3807 = vrot.slane %v3743, 1
  %v3808 = vrot.slane %v3744, 1
  %v3809 = vrot.slane %v3745, 1
  %v3810 = vrot.slane %v3746, 1
  %v3811 = vrot.slane %v3747, 1
  %v3812 = vrot.slane %v3748, 1
  %v3813 = vrot.slane %v3749, 1
  %v3814 = vrot.slane %v3750, 1
  %v3815 = vrot.slane %v3751, 1
  %v3816 = vrot.slane %v3752, 1
  %v3817 = vrot.slane %v3753, 1
  %v3818 = vrot.slane %v3754, 1
  %v3819 = vrot.slane %v3755, 1
  %v3820 = vrot.slane %v3756, 1
  %v3821 = vsel %vm827, %v3819, %v3820
  %v3822 = vsel %vm827, %v3818, %v3819
  %v3823 = vsel %vm827, %v3817, %v3818
  %v3824 = vsel %vm827, %v3816, %v3817
  %v3825 = vsel %vm827, %v3815, %v3816
  %v3826 = vsel %vm827, %v3814, %v3815
  %v3827 = vsel %vm827, %v3813, %v3814
  %v3828 = vsel %vm827, %v3812, %v3813
  %v3829 = vsel %vm827, %v3811, %v3812
  %v3830 = vsel %vm827, %v3810, %v3811
  %v3831 = vsel %vm827, %v3809, %v3810
  %v3832 = vsel %vm827, %v3808, %v3809
  %v3833 = vsel %vm827, %v3807, %v3808
  %v3834 = vsel %vm827, %v3806, %v3807
  %v3835 = vsel %vm827, %v3805, %v3806
  %v3836 = vsel %vm827, %v3804, %v3805
  %v3837 = vsel %vm827, %v3803, %v3804
  %v3838 = vsel %vm827, %v3802, %v3803
  %v3839 = vsel %vm827, %v3801, %v3802
  %v3840 = vsel %vm827, %v3800, %v3801
  %v3841 = vsel %vm827, %v3799, %v3800
  %v3842 = vsel %vm827, %v3798, %v3799
  %v3843 = vsel %vm827, %v3797, %v3798
  %v3844 = vsel %vm827, %v3796, %v3797
  %v3845 = vsel %vm827, %v3795, %v3796
  %v3846 = vsel %vm827, %v3794, %v3795
  %v3847 = vsel %vm827, %v3793, %v3794
  %v3848 = vsel %vm827, %v3792, %v3793
  %v3849 = vsel %vm827, %v3791, %v3792
  %v3850 = vsel %vm827, %v3790, %v3791
  %v3851 = vsel %vm827, %v3789, %v3790
  %v3852 = vsel %vm827, %v3788, %v3789
  %v3853 = vsel %vm827, %v3787, %v3788
  %v3854 = vsel %vm827, %v3786, %v3787
  %v3855 = vsel %vm827, %v3785, %v3786
  %v3856 = vsel %vm827, %v3784, %v3785
  %v3857 = vsel %vm827, %v3783, %v3784
  %v3858 = vsel %vm827, %v3782, %v3783
  %v3859 = vsel %vm827, %v3781, %v3782
  %v3860 = vsel %vm827, %v3780, %v3781
  %v3861 = vsel %vm827, %v3779, %v3780
  %v3862 = vsel %vm827, %v3778, %v3779
  %v3863 = vsel %vm827, %v3777, %v3778
  %v3864 = vsel %vm827, %v3776, %v3777
  %v3865 = vsel %vm827, %v3775, %v3776
  %v3866 = vsel %vm827, %v3774, %v3775
  %v3867 = vsel %vm827, %v3773, %v3774
  %v3868 = vsel %vm827, %v3772, %v3773
  %v3869 = vsel %vm827, %v3771, %v3772
  %v3870 = vsel %vm827, %v3770, %v3771
  %v3871 = vsel %vm827, %v3769, %v3770
  %v3872 = vsel %vm827, %v3768, %v3769
  %v3873 = vsel %vm827, %v3767, %v3768
  %v3874 = vsel %vm827, %v3766, %v3767
  %v3875 = vsel %vm827, %v3765, %v3766
  %v3876 = vsel %vm827, %v3764, %v3765
  %v3877 = vsel %vm827, %v3763, %v3764
  %v3878 = vsel %vm827, %v3762, %v3763
  %v3879 = vsel %vm827, %v3761, %v3762
  %v3880 = vsel %vm827, %v3760, %v3761
  %v3881 = vsel %vm827, %v3759, %v3760
  %v3882 = vsel %vm827, %v3758, %v3759
  %v3883 = vsel %vm827, %v3757, %v3758
  %v3884 = vsel %vm827, %v3820, %v3757
  %v3885 = vrot.slane %v3693, 2
  %v3886 = vrot.slane %v3694, 2
  %v3887 = vrot.slane %v3695, 2
  %v3888 = vrot.slane %v3696, 2
  %v3889 = vrot.slane %v3697, 2
  %v3890 = vrot.slane %v3698, 2
  %v3891 = vrot.slane %v3699, 2
  %v3892 = vrot.slane %v3700, 2
  %v3893 = vrot.slane %v3701, 2
  %v3894 = vrot.slane %v3702, 2
  %v3895 = vrot.slane %v3703, 2
  %v3896 = vrot.slane %v3704, 2
  %v3897 = vrot.slane %v3705, 2
  %v3898 = vrot.slane %v3706, 2
  %v3899 = vrot.slane %v3707, 2
  %v3900 = vrot.slane %v3708, 2
  %v3901 = vrot.slane %v3709, 2
  %v3902 = vrot.slane %v3710, 2
  %v3903 = vrot.slane %v3711, 2
  %v3904 = vrot.slane %v3712, 2
  %v3905 = vrot.slane %v3713, 2
  %v3906 = vrot.slane %v3714, 2
  %v3907 = vrot.slane %v3715, 2
  %v3908 = vrot.slane %v3716, 2
  %v3909 = vrot.slane %v3717, 2
  %v3910 = vrot.slane %v3718, 2
  %v3911 = vrot.slane %v3719, 2
  %v3912 = vrot.slane %v3720, 2
  %v3913 = vrot.slane %v3721, 2
  %v3914 = vrot.slane %v3722, 2
  %v3915 = vrot.slane %v3723, 2
  %v3916 = vrot.slane %v3724, 2
  %v3917 = vrot.slane %v3725, 2
  %v3918 = vrot.slane %v3726, 2
  %v3919 = vrot.slane %v3727, 2
  %v3920 = vrot.slane %v3728, 2
  %v3921 = vrot.slane %v3729, 2
  %v3922 = vrot.slane %v3730, 2
  %v3923 = vrot.slane %v3731, 2
  %v3924 = vrot.slane %v3732, 2
  %v3925 = vrot.slane %v3733, 2
  %v3926 = vrot.slane %v3734, 2
  %v3927 = vrot.slane %v3735, 2
  %v3928 = vrot.slane %v3736, 2
  %v3929 = vrot.slane %v3737, 2
  %v3930 = vrot.slane %v3738, 2
  %v3931 = vrot.slane %v3739, 2
  %v3932 = vrot.slane %v3740, 2
  %v3933 = vrot.slane %v3741, 2
  %v3934 = vrot.slane %v3742, 2
  %v3935 = vrot.slane %v3743, 2
  %v3936 = vrot.slane %v3744, 2
  %v3937 = vrot.slane %v3745, 2
  %v3938 = vrot.slane %v3746, 2
  %v3939 = vrot.slane %v3747, 2
  %v3940 = vrot.slane %v3748, 2
  %v3941 = vrot.slane %v3749, 2
  %v3942 = vrot.slane %v3750, 2
  %v3943 = vrot.slane %v3751, 2
  %v3944 = vrot.slane %v3752, 2
  %v3945 = vrot.slane %v3753, 2
  %v3946 = vrot.slane %v3754, 2
  %v3947 = vrot.slane %v3755, 2
  %v3948 = vrot.slane %v3756, 2
  %v3949 = vsel %vm956, %v3947, %v3948
  %v3950 = vsel %vm956, %v3946, %v3947
  %v3951 = vsel %vm956, %v3945, %v3946
  %v3952 = vsel %vm956, %v3944, %v3945
  %v3953 = vsel %vm956, %v3943, %v3944
  %v3954 = vsel %vm956, %v3942, %v3943
  %v3955 = vsel %vm956, %v3941, %v3942
  %v3956 = vsel %vm956, %v3940, %v3941
  %v3957 = vsel %vm956, %v3939, %v3940
  %v3958 = vsel %vm956, %v3938, %v3939
  %v3959 = vsel %vm956, %v3937, %v3938
  %v3960 = vsel %vm956, %v3936, %v3937
  %v3961 = vsel %vm956, %v3935, %v3936
  %v3962 = vsel %vm956, %v3934, %v3935
  %v3963 = vsel %vm956, %v3933, %v3934
  %v3964 = vsel %vm956, %v3932, %v3933
  %v3965 = vsel %vm956, %v3931, %v3932
  %v3966 = vsel %vm956, %v3930, %v3931
  %v3967 = vsel %vm956, %v3929, %v3930
  %v3968 = vsel %vm956, %v3928, %v3929
  %v3969 = vsel %vm956, %v3927, %v3928
  %v3970 = vsel %vm956, %v3926, %v3927
  %v3971 = vsel %vm956, %v3925, %v3926
  %v3972 = vsel %vm956, %v3924, %v3925
  %v3973 = vsel %vm956, %v3923, %v3924
  %v3974 = vsel %vm956, %v3922, %v3923
  %v3975 = vsel %vm956, %v3921, %v3922
  %v3976 = vsel %vm956, %v3920, %v3921
  %v3977 = vsel %vm956, %v3919, %v3920
  %v3978 = vsel %vm956, %v3918, %v3919
  %v3979 = vsel %vm956, %v3917, %v3918
  %v3980 = vsel %vm956, %v3916, %v3917
  %v3981 = vsel %vm956, %v3915, %v3916
  %v3982 = vsel %vm956, %v3914, %v3915
  %v3983 = vsel %vm956, %v3913, %v3914
  %v3984 = vsel %vm956, %v3912, %v3913
  %v3985 = vsel %vm956, %v3911, %v3912
  %v3986 = vsel %vm956, %v3910, %v3911
  %v3987 = vsel %vm956, %v3909, %v3910
  %v3988 = vsel %vm956, %v3908, %v3909
  %v3989 = vsel %vm956, %v3907, %v3908
  %v3990 = vsel %vm956, %v3906, %v3907
  %v3991 = vsel %vm956, %v3905, %v3906
  %v3992 = vsel %vm956, %v3904, %v3905
  %v3993 = vsel %vm956, %v3903, %v3904
  %v3994 = vsel %vm956, %v3902, %v3903
  %v3995 = vsel %vm956, %v3901, %v3902
  %v3996 = vsel %vm956, %v3900, %v3901
  %v3997 = vsel %vm956, %v3899, %v3900
  %v3998 = vsel %vm956, %v3898, %v3899
  %v3999 = vsel %vm956, %v3897, %v3898
  %v4000 = vsel %vm956, %v3896, %v3897
  %v4001 = vsel %vm956, %v3895, %v3896
  %v4002 = vsel %vm956, %v3894, %v3895
  %v4003 = vsel %vm956, %v3893, %v3894
  %v4004 = vsel %vm956, %v3892, %v3893
  %v4005 = vsel %vm956, %v3891, %v3892
  %v4006 = vsel %vm956, %v3890, %v3891
  %v4007 = vsel %vm956, %v3889, %v3890
  %v4008 = vsel %vm956, %v3888, %v3889
  %v4009 = vsel %vm956, %v3887, %v3888
  %v4010 = vsel %vm956, %v3886, %v3887
  %v4011 = vsel %vm956, %v3885, %v3886
  %v4012 = vsel %vm956, %v3948, %v3885
  %4077 = vrot.lane.b32.xlu0 %v3883, 32
  %v4078 = vpop.permute.xlu0 %4077
  %4079 = vrot.lane.b32.xlu0 %v3882, 32
  %v4080 = vpop.permute.xlu0 %4079
  %4081 = vrot.lane.b32.xlu0 %v3881, 32
  %v4082 = vpop.permute.xlu0 %4081
  %4083 = vrot.lane.b32.xlu0 %v3880, 32
  %v4084 = vpop.permute.xlu0 %4083
  %4085 = vrot.lane.b32.xlu0 %v3879, 32
  %v4086 = vpop.permute.xlu0 %4085
  %4087 = vrot.lane.b32.xlu0 %v3878, 32
  %v4088 = vpop.permute.xlu0 %4087
  %4089 = vrot.lane.b32.xlu0 %v3877, 32
  %v4090 = vpop.permute.xlu0 %4089
  %4091 = vrot.lane.b32.xlu0 %v3876, 32
  %v4092 = vpop.permute.xlu0 %4091
  %4093 = vrot.lane.b32.xlu0 %v3875, 32
  %v4094 = vpop.permute.xlu0 %4093
  %4095 = vrot.lane.b32.xlu0 %v3874, 32
  %v4096 = vpop.permute.xlu0 %4095
  %4097 = vrot.lane.b32.xlu0 %v3873, 32
  %v4098 = vpop.permute.xlu0 %4097
  %4099 = vrot.lane.b32.xlu0 %v3872, 32
  %v4100 = vpop.permute.xlu0 %4099
  %4101 = vrot.lane.b32.xlu0 %v3871, 32
  %v4102 = vpop.permute.xlu0 %4101
  %4103 = vrot.lane.b32.xlu0 %v3870, 32
  %v4104 = vpop.permute.xlu0 %4103
  %4105 = vrot.lane.b32.xlu0 %v3869, 32
  %v4106 = vpop.permute.xlu0 %4105
  %4107 = vrot.lane.b32.xlu0 %v3868, 32
  %v4108 = vpop.permute.xlu0 %4107
  %4109 = vrot.lane.b32.xlu0 %v3867, 32
  %v4110 = vpop.permute.xlu0 %4109
  %4111 = vrot.lane.b32.xlu0 %v3866, 32
  %v4112 = vpop.permute.xlu0 %4111
  %4113 = vrot.lane.b32.xlu0 %v3865, 32
  %v4114 = vpop.permute.xlu0 %4113
  %4115 = vrot.lane.b32.xlu0 %v3864, 32
  %v4116 = vpop.permute.xlu0 %4115
  %4117 = vrot.lane.b32.xlu0 %v3863, 32
  %v4118 = vpop.permute.xlu0 %4117
  %4119 = vrot.lane.b32.xlu0 %v3862, 32
  %v4120 = vpop.permute.xlu0 %4119
  %4121 = vrot.lane.b32.xlu0 %v3861, 32
  %v4122 = vpop.permute.xlu0 %4121
  %4123 = vrot.lane.b32.xlu0 %v3860, 32
  %v4124 = vpop.permute.xlu0 %4123
  %4125 = vrot.lane.b32.xlu0 %v3859, 32
  %v4126 = vpop.permute.xlu0 %4125
  %4127 = vrot.lane.b32.xlu0 %v3858, 32
  %v4128 = vpop.permute.xlu0 %4127
  %4129 = vrot.lane.b32.xlu0 %v3857, 32
  %v4130 = vpop.permute.xlu0 %4129
  %4131 = vrot.lane.b32.xlu0 %v3856, 32
  %v4132 = vpop.permute.xlu0 %4131
  %4133 = vrot.lane.b32.xlu0 %v3855, 32
  %v4134 = vpop.permute.xlu0 %4133
  %4135 = vrot.lane.b32.xlu0 %v3854, 32
  %v4136 = vpop.permute.xlu0 %4135
  %4137 = vrot.lane.b32.xlu0 %v3853, 32
  %v4138 = vpop.permute.xlu0 %4137
  %4139 = vrot.lane.b32.xlu0 %v3852, 32
  %v4140 = vpop.permute.xlu0 %4139
  %4141 = vrot.lane.b32.xlu0 %v3851, 32
  %v4142 = vpop.permute.xlu0 %4141
  %4143 = vrot.lane.b32.xlu0 %v3850, 32
  %v4144 = vpop.permute.xlu0 %4143
  %4145 = vrot.lane.b32.xlu0 %v3849, 32
  %v4146 = vpop.permute.xlu0 %4145
  %4147 = vrot.lane.b32.xlu0 %v3848, 32
  %v4148 = vpop.permute.xlu0 %4147
  %4149 = vrot.lane.b32.xlu0 %v3847, 32
  %v4150 = vpop.permute.xlu0 %4149
  %4151 = vrot.lane.b32.xlu0 %v3846, 32
  %v4152 = vpop.permute.xlu0 %4151
  %4153 = vrot.lane.b32.xlu0 %v3845, 32
  %v4154 = vpop.permute.xlu0 %4153
  %4155 = vrot.lane.b32.xlu0 %v3844, 32
  %v4156 = vpop.permute.xlu0 %4155
  %4157 = vrot.lane.b32.xlu0 %v3843, 32
  %v4158 = vpop.permute.xlu0 %4157
  %4159 = vrot.lane.b32.xlu0 %v3842, 32
  %v4160 = vpop.permute.xlu0 %4159
  %4161 = vrot.lane.b32.xlu0 %v3841, 32
  %v4162 = vpop.permute.xlu0 %4161
  %4163 = vrot.lane.b32.xlu0 %v3840, 32
  %v4164 = vpop.permute.xlu0 %4163
  %4165 = vrot.lane.b32.xlu0 %v3839, 32
  %v4166 = vpop.permute.xlu0 %4165
  %4167 = vrot.lane.b32.xlu0 %v3838, 32
  %v4168 = vpop.permute.xlu0 %4167
  %4169 = vrot.lane.b32.xlu0 %v3837, 32
  %v4170 = vpop.permute.xlu0 %4169
  %4171 = vrot.lane.b32.xlu0 %v3836, 32
  %v4172 = vpop.permute.xlu0 %4171
  %4173 = vrot.lane.b32.xlu0 %v3835, 32
  %v4174 = vpop.permute.xlu0 %4173
  %4175 = vrot.lane.b32.xlu0 %v3834, 32
  %v4176 = vpop.permute.xlu0 %4175
  %4177 = vrot.lane.b32.xlu0 %v3833, 32
  %v4178 = vpop.permute.xlu0 %4177
  %4179 = vrot.lane.b32.xlu0 %v3832, 32
  %v4180 = vpop.permute.xlu0 %4179
  %4181 = vrot.lane.b32.xlu0 %v3831, 32
  %v4182 = vpop.permute.xlu0 %4181
  %4183 = vrot.lane.b32.xlu0 %v3830, 32
  %v4184 = vpop.permute.xlu0 %4183
  %4185 = vrot.lane.b32.xlu0 %v3829, 32
  %v4186 = vpop.permute.xlu0 %4185
  %4187 = vrot.lane.b32.xlu0 %v3828, 32
  %v4188 = vpop.permute.xlu0 %4187
  %4189 = vrot.lane.b32.xlu0 %v3827, 32
  %v4190 = vpop.permute.xlu0 %4189
  %4191 = vrot.lane.b32.xlu0 %v3826, 32
  %v4192 = vpop.permute.xlu0 %4191
  %4193 = vrot.lane.b32.xlu0 %v3825, 32
  %v4194 = vpop.permute.xlu0 %4193
  %4195 = vrot.lane.b32.xlu0 %v3824, 32
  %v4196 = vpop.permute.xlu0 %4195
  %4197 = vrot.lane.b32.xlu0 %v3823, 32
  %v4198 = vpop.permute.xlu0 %4197
  %4199 = vrot.lane.b32.xlu0 %v3822, 32
  %v4200 = vpop.permute.xlu0 %4199
  %4201 = vrot.lane.b32.xlu0 %v3821, 32
  %v4202 = vpop.permute.xlu0 %4201
  %4203 = vrot.lane.b32.xlu0 %v3884, 32
  %v4204 = vpop.permute.xlu0 %4203
  %4333 = vrot.lane.b32.xlu0 %v4011, 64
  %v4334 = vpop.permute.xlu0 %4333
  %4335 = vrot.lane.b32.xlu0 %v4010, 64
  %v4336 = vpop.permute.xlu0 %4335
  %4337 = vrot.lane.b32.xlu0 %v4009, 64
  %v4338 = vpop.permute.xlu0 %4337
  %4339 = vrot.lane.b32.xlu0 %v4008, 64
  %v4340 = vpop.permute.xlu0 %4339
  %4341 = vrot.lane.b32.xlu0 %v4007, 64
  %v4342 = vpop.permute.xlu0 %4341
  %4343 = vrot.lane.b32.xlu0 %v4006, 64
  %v4344 = vpop.permute.xlu0 %4343
  %4345 = vrot.lane.b32.xlu0 %v4005, 64
  %v4346 = vpop.permute.xlu0 %4345
  %4347 = vrot.lane.b32.xlu0 %v4004, 64
  %v4348 = vpop.permute.xlu0 %4347
  %4349 = vrot.lane.b32.xlu0 %v4003, 64
  %v4350 = vpop.permute.xlu0 %4349
  %4351 = vrot.lane.b32.xlu0 %v4002, 64
  %v4352 = vpop.permute.xlu0 %4351
  %4353 = vrot.lane.b32.xlu0 %v4001, 64
  %v4354 = vpop.permute.xlu0 %4353
  %4355 = vrot.lane.b32.xlu0 %v4000, 64
  %v4356 = vpop.permute.xlu0 %4355
  %4357 = vrot.lane.b32.xlu0 %v3999, 64
  %v4358 = vpop.permute.xlu0 %4357
  %4359 = vrot.lane.b32.xlu0 %v3998, 64
  %v4360 = vpop.permute.xlu0 %4359
  %4361 = vrot.lane.b32.xlu0 %v3997, 64
  %v4362 = vpop.permute.xlu0 %4361
  %4363 = vrot.lane.b32.xlu0 %v3996, 64
  %v4364 = vpop.permute.xlu0 %4363
  %4365 = vrot.lane.b32.xlu0 %v3995, 64
  %v4366 = vpop.permute.xlu0 %4365
  %4367 = vrot.lane.b32.xlu0 %v3994, 64
  %v4368 = vpop.permute.xlu0 %4367
  %4369 = vrot.lane.b32.xlu0 %v3993, 64
  %v4370 = vpop.permute.xlu0 %4369
  %4371 = vrot.lane.b32.xlu0 %v3992, 64
  %v4372 = vpop.permute.xlu0 %4371
  %4373 = vrot.lane.b32.xlu0 %v3991, 64
  %v4374 = vpop.permute.xlu0 %4373
  %4375 = vrot.lane.b32.xlu0 %v3990, 64
  %v4376 = vpop.permute.xlu0 %4375
  %4377 = vrot.lane.b32.xlu0 %v3989, 64
  %v4378 = vpop.permute.xlu0 %4377
  %4379 = vrot.lane.b32.xlu0 %v3988, 64
  %v4380 = vpop.permute.xlu0 %4379
  %4381 = vrot.lane.b32.xlu0 %v3987, 64
  %v4382 = vpop.permute.xlu0 %4381
  %4383 = vrot.lane.b32.xlu0 %v3986, 64
  %v4384 = vpop.permute.xlu0 %4383
  %4385 = vrot.lane.b32.xlu0 %v3985, 64
  %v4386 = vpop.permute.xlu0 %4385
  %4387 = vrot.lane.b32.xlu0 %v3984, 64
  %v4388 = vpop.permute.xlu0 %4387
  %4389 = vrot.lane.b32.xlu0 %v3983, 64
  %v4390 = vpop.permute.xlu0 %4389
  %4391 = vrot.lane.b32.xlu0 %v3982, 64
  %v4392 = vpop.permute.xlu0 %4391
  %4393 = vrot.lane.b32.xlu0 %v3981, 64
  %v4394 = vpop.permute.xlu0 %4393
  %4395 = vrot.lane.b32.xlu0 %v3980, 64
  %v4396 = vpop.permute.xlu0 %4395
  %4397 = vrot.lane.b32.xlu0 %v3979, 64
  %v4398 = vpop.permute.xlu0 %4397
  %4399 = vrot.lane.b32.xlu0 %v3978, 64
  %v4400 = vpop.permute.xlu0 %4399
  %4401 = vrot.lane.b32.xlu0 %v3977, 64
  %v4402 = vpop.permute.xlu0 %4401
  %4403 = vrot.lane.b32.xlu0 %v3976, 64
  %v4404 = vpop.permute.xlu0 %4403
  %4405 = vrot.lane.b32.xlu0 %v3975, 64
  %v4406 = vpop.permute.xlu0 %4405
  %4407 = vrot.lane.b32.xlu0 %v3974, 64
  %v4408 = vpop.permute.xlu0 %4407
  %4409 = vrot.lane.b32.xlu0 %v3973, 64
  %v4410 = vpop.permute.xlu0 %4409
  %4411 = vrot.lane.b32.xlu0 %v3972, 64
  %v4412 = vpop.permute.xlu0 %4411
  %4413 = vrot.lane.b32.xlu0 %v3971, 64
  %v4414 = vpop.permute.xlu0 %4413
  %4415 = vrot.lane.b32.xlu0 %v3970, 64
  %v4416 = vpop.permute.xlu0 %4415
  %4417 = vrot.lane.b32.xlu0 %v3969, 64
  %v4418 = vpop.permute.xlu0 %4417
  %4419 = vrot.lane.b32.xlu0 %v3968, 64
  %v4420 = vpop.permute.xlu0 %4419
  %4421 = vrot.lane.b32.xlu0 %v3967, 64
  %v4422 = vpop.permute.xlu0 %4421
  %4423 = vrot.lane.b32.xlu0 %v3966, 64
  %v4424 = vpop.permute.xlu0 %4423
  %4425 = vrot.lane.b32.xlu0 %v3965, 64
  %v4426 = vpop.permute.xlu0 %4425
  %4427 = vrot.lane.b32.xlu0 %v3964, 64
  %v4428 = vpop.permute.xlu0 %4427
  %4429 = vrot.lane.b32.xlu0 %v3963, 64
  %v4430 = vpop.permute.xlu0 %4429
  %4431 = vrot.lane.b32.xlu0 %v3962, 64
  %v4432 = vpop.permute.xlu0 %4431
  %4433 = vrot.lane.b32.xlu0 %v3961, 64
  %v4434 = vpop.permute.xlu0 %4433
  %4435 = vrot.lane.b32.xlu0 %v3960, 64
  %v4436 = vpop.permute.xlu0 %4435
  %4437 = vrot.lane.b32.xlu0 %v3959, 64
  %v4438 = vpop.permute.xlu0 %4437
  %4439 = vrot.lane.b32.xlu0 %v3958, 64
  %v4440 = vpop.permute.xlu0 %4439
  %4441 = vrot.lane.b32.xlu0 %v3957, 64
  %v4442 = vpop.permute.xlu0 %4441
  %4443 = vrot.lane.b32.xlu0 %v3956, 64
  %v4444 = vpop.permute.xlu0 %4443
  %4445 = vrot.lane.b32.xlu0 %v3955, 64
  %v4446 = vpop.permute.xlu0 %4445
  %4447 = vrot.lane.b32.xlu0 %v3954, 64
  %v4448 = vpop.permute.xlu0 %4447
  %4449 = vrot.lane.b32.xlu0 %v3953, 64
  %v4450 = vpop.permute.xlu0 %4449
  %4451 = vrot.lane.b32.xlu0 %v3952, 64
  %v4452 = vpop.permute.xlu0 %4451
  %4453 = vrot.lane.b32.xlu0 %v3951, 64
  %v4454 = vpop.permute.xlu0 %4453
  %4455 = vrot.lane.b32.xlu0 %v3950, 64
  %v4456 = vpop.permute.xlu0 %4455
  %4457 = vrot.lane.b32.xlu0 %v3949, 64
  %v4458 = vpop.permute.xlu0 %4457
  %4459 = vrot.lane.b32.xlu0 %v4012, 64
  %v4460 = vpop.permute.xlu0 %4459
  %4589 = vrot.lane.b32.xlu0 %v3695, 96
  %v4590 = vpop.permute.xlu0 %4589
  %4591 = vrot.lane.b32.xlu0 %v3696, 96
  %v4592 = vpop.permute.xlu0 %4591
  %4593 = vrot.lane.b32.xlu0 %v3697, 96
  %v4594 = vpop.permute.xlu0 %4593
  %4595 = vrot.lane.b32.xlu0 %v3698, 96
  %v4596 = vpop.permute.xlu0 %4595
  %4597 = vrot.lane.b32.xlu0 %v3699, 96
  %v4598 = vpop.permute.xlu0 %4597
  %4599 = vrot.lane.b32.xlu0 %v3700, 96
  %v4600 = vpop.permute.xlu0 %4599
  %4601 = vrot.lane.b32.xlu0 %v3701, 96
  %v4602 = vpop.permute.xlu0 %4601
  %4603 = vrot.lane.b32.xlu0 %v3702, 96
  %v4604 = vpop.permute.xlu0 %4603
  %4605 = vrot.lane.b32.xlu0 %v3703, 96
  %v4606 = vpop.permute.xlu0 %4605
  %4607 = vrot.lane.b32.xlu0 %v3704, 96
  %v4608 = vpop.permute.xlu0 %4607
  %4609 = vrot.lane.b32.xlu0 %v3705, 96
  %v4610 = vpop.permute.xlu0 %4609
  %4611 = vrot.lane.b32.xlu0 %v3706, 96
  %v4612 = vpop.permute.xlu0 %4611
  %4613 = vrot.lane.b32.xlu0 %v3707, 96
  %v4614 = vpop.permute.xlu0 %4613
  %4615 = vrot.lane.b32.xlu0 %v3708, 96
  %v4616 = vpop.permute.xlu0 %4615
  %4617 = vrot.lane.b32.xlu0 %v3709, 96
  %v4618 = vpop.permute.xlu0 %4617
  %4619 = vrot.lane.b32.xlu0 %v3710, 96
  %v4620 = vpop.permute.xlu0 %4619
  %4621 = vrot.lane.b32.xlu0 %v3711, 96
  %v4622 = vpop.permute.xlu0 %4621
  %4623 = vrot.lane.b32.xlu0 %v3712, 96
  %v4624 = vpop.permute.xlu0 %4623
  %4625 = vrot.lane.b32.xlu0 %v3713, 96
  %v4626 = vpop.permute.xlu0 %4625
  %4627 = vrot.lane.b32.xlu0 %v3714, 96
  %v4628 = vpop.permute.xlu0 %4627
  %4629 = vrot.lane.b32.xlu0 %v3715, 96
  %v4630 = vpop.permute.xlu0 %4629
  %4631 = vrot.lane.b32.xlu0 %v3716, 96
  %v4632 = vpop.permute.xlu0 %4631
  %4633 = vrot.lane.b32.xlu0 %v3717, 96
  %v4634 = vpop.permute.xlu0 %4633
  %4635 = vrot.lane.b32.xlu0 %v3718, 96
  %v4636 = vpop.permute.xlu0 %4635
  %4637 = vrot.lane.b32.xlu0 %v3719, 96
  %v4638 = vpop.permute.xlu0 %4637
  %4639 = vrot.lane.b32.xlu0 %v3720, 96
  %v4640 = vpop.permute.xlu0 %4639
  %4641 = vrot.lane.b32.xlu0 %v3721, 96
  %v4642 = vpop.permute.xlu0 %4641
  %4643 = vrot.lane.b32.xlu0 %v3722, 96
  %v4644 = vpop.permute.xlu0 %4643
  %4645 = vrot.lane.b32.xlu0 %v3723, 96
  %v4646 = vpop.permute.xlu0 %4645
  %4647 = vrot.lane.b32.xlu0 %v3724, 96
  %v4648 = vpop.permute.xlu0 %4647
  %4649 = vrot.lane.b32.xlu0 %v3725, 96
  %v4650 = vpop.permute.xlu0 %4649
  %4651 = vrot.lane.b32.xlu0 %v3726, 96
  %v4652 = vpop.permute.xlu0 %4651
  %4653 = vrot.lane.b32.xlu0 %v3727, 96
  %v4654 = vpop.permute.xlu0 %4653
  %4655 = vrot.lane.b32.xlu0 %v3728, 96
  %v4656 = vpop.permute.xlu0 %4655
  %4657 = vrot.lane.b32.xlu0 %v3729, 96
  %v4658 = vpop.permute.xlu0 %4657
  %4659 = vrot.lane.b32.xlu0 %v3730, 96
  %v4660 = vpop.permute.xlu0 %4659
  %4661 = vrot.lane.b32.xlu0 %v3731, 96
  %v4662 = vpop.permute.xlu0 %4661
  %4663 = vrot.lane.b32.xlu0 %v3732, 96
  %v4664 = vpop.permute.xlu0 %4663
  %4665 = vrot.lane.b32.xlu0 %v3733, 96
  %v4666 = vpop.permute.xlu0 %4665
  %4667 = vrot.lane.b32.xlu0 %v3734, 96
  %v4668 = vpop.permute.xlu0 %4667
  %4669 = vrot.lane.b32.xlu0 %v3735, 96
  %v4670 = vpop.permute.xlu0 %4669
  %4671 = vrot.lane.b32.xlu0 %v3736, 96
  %v4672 = vpop.permute.xlu0 %4671
  %4673 = vrot.lane.b32.xlu0 %v3737, 96
  %v4674 = vpop.permute.xlu0 %4673
  %4675 = vrot.lane.b32.xlu0 %v3738, 96
  %v4676 = vpop.permute.xlu0 %4675
  %4677 = vrot.lane.b32.xlu0 %v3739, 96
  %v4678 = vpop.permute.xlu0 %4677
  %4679 = vrot.lane.b32.xlu0 %v3740, 96
  %v4680 = vpop.permute.xlu0 %4679
  %4681 = vrot.lane.b32.xlu0 %v3741, 96
  %v4682 = vpop.permute.xlu0 %4681
  %4683 = vrot.lane.b32.xlu0 %v3742, 96
  %v4684 = vpop.permute.xlu0 %4683
  %4685 = vrot.lane.b32.xlu0 %v3743, 96
  %v4686 = vpop.permute.xlu0 %4685
  %4687 = vrot.lane.b32.xlu0 %v3744, 96
  %v4688 = vpop.permute.xlu0 %4687
  %4689 = vrot.lane.b32.xlu0 %v3745, 96
  %v4690 = vpop.permute.xlu0 %4689
  %4691 = vrot.lane.b32.xlu0 %v3746, 96
  %v4692 = vpop.permute.xlu0 %4691
  %4693 = vrot.lane.b32.xlu0 %v3747, 96
  %v4694 = vpop.permute.xlu0 %4693
  %4695 = vrot.lane.b32.xlu0 %v3748, 96
  %v4696 = vpop.permute.xlu0 %4695
  %4697 = vrot.lane.b32.xlu0 %v3749, 96
  %v4698 = vpop.permute.xlu0 %4697
  %4699 = vrot.lane.b32.xlu0 %v3750, 96
  %v4700 = vpop.permute.xlu0 %4699
  %4701 = vrot.lane.b32.xlu0 %v3751, 96
  %v4702 = vpop.permute.xlu0 %4701
  %4703 = vrot.lane.b32.xlu0 %v3752, 96
  %v4704 = vpop.permute.xlu0 %4703
  %4705 = vrot.lane.b32.xlu0 %v3753, 96
  %v4706 = vpop.permute.xlu0 %4705
  %4707 = vrot.lane.b32.xlu0 %v3754, 96
  %v4708 = vpop.permute.xlu0 %4707
  %4709 = vrot.lane.b32.xlu0 %v3755, 96
  %v4710 = vpop.permute.xlu0 %4709
  %4711 = vrot.lane.b32.xlu0 %v3756, 96
  %v4712 = vpop.permute.xlu0 %4711
  %4713 = vrot.lane.b32.xlu0 %v3693, 96
  %v4714 = vpop.permute.xlu0 %4713
  %4715 = vrot.lane.b32.xlu0 %v3694, 96
  %v4716 = vpop.permute.xlu0 %4715
  %4781 = vrot.lane.b32.xlu0 %v4009, 32
  %v4782 = vpop.permute.xlu0 %4781
  %4783 = vrot.lane.b32.xlu0 %v4008, 32
  %v4784 = vpop.permute.xlu0 %4783
  %4785 = vrot.lane.b32.xlu0 %v4007, 32
  %v4786 = vpop.permute.xlu0 %4785
  %4787 = vrot.lane.b32.xlu0 %v4006, 32
  %v4788 = vpop.permute.xlu0 %4787
  %4789 = vrot.lane.b32.xlu0 %v4005, 32
  %v4790 = vpop.permute.xlu0 %4789
  %4791 = vrot.lane.b32.xlu0 %v4004, 32
  %v4792 = vpop.permute.xlu0 %4791
  %4793 = vrot.lane.b32.xlu0 %v4003, 32
  %v4794 = vpop.permute.xlu0 %4793
  %4795 = vrot.lane.b32.xlu0 %v4002, 32
  %v4796 = vpop.permute.xlu0 %4795
  %4797 = vrot.lane.b32.xlu0 %v4001, 32
  %v4798 = vpop.permute.xlu0 %4797
  %4799 = vrot.lane.b32.xlu0 %v4000, 32
  %v4800 = vpop.permute.xlu0 %4799
  %4801 = vrot.lane.b32.xlu0 %v3999, 32
  %v4802 = vpop.permute.xlu0 %4801
  %4803 = vrot.lane.b32.xlu0 %v3998, 32
  %v4804 = vpop.permute.xlu0 %4803
  %4805 = vrot.lane.b32.xlu0 %v3997, 32
  %v4806 = vpop.permute.xlu0 %4805
  %4807 = vrot.lane.b32.xlu0 %v3996, 32
  %v4808 = vpop.permute.xlu0 %4807
  %4809 = vrot.lane.b32.xlu0 %v3995, 32
  %v4810 = vpop.permute.xlu0 %4809
  %4811 = vrot.lane.b32.xlu0 %v3994, 32
  %v4812 = vpop.permute.xlu0 %4811
  %4813 = vrot.lane.b32.xlu0 %v3993, 32
  %v4814 = vpop.permute.xlu0 %4813
  %4815 = vrot.lane.b32.xlu0 %v3992, 32
  %v4816 = vpop.permute.xlu0 %4815
  %4817 = vrot.lane.b32.xlu0 %v3991, 32
  %v4818 = vpop.permute.xlu0 %4817
  %4819 = vrot.lane.b32.xlu0 %v3990, 32
  %v4820 = vpop.permute.xlu0 %4819
  %4821 = vrot.lane.b32.xlu0 %v3989, 32
  %v4822 = vpop.permute.xlu0 %4821
  %4823 = vrot.lane.b32.xlu0 %v3988, 32
  %v4824 = vpop.permute.xlu0 %4823
  %4825 = vrot.lane.b32.xlu0 %v3987, 32
  %v4826 = vpop.permute.xlu0 %4825
  %4827 = vrot.lane.b32.xlu0 %v3986, 32
  %v4828 = vpop.permute.xlu0 %4827
  %4829 = vrot.lane.b32.xlu0 %v3985, 32
  %v4830 = vpop.permute.xlu0 %4829
  %4831 = vrot.lane.b32.xlu0 %v3984, 32
  %v4832 = vpop.permute.xlu0 %4831
  %4833 = vrot.lane.b32.xlu0 %v3983, 32
  %v4834 = vpop.permute.xlu0 %4833
  %4835 = vrot.lane.b32.xlu0 %v3982, 32
  %v4836 = vpop.permute.xlu0 %4835
  %4837 = vrot.lane.b32.xlu0 %v3981, 32
  %v4838 = vpop.permute.xlu0 %4837
  %4839 = vrot.lane.b32.xlu0 %v3980, 32
  %v4840 = vpop.permute.xlu0 %4839
  %4841 = vrot.lane.b32.xlu0 %v3979, 32
  %v4842 = vpop.permute.xlu0 %4841
  %4843 = vrot.lane.b32.xlu0 %v3978, 32
  %v4844 = vpop.permute.xlu0 %4843
  %4845 = vrot.lane.b32.xlu0 %v3977, 32
  %v4846 = vpop.permute.xlu0 %4845
  %4847 = vrot.lane.b32.xlu0 %v3976, 32
  %v4848 = vpop.permute.xlu0 %4847
  %4849 = vrot.lane.b32.xlu0 %v3975, 32
  %v4850 = vpop.permute.xlu0 %4849
  %4851 = vrot.lane.b32.xlu0 %v3974, 32
  %v4852 = vpop.permute.xlu0 %4851
  %4853 = vrot.lane.b32.xlu0 %v3973, 32
  %v4854 = vpop.permute.xlu0 %4853
  %4855 = vrot.lane.b32.xlu0 %v3972, 32
  %v4856 = vpop.permute.xlu0 %4855
  %4857 = vrot.lane.b32.xlu0 %v3971, 32
  %v4858 = vpop.permute.xlu0 %4857
  %4859 = vrot.lane.b32.xlu0 %v3970, 32
  %v4860 = vpop.permute.xlu0 %4859
  %4861 = vrot.lane.b32.xlu0 %v3969, 32
  %v4862 = vpop.permute.xlu0 %4861
  %4863 = vrot.lane.b32.xlu0 %v3968, 32
  %v4864 = vpop.permute.xlu0 %4863
  %4865 = vrot.lane.b32.xlu0 %v3967, 32
  %v4866 = vpop.permute.xlu0 %4865
  %4867 = vrot.lane.b32.xlu0 %v3966, 32
  %v4868 = vpop.permute.xlu0 %4867
  %4869 = vrot.lane.b32.xlu0 %v3965, 32
  %v4870 = vpop.permute.xlu0 %4869
  %4871 = vrot.lane.b32.xlu0 %v3964, 32
  %v4872 = vpop.permute.xlu0 %4871
  %4873 = vrot.lane.b32.xlu0 %v3963, 32
  %v4874 = vpop.permute.xlu0 %4873
  %4875 = vrot.lane.b32.xlu0 %v3962, 32
  %v4876 = vpop.permute.xlu0 %4875
  %4877 = vrot.lane.b32.xlu0 %v3961, 32
  %v4878 = vpop.permute.xlu0 %4877
  %4879 = vrot.lane.b32.xlu0 %v3960, 32
  %v4880 = vpop.permute.xlu0 %4879
  %4881 = vrot.lane.b32.xlu0 %v3959, 32
  %v4882 = vpop.permute.xlu0 %4881
  %4883 = vrot.lane.b32.xlu0 %v3958, 32
  %v4884 = vpop.permute.xlu0 %4883
  %4885 = vrot.lane.b32.xlu0 %v3957, 32
  %v4886 = vpop.permute.xlu0 %4885
  %4887 = vrot.lane.b32.xlu0 %v3956, 32
  %v4888 = vpop.permute.xlu0 %4887
  %4889 = vrot.lane.b32.xlu0 %v3955, 32
  %v4890 = vpop.permute.xlu0 %4889
  %4891 = vrot.lane.b32.xlu0 %v3954, 32
  %v4892 = vpop.permute.xlu0 %4891
  %4893 = vrot.lane.b32.xlu0 %v3953, 32
  %v4894 = vpop.permute.xlu0 %4893
  %4895 = vrot.lane.b32.xlu0 %v3952, 32
  %v4896 = vpop.permute.xlu0 %4895
  %4897 = vrot.lane.b32.xlu0 %v3951, 32
  %v4898 = vpop.permute.xlu0 %4897
  %4899 = vrot.lane.b32.xlu0 %v3950, 32
  %v4900 = vpop.permute.xlu0 %4899
  %4901 = vrot.lane.b32.xlu0 %v3949, 32
  %v4902 = vpop.permute.xlu0 %4901
  %4903 = vrot.lane.b32.xlu0 %v4012, 32
  %v4904 = vpop.permute.xlu0 %4903
  %4905 = vrot.lane.b32.xlu0 %v4011, 32
  %v4906 = vpop.permute.xlu0 %4905
  %4907 = vrot.lane.b32.xlu0 %v4010, 32
  %v4908 = vpop.permute.xlu0 %4907
  %4973 = vrot.lane.b32.xlu0 %v3697, 64
  %v4974 = vpop.permute.xlu0 %4973
  %4975 = vrot.lane.b32.xlu0 %v3698, 64
  %v4976 = vpop.permute.xlu0 %4975
  %4977 = vrot.lane.b32.xlu0 %v3699, 64
  %v4978 = vpop.permute.xlu0 %4977
  %4979 = vrot.lane.b32.xlu0 %v3700, 64
  %v4980 = vpop.permute.xlu0 %4979
  %4981 = vrot.lane.b32.xlu0 %v3701, 64
  %v4982 = vpop.permute.xlu0 %4981
  %4983 = vrot.lane.b32.xlu0 %v3702, 64
  %v4984 = vpop.permute.xlu0 %4983
  %4985 = vrot.lane.b32.xlu0 %v3703, 64
  %v4986 = vpop.permute.xlu0 %4985
  %4987 = vrot.lane.b32.xlu0 %v3704, 64
  %v4988 = vpop.permute.xlu0 %4987
  %4989 = vrot.lane.b32.xlu0 %v3705, 64
  %v4990 = vpop.permute.xlu0 %4989
  %4991 = vrot.lane.b32.xlu0 %v3706, 64
  %v4992 = vpop.permute.xlu0 %4991
  %4993 = vrot.lane.b32.xlu0 %v3707, 64
  %v4994 = vpop.permute.xlu0 %4993
  %4995 = vrot.lane.b32.xlu0 %v3708, 64
  %v4996 = vpop.permute.xlu0 %4995
  %4997 = vrot.lane.b32.xlu0 %v3709, 64
  %v4998 = vpop.permute.xlu0 %4997
  %4999 = vrot.lane.b32.xlu0 %v3710, 64
  %v5000 = vpop.permute.xlu0 %4999
  %5001 = vrot.lane.b32.xlu0 %v3711, 64
  %v5002 = vpop.permute.xlu0 %5001
  %5003 = vrot.lane.b32.xlu0 %v3712, 64
  %v5004 = vpop.permute.xlu0 %5003
  %5005 = vrot.lane.b32.xlu0 %v3713, 64
  %v5006 = vpop.permute.xlu0 %5005
  %5007 = vrot.lane.b32.xlu0 %v3714, 64
  %v5008 = vpop.permute.xlu0 %5007
  %5009 = vrot.lane.b32.xlu0 %v3715, 64
  %v5010 = vpop.permute.xlu0 %5009
  %5011 = vrot.lane.b32.xlu0 %v3716, 64
  %v5012 = vpop.permute.xlu0 %5011
  %5013 = vrot.lane.b32.xlu0 %v3717, 64
  %v5014 = vpop.permute.xlu0 %5013
  %5015 = vrot.lane.b32.xlu0 %v3718, 64
  %v5016 = vpop.permute.xlu0 %5015
  %5017 = vrot.lane.b32.xlu0 %v3719, 64
  %v5018 = vpop.permute.xlu0 %5017
  %5019 = vrot.lane.b32.xlu0 %v3720, 64
  %v5020 = vpop.permute.xlu0 %5019
  %5021 = vrot.lane.b32.xlu0 %v3721, 64
  %v5022 = vpop.permute.xlu0 %5021
  %5023 = vrot.lane.b32.xlu0 %v3722, 64
  %v5024 = vpop.permute.xlu0 %5023
  %5025 = vrot.lane.b32.xlu0 %v3723, 64
  %v5026 = vpop.permute.xlu0 %5025
  %5027 = vrot.lane.b32.xlu0 %v3724, 64
  %v5028 = vpop.permute.xlu0 %5027
  %5029 = vrot.lane.b32.xlu0 %v3725, 64
  %v5030 = vpop.permute.xlu0 %5029
  %5031 = vrot.lane.b32.xlu0 %v3726, 64
  %v5032 = vpop.permute.xlu0 %5031
  %5033 = vrot.lane.b32.xlu0 %v3727, 64
  %v5034 = vpop.permute.xlu0 %5033
  %5035 = vrot.lane.b32.xlu0 %v3728, 64
  %v5036 = vpop.permute.xlu0 %5035
  %5037 = vrot.lane.b32.xlu0 %v3729, 64
  %v5038 = vpop.permute.xlu0 %5037
  %5039 = vrot.lane.b32.xlu0 %v3730, 64
  %v5040 = vpop.permute.xlu0 %5039
  %5041 = vrot.lane.b32.xlu0 %v3731, 64
  %v5042 = vpop.permute.xlu0 %5041
  %5043 = vrot.lane.b32.xlu0 %v3732, 64
  %v5044 = vpop.permute.xlu0 %5043
  %5045 = vrot.lane.b32.xlu0 %v3733, 64
  %v5046 = vpop.permute.xlu0 %5045
  %5047 = vrot.lane.b32.xlu0 %v3734, 64
  %v5048 = vpop.permute.xlu0 %5047
  %5049 = vrot.lane.b32.xlu0 %v3735, 64
  %v5050 = vpop.permute.xlu0 %5049
  %5051 = vrot.lane.b32.xlu0 %v3736, 64
  %v5052 = vpop.permute.xlu0 %5051
  %5053 = vrot.lane.b32.xlu0 %v3737, 64
  %v5054 = vpop.permute.xlu0 %5053
  %5055 = vrot.lane.b32.xlu0 %v3738, 64
  %v5056 = vpop.permute.xlu0 %5055
  %5057 = vrot.lane.b32.xlu0 %v3739, 64
  %v5058 = vpop.permute.xlu0 %5057
  %5059 = vrot.lane.b32.xlu0 %v3740, 64
  %v5060 = vpop.permute.xlu0 %5059
  %5061 = vrot.lane.b32.xlu0 %v3741, 64
  %v5062 = vpop.permute.xlu0 %5061
  %5063 = vrot.lane.b32.xlu0 %v3742, 64
  %v5064 = vpop.permute.xlu0 %5063
  %5065 = vrot.lane.b32.xlu0 %v3743, 64
  %v5066 = vpop.permute.xlu0 %5065
  %5067 = vrot.lane.b32.xlu0 %v3744, 64
  %v5068 = vpop.permute.xlu0 %5067
  %5069 = vrot.lane.b32.xlu0 %v3745, 64
  %v5070 = vpop.permute.xlu0 %5069
  %5071 = vrot.lane.b32.xlu0 %v3746, 64
  %v5072 = vpop.permute.xlu0 %5071
  %5073 = vrot.lane.b32.xlu0 %v3747, 64
  %v5074 = vpop.permute.xlu0 %5073
  %5075 = vrot.lane.b32.xlu0 %v3748, 64
  %v5076 = vpop.permute.xlu0 %5075
  %5077 = vrot.lane.b32.xlu0 %v3749, 64
  %v5078 = vpop.permute.xlu0 %5077
  %5079 = vrot.lane.b32.xlu0 %v3750, 64
  %v5080 = vpop.permute.xlu0 %5079
  %5081 = vrot.lane.b32.xlu0 %v3751, 64
  %v5082 = vpop.permute.xlu0 %5081
  %5083 = vrot.lane.b32.xlu0 %v3752, 64
  %v5084 = vpop.permute.xlu0 %5083
  %5085 = vrot.lane.b32.xlu0 %v3753, 64
  %v5086 = vpop.permute.xlu0 %5085
  %5087 = vrot.lane.b32.xlu0 %v3754, 64
  %v5088 = vpop.permute.xlu0 %5087
  %5089 = vrot.lane.b32.xlu0 %v3755, 64
  %v5090 = vpop.permute.xlu0 %5089
  %5091 = vrot.lane.b32.xlu0 %v3756, 64
  %v5092 = vpop.permute.xlu0 %5091
  %5093 = vrot.lane.b32.xlu0 %v3693, 64
  %v5094 = vpop.permute.xlu0 %5093
  %5095 = vrot.lane.b32.xlu0 %v3694, 64
  %v5096 = vpop.permute.xlu0 %5095
  %5097 = vrot.lane.b32.xlu0 %v3695, 64
  %v5098 = vpop.permute.xlu0 %5097
  %5099 = vrot.lane.b32.xlu0 %v3696, 64
  %v5100 = vpop.permute.xlu0 %5099
  %5165 = vrot.lane.b32.xlu0 %v3879, 96
  %v5166 = vpop.permute.xlu0 %5165
  %5167 = vrot.lane.b32.xlu0 %v3878, 96
  %v5168 = vpop.permute.xlu0 %5167
  %5169 = vrot.lane.b32.xlu0 %v3877, 96
  %v5170 = vpop.permute.xlu0 %5169
  %5171 = vrot.lane.b32.xlu0 %v3876, 96
  %v5172 = vpop.permute.xlu0 %5171
  %5173 = vrot.lane.b32.xlu0 %v3875, 96
  %v5174 = vpop.permute.xlu0 %5173
  %5175 = vrot.lane.b32.xlu0 %v3874, 96
  %v5176 = vpop.permute.xlu0 %5175
  %5177 = vrot.lane.b32.xlu0 %v3873, 96
  %v5178 = vpop.permute.xlu0 %5177
  %5179 = vrot.lane.b32.xlu0 %v3872, 96
  %v5180 = vpop.permute.xlu0 %5179
  %5181 = vrot.lane.b32.xlu0 %v3871, 96
  %v5182 = vpop.permute.xlu0 %5181
  %5183 = vrot.lane.b32.xlu0 %v3870, 96
  %v5184 = vpop.permute.xlu0 %5183
  %5185 = vrot.lane.b32.xlu0 %v3869, 96
  %v5186 = vpop.permute.xlu0 %5185
  %5187 = vrot.lane.b32.xlu0 %v3868, 96
  %v5188 = vpop.permute.xlu0 %5187
  %5189 = vrot.lane.b32.xlu0 %v3867, 96
  %v5190 = vpop.permute.xlu0 %5189
  %5191 = vrot.lane.b32.xlu0 %v3866, 96
  %v5192 = vpop.permute.xlu0 %5191
  %5193 = vrot.lane.b32.xlu0 %v3865, 96
  %v5194 = vpop.permute.xlu0 %5193
  %5195 = vrot.lane.b32.xlu0 %v3864, 96
  %v5196 = vpop.permute.xlu0 %5195
  %5197 = vrot.lane.b32.xlu0 %v3863, 96
  %v5198 = vpop.permute.xlu0 %5197
  %5199 = vrot.lane.b32.xlu0 %v3862, 96
  %v5200 = vpop.permute.xlu0 %5199
  %5201 = vrot.lane.b32.xlu0 %v3861, 96
  %v5202 = vpop.permute.xlu0 %5201
  %5203 = vrot.lane.b32.xlu0 %v3860, 96
  %v5204 = vpop.permute.xlu0 %5203
  %5205 = vrot.lane.b32.xlu0 %v3859, 96
  %v5206 = vpop.permute.xlu0 %5205
  %5207 = vrot.lane.b32.xlu0 %v3858, 96
  %v5208 = vpop.permute.xlu0 %5207
  %5209 = vrot.lane.b32.xlu0 %v3857, 96
  %v5210 = vpop.permute.xlu0 %5209
  %5211 = vrot.lane.b32.xlu0 %v3856, 96
  %v5212 = vpop.permute.xlu0 %5211
  %5213 = vrot.lane.b32.xlu0 %v3855, 96
  %v5214 = vpop.permute.xlu0 %5213
  %5215 = vrot.lane.b32.xlu0 %v3854, 96
  %v5216 = vpop.permute.xlu0 %5215
  %5217 = vrot.lane.b32.xlu0 %v3853, 96
  %v5218 = vpop.permute.xlu0 %5217
  %5219 = vrot.lane.b32.xlu0 %v3852, 96
  %v5220 = vpop.permute.xlu0 %5219
  %5221 = vrot.lane.b32.xlu0 %v3851, 96
  %v5222 = vpop.permute.xlu0 %5221
  %5223 = vrot.lane.b32.xlu0 %v3850, 96
  %v5224 = vpop.permute.xlu0 %5223
  %5225 = vrot.lane.b32.xlu0 %v3849, 96
  %v5226 = vpop.permute.xlu0 %5225
  %5227 = vrot.lane.b32.xlu0 %v3848, 96
  %v5228 = vpop.permute.xlu0 %5227
  %5229 = vrot.lane.b32.xlu0 %v3847, 96
  %v5230 = vpop.permute.xlu0 %5229
  %5231 = vrot.lane.b32.xlu0 %v3846, 96
  %v5232 = vpop.permute.xlu0 %5231
  %5233 = vrot.lane.b32.xlu0 %v3845, 96
  %v5234 = vpop.permute.xlu0 %5233
  %5235 = vrot.lane.b32.xlu0 %v3844, 96
  %v5236 = vpop.permute.xlu0 %5235
  %5237 = vrot.lane.b32.xlu0 %v3843, 96
  %v5238 = vpop.permute.xlu0 %5237
  %5239 = vrot.lane.b32.xlu0 %v3842, 96
  %v5240 = vpop.permute.xlu0 %5239
  %5241 = vrot.lane.b32.xlu0 %v3841, 96
  %v5242 = vpop.permute.xlu0 %5241
  %5243 = vrot.lane.b32.xlu0 %v3840, 96
  %v5244 = vpop.permute.xlu0 %5243
  %5245 = vrot.lane.b32.xlu0 %v3839, 96
  %v5246 = vpop.permute.xlu0 %5245
  %5247 = vrot.lane.b32.xlu0 %v3838, 96
  %v5248 = vpop.permute.xlu0 %5247
  %5249 = vrot.lane.b32.xlu0 %v3837, 96
  %v5250 = vpop.permute.xlu0 %5249
  %5251 = vrot.lane.b32.xlu0 %v3836, 96
  %v5252 = vpop.permute.xlu0 %5251
  %5253 = vrot.lane.b32.xlu0 %v3835, 96
  %v5254 = vpop.permute.xlu0 %5253
  %5255 = vrot.lane.b32.xlu0 %v3834, 96
  %v5256 = vpop.permute.xlu0 %5255
  %5257 = vrot.lane.b32.xlu0 %v3833, 96
  %v5258 = vpop.permute.xlu0 %5257
  %5259 = vrot.lane.b32.xlu0 %v3832, 96
  %v5260 = vpop.permute.xlu0 %5259
  %5261 = vrot.lane.b32.xlu0 %v3831, 96
  %v5262 = vpop.permute.xlu0 %5261
  %5263 = vrot.lane.b32.xlu0 %v3830, 96
  %v5264 = vpop.permute.xlu0 %5263
  %5265 = vrot.lane.b32.xlu0 %v3829, 96
  %v5266 = vpop.permute.xlu0 %5265
  %5267 = vrot.lane.b32.xlu0 %v3828, 96
  %v5268 = vpop.permute.xlu0 %5267
  %5269 = vrot.lane.b32.xlu0 %v3827, 96
  %v5270 = vpop.permute.xlu0 %5269
  %5271 = vrot.lane.b32.xlu0 %v3826, 96
  %v5272 = vpop.permute.xlu0 %5271
  %5273 = vrot.lane.b32.xlu0 %v3825, 96
  %v5274 = vpop.permute.xlu0 %5273
  %5275 = vrot.lane.b32.xlu0 %v3824, 96
  %v5276 = vpop.permute.xlu0 %5275
  %5277 = vrot.lane.b32.xlu0 %v3823, 96
  %v5278 = vpop.permute.xlu0 %5277
  %5279 = vrot.lane.b32.xlu0 %v3822, 96
  %v5280 = vpop.permute.xlu0 %5279
  %5281 = vrot.lane.b32.xlu0 %v3821, 96
  %v5282 = vpop.permute.xlu0 %5281
  %5283 = vrot.lane.b32.xlu0 %v3884, 96
  %v5284 = vpop.permute.xlu0 %5283
  %5285 = vrot.lane.b32.xlu0 %v3883, 96
  %v5286 = vpop.permute.xlu0 %5285
  %5287 = vrot.lane.b32.xlu0 %v3882, 96
  %v5288 = vpop.permute.xlu0 %5287
  %5289 = vrot.lane.b32.xlu0 %v3881, 96
  %v5290 = vpop.permute.xlu0 %5289
  %5291 = vrot.lane.b32.xlu0 %v3880, 96
  %v5292 = vpop.permute.xlu0 %5291
  %v5357 = vsel %vm2365, %v3693, %v4078
  %v5358 = vsel %vm2365, %v3694, %v4080
  %v5359 = vsel %vm2365, %v3695, %v4082
  %v5360 = vsel %vm2365, %v3696, %v4084
  %v5361 = vsel %vm2365, %v3697, %v4086
  %v5362 = vsel %vm2365, %v3698, %v4088
  %v5363 = vsel %vm2365, %v3699, %v4090
  %v5364 = vsel %vm2365, %v3700, %v4092
  %v5365 = vsel %vm2365, %v3701, %v4094
  %v5366 = vsel %vm2365, %v3702, %v4096
  %v5367 = vsel %vm2365, %v3703, %v4098
  %v5368 = vsel %vm2365, %v3704, %v4100
  %v5369 = vsel %vm2365, %v3705, %v4102
  %v5370 = vsel %vm2365, %v3706, %v4104
  %v5371 = vsel %vm2365, %v3707, %v4106
  %v5372 = vsel %vm2365, %v3708, %v4108
  %v5373 = vsel %vm2365, %v3709, %v4110
  %v5374 = vsel %vm2365, %v3710, %v4112
  %v5375 = vsel %vm2365, %v3711, %v4114
  %v5376 = vsel %vm2365, %v3712, %v4116
  %v5377 = vsel %vm2365, %v3713, %v4118
  %v5378 = vsel %vm2365, %v3714, %v4120
  %v5379 = vsel %vm2365, %v3715, %v4122
  %v5380 = vsel %vm2365, %v3716, %v4124
  %v5381 = vsel %vm2365, %v3717, %v4126
  %v5382 = vsel %vm2365, %v3718, %v4128
  %v5383 = vsel %vm2365, %v3719, %v4130
  %v5384 = vsel %vm2365, %v3720, %v4132
  %v5385 = vsel %vm2365, %v3721, %v4134
  %v5386 = vsel %vm2365, %v3722, %v4136
  %v5387 = vsel %vm2365, %v3723, %v4138
  %v5388 = vsel %vm2365, %v3724, %v4140
  %v5389 = vsel %vm2365, %v3725, %v4142
  %v5390 = vsel %vm2365, %v3726, %v4144
  %v5391 = vsel %vm2365, %v3727, %v4146
  %v5392 = vsel %vm2365, %v3728, %v4148
  %v5393 = vsel %vm2365, %v3729, %v4150
  %v5394 = vsel %vm2365, %v3730, %v4152
  %v5395 = vsel %vm2365, %v3731, %v4154
  %v5396 = vsel %vm2365, %v3732, %v4156
  %v5397 = vsel %vm2365, %v3733, %v4158
  %v5398 = vsel %vm2365, %v3734, %v4160
  %v5399 = vsel %vm2365, %v3735, %v4162
  %v5400 = vsel %vm2365, %v3736, %v4164
  %v5401 = vsel %vm2365, %v3737, %v4166
  %v5402 = vsel %vm2365, %v3738, %v4168
  %v5403 = vsel %vm2365, %v3739, %v4170
  %v5404 = vsel %vm2365, %v3740, %v4172
  %v5405 = vsel %vm2365, %v3741, %v4174
  %v5406 = vsel %vm2365, %v3742, %v4176
  %v5407 = vsel %vm2365, %v3743, %v4178
  %v5408 = vsel %vm2365, %v3744, %v4180
  %v5409 = vsel %vm2365, %v3745, %v4182
  %v5410 = vsel %vm2365, %v3746, %v4184
  %v5411 = vsel %vm2365, %v3747, %v4186
  %v5412 = vsel %vm2365, %v3748, %v4188
  %v5413 = vsel %vm2365, %v3749, %v4190
  %v5414 = vsel %vm2365, %v3750, %v4192
  %v5415 = vsel %vm2365, %v3751, %v4194
  %v5416 = vsel %vm2365, %v3752, %v4196
  %v5417 = vsel %vm2365, %v3753, %v4198
  %v5418 = vsel %vm2365, %v3754, %v4200
  %v5419 = vsel %vm2365, %v3755, %v4202
  %v5420 = vsel %vm2365, %v3756, %v4204
  %v5421 = vsel %vm2430, %v5357, %v4334
  %v5422 = vsel %vm2430, %v5358, %v4336
  %v5423 = vsel %vm2430, %v5359, %v4338
  %v5424 = vsel %vm2430, %v5360, %v4340
  %v5425 = vsel %vm2430, %v5361, %v4342
  %v5426 = vsel %vm2430, %v5362, %v4344
  %v5427 = vsel %vm2430, %v5363, %v4346
  %v5428 = vsel %vm2430, %v5364, %v4348
  %v5429 = vsel %vm2430, %v5365, %v4350
  %v5430 = vsel %vm2430, %v5366, %v4352
  %v5431 = vsel %vm2430, %v5367, %v4354
  %v5432 = vsel %vm2430, %v5368, %v4356
  %v5433 = vsel %vm2430, %v5369, %v4358
  %v5434 = vsel %vm2430, %v5370, %v4360
  %v5435 = vsel %vm2430, %v5371, %v4362
  %v5436 = vsel %vm2430, %v5372, %v4364
  %v5437 = vsel %vm2430, %v5373, %v4366
  %v5438 = vsel %vm2430, %v5374, %v4368
  %v5439 = vsel %vm2430, %v5375, %v4370
  %v5440 = vsel %vm2430, %v5376, %v4372
  %v5441 = vsel %vm2430, %v5377, %v4374
  %v5442 = vsel %vm2430, %v5378, %v4376
  %v5443 = vsel %vm2430, %v5379, %v4378
  %v5444 = vsel %vm2430, %v5380, %v4380
  %v5445 = vsel %vm2430, %v5381, %v4382
  %v5446 = vsel %vm2430, %v5382, %v4384
  %v5447 = vsel %vm2430, %v5383, %v4386
  %v5448 = vsel %vm2430, %v5384, %v4388
  %v5449 = vsel %vm2430, %v5385, %v4390
  %v5450 = vsel %vm2430, %v5386, %v4392
  %v5451 = vsel %vm2430, %v5387, %v4394
  %v5452 = vsel %vm2430, %v5388, %v4396
  %v5453 = vsel %vm2430, %v5389, %v4398
  %v5454 = vsel %vm2430, %v5390, %v4400
  %v5455 = vsel %vm2430, %v5391, %v4402
  %v5456 = vsel %vm2430, %v5392, %v4404
  %v5457 = vsel %vm2430, %v5393, %v4406
  %v5458 = vsel %vm2430, %v5394, %v4408
  %v5459 = vsel %vm2430, %v5395, %v4410
  %v5460 = vsel %vm2430, %v5396, %v4412
  %v5461 = vsel %vm2430, %v5397, %v4414
  %v5462 = vsel %vm2430, %v5398, %v4416
  %v5463 = vsel %vm2430, %v5399, %v4418
  %v5464 = vsel %vm2430, %v5400, %v4420
  %v5465 = vsel %vm2430, %v5401, %v4422
  %v5466 = vsel %vm2430, %v5402, %v4424
  %v5467 = vsel %vm2430, %v5403, %v4426
  %v5468 = vsel %vm2430, %v5404, %v4428
  %v5469 = vsel %vm2430, %v5405, %v4430
  %v5470 = vsel %vm2430, %v5406, %v4432
  %v5471 = vsel %vm2430, %v5407, %v4434
  %v5472 = vsel %vm2430, %v5408, %v4436
  %v5473 = vsel %vm2430, %v5409, %v4438
  %v5474 = vsel %vm2430, %v5410, %v4440
  %v5475 = vsel %vm2430, %v5411, %v4442
  %v5476 = vsel %vm2430, %v5412, %v4444
  %v5477 = vsel %vm2430, %v5413, %v4446
  %v5478 = vsel %vm2430, %v5414, %v4448
  %v5479 = vsel %vm2430, %v5415, %v4450
  %v5480 = vsel %vm2430, %v5416, %v4452
  %v5481 = vsel %vm2430, %v5417, %v4454
  %v5482 = vsel %vm2430, %v5418, %v4456
  %v5483 = vsel %vm2430, %v5419, %v4458
  %v5484 = vsel %vm2430, %v5420, %v4460
  %v5485 = vsel %vm2495, %v5421, %v4590
  %v5486 = vsel %vm2495, %v5422, %v4592
  %v5487 = vsel %vm2495, %v5423, %v4594
  %v5488 = vsel %vm2495, %v5424, %v4596
  %v5489 = vsel %vm2495, %v5425, %v4598
  %v5490 = vsel %vm2495, %v5426, %v4600
  %v5491 = vsel %vm2495, %v5427, %v4602
  %v5492 = vsel %vm2495, %v5428, %v4604
  %v5493 = vsel %vm2495, %v5429, %v4606
  %v5494 = vsel %vm2495, %v5430, %v4608
  %v5495 = vsel %vm2495, %v5431, %v4610
  %v5496 = vsel %vm2495, %v5432, %v4612
  %v5497 = vsel %vm2495, %v5433, %v4614
  %v5498 = vsel %vm2495, %v5434, %v4616
  %v5499 = vsel %vm2495, %v5435, %v4618
  %v5500 = vsel %vm2495, %v5436, %v4620
  %v5501 = vsel %vm2495, %v5437, %v4622
  %v5502 = vsel %vm2495, %v5438, %v4624
  %v5503 = vsel %vm2495, %v5439, %v4626
  %v5504 = vsel %vm2495, %v5440, %v4628
  %v5505 = vsel %vm2495, %v5441, %v4630
  %v5506 = vsel %vm2495, %v5442, %v4632
  %v5507 = vsel %vm2495, %v5443, %v4634
  %v5508 = vsel %vm2495, %v5444, %v4636
  %v5509 = vsel %vm2495, %v5445, %v4638
  %v5510 = vsel %vm2495, %v5446, %v4640
  %v5511 = vsel %vm2495, %v5447, %v4642
  %v5512 = vsel %vm2495, %v5448, %v4644
  %v5513 = vsel %vm2495, %v5449, %v4646
  %v5514 = vsel %vm2495, %v5450, %v4648
  %v5515 = vsel %vm2495, %v5451, %v4650
  %v5516 = vsel %vm2495, %v5452, %v4652
  %v5517 = vsel %vm2495, %v5453, %v4654
  %v5518 = vsel %vm2495, %v5454, %v4656
  %v5519 = vsel %vm2495, %v5455, %v4658
  %v5520 = vsel %vm2495, %v5456, %v4660
  %v5521 = vsel %vm2495, %v5457, %v4662
  %v5522 = vsel %vm2495, %v5458, %v4664
  %v5523 = vsel %vm2495, %v5459, %v4666
  %v5524 = vsel %vm2495, %v5460, %v4668
  %v5525 = vsel %vm2495, %v5461, %v4670
  %v5526 = vsel %vm2495, %v5462, %v4672
  %v5527 = vsel %vm2495, %v5463, %v4674
  %v5528 = vsel %vm2495, %v5464, %v4676
  %v5529 = vsel %vm2495, %v5465, %v4678
  %v5530 = vsel %vm2495, %v5466, %v4680
  %v5531 = vsel %vm2495, %v5467, %v4682
  %v5532 = vsel %vm2495, %v5468, %v4684
  %v5533 = vsel %vm2495, %v5469, %v4686
  %v5534 = vsel %vm2495, %v5470, %v4688
  %v5535 = vsel %vm2495, %v5471, %v4690
  %v5536 = vsel %vm2495, %v5472, %v4692
  %v5537 = vsel %vm2495, %v5473, %v4694
  %v5538 = vsel %vm2495, %v5474, %v4696
  %v5539 = vsel %vm2495, %v5475, %v4698
  %v5540 = vsel %vm2495, %v5476, %v4700
  %v5541 = vsel %vm2495, %v5477, %v4702
  %v5542 = vsel %vm2495, %v5478, %v4704
  %v5543 = vsel %vm2495, %v5479, %v4706
  %v5544 = vsel %vm2495, %v5480, %v4708
  %v5545 = vsel %vm2495, %v5481, %v4710
  %v5546 = vsel %vm2495, %v5482, %v4712
  %v5547 = vsel %vm2495, %v5483, %v4714
  %v5548 = vsel %vm2495, %v5484, %v4716
  %v5549 = vsel %vm2365, %v3881, %v4782
  %v5550 = vsel %vm2365, %v3880, %v4784
  %v5551 = vsel %vm2365, %v3879, %v4786
  %v5552 = vsel %vm2365, %v3878, %v4788
  %v5553 = vsel %vm2365, %v3877, %v4790
  %v5554 = vsel %vm2365, %v3876, %v4792
  %v5555 = vsel %vm2365, %v3875, %v4794
  %v5556 = vsel %vm2365, %v3874, %v4796
  %v5557 = vsel %vm2365, %v3873, %v4798
  %v5558 = vsel %vm2365, %v3872, %v4800
  %v5559 = vsel %vm2365, %v3871, %v4802
  %v5560 = vsel %vm2365, %v3870, %v4804
  %v5561 = vsel %vm2365, %v3869, %v4806
  %v5562 = vsel %vm2365, %v3868, %v4808
  %v5563 = vsel %vm2365, %v3867, %v4810
  %v5564 = vsel %vm2365, %v3866, %v4812
  %v5565 = vsel %vm2365, %v3865, %v4814
  %v5566 = vsel %vm2365, %v3864, %v4816
  %v5567 = vsel %vm2365, %v3863, %v4818
  %v5568 = vsel %vm2365, %v3862, %v4820
  %v5569 = vsel %vm2365, %v3861, %v4822
  %v5570 = vsel %vm2365, %v3860, %v4824
  %v5571 = vsel %vm2365, %v3859, %v4826
  %v5572 = vsel %vm2365, %v3858, %v4828
  %v5573 = vsel %vm2365, %v3857, %v4830
  %v5574 = vsel %vm2365, %v3856, %v4832
  %v5575 = vsel %vm2365, %v3855, %v4834
  %v5576 = vsel %vm2365, %v3854, %v4836
  %v5577 = vsel %vm2365, %v3853, %v4838
  %v5578 = vsel %vm2365, %v3852, %v4840
  %v5579 = vsel %vm2365, %v3851, %v4842
  %v5580 = vsel %vm2365, %v3850, %v4844
  %v5581 = vsel %vm2365, %v3849, %v4846
  %v5582 = vsel %vm2365, %v3848, %v4848
  %v5583 = vsel %vm2365, %v3847, %v4850
  %v5584 = vsel %vm2365, %v3846, %v4852
  %v5585 = vsel %vm2365, %v3845, %v4854
  %v5586 = vsel %vm2365, %v3844, %v4856
  %v5587 = vsel %vm2365, %v3843, %v4858
  %v5588 = vsel %vm2365, %v3842, %v4860
  %v5589 = vsel %vm2365, %v3841, %v4862
  %v5590 = vsel %vm2365, %v3840, %v4864
  %v5591 = vsel %vm2365, %v3839, %v4866
  %v5592 = vsel %vm2365, %v3838, %v4868
  %v5593 = vsel %vm2365, %v3837, %v4870
  %v5594 = vsel %vm2365, %v3836, %v4872
  %v5595 = vsel %vm2365, %v3835, %v4874
  %v5596 = vsel %vm2365, %v3834, %v4876
  %v5597 = vsel %vm2365, %v3833, %v4878
  %v5598 = vsel %vm2365, %v3832, %v4880
  %v5599 = vsel %vm2365, %v3831, %v4882
  %v5600 = vsel %vm2365, %v3830, %v4884
  %v5601 = vsel %vm2365, %v3829, %v4886
  %v5602 = vsel %vm2365, %v3828, %v4888
  %v5603 = vsel %vm2365, %v3827, %v4890
  %v5604 = vsel %vm2365, %v3826, %v4892
  %v5605 = vsel %vm2365, %v3825, %v4894
  %v5606 = vsel %vm2365, %v3824, %v4896
  %v5607 = vsel %vm2365, %v3823, %v4898
  %v5608 = vsel %vm2365, %v3822, %v4900
  %v5609 = vsel %vm2365, %v3821, %v4902
  %v5610 = vsel %vm2365, %v3884, %v4904
  %v5611 = vsel %vm2365, %v3883, %v4906
  %v5612 = vsel %vm2365, %v3882, %v4908
  %v5613 = vsel %vm2430, %v5549, %v4974
  %v5614 = vsel %vm2430, %v5550, %v4976
  %v5615 = vsel %vm2430, %v5551, %v4978
  %v5616 = vsel %vm2430, %v5552, %v4980
  %v5617 = vsel %vm2430, %v5553, %v4982
  %v5618 = vsel %vm2430, %v5554, %v4984
  %v5619 = vsel %vm2430, %v5555, %v4986
  %v5620 = vsel %vm2430, %v5556, %v4988
  %v5621 = vsel %vm2430, %v5557, %v4990
  %v5622 = vsel %vm2430, %v5558, %v4992
  %v5623 = vsel %vm2430, %v5559, %v4994
  %v5624 = vsel %vm2430, %v5560, %v4996
  %v5625 = vsel %vm2430, %v5561, %v4998
  %v5626 = vsel %vm2430, %v5562, %v5000
  %v5627 = vsel %vm2430, %v5563, %v5002
  %v5628 = vsel %vm2430, %v5564, %v5004
  %v5629 = vsel %vm2430, %v5565, %v5006
  %v5630 = vsel %vm2430, %v5566, %v5008
  %v5631 = vsel %vm2430, %v5567, %v5010
  %v5632 = vsel %vm2430, %v5568, %v5012
  %v5633 = vsel %vm2430, %v5569, %v5014
  %v5634 = vsel %vm2430, %v5570, %v5016
  %v5635 = vsel %vm2430, %v5571, %v5018
  %v5636 = vsel %vm2430, %v5572, %v5020
  %v5637 = vsel %vm2430, %v5573, %v5022
  %v5638 = vsel %vm2430, %v5574, %v5024
  %v5639 = vsel %vm2430, %v5575, %v5026
  %v5640 = vsel %vm2430, %v5576, %v5028
  %v5641 = vsel %vm2430, %v5577, %v5030
  %v5642 = vsel %vm2430, %v5578, %v5032
  %v5643 = vsel %vm2430, %v5579, %v5034
  %v5644 = vsel %vm2430, %v5580, %v5036
  %v5645 = vsel %vm2430, %v5581, %v5038
  %v5646 = vsel %vm2430, %v5582, %v5040
  %v5647 = vsel %vm2430, %v5583, %v5042
  %v5648 = vsel %vm2430, %v5584, %v5044
  %v5649 = vsel %vm2430, %v5585, %v5046
  %v5650 = vsel %vm2430, %v5586, %v5048
  %v5651 = vsel %vm2430, %v5587, %v5050
  %v5652 = vsel %vm2430, %v5588, %v5052
  %v5653 = vsel %vm2430, %v5589, %v5054
  %v5654 = vsel %vm2430, %v5590, %v5056
  %v5655 = vsel %vm2430, %v5591, %v5058
  %v5656 = vsel %vm2430, %v5592, %v5060
  %v5657 = vsel %vm2430, %v5593, %v5062
  %v5658 = vsel %vm2430, %v5594, %v5064
  %v5659 = vsel %vm2430, %v5595, %v5066
  %v5660 = vsel %vm2430, %v5596, %v5068
  %v5661 = vsel %vm2430, %v5597, %v5070
  %v5662 = vsel %vm2430, %v5598, %v5072
  %v5663 = vsel %vm2430, %v5599, %v5074
  %v5664 = vsel %vm2430, %v5600, %v5076
  %v5665 = vsel %vm2430, %v5601, %v5078
  %v5666 = vsel %vm2430, %v5602, %v5080
  %v5667 = vsel %vm2430, %v5603, %v5082
  %v5668 = vsel %vm2430, %v5604, %v5084
  %v5669 = vsel %vm2430, %v5605, %v5086
  %v5670 = vsel %vm2430, %v5606, %v5088
  %v5671 = vsel %vm2430, %v5607, %v5090
  %v5672 = vsel %vm2430, %v5608, %v5092
  %v5673 = vsel %vm2430, %v5609, %v5094
  %v5674 = vsel %vm2430, %v5610, %v5096
  %v5675 = vsel %vm2430, %v5611, %v5098
  %v5676 = vsel %vm2430, %v5612, %v5100
  %v5677 = vsel %vm2495, %v5613, %v5166
  %v5678 = vsel %vm2495, %v5614, %v5168
  %v5679 = vsel %vm2495, %v5615, %v5170
  %v5680 = vsel %vm2495, %v5616, %v5172
  %v5681 = vsel %vm2495, %v5617, %v5174
  %v5682 = vsel %vm2495, %v5618, %v5176
  %v5683 = vsel %vm2495, %v5619, %v5178
  %v5684 = vsel %vm2495, %v5620, %v5180
  %v5685 = vsel %vm2495, %v5621, %v5182
  %v5686 = vsel %vm2495, %v5622, %v5184
  %v5687 = vsel %vm2495, %v5623, %v5186
  %v5688 = vsel %vm2495, %v5624, %v5188
  %v5689 = vsel %vm2495, %v5625, %v5190
  %v5690 = vsel %vm2495, %v5626, %v5192
  %v5691 = vsel %vm2495, %v5627, %v5194
  %v5692 = vsel %vm2495, %v5628, %v5196
  %v5693 = vsel %vm2495, %v5629, %v5198
  %v5694 = vsel %vm2495, %v5630, %v5200
  %v5695 = vsel %vm2495, %v5631, %v5202
  %v5696 = vsel %vm2495, %v5632, %v5204
  %v5697 = vsel %vm2495, %v5633, %v5206
  %v5698 = vsel %vm2495, %v5634, %v5208
  %v5699 = vsel %vm2495, %v5635, %v5210
  %v5700 = vsel %vm2495, %v5636, %v5212
  %v5701 = vsel %vm2495, %v5637, %v5214
  %v5702 = vsel %vm2495, %v5638, %v5216
  %v5703 = vsel %vm2495, %v5639, %v5218
  %v5704 = vsel %vm2495, %v5640, %v5220
  %v5705 = vsel %vm2495, %v5641, %v5222
  %v5706 = vsel %vm2495, %v5642, %v5224
  %v5707 = vsel %vm2495, %v5643, %v5226
  %v5708 = vsel %vm2495, %v5644, %v5228
  %v5709 = vsel %vm2495, %v5645, %v5230
  %v5710 = vsel %vm2495, %v5646, %v5232
  %v5711 = vsel %vm2495, %v5647, %v5234
  %v5712 = vsel %vm2495, %v5648, %v5236
  %v5713 = vsel %vm2495, %v5649, %v5238
  %v5714 = vsel %vm2495, %v5650, %v5240
  %v5715 = vsel %vm2495, %v5651, %v5242
  %v5716 = vsel %vm2495, %v5652, %v5244
  %v5717 = vsel %vm2495, %v5653, %v5246
  %v5718 = vsel %vm2495, %v5654, %v5248
  %v5719 = vsel %vm2495, %v5655, %v5250
  %v5720 = vsel %vm2495, %v5656, %v5252
  %v5721 = vsel %vm2495, %v5657, %v5254
  %v5722 = vsel %vm2495, %v5658, %v5256
  %v5723 = vsel %vm2495, %v5659, %v5258
  %v5724 = vsel %vm2495, %v5660, %v5260
  %v5725 = vsel %vm2495, %v5661, %v5262
  %v5726 = vsel %vm2495, %v5662, %v5264
  %v5727 = vsel %vm2495, %v5663, %v5266
  %v5728 = vsel %vm2495, %v5664, %v5268
  %v5729 = vsel %vm2495, %v5665, %v5270
  %v5730 = vsel %vm2495, %v5666, %v5272
  %v5731 = vsel %vm2495, %v5667, %v5274
  %v5732 = vsel %vm2495, %v5668, %v5276
  %v5733 = vsel %vm2495, %v5669, %v5278
  %v5734 = vsel %vm2495, %v5670, %v5280
  %v5735 = vsel %vm2495, %v5671, %v5282
  %v5736 = vsel %vm2495, %v5672, %v5284
  %v5737 = vsel %vm2495, %v5673, %v5286
  %v5738 = vsel %vm2495, %v5674, %v5288
  %v5739 = vsel %vm2495, %v5675, %v5290
  %v5740 = vsel %vm2495, %v5676, %v5292
  %v5741 = vld [vmem:[%s5] sm:$0xff]
  %v5742 = vld [vmem:[%s5 + $0x8] sm:$0xff]
  %v5743 = vld [vmem:[%s5 + $0x10] sm:$0xff]
  %v5744 = vld [vmem:[%s5 + $0x18] sm:$0xff]
  %v5745 = vld [vmem:[%s5 + $0x20] sm:$0xff]
  %v5746 = vld [vmem:[%s5 + $0x28] sm:$0xff]
  %v5747 = vld [vmem:[%s5 + $0x30] sm:$0xff]
  %v5748 = vld [vmem:[%s5 + $0x38] sm:$0xff]
  %v5749 = vld [vmem:[%s5 + $0x40] sm:$0xff]
  %v5750 = vld [vmem:[%s5 + $0x48] sm:$0xff]
  %v5751 = vld [vmem:[%s5 + $0x50] sm:$0xff]
  %v5752 = vld [vmem:[%s5 + $0x58] sm:$0xff]
  %v5753 = vld [vmem:[%s5 + $0x60] sm:$0xff]
  %v5754 = vld [vmem:[%s5 + $0x68] sm:$0xff]
  %v5755 = vld [vmem:[%s5 + $0x70] sm:$0xff]
  %v5756 = vld [vmem:[%s5 + $0x78] sm:$0xff]
  %v5757 = vld [vmem:[%s5 + $0x80] sm:$0xff]
  %v5758 = vld [vmem:[%s5 + $0x88] sm:$0xff]
  %v5759 = vld [vmem:[%s5 + $0x90] sm:$0xff]
  %v5760 = vld [vmem:[%s5 + $0x98] sm:$0xff]
  %v5761 = vld [vmem:[%s5 + $0xa0] sm:$0xff]
  %v5762 = vld [vmem:[%s5 + $0xa8] sm:$0xff]
  %v5763 = vld [vmem:[%s5 + $0xb0] sm:$0xff]
  %v5764 = vld [vmem:[%s5 + $0xb8] sm:$0xff]
  %v5765 = vld [vmem:[%s5 + $0xc0] sm:$0xff]
  %v5766 = vld [vmem:[%s5 + $0xc8] sm:$0xff]
  %v5767 = vld [vmem:[%s5 + $0xd0] sm:$0xff]
  %v5768 = vld [vmem:[%s5 + $0xd8] sm:$0xff]
  %v5769 = vld [vmem:[%s5 + $0xe0] sm:$0xff]
  %v5770 = vld [vmem:[%s5 + $0xe8] sm:$0xff]
  %v5771 = vld [vmem:[%s5 + $0xf0] sm:$0xff]
  %v5772 = vld [vmem:[%s5 + $0xf8] sm:$0xff]
  %v5773 = vld [vmem:[%s5 + $0x100] sm:$0xff]
  %v5774 = vld [vmem:[%s5 + $0x108] sm:$0xff]
  %v5775 = vld [vmem:[%s5 + $0x110] sm:$0xff]
  %v5776 = vld [vmem:[%s5 + $0x118] sm:$0xff]
  %v5777 = vld [vmem:[%s6] sm:$0x1]
  %v5779 = vlaneseq
  %v5780 = vshrl.u32 %v5779, 7
  %v5781 = vsub.s32 0, %v5780
  %v5782 = vrot.slane %v5777, %v5781
  %v5784 = vsel %vm2365, %v4007, 0
  %v5786 = vsel %vm2365, %v4006, 0
  %v5788 = vsel %vm2365, %v4005, 0
  %v5790 = vsel %vm2365, %v4004, 0
  %v5792 = vsel %vm2365, %v4003, 0
  %v5794 = vsel %vm2365, %v4002, 0
  %v5796 = vsel %vm2365, %v4001, 0
  %v5798 = vsel %vm2365, %v4000, 0
  %v5800 = vsel %vm2365, %v3999, 0
  %v5802 = vsel %vm2365, %v3998, 0
  %v5804 = vsel %vm2365, %v3997, 0
  %v5806 = vsel %vm2365, %v3996, 0
  %v5808 = vsel %vm2365, %v3995, 0
  %v5810 = vsel %vm2365, %v3994, 0
  %v5812 = vsel %vm2365, %v3993, 0
  %v5814 = vsel %vm2365, %v3992, 0
  %v5816 = vsel %vm2365, %v3991, 0
  %v5818 = vsel %vm2365, %v3990, 0
  %v5820 = vsel %vm2365, %v3989, 0
  %v5822 = vsel %vm2365, %v3988, 0
  %v5824 = vsel %vm2365, %v3987, 0
  %v5826 = vsel %vm2365, %v3986, 0
  %v5828 = vsel %vm2365, %v3985, 0
  %v5830 = vsel %vm2365, %v3984, 0
  %v5832 = vsel %vm2365, %v3983, 0
  %v5834 = vsel %vm2365, %v3982, 0
  %v5836 = vsel %vm2365, %v3981, 0
  %v5838 = vsel %vm2365, %v3980, 0
  %v5840 = vsel %vm2365, %v3979, 0
  %v5842 = vsel %vm2365, %v3978, 0
  %v5844 = vsel %vm2365, %v3977, 0
  %v5846 = vsel %vm2365, %v3976, 0
  %v5848 = vsel %vm2365, %v3975, 0
  %v5850 = vsel %vm2365, %v3974, 0
  %v5852 = vsel %vm2365, %v3973, 0
  %v5854 = vsel %vm2365, %v3972, 0
  %v5856 = vsel %vm2365, %v3971, 0
  %v5858 = vsel %vm2365, %v3970, 0
  %v5860 = vsel %vm2365, %v3969, 0
  %v5862 = vsel %vm2365, %v3968, 0
  %v5864 = vsel %vm2365, %v3967, 0
  %v5866 = vsel %vm2365, %v3966, 0
  %v5868 = vsel %vm2365, %v3965, 0
  %v5870 = vsel %vm2365, %v3964, 0
  %v5872 = vsel %vm2365, %v3963, 0
  %v5874 = vsel %vm2365, %v3962, 0
  %v5876 = vsel %vm2365, %v3961, 0
  %v5878 = vsel %vm2365, %v3960, 0
  %v5880 = vsel %vm2365, %v3959, 0
  %v5882 = vsel %vm2365, %v3958, 0
  %v5884 = vsel %vm2365, %v3957, 0
  %v5886 = vsel %vm2365, %v3956, 0
  %v5888 = vsel %vm2365, %v3955, 0
  %v5890 = vsel %vm2365, %v3954, 0
  %v5892 = vsel %vm2365, %v3953, 0
  %v5894 = vsel %vm2365, %v3952, 0
  %v5896 = vsel %vm2365, %v3951, 0
  %v5898 = vsel %vm2365, %v3950, 0
  %v5900 = vsel %vm2365, %v3949, 0
  %v5902 = vsel %vm2365, %v4012, 0
  %v5904 = vsel %vm2365, %v4011, 0
  %v5906 = vsel %vm2365, %v4010, 0
  %v5908 = vsel %vm2365, %v4009, 0
  %v5910 = vsel %vm2365, %v4008, 0
  %5912 = vmatprep.subr.mxu0 0.0
  %5913 = vmatpush1.msra.mxu0 %v5741
  %5914 = vmatprep.subr.mxu0 0.0
  %5915 = vmatpush1.msra.mxu0 %v5742
  %5916 = vmatprep.subr.mxu0 0.0
  %5917 = vmatpush1.msra.mxu0 %v5743
  %5918 = vmatprep.subr.mxu0 0.0
  %5919 = vmatpush1.msra.mxu0 %v5744
  %5920 = vmatprep.subr.mxu0 0.0
  %5921 = vmatpush1.msra.mxu0 %v5745
  %5922 = vmatprep.subr.mxu0 0.0
  %5923 = vmatpush1.msra.mxu0 %v5746
  %5924 = vmatprep.subr.mxu0 0.0
  %5925 = vmatpush1.msra.mxu0 %v5747
  %5926 = vmatprep.subr.mxu0 0.0
  %5927 = vmatpush1.msra.mxu0 %v5748
  %5928 = vmatprep.subr.mxu0 0.0
  %5929 = vmatpush1.msra.mxu0 %v5749
  %5930 = vmatprep.subr.mxu0 0.0
  %5931 = vmatpush1.msra.mxu0 %v5750
  %5932 = vmatprep.subr.mxu0 0.0
  %5933 = vmatpush1.msra.mxu0 %v5751
  %5934 = vmatprep.subr.mxu0 0.0
  %5935 = vmatpush1.msra.mxu0 %v5752
  %5936 = vmatprep.subr.mxu0 0.0
  %5937 = vmatpush1.msra.mxu0 %v5753
  %5938 = vmatprep.subr.mxu0 0.0
  %5939 = vmatpush1.msra.mxu0 %v5754
  %5940 = vmatprep.subr.mxu0 0.0
  %5941 = vmatpush1.msra.mxu0 %v5755
  %5942 = vmatprep.subr.mxu0 0.0
  %5943 = vmatpush1.msra.mxu0 %v5756
  %5944 = vmatprep.subr.mxu0 0.0
  %5945 = vmatpush1.msra.mxu0 %v5757
  %5946 = vmatprep.subr.mxu0 0.0
  %5947 = vmatpush1.msra.mxu0 %v5758
  %5948 = vmatprep.subr.mxu0 0.0
  %5949 = vmatpush1.msra.mxu0 %v5759
  %5950 = vmatprep.subr.mxu0 0.0
  %5951 = vmatpush1.msra.mxu0 %v5760
  %5952 = vmatprep.subr.mxu0 0.0
  %5953 = vmatpush1.msra.mxu0 %v5761
  %5954 = vmatprep.subr.mxu0 0.0
  %5955 = vmatpush1.msra.mxu0 %v5762
  %5956 = vmatprep.subr.mxu0 0.0
  %5957 = vmatpush1.msra.mxu0 %v5763
  %5958 = vmatprep.subr.mxu0 0.0
  %5959 = vmatpush1.msra.mxu0 %v5764
  %5960 = vmatprep.subr.mxu0 0.0
  %5961 = vmatpush1.msra.mxu0 %v5765
  %5962 = vmatprep.subr.mxu0 0.0
  %5963 = vmatpush1.msra.mxu0 %v5766
  %5964 = vmatprep.subr.mxu0 0.0
  %5965 = vmatpush1.msra.mxu0 %v5767
  %5966 = vmatprep.subr.mxu0 0.0
  %5967 = vmatpush1.msra.mxu0 %v5768
  %5968 = vmatprep.subr.mxu0 0.0
  %5969 = vmatpush1.msra.mxu0 %v5769
  %5970 = vmatprep.subr.mxu0 0.0
  %5971 = vmatpush1.msra.mxu0 %v5770
  %5972 = vmatprep.subr.mxu0 0.0
  %5973 = vmatpush1.msra.mxu0 %v5771
  %5974 = vmatprep.subr.mxu0 0.0
  %5975 = vmatpush1.msra.mxu0 %v5772
  %5976 = vmatprep.mubr.f32.mxu0 %v5677
  %5977 = vmatmul.mubr.f32.gmra.mrb[0].mxu0 %v5485
  %v5978 = vpop.f32.mrb[0].mxu0
  %v5979 = vadd.f32 %v5782, %v5978
  %v5980 = vpop.f32.mrb[0].mxu0
  %5981 = vmatprep.mubr.f32.mxu0 %v5678
  %5982 = vmatmul.mubr.f32.gmra.mrb[0].mxu0 %v5486
  %v5983 = vpop.f32.mrb[0].mxu0
  %v5984 = vadd.f32 %v5782, %v5983
  %v5985 = vpop.f32.mrb[0].mxu0
  %5986 = vmatprep.mubr.f32.mxu0 %v5679
  %5987 = vmatmul.mubr.f32.gmra.mrb[0].mxu0 %v5487
  %v5988 = vpop.f32.mrb[0].mxu0
  %v5989 = vadd.f32 %v5782, %v5988
  %v5990 = vpop.f32.mrb[0].mxu0
  %5991 = vmatprep.mubr.f32.mxu0 %v5680
  %5992 = vmatmul.mubr.f32.gmra.mrb[0].mxu0 %v5488
  %v5993 = vpop.f32.mrb[0].mxu0
  %v5994 = vadd.f32 %v5782, %v5993
  %v5995 = vpop.f32.mrb[0].mxu0
  %5996 = vmatprep.mubr.f32.mxu0 %v5681
  %5997 = vmatmul.mubr.f32.gmra.mrb[0].mxu0 %v5489
  %v5998 = vpop.f32.mrb[0].mxu0
  %v5999 = vadd.f32 %v5782, %v5998
  %v6000 = vpop.f32.mrb[0].mxu0
  %6001 = vmatprep.mubr.f32.mxu0 %v5682
  %6002 = vmatmul.mubr.f32.gmra.mrb[0].mxu0 %v5490
  %v6003 = vpop.f32.mrb[0].mxu0
  %v6004 = vadd.f32 %v5782, %v6003
  %v6005 = vpop.f32.mrb[0].mxu0
  %6006 = vmatprep.mubr.f32.mxu0 %v5683
  %6007 = vmatmul.mubr.f32.gmra.mrb[0].mxu0 %v5491
  %v6008 = vpop.f32.mrb[0].mxu0
  %v6009 = vadd.f32 %v5782, %v6008
  %v6010 = vpop.f32.mrb[0].mxu0
  %6011 = vmatprep.mubr.f32.mxu0 %v5684
  %6012 = vmatmul.mubr.f32.gmra.mrb[0].mxu0 %v5492
  %v6013 = vpop.f32.mrb[0].mxu0
  %v6014 = vadd.f32 %v5782, %v6013
  %v6015 = vpop.f32.mrb[0].mxu0
  %6016 = vmatprep.mubr.f32.mxu0 %v5685
  %6017 = vmatmul.mubr.f32.gmra.mrb[0].mxu0 %v5493
  %v6018 = vpop.f32.mrb[0].mxu0
  %v6019 = vadd.f32 %v5782, %v6018
  %v6020 = vpop.f32.mrb[0].mxu0
  %6021 = vmatprep.mubr.f32.mxu0 %v5686
  %6022 = vmatmul.mubr.f32.gmra.mrb[0].mxu0 %v5494
  %v6023 = vpop.f32.mrb[0].mxu0
  %v6024 = vadd.f32 %v5782, %v6023
  %v6025 = vpop.f32.mrb[0].mxu0
  %6026 = vmatprep.mubr.f32.mxu0 %v5687
  %6027 = vmatmul.mubr.f32.gmra.mrb[0].mxu0 %v5495
  %v6028 = vpop.f32.mrb[0].mxu0
  %v6029 = vadd.f32 %v5782, %v6028
  %v6030 = vpop.f32.mrb[0].mxu0
  %6031 = vmatprep.mubr.f32.mxu0 %v5688
  %6032 = vmatmul.mubr.f32.gmra.mrb[0].mxu0 %v5496
  %v6033 = vpop.f32.mrb[0].mxu0
  %v6034 = vadd.f32 %v5782, %v6033
  %v6035 = vpop.f32.mrb[0].mxu0
  %6036 = vmatprep.mubr.f32.mxu0 %v5689
  %6037 = vmatmul.mubr.f32.gmra.mrb[0].mxu0 %v5497
  %v6038 = vpop.f32.mrb[0].mxu0
  %v6039 = vadd.f32 %v5782, %v6038
  %v6040 = vpop.f32.mrb[0].mxu0
  %6041 = vmatprep.mubr.f32.mxu0 %v5690
  %6042 = vmatmul.mubr.f32.gmra.mrb[0].mxu0 %v5498
  %v6043 = vpop.f32.mrb[0].mxu0
  %v6044 = vadd.f32 %v5782, %v6043
  %v6045 = vpop.f32.mrb[0].mxu0
  %6046 = vmatprep.mubr.f32.mxu0 %v5691
  %6047 = vmatmul.mubr.f32.gmra.mrb[0].mxu0 %v5499
  %v6048 = vpop.f32.mrb[0].mxu0
  %v6049 = vadd.f32 %v5782, %v6048
  %v6050 = vpop.f32.mrb[0].mxu0
  %6051 = vmatprep.mubr.f32.mxu0 %v5692
  %6052 = vmatmul.mubr.f32.gmra.mrb[0].mxu0 %v5500
  %v6053 = vpop.f32.mrb[0].mxu0
  %v6054 = vadd.f32 %v5782, %v6053
  %v6055 = vpop.f32.mrb[0].mxu0
  %6056 = vmatprep.mubr.f32.mxu0 %v5693
  %6057 = vmatmul.mubr.f32.gmra.mrb[0].mxu0 %v5501
  %v6058 = vpop.f32.mrb[0].mxu0
  %v6059 = vadd.f32 %v5782, %v6058
  %v6060 = vpop.f32.mrb[0].mxu0
  %6061 = vmatprep.mubr.f32.mxu0 %v5694
  %6062 = vmatmul.mubr.f32.gmra.mrb[0].mxu0 %v5502
  %v6063 = vpop.f32.mrb[0].mxu0
  %v6064 = vadd.f32 %v5782, %v6063
  %v6065 = vpop.f32.mrb[0].mxu0
  %6066 = vmatprep.mubr.f32.mxu0 %v5695
  %6067 = vmatmul.mubr.f32.gmra.mrb[0].mxu0 %v5503
  %v6068 = vpop.f32.mrb[0].mxu0
  %v6069 = vadd.f32 %v5782, %v6068
  %v6070 = vpop.f32.mrb[0].mxu0
  %6071 = vmatprep.mubr.f32.mxu0 %v5696
  %6072 = vmatmul.mubr.f32.gmra.mrb[0].mxu0 %v5504
  %v6073 = vpop.f32.mrb[0].mxu0
  %v6074 = vadd.f32 %v5782, %v6073
  %v6075 = vpop.f32.mrb[0].mxu0
  %6076 = vmatprep.mubr.f32.mxu0 %v5697
  %6077 = vmatmul.mubr.f32.gmra.mrb[0].mxu0 %v5505
  %v6078 = vpop.f32.mrb[0].mxu0
  %v6079 = vadd.f32 %v5782, %v6078
  %v6080 = vpop.f32.mrb[0].mxu0
  %6081 = vmatprep.mubr.f32.mxu0 %v5698
  %6082 = vmatmul.mubr.f32.gmra.mrb[0].mxu0 %v5506
  %v6083 = vpop.f32.mrb[0].mxu0
  %v6084 = vadd.f32 %v5782, %v6083
  %v6085 = vpop.f32.mrb[0].mxu0
  %6086 = vmatprep.mubr.f32.mxu0 %v5699
  %6087 = vmatmul.mubr.f32.gmra.mrb[0].mxu0 %v5507
  %v6088 = vpop.f32.mrb[0].mxu0
  %v6089 = vadd.f32 %v5782, %v6088
  %v6090 = vpop.f32.mrb[0].mxu0
  %6091 = vmatprep.mubr.f32.mxu0 %v5700
  %6092 = vmatmul.mubr.f32.gmra.mrb[0].mxu0 %v5508
  %v6093 = vpop.f32.mrb[0].mxu0
  %v6094 = vadd.f32 %v5782, %v6093
  %v6095 = vpop.f32.mrb[0].mxu0
  %6096 = vmatprep.mubr.f32.mxu0 %v5701
  %6097 = vmatmul.mubr.f32.gmra.mrb[0].mxu0 %v5509
  %v6098 = vpop.f32.mrb[0].mxu0
  %v6099 = vadd.f32 %v5782, %v6098
  %v6100 = vpop.f32.mrb[0].mxu0
  %6101 = vmatprep.mubr.f32.mxu0 %v5702
  %6102 = vmatmul.mubr.f32.gmra.mrb[0].mxu0 %v5510
  %v6103 = vpop.f32.mrb[0].mxu0
  %v6104 = vadd.f32 %v5782, %v6103
  %v6105 = vpop.f32.mrb[0].mxu0
  %6106 = vmatprep.mubr.f32.mxu0 %v5703
  %6107 = vmatmul.mubr.f32.gmra.mrb[0].mxu0 %v5511
  %v6108 = vpop.f32.mrb[0].mxu0
  %v6109 = vadd.f32 %v5782, %v6108
  %v6110 = vpop.f32.mrb[0].mxu0
  %6111 = vmatprep.mubr.f32.mxu0 %v5704
  %6112 = vmatmul.mubr.f32.gmra.mrb[0].mxu0 %v5512
  %v6113 = vpop.f32.mrb[0].mxu0
  %v6114 = vadd.f32 %v5782, %v6113
  %v6115 = vpop.f32.mrb[0].mxu0
  %6116 = vmatprep.mubr.f32.mxu0 %v5705
  %6117 = vmatmul.mubr.f32.gmra.mrb[0].mxu0 %v5513
  %v6118 = vpop.f32.mrb[0].mxu0
  %v6119 = vadd.f32 %v5782, %v6118
  %v6120 = vpop.f32.mrb[0].mxu0
  %6121 = vmatprep.mubr.f32.mxu0 %v5706
  %6122 = vmatmul.mubr.f32.gmra.mrb[0].mxu0 %v5514
  %v6123 = vpop.f32.mrb[0].mxu0
  %v6124 = vadd.f32 %v5782, %v6123
  %v6125 = vpop.f32.mrb[0].mxu0
  %6126 = vmatprep.mubr.f32.mxu0 %v5707
  %6127 = vmatmul.mubr.f32.gmra.mrb[0].mxu0 %v5515
  %v6128 = vpop.f32.mrb[0].mxu0
  %v6129 = vadd.f32 %v5782, %v6128
  %v6130 = vpop.f32.mrb[0].mxu0
  %6131 = vmatprep.mubr.f32.mxu0 %v5708
  %6132 = vmatmul.mubr.f32.gmra.mrb[0].mxu0 %v5516
  %v6133 = vpop.f32.mrb[0].mxu0
  %v6134 = vadd.f32 %v5782, %v6133
  %v6135 = vpop.f32.mrb[0].mxu0
  %6136 = vmatprep.mubr.f32.mxu0 %v5709
  %6137 = vmatmul.mubr.f32.gmra.mrb[0].mxu0 %v5517
  %v6138 = vpop.f32.mrb[0].mxu0
  %v6139 = vadd.f32 %v5782, %v6138
  %v6140 = vpop.f32.mrb[0].mxu0
  %6141 = vmatprep.mubr.f32.mxu0 %v5710
  %6142 = vmatmul.mubr.f32.gmra.mrb[0].mxu0 %v5518
  %v6143 = vpop.f32.mrb[0].mxu0
  %v6144 = vadd.f32 %v5782, %v6143
  %v6145 = vpop.f32.mrb[0].mxu0
  %6146 = vmatprep.mubr.f32.mxu0 %v5711
  %6147 = vmatmul.mubr.f32.gmra.mrb[0].mxu0 %v5519
  %v6148 = vpop.f32.mrb[0].mxu0
  %v6149 = vadd.f32 %v5782, %v6148
  %v6150 = vpop.f32.mrb[0].mxu0
  %6151 = vmatprep.mubr.f32.mxu0 %v5712
  %6152 = vmatmul.mubr.f32.gmra.mrb[0].mxu0 %v5520
  %v6153 = vpop.f32.mrb[0].mxu0
  %v6154 = vadd.f32 %v5782, %v6153
  %v6155 = vpop.f32.mrb[0].mxu0
  %6156 = vmatprep.mubr.f32.mxu0 %v5713
  %6157 = vmatmul.mubr.f32.gmra.mrb[0].mxu0 %v5521
  %v6158 = vpop.f32.mrb[0].mxu0
  %v6159 = vadd.f32 %v5782, %v6158
  %v6160 = vpop.f32.mrb[0].mxu0
  %6161 = vmatprep.mubr.f32.mxu0 %v5714
  %6162 = vmatmul.mubr.f32.gmra.mrb[0].mxu0 %v5522
  %v6163 = vpop.f32.mrb[0].mxu0
  %v6164 = vadd.f32 %v5782, %v6163
  %v6165 = vpop.f32.mrb[0].mxu0
  %6166 = vmatprep.mubr.f32.mxu0 %v5715
  %6167 = vmatmul.mubr.f32.gmra.mrb[0].mxu0 %v5523
  %v6168 = vpop.f32.mrb[0].mxu0
  %v6169 = vadd.f32 %v5782, %v6168
  %v6170 = vpop.f32.mrb[0].mxu0
  %6171 = vmatprep.mubr.f32.mxu0 %v5716
  %6172 = vmatmul.mubr.f32.gmra.mrb[0].mxu0 %v5524
  %v6173 = vpop.f32.mrb[0].mxu0
  %v6174 = vadd.f32 %v5782, %v6173
  %v6175 = vpop.f32.mrb[0].mxu0
  %6176 = vmatprep.mubr.f32.mxu0 %v5717
  %6177 = vmatmul.mubr.f32.gmra.mrb[0].mxu0 %v5525
  %v6178 = vpop.f32.mrb[0].mxu0
  %v6179 = vadd.f32 %v5782, %v6178
  %v6180 = vpop.f32.mrb[0].mxu0
  %6181 = vmatprep.mubr.f32.mxu0 %v5718
  %6182 = vmatmul.mubr.f32.gmra.mrb[0].mxu0 %v5526
  %v6183 = vpop.f32.mrb[0].mxu0
  %v6184 = vadd.f32 %v5782, %v6183
  %v6185 = vpop.f32.mrb[0].mxu0
  %6186 = vmatprep.mubr.f32.mxu0 %v5719
  %6187 = vmatmul.mubr.f32.gmra.mrb[0].mxu0 %v5527
  %v6188 = vpop.f32.mrb[0].mxu0
  %v6189 = vadd.f32 %v5782, %v6188
  %v6190 = vpop.f32.mrb[0].mxu0
  %6191 = vmatprep.mubr.f32.mxu0 %v5720
  %6192 = vmatmul.mubr.f32.gmra.mrb[0].mxu0 %v5528
  %v6193 = vpop.f32.mrb[0].mxu0
  %v6194 = vadd.f32 %v5782, %v6193
  %v6195 = vpop.f32.mrb[0].mxu0
  %6196 = vmatprep.mubr.f32.mxu0 %v5721
  %6197 = vmatmul.mubr.f32.gmra.mrb[0].mxu0 %v5529
  %v6198 = vpop.f32.mrb[0].mxu0
  %v6199 = vadd.f32 %v5782, %v6198
  %v6200 = vpop.f32.mrb[0].mxu0
  %6201 = vmatprep.mubr.f32.mxu0 %v5722
  %6202 = vmatmul.mubr.f32.gmra.mrb[0].mxu0 %v5530
  %v6203 = vpop.f32.mrb[0].mxu0
  %v6204 = vadd.f32 %v5782, %v6203
  %v6205 = vpop.f32.mrb[0].mxu0
  %6206 = vmatprep.mubr.f32.mxu0 %v5723
  %6207 = vmatmul.mubr.f32.gmra.mrb[0].mxu0 %v5531
  %v6208 = vpop.f32.mrb[0].mxu0
  %v6209 = vadd.f32 %v5782, %v6208
  %v6210 = vpop.f32.mrb[0].mxu0
  %6211 = vmatprep.mubr.f32.mxu0 %v5724
  %6212 = vmatmul.mubr.f32.gmra.mrb[0].mxu0 %v5532
  %v6213 = vpop.f32.mrb[0].mxu0
  %v6214 = vadd.f32 %v5782, %v6213
  %v6215 = vpop.f32.mrb[0].mxu0
  %6216 = vmatprep.mubr.f32.mxu0 %v5725
  %6217 = vmatmul.mubr.f32.gmra.mrb[0].mxu0 %v5533
  %v6218 = vpop.f32.mrb[0].mxu0
  %v6219 = vadd.f32 %v5782, %v6218
  %v6220 = vpop.f32.mrb[0].mxu0
  %6221 = vmatprep.mubr.f32.mxu0 %v5726
  %6222 = vmatmul.mubr.f32.gmra.mrb[0].mxu0 %v5534
  %v6223 = vpop.f32.mrb[0].mxu0
  %v6224 = vadd.f32 %v5782, %v6223
  %v6225 = vpop.f32.mrb[0].mxu0
  %6226 = vmatprep.mubr.f32.mxu0 %v5727
  %6227 = vmatmul.mubr.f32.gmra.mrb[0].mxu0 %v5535
  %v6228 = vpop.f32.mrb[0].mxu0
  %v6229 = vadd.f32 %v5782, %v6228
  %v6230 = vpop.f32.mrb[0].mxu0
  %6231 = vmatprep.mubr.f32.mxu0 %v5728
  %6232 = vmatmul.mubr.f32.gmra.mrb[0].mxu0 %v5536
  %v6233 = vpop.f32.mrb[0].mxu0
  %v6234 = vadd.f32 %v5782, %v6233
  %v6235 = vpop.f32.mrb[0].mxu0
  %6236 = vmatprep.mubr.f32.mxu0 %v5729
  %6237 = vmatmul.mubr.f32.gmra.mrb[0].mxu0 %v5537
  %v6238 = vpop.f32.mrb[0].mxu0
  %v6239 = vadd.f32 %v5782, %v6238
  %v6240 = vpop.f32.mrb[0].mxu0
  %6241 = vmatprep.mubr.f32.mxu0 %v5730
  %6242 = vmatmul.mubr.f32.gmra.mrb[0].mxu0 %v5538
  %v6243 = vpop.f32.mrb[0].mxu0
  %v6244 = vadd.f32 %v5782, %v6243
  %v6245 = vpop.f32.mrb[0].mxu0
  %6246 = vmatprep.mubr.f32.mxu0 %v5731
  %6247 = vmatmul.mubr.f32.gmra.mrb[0].mxu0 %v5539
  %v6248 = vpop.f32.mrb[0].mxu0
  %v6249 = vadd.f32 %v5782, %v6248
  %v6250 = vpop.f32.mrb[0].mxu0
  %6251 = vmatprep.mubr.f32.mxu0 %v5732
  %6252 = vmatmul.mubr.f32.gmra.mrb[0].mxu0 %v5540
  %v6253 = vpop.f32.mrb[0].mxu0
  %v6254 = vadd.f32 %v5782, %v6253
  %v6255 = vpop.f32.mrb[0].mxu0
  %6256 = vmatprep.mubr.f32.mxu0 %v5733
  %6257 = vmatmul.mubr.f32.gmra.mrb[0].mxu0 %v5541
  %v6258 = vpop.f32.mrb[0].mxu0
  %v6259 = vadd.f32 %v5782, %v6258
  %v6260 = vpop.f32.mrb[0].mxu0
  %6261 = vmatprep.mubr.f32.mxu0 %v5734
  %6262 = vmatmul.mubr.f32.gmra.mrb[0].mxu0 %v5542
  %v6263 = vpop.f32.mrb[0].mxu0
  %v6264 = vadd.f32 %v5782, %v6263
  %v6265 = vpop.f32.mrb[0].mxu0
  %6266 = vmatprep.mubr.f32.mxu0 %v5735
  %6267 = vmatmul.mubr.f32.gmra.mrb[0].mxu0 %v5543
  %v6268 = vpop.f32.mrb[0].mxu0
  %v6269 = vadd.f32 %v5782, %v6268
  %v6270 = vpop.f32.mrb[0].mxu0
  %6271 = vmatprep.mubr.f32.mxu0 %v5736
  %6272 = vmatmul.mubr.f32.gmra.mrb[0].mxu0 %v5544
  %v6273 = vpop.f32.mrb[0].mxu0
  %v6274 = vadd.f32 %v5782, %v6273
  %v6275 = vpop.f32.mrb[0].mxu0
  %6276 = vmatprep.mubr.f32.mxu0 %v5737
  %6277 = vmatmul.mubr.f32.gmra.mrb[0].mxu0 %v5545
  %v6278 = vpop.f32.mrb[0].mxu0
  %v6279 = vadd.f32 %v5782, %v6278
  %v6280 = vpop.f32.mrb[0].mxu0
  %6281 = vmatprep.mubr.f32.mxu0 %v5738
  %6282 = vmatmul.mubr.f32.gmra.mrb[0].mxu0 %v5546
  %v6283 = vpop.f32.mrb[0].mxu0
  %v6284 = vadd.f32 %v5782, %v6283
  %v6285 = vpop.f32.mrb[0].mxu0
  %6286 = vmatprep.mubr.f32.mxu0 %v5739
  %6287 = vmatmul.mubr.f32.gmra.mrb[0].mxu0 %v5547
  %v6288 = vpop.f32.mrb[0].mxu0
  %v6289 = vadd.f32 %v5782, %v6288
  %v6290 = vpop.f32.mrb[0].mxu0
  %6291 = vmatprep.mubr.f32.mxu0 %v5740
  %6292 = vmatmul.mubr.f32.gmra.mrb[0].mxu0 %v5548
  %v6293 = vpop.f32.mrb[0].mxu0
  %v6294 = vadd.f32 %v5782, %v6293
  %v6295 = vpop.f32.mrb[0].mxu0
  %6296 = vdwg.mxu0
  %6297 = vmatprep.subr.mxu0 0.0
  %6298 = vmatpush1.msra.mxu0 %v5773
  %6299 = vmatprep.subr.mxu0 0.0
  %6300 = vmatpush1.msra.mxu0 %v5774
  %6301 = vmatprep.subr.mxu0 0.0
  %6302 = vmatpush1.msra.mxu0 %v5775
  %6303 = vmatprep.subr.mxu0 0.0
  %6304 = vmatpush1.msra.mxu0 %v5776
  %6305 = vmatprep.subr.mxu0 0.0
  %6306 = vmatpush1.msra.mxu0 0.0
  %6307 = vmatprep.subr.mxu0 0.0
  %6308 = vmatpush1.msra.mxu0 0.0
  %6309 = vmatprep.subr.mxu0 0.0
  %6310 = vmatpush1.msra.mxu0 0.0
  %6311 = vmatprep.subr.mxu0 0.0
  %6312 = vmatpush1.msra.mxu0 0.0
  %6313 = vmatprep.subr.mxu0 0.0
  %6314 = vmatpush1.msra.mxu0 0.0
  %6315 = vmatprep.subr.mxu0 0.0
  %6316 = vmatpush1.msra.mxu0 0.0
  %6317 = vmatprep.subr.mxu0 0.0
  %6318 = vmatpush1.msra.mxu0 0.0
  %6319 = vmatprep.subr.mxu0 0.0
  %6320 = vmatpush1.msra.mxu0 0.0
  %6321 = vmatprep.subr.mxu0 0.0
  %6322 = vmatpush1.msra.mxu0 0.0
  %6323 = vmatprep.subr.mxu0 0.0
  %6324 = vmatpush1.msra.mxu0 0.0
  %6325 = vmatprep.subr.mxu0 0.0
  %6326 = vmatpush1.msra.mxu0 0.0
  %6327 = vmatprep.subr.mxu0 0.0
  %6328 = vmatpush1.msra.mxu0 0.0
  %6329 = vmatprep.subr.mxu0 0.0
  %6330 = vmatpush1.msra.mxu0 0.0
  %6331 = vmatprep.subr.mxu0 0.0
  %6332 = vmatpush1.msra.mxu0 0.0
  %6333 = vmatprep.subr.mxu0 0.0
  %6334 = vmatpush1.msra.mxu0 0.0
  %6335 = vmatprep.subr.mxu0 0.0
  %6336 = vmatpush1.msra.mxu0 0.0
  %6337 = vmatprep.subr.mxu0 0.0
  %6338 = vmatpush1.msra.mxu0 0.0
  %6339 = vmatprep.subr.mxu0 0.0
  %6340 = vmatpush1.msra.mxu0 0.0
  %6341 = vmatprep.subr.mxu0 0.0
  %6342 = vmatpush1.msra.mxu0 0.0
  %6343 = vmatprep.subr.mxu0 0.0
  %6344 = vmatpush1.msra.mxu0 0.0
  %6345 = vmatprep.subr.mxu0 0.0
  %6346 = vmatpush1.msra.mxu0 0.0
  %6347 = vmatprep.subr.mxu0 0.0
  %6348 = vmatpush1.msra.mxu0 0.0
  %6349 = vmatprep.subr.mxu0 0.0
  %6350 = vmatpush1.msra.mxu0 0.0
  %6351 = vmatprep.subr.mxu0 0.0
  %6352 = vmatpush1.msra.mxu0 0.0
  %6353 = vmatprep.subr.mxu0 0.0
  %6354 = vmatpush1.msra.mxu0 0.0
  %6355 = vmatprep.subr.mxu0 0.0
  %6356 = vmatpush1.msra.mxu0 0.0
  %6357 = vmatprep.subr.mxu0 0.0
  %6358 = vmatpush1.msra.mxu0 0.0
  %6359 = vmatprep.subr.mxu0 0.0
  %6360 = vmatpush1.msra.mxu0 0.0
  %6361 = vmatprep.mubr.f32.mxu0 0.0
  %6362 = vmatmul.mubr.f32.gmra.mrb[0].mxu0 %v5784
  %v6363 = vpop.f32.mrb[0].mxu0
  %v6364 = vadd.f32 %v5979, %v6363
  %v6365 = vpop.f32.mrb[0].mxu0
  %6366 = vmatprep.mubr.f32.mxu0 0.0
  %6367 = vmatmul.mubr.f32.gmra.mrb[0].mxu0 %v5786
  %v6368 = vpop.f32.mrb[0].mxu0
  %v6369 = vadd.f32 %v5984, %v6368
  %v6370 = vpop.f32.mrb[0].mxu0
  %6371 = vmatprep.mubr.f32.mxu0 0.0
  %6372 = vmatmul.mubr.f32.gmra.mrb[0].mxu0 %v5788
  %v6373 = vpop.f32.mrb[0].mxu0
  %v6374 = vadd.f32 %v5989, %v6373
  %v6375 = vpop.f32.mrb[0].mxu0
  %6376 = vmatprep.mubr.f32.mxu0 0.0
  %6377 = vmatmul.mubr.f32.gmra.mrb[0].mxu0 %v5790
  %v6378 = vpop.f32.mrb[0].mxu0
  %v6379 = vadd.f32 %v5994, %v6378
  %v6380 = vpop.f32.mrb[0].mxu0
  %6381 = vmatprep.mubr.f32.mxu0 0.0
  %6382 = vmatmul.mubr.f32.gmra.mrb[0].mxu0 %v5792
  %v6383 = vpop.f32.mrb[0].mxu0
  %v6384 = vadd.f32 %v5999, %v6383
  %v6385 = vpop.f32.mrb[0].mxu0
  %6386 = vmatprep.mubr.f32.mxu0 0.0
  %6387 = vmatmul.mubr.f32.gmra.mrb[0].mxu0 %v5794
  %v6388 = vpop.f32.mrb[0].mxu0
  %v6389 = vadd.f32 %v6004, %v6388
  %v6390 = vpop.f32.mrb[0].mxu0
  %6391 = vmatprep.mubr.f32.mxu0 0.0
  %6392 = vmatmul.mubr.f32.gmra.mrb[0].mxu0 %v5796
  %v6393 = vpop.f32.mrb[0].mxu0
  %v6394 = vadd.f32 %v6009, %v6393
  %v6395 = vpop.f32.mrb[0].mxu0
  %6396 = vmatprep.mubr.f32.mxu0 0.0
  %6397 = vmatmul.mubr.f32.gmra.mrb[0].mxu0 %v5798
  %v6398 = vpop.f32.mrb[0].mxu0
  %v6399 = vadd.f32 %v6014, %v6398
  %v6400 = vpop.f32.mrb[0].mxu0
  %6401 = vmatprep.mubr.f32.mxu0 0.0
  %6402 = vmatmul.mubr.f32.gmra.mrb[0].mxu0 %v5800
  %v6403 = vpop.f32.mrb[0].mxu0
  %v6404 = vadd.f32 %v6019, %v6403
  %v6405 = vpop.f32.mrb[0].mxu0
  %6406 = vmatprep.mubr.f32.mxu0 0.0
  %6407 = vmatmul.mubr.f32.gmra.mrb[0].mxu0 %v5802
  %v6408 = vpop.f32.mrb[0].mxu0
  %v6409 = vadd.f32 %v6024, %v6408
  %v6410 = vpop.f32.mrb[0].mxu0
  %6411 = vmatprep.mubr.f32.mxu0 0.0
  %6412 = vmatmul.mubr.f32.gmra.mrb[0].mxu0 %v5804
  %v6413 = vpop.f32.mrb[0].mxu0
  %v6414 = vadd.f32 %v6029, %v6413
  %v6415 = vpop.f32.mrb[0].mxu0
  %6416 = vmatprep.mubr.f32.mxu0 0.0
  %6417 = vmatmul.mubr.f32.gmra.mrb[0].mxu0 %v5806
  %v6418 = vpop.f32.mrb[0].mxu0
  %v6419 = vadd.f32 %v6034, %v6418
  %v6420 = vpop.f32.mrb[0].mxu0
  %6421 = vmatprep.mubr.f32.mxu0 0.0
  %6422 = vmatmul.mubr.f32.gmra.mrb[0].mxu0 %v5808
  %v6423 = vpop.f32.mrb[0].mxu0
  %v6424 = vadd.f32 %v6039, %v6423
  %v6425 = vpop.f32.mrb[0].mxu0
  %6426 = vmatprep.mubr.f32.mxu0 0.0
  %6427 = vmatmul.mubr.f32.gmra.mrb[0].mxu0 %v5810
  %v6428 = vpop.f32.mrb[0].mxu0
  %v6429 = vadd.f32 %v6044, %v6428
  %v6430 = vpop.f32.mrb[0].mxu0
  %6431 = vmatprep.mubr.f32.mxu0 0.0
  %6432 = vmatmul.mubr.f32.gmra.mrb[0].mxu0 %v5812
  %v6433 = vpop.f32.mrb[0].mxu0
  %v6434 = vadd.f32 %v6049, %v6433
  %v6435 = vpop.f32.mrb[0].mxu0
  %6436 = vmatprep.mubr.f32.mxu0 0.0
  %6437 = vmatmul.mubr.f32.gmra.mrb[0].mxu0 %v5814
  %v6438 = vpop.f32.mrb[0].mxu0
  %v6439 = vadd.f32 %v6054, %v6438
  %v6440 = vpop.f32.mrb[0].mxu0
  %6441 = vmatprep.mubr.f32.mxu0 0.0
  %6442 = vmatmul.mubr.f32.gmra.mrb[0].mxu0 %v5816
  %v6443 = vpop.f32.mrb[0].mxu0
  %v6444 = vadd.f32 %v6059, %v6443
  %v6445 = vpop.f32.mrb[0].mxu0
  %6446 = vmatprep.mubr.f32.mxu0 0.0
  %6447 = vmatmul.mubr.f32.gmra.mrb[0].mxu0 %v5818
  %v6448 = vpop.f32.mrb[0].mxu0
  %v6449 = vadd.f32 %v6064, %v6448
  %v6450 = vpop.f32.mrb[0].mxu0
  %6451 = vmatprep.mubr.f32.mxu0 0.0
  %6452 = vmatmul.mubr.f32.gmra.mrb[0].mxu0 %v5820
  %v6453 = vpop.f32.mrb[0].mxu0
  %v6454 = vadd.f32 %v6069, %v6453
  %v6455 = vpop.f32.mrb[0].mxu0
  %6456 = vmatprep.mubr.f32.mxu0 0.0
  %6457 = vmatmul.mubr.f32.gmra.mrb[0].mxu0 %v5822
  %v6458 = vpop.f32.mrb[0].mxu0
  %v6459 = vadd.f32 %v6074, %v6458
  %v6460 = vpop.f32.mrb[0].mxu0
  %6461 = vmatprep.mubr.f32.mxu0 0.0
  %6462 = vmatmul.mubr.f32.gmra.mrb[0].mxu0 %v5824
  %v6463 = vpop.f32.mrb[0].mxu0
  %v6464 = vadd.f32 %v6079, %v6463
  %v6465 = vpop.f32.mrb[0].mxu0
  %6466 = vmatprep.mubr.f32.mxu0 0.0
  %6467 = vmatmul.mubr.f32.gmra.mrb[0].mxu0 %v5826
  %v6468 = vpop.f32.mrb[0].mxu0
  %v6469 = vadd.f32 %v6084, %v6468
  %v6470 = vpop.f32.mrb[0].mxu0
  %6471 = vmatprep.mubr.f32.mxu0 0.0
  %6472 = vmatmul.mubr.f32.gmra.mrb[0].mxu0 %v5828
  %v6473 = vpop.f32.mrb[0].mxu0
  %v6474 = vadd.f32 %v6089, %v6473
  %v6475 = vpop.f32.mrb[0].mxu0
  %6476 = vmatprep.mubr.f32.mxu0 0.0
  %6477 = vmatmul.mubr.f32.gmra.mrb[0].mxu0 %v5830
  %v6478 = vpop.f32.mrb[0].mxu0
  %v6479 = vadd.f32 %v6094, %v6478
  %v6480 = vpop.f32.mrb[0].mxu0
  %6481 = vmatprep.mubr.f32.mxu0 0.0
  %6482 = vmatmul.mubr.f32.gmra.mrb[0].mxu0 %v5832
  %v6483 = vpop.f32.mrb[0].mxu0
  %v6484 = vadd.f32 %v6099, %v6483
  %v6485 = vpop.f32.mrb[0].mxu0
  %6486 = vmatprep.mubr.f32.mxu0 0.0
  %6487 = vmatmul.mubr.f32.gmra.mrb[0].mxu0 %v5834
  %v6488 = vpop.f32.mrb[0].mxu0
  %v6489 = vadd.f32 %v6104, %v6488
  %v6490 = vpop.f32.mrb[0].mxu0
  %6491 = vmatprep.mubr.f32.mxu0 0.0
  %6492 = vmatmul.mubr.f32.gmra.mrb[0].mxu0 %v5836
  %v6493 = vpop.f32.mrb[0].mxu0
  %v6494 = vadd.f32 %v6109, %v6493
  %v6495 = vpop.f32.mrb[0].mxu0
  %6496 = vmatprep.mubr.f32.mxu0 0.0
  %6497 = vmatmul.mubr.f32.gmra.mrb[0].mxu0 %v5838
  %v6498 = vpop.f32.mrb[0].mxu0
  %v6499 = vadd.f32 %v6114, %v6498
  %v6500 = vpop.f32.mrb[0].mxu0
  %6501 = vmatprep.mubr.f32.mxu0 0.0
  %6502 = vmatmul.mubr.f32.gmra.mrb[0].mxu0 %v5840
  %v6503 = vpop.f32.mrb[0].mxu0
  %v6504 = vadd.f32 %v6119, %v6503
  %v6505 = vpop.f32.mrb[0].mxu0
  %6506 = vmatprep.mubr.f32.mxu0 0.0
  %6507 = vmatmul.mubr.f32.gmra.mrb[0].mxu0 %v5842
  %v6508 = vpop.f32.mrb[0].mxu0
  %v6509 = vadd.f32 %v6124, %v6508
  %v6510 = vpop.f32.mrb[0].mxu0
  %6511 = vmatprep.mubr.f32.mxu0 0.0
  %6512 = vmatmul.mubr.f32.gmra.mrb[0].mxu0 %v5844
  %v6513 = vpop.f32.mrb[0].mxu0
  %v6514 = vadd.f32 %v6129, %v6513
  %v6515 = vpop.f32.mrb[0].mxu0
  %6516 = vmatprep.mubr.f32.mxu0 0.0
  %6517 = vmatmul.mubr.f32.gmra.mrb[0].mxu0 %v5846
  %v6518 = vpop.f32.mrb[0].mxu0
  %v6519 = vadd.f32 %v6134, %v6518
  %v6520 = vpop.f32.mrb[0].mxu0
  %6521 = vmatprep.mubr.f32.mxu0 0.0
  %6522 = vmatmul.mubr.f32.gmra.mrb[0].mxu0 %v5848
  %v6523 = vpop.f32.mrb[0].mxu0
  %v6524 = vadd.f32 %v6139, %v6523
  %v6525 = vpop.f32.mrb[0].mxu0
  %6526 = vmatprep.mubr.f32.mxu0 0.0
  %6527 = vmatmul.mubr.f32.gmra.mrb[0].mxu0 %v5850
  %v6528 = vpop.f32.mrb[0].mxu0
  %v6529 = vadd.f32 %v6144, %v6528
  %v6530 = vpop.f32.mrb[0].mxu0
  %6531 = vmatprep.mubr.f32.mxu0 0.0
  %6532 = vmatmul.mubr.f32.gmra.mrb[0].mxu0 %v5852
  %v6533 = vpop.f32.mrb[0].mxu0
  %v6534 = vadd.f32 %v6149, %v6533
  %v6535 = vpop.f32.mrb[0].mxu0
  %6536 = vmatprep.mubr.f32.mxu0 0.0
  %6537 = vmatmul.mubr.f32.gmra.mrb[0].mxu0 %v5854
  %v6538 = vpop.f32.mrb[0].mxu0
  %v6539 = vadd.f32 %v6154, %v6538
  %v6540 = vpop.f32.mrb[0].mxu0
  %6541 = vmatprep.mubr.f32.mxu0 0.0
  %6542 = vmatmul.mubr.f32.gmra.mrb[0].mxu0 %v5856
  %v6543 = vpop.f32.mrb[0].mxu0
  %v6544 = vadd.f32 %v6159, %v6543
  %v6545 = vpop.f32.mrb[0].mxu0
  %6546 = vmatprep.mubr.f32.mxu0 0.0
  %6547 = vmatmul.mubr.f32.gmra.mrb[0].mxu0 %v5858
  %v6548 = vpop.f32.mrb[0].mxu0
  %v6549 = vadd.f32 %v6164, %v6548
  %v6550 = vpop.f32.mrb[0].mxu0
  %6551 = vmatprep.mubr.f32.mxu0 0.0
  %6552 = vmatmul.mubr.f32.gmra.mrb[0].mxu0 %v5860
  %v6553 = vpop.f32.mrb[0].mxu0
  %v6554 = vadd.f32 %v6169, %v6553
  %v6555 = vpop.f32.mrb[0].mxu0
  %6556 = vmatprep.mubr.f32.mxu0 0.0
  %6557 = vmatmul.mubr.f32.gmra.mrb[0].mxu0 %v5862
  %v6558 = vpop.f32.mrb[0].mxu0
  %v6559 = vadd.f32 %v6174, %v6558
  %v6560 = vpop.f32.mrb[0].mxu0
  %6561 = vmatprep.mubr.f32.mxu0 0.0
  %6562 = vmatmul.mubr.f32.gmra.mrb[0].mxu0 %v5864
  %v6563 = vpop.f32.mrb[0].mxu0
  %v6564 = vadd.f32 %v6179, %v6563
  %v6565 = vpop.f32.mrb[0].mxu0
  %6566 = vmatprep.mubr.f32.mxu0 0.0
  %6567 = vmatmul.mubr.f32.gmra.mrb[0].mxu0 %v5866
  %v6568 = vpop.f32.mrb[0].mxu0
  %v6569 = vadd.f32 %v6184, %v6568
  %v6570 = vpop.f32.mrb[0].mxu0
  %6571 = vmatprep.mubr.f32.mxu0 0.0
  %6572 = vmatmul.mubr.f32.gmra.mrb[0].mxu0 %v5868
  %v6573 = vpop.f32.mrb[0].mxu0
  %v6574 = vadd.f32 %v6189, %v6573
  %v6575 = vpop.f32.mrb[0].mxu0
  %6576 = vmatprep.mubr.f32.mxu0 0.0
  %6577 = vmatmul.mubr.f32.gmra.mrb[0].mxu0 %v5870
  %v6578 = vpop.f32.mrb[0].mxu0
  %v6579 = vadd.f32 %v6194, %v6578
  %v6580 = vpop.f32.mrb[0].mxu0
  %6581 = vmatprep.mubr.f32.mxu0 0.0
  %6582 = vmatmul.mubr.f32.gmra.mrb[0].mxu0 %v5872
  %v6583 = vpop.f32.mrb[0].mxu0
  %v6584 = vadd.f32 %v6199, %v6583
  %v6585 = vpop.f32.mrb[0].mxu0
  %6586 = vmatprep.mubr.f32.mxu0 0.0
  %6587 = vmatmul.mubr.f32.gmra.mrb[0].mxu0 %v5874
  %v6588 = vpop.f32.mrb[0].mxu0
  %v6589 = vadd.f32 %v6204, %v6588
  %v6590 = vpop.f32.mrb[0].mxu0
  %6591 = vmatprep.mubr.f32.mxu0 0.0
  %6592 = vmatmul.mubr.f32.gmra.mrb[0].mxu0 %v5876
  %v6593 = vpop.f32.mrb[0].mxu0
  %v6594 = vadd.f32 %v6209, %v6593
  %v6595 = vpop.f32.mrb[0].mxu0
  %6596 = vmatprep.mubr.f32.mxu0 0.0
  %6597 = vmatmul.mubr.f32.gmra.mrb[0].mxu0 %v5878
  %v6598 = vpop.f32.mrb[0].mxu0
  %v6599 = vadd.f32 %v6214, %v6598
  %v6600 = vpop.f32.mrb[0].mxu0
  %6601 = vmatprep.mubr.f32.mxu0 0.0
  %6602 = vmatmul.mubr.f32.gmra.mrb[0].mxu0 %v5880
  %v6603 = vpop.f32.mrb[0].mxu0
  %v6604 = vadd.f32 %v6219, %v6603
  %v6605 = vpop.f32.mrb[0].mxu0
  %6606 = vmatprep.mubr.f32.mxu0 0.0
  %6607 = vmatmul.mubr.f32.gmra.mrb[0].mxu0 %v5882
  %v6608 = vpop.f32.mrb[0].mxu0
  %v6609 = vadd.f32 %v6224, %v6608
  %v6610 = vpop.f32.mrb[0].mxu0
  %6611 = vmatprep.mubr.f32.mxu0 0.0
  %6612 = vmatmul.mubr.f32.gmra.mrb[0].mxu0 %v5884
  %v6613 = vpop.f32.mrb[0].mxu0
  %v6614 = vadd.f32 %v6229, %v6613
  %v6615 = vpop.f32.mrb[0].mxu0
  %6616 = vmatprep.mubr.f32.mxu0 0.0
  %6617 = vmatmul.mubr.f32.gmra.mrb[0].mxu0 %v5886
  %v6618 = vpop.f32.mrb[0].mxu0
  %v6619 = vadd.f32 %v6234, %v6618
  %v6620 = vpop.f32.mrb[0].mxu0
  %6621 = vmatprep.mubr.f32.mxu0 0.0
  %6622 = vmatmul.mubr.f32.gmra.mrb[0].mxu0 %v5888
  %v6623 = vpop.f32.mrb[0].mxu0
  %v6624 = vadd.f32 %v6239, %v6623
  %v6625 = vpop.f32.mrb[0].mxu0
  %6626 = vmatprep.mubr.f32.mxu0 0.0
  %6627 = vmatmul.mubr.f32.gmra.mrb[0].mxu0 %v5890
  %v6628 = vpop.f32.mrb[0].mxu0
  %v6629 = vadd.f32 %v6244, %v6628
  %v6630 = vpop.f32.mrb[0].mxu0
  %6631 = vmatprep.mubr.f32.mxu0 0.0
  %6632 = vmatmul.mubr.f32.gmra.mrb[0].mxu0 %v5892
  %v6633 = vpop.f32.mrb[0].mxu0
  %v6634 = vadd.f32 %v6249, %v6633
  %v6635 = vpop.f32.mrb[0].mxu0
  %6636 = vmatprep.mubr.f32.mxu0 0.0
  %6637 = vmatmul.mubr.f32.gmra.mrb[0].mxu0 %v5894
  %v6638 = vpop.f32.mrb[0].mxu0
  %v6639 = vadd.f32 %v6254, %v6638
  %v6640 = vpop.f32.mrb[0].mxu0
  %6641 = vmatprep.mubr.f32.mxu0 0.0
  %6642 = vmatmul.mubr.f32.gmra.mrb[0].mxu0 %v5896
  %v6643 = vpop.f32.mrb[0].mxu0
  %v6644 = vadd.f32 %v6259, %v6643
  %v6645 = vpop.f32.mrb[0].mxu0
  %6646 = vmatprep.mubr.f32.mxu0 0.0
  %6647 = vmatmul.mubr.f32.gmra.mrb[0].mxu0 %v5898
  %v6648 = vpop.f32.mrb[0].mxu0
  %v6649 = vadd.f32 %v6264, %v6648
  %v6650 = vpop.f32.mrb[0].mxu0
  %6651 = vmatprep.mubr.f32.mxu0 0.0
  %6652 = vmatmul.mubr.f32.gmra.mrb[0].mxu0 %v5900
  %v6653 = vpop.f32.mrb[0].mxu0
  %v6654 = vadd.f32 %v6269, %v6653
  %v6655 = vpop.f32.mrb[0].mxu0
  %6656 = vmatprep.mubr.f32.mxu0 0.0
  %6657 = vmatmul.mubr.f32.gmra.mrb[0].mxu0 %v5902
  %v6658 = vpop.f32.mrb[0].mxu0
  %v6659 = vadd.f32 %v6274, %v6658
  %v6660 = vpop.f32.mrb[0].mxu0
  %6661 = vmatprep.mubr.f32.mxu0 0.0
  %6662 = vmatmul.mubr.f32.gmra.mrb[0].mxu0 %v5904
  %v6663 = vpop.f32.mrb[0].mxu0
  %v6664 = vadd.f32 %v6279, %v6663
  %v6665 = vpop.f32.mrb[0].mxu0
  %6666 = vmatprep.mubr.f32.mxu0 0.0
  %6667 = vmatmul.mubr.f32.gmra.mrb[0].mxu0 %v5906
  %v6668 = vpop.f32.mrb[0].mxu0
  %v6669 = vadd.f32 %v6284, %v6668
  %v6670 = vpop.f32.mrb[0].mxu0
  %6671 = vmatprep.mubr.f32.mxu0 0.0
  %6672 = vmatmul.mubr.f32.gmra.mrb[0].mxu0 %v5908
  %v6673 = vpop.f32.mrb[0].mxu0
  %v6674 = vadd.f32 %v6289, %v6673
  %v6675 = vpop.f32.mrb[0].mxu0
  %6676 = vmatprep.mubr.f32.mxu0 0.0
  %6677 = vmatmul.mubr.f32.gmra.mrb[0].mxu0 %v5910
  %v6678 = vpop.f32.mrb[0].mxu0
  %v6679 = vadd.f32 %v6294, %v6678
  %v6680 = vpop.f32.mrb[0].mxu0
  %6681 = vdwg.mxu0
  %v6682 = vmax.f32 %v6364, 0.0
  %v6683 = vmax.f32 %v6369, 0.0
  %v6684 = vmax.f32 %v6374, 0.0
  %v6685 = vmax.f32 %v6379, 0.0
  %v6686 = vmax.f32 %v6384, 0.0
  %v6687 = vmax.f32 %v6389, 0.0
  %v6688 = vmax.f32 %v6394, 0.0
  %v6689 = vmax.f32 %v6399, 0.0
  %v6690 = vmax.f32 %v6404, 0.0
  %v6691 = vmax.f32 %v6409, 0.0
  %v6692 = vmax.f32 %v6414, 0.0
  %v6693 = vmax.f32 %v6419, 0.0
  %v6694 = vmax.f32 %v6424, 0.0
  %v6695 = vmax.f32 %v6429, 0.0
  %v6696 = vmax.f32 %v6434, 0.0
  %v6697 = vmax.f32 %v6439, 0.0
  %v6698 = vmax.f32 %v6444, 0.0
  %v6699 = vmax.f32 %v6449, 0.0
  %v6700 = vmax.f32 %v6454, 0.0
  %v6701 = vmax.f32 %v6459, 0.0
  %v6702 = vmax.f32 %v6464, 0.0
  %v6703 = vmax.f32 %v6469, 0.0
  %v6704 = vmax.f32 %v6474, 0.0
  %v6705 = vmax.f32 %v6479, 0.0
  %v6706 = vmax.f32 %v6484, 0.0
  %v6707 = vmax.f32 %v6489, 0.0
  %v6708 = vmax.f32 %v6494, 0.0
  %v6709 = vmax.f32 %v6499, 0.0
  %v6710 = vmax.f32 %v6504, 0.0
  %v6711 = vmax.f32 %v6509, 0.0
  %v6712 = vmax.f32 %v6514, 0.0
  %v6713 = vmax.f32 %v6519, 0.0
  %v6714 = vmax.f32 %v6524, 0.0
  %v6715 = vmax.f32 %v6529, 0.0
  %v6716 = vmax.f32 %v6534, 0.0
  %v6717 = vmax.f32 %v6539, 0.0
  %v6718 = vmax.f32 %v6544, 0.0
  %v6719 = vmax.f32 %v6549, 0.0
  %v6720 = vmax.f32 %v6554, 0.0
  %v6721 = vmax.f32 %v6559, 0.0
  %v6722 = vmax.f32 %v6564, 0.0
  %v6723 = vmax.f32 %v6569, 0.0
  %v6724 = vmax.f32 %v6574, 0.0
  %v6725 = vmax.f32 %v6579, 0.0
  %v6726 = vmax.f32 %v6584, 0.0
  %v6727 = vmax.f32 %v6589, 0.0
  %v6728 = vmax.f32 %v6594, 0.0
  %v6729 = vmax.f32 %v6599, 0.0
  %v6730 = vmax.f32 %v6604, 0.0
  %v6731 = vmax.f32 %v6609, 0.0
  %v6732 = vmax.f32 %v6614, 0.0
  %v6733 = vmax.f32 %v6619, 0.0
  %v6734 = vmax.f32 %v6624, 0.0
  %v6735 = vmax.f32 %v6629, 0.0
  %v6736 = vmax.f32 %v6634, 0.0
  %v6737 = vmax.f32 %v6639, 0.0
  %v6738 = vmax.f32 %v6644, 0.0
  %v6739 = vmax.f32 %v6649, 0.0
  %v6740 = vmax.f32 %v6654, 0.0
  %v6741 = vmax.f32 %v6659, 0.0
  %v6742 = vmax.f32 %v6664, 0.0
  %v6743 = vmax.f32 %v6669, 0.0
  %v6744 = vmax.f32 %v6674, 0.0
  %v6745 = vmax.f32 %v6679, 0.0
  %v6746 = vrot.slane %v6682, 1
  %v6747 = vrot.slane %v6683, 1
  %v6748 = vrot.slane %v6684, 1
  %v6749 = vrot.slane %v6685, 1
  %v6750 = vrot.slane %v6686, 1
  %v6751 = vrot.slane %v6687, 1
  %v6752 = vrot.slane %v6688, 1
  %v6753 = vrot.slane %v6689, 1
  %v6754 = vrot.slane %v6690, 1
  %v6755 = vrot.slane %v6691, 1
  %v6756 = vrot.slane %v6692, 1
  %v6757 = vrot.slane %v6693, 1
  %v6758 = vrot.slane %v6694, 1
  %v6759 = vrot.slane %v6695, 1
  %v6760 = vrot.slane %v6696, 1
  %v6761 = vrot.slane %v6697, 1
  %v6762 = vrot.slane %v6698, 1
  %v6763 = vrot.slane %v6699, 1
  %v6764 = vrot.slane %v6700, 1
  %v6765 = vrot.slane %v6701, 1
  %v6766 = vrot.slane %v6702, 1
  %v6767 = vrot.slane %v6703, 1
  %v6768 = vrot.slane %v6704, 1
  %v6769 = vrot.slane %v6705, 1
  %v6770 = vrot.slane %v6706, 1
  %v6771 = vrot.slane %v6707, 1
  %v6772 = vrot.slane %v6708, 1
  %v6773 = vrot.slane %v6709, 1
  %v6774 = vrot.slane %v6710, 1
  %v6775 = vrot.slane %v6711, 1
  %v6776 = vrot.slane %v6712, 1
  %v6777 = vrot.slane %v6713, 1
  %v6778 = vrot.slane %v6714, 1
  %v6779 = vrot.slane %v6715, 1
  %v6780 = vrot.slane %v6716, 1
  %v6781 = vrot.slane %v6717, 1
  %v6782 = vrot.slane %v6718, 1
  %v6783 = vrot.slane %v6719, 1
  %v6784 = vrot.slane %v6720, 1
  %v6785 = vrot.slane %v6721, 1
  %v6786 = vrot.slane %v6722, 1
  %v6787 = vrot.slane %v6723, 1
  %v6788 = vrot.slane %v6724, 1
  %v6789 = vrot.slane %v6725, 1
  %v6790 = vrot.slane %v6726, 1
  %v6791 = vrot.slane %v6727, 1
  %v6792 = vrot.slane %v6728, 1
  %v6793 = vrot.slane %v6729, 1
  %v6794 = vrot.slane %v6730, 1
  %v6795 = vrot.slane %v6731, 1
  %v6796 = vrot.slane %v6732, 1
  %v6797 = vrot.slane %v6733, 1
  %v6798 = vrot.slane %v6734, 1
  %v6799 = vrot.slane %v6735, 1
  %v6800 = vrot.slane %v6736, 1
  %v6801 = vrot.slane %v6737, 1
  %v6802 = vrot.slane %v6738, 1
  %v6803 = vrot.slane %v6739, 1
  %v6804 = vrot.slane %v6740, 1
  %v6805 = vrot.slane %v6741, 1
  %v6806 = vrot.slane %v6742, 1
  %v6807 = vrot.slane %v6743, 1
  %v6808 = vrot.slane %v6744, 1
  %v6809 = vrot.slane %v6745, 1
  %v6810 = vsel %vm827, %v6808, %v6809
  %v6811 = vsel %vm827, %v6807, %v6808
  %v6812 = vsel %vm827, %v6806, %v6807
  %v6813 = vsel %vm827, %v6805, %v6806
  %v6814 = vsel %vm827, %v6804, %v6805
  %v6815 = vsel %vm827, %v6803, %v6804
  %v6816 = vsel %vm827, %v6802, %v6803
  %v6817 = vsel %vm827, %v6801, %v6802
  %v6818 = vsel %vm827, %v6800, %v6801
  %v6819 = vsel %vm827, %v6799, %v6800
  %v6820 = vsel %vm827, %v6798, %v6799
  %v6821 = vsel %vm827, %v6797, %v6798
  %v6822 = vsel %vm827, %v6796, %v6797
  %v6823 = vsel %vm827, %v6795, %v6796
  %v6824 = vsel %vm827, %v6794, %v6795
  %v6825 = vsel %vm827, %v6793, %v6794
  %v6826 = vsel %vm827, %v6792, %v6793
  %v6827 = vsel %vm827, %v6791, %v6792
  %v6828 = vsel %vm827, %v6790, %v6791
  %v6829 = vsel %vm827, %v6789, %v6790
  %v6830 = vsel %vm827, %v6788, %v6789
  %v6831 = vsel %vm827, %v6787, %v6788
  %v6832 = vsel %vm827, %v6786, %v6787
  %v6833 = vsel %vm827, %v6785, %v6786
  %v6834 = vsel %vm827, %v6784, %v6785
  %v6835 = vsel %vm827, %v6783, %v6784
  %v6836 = vsel %vm827, %v6782, %v6783
  %v6837 = vsel %vm827, %v6781, %v6782
  %v6838 = vsel %vm827, %v6780, %v6781
  %v6839 = vsel %vm827, %v6779, %v6780
  %v6840 = vsel %vm827, %v6778, %v6779
  %v6841 = vsel %vm827, %v6777, %v6778
  %v6842 = vsel %vm827, %v6776, %v6777
  %v6843 = vsel %vm827, %v6775, %v6776
  %v6844 = vsel %vm827, %v6774, %v6775
  %v6845 = vsel %vm827, %v6773, %v6774
  %v6846 = vsel %vm827, %v6772, %v6773
  %v6847 = vsel %vm827, %v6771, %v6772
  %v6848 = vsel %vm827, %v6770, %v6771
  %v6849 = vsel %vm827, %v6769, %v6770
  %v6850 = vsel %vm827, %v6768, %v6769
  %v6851 = vsel %vm827, %v6767, %v6768
  %v6852 = vsel %vm827, %v6766, %v6767
  %v6853 = vsel %vm827, %v6765, %v6766
  %v6854 = vsel %vm827, %v6764, %v6765
  %v6855 = vsel %vm827, %v6763, %v6764
  %v6856 = vsel %vm827, %v6762, %v6763
  %v6857 = vsel %vm827, %v6761, %v6762
  %v6858 = vsel %vm827, %v6760, %v6761
  %v6859 = vsel %vm827, %v6759, %v6760
  %v6860 = vsel %vm827, %v6758, %v6759
  %v6861 = vsel %vm827, %v6757, %v6758
  %v6862 = vsel %vm827, %v6756, %v6757
  %v6863 = vsel %vm827, %v6755, %v6756
  %v6864 = vsel %vm827, %v6754, %v6755
  %v6865 = vsel %vm827, %v6753, %v6754
  %v6866 = vsel %vm827, %v6752, %v6753
  %v6867 = vsel %vm827, %v6751, %v6752
  %v6868 = vsel %vm827, %v6750, %v6751
  %v6869 = vsel %vm827, %v6749, %v6750
  %v6870 = vsel %vm827, %v6748, %v6749
  %v6871 = vsel %vm827, %v6747, %v6748
  %v6872 = vsel %vm827, %v6746, %v6747
  %v6873 = vsel %vm827, %v6809, %v6746
  %v6874 = vrot.slane %v6682, 2
  %v6875 = vrot.slane %v6683, 2
  %v6876 = vrot.slane %v6684, 2
  %v6877 = vrot.slane %v6685, 2
  %v6878 = vrot.slane %v6686, 2
  %v6879 = vrot.slane %v6687, 2
  %v6880 = vrot.slane %v6688, 2
  %v6881 = vrot.slane %v6689, 2
  %v6882 = vrot.slane %v6690, 2
  %v6883 = vrot.slane %v6691, 2
  %v6884 = vrot.slane %v6692, 2
  %v6885 = vrot.slane %v6693, 2
  %v6886 = vrot.slane %v6694, 2
  %v6887 = vrot.slane %v6695, 2
  %v6888 = vrot.slane %v6696, 2
  %v6889 = vrot.slane %v6697, 2
  %v6890 = vrot.slane %v6698, 2
  %v6891 = vrot.slane %v6699, 2
  %v6892 = vrot.slane %v6700, 2
  %v6893 = vrot.slane %v6701, 2
  %v6894 = vrot.slane %v6702, 2
  %v6895 = vrot.slane %v6703, 2
  %v6896 = vrot.slane %v6704, 2
  %v6897 = vrot.slane %v6705, 2
  %v6898 = vrot.slane %v6706, 2
  %v6899 = vrot.slane %v6707, 2
  %v6900 = vrot.slane %v6708, 2
  %v6901 = vrot.slane %v6709, 2
  %v6902 = vrot.slane %v6710, 2
  %v6903 = vrot.slane %v6711, 2
  %v6904 = vrot.slane %v6712, 2
  %v6905 = vrot.slane %v6713, 2
  %v6906 = vrot.slane %v6714, 2
  %v6907 = vrot.slane %v6715, 2
  %v6908 = vrot.slane %v6716, 2
  %v6909 = vrot.slane %v6717, 2
  %v6910 = vrot.slane %v6718, 2
  %v6911 = vrot.slane %v6719, 2
  %v6912 = vrot.slane %v6720, 2
  %v6913 = vrot.slane %v6721, 2
  %v6914 = vrot.slane %v6722, 2
  %v6915 = vrot.slane %v6723, 2
  %v6916 = vrot.slane %v6724, 2
  %v6917 = vrot.slane %v6725, 2
  %v6918 = vrot.slane %v6726, 2
  %v6919 = vrot.slane %v6727, 2
  %v6920 = vrot.slane %v6728, 2
  %v6921 = vrot.slane %v6729, 2
  %v6922 = vrot.slane %v6730, 2
  %v6923 = vrot.slane %v6731, 2
  %v6924 = vrot.slane %v6732, 2
  %v6925 = vrot.slane %v6733, 2
  %v6926 = vrot.slane %v6734, 2
  %v6927 = vrot.slane %v6735, 2
  %v6928 = vrot.slane %v6736, 2
  %v6929 = vrot.slane %v6737, 2
  %v6930 = vrot.slane %v6738, 2
  %v6931 = vrot.slane %v6739, 2
  %v6932 = vrot.slane %v6740, 2
  %v6933 = vrot.slane %v6741, 2
  %v6934 = vrot.slane %v6742, 2
  %v6935 = vrot.slane %v6743, 2
  %v6936 = vrot.slane %v6744, 2
  %v6937 = vrot.slane %v6745, 2
  %v6938 = vsel %vm956, %v6936, %v6937
  %v6939 = vsel %vm956, %v6935, %v6936
  %v6940 = vsel %vm956, %v6934, %v6935
  %v6941 = vsel %vm956, %v6933, %v6934
  %v6942 = vsel %vm956, %v6932, %v6933
  %v6943 = vsel %vm956, %v6931, %v6932
  %v6944 = vsel %vm956, %v6930, %v6931
  %v6945 = vsel %vm956, %v6929, %v6930
  %v6946 = vsel %vm956, %v6928, %v6929
  %v6947 = vsel %vm956, %v6927, %v6928
  %v6948 = vsel %vm956, %v6926, %v6927
  %v6949 = vsel %vm956, %v6925, %v6926
  %v6950 = vsel %vm956, %v6924, %v6925
  %v6951 = vsel %vm956, %v6923, %v6924
  %v6952 = vsel %vm956, %v6922, %v6923
  %v6953 = vsel %vm956, %v6921, %v6922
  %v6954 = vsel %vm956, %v6920, %v6921
  %v6955 = vsel %vm956, %v6919, %v6920
  %v6956 = vsel %vm956, %v6918, %v6919
  %v6957 = vsel %vm956, %v6917, %v6918
  %v6958 = vsel %vm956, %v6916, %v6917
  %v6959 = vsel %vm956, %v6915, %v6916
  %v6960 = vsel %vm956, %v6914, %v6915
  %v6961 = vsel %vm956, %v6913, %v6914
  %v6962 = vsel %vm956, %v6912, %v6913
  %v6963 = vsel %vm956, %v6911, %v6912
  %v6964 = vsel %vm956, %v6910, %v6911
  %v6965 = vsel %vm956, %v6909, %v6910
  %v6966 = vsel %vm956, %v6908, %v6909
  %v6967 = vsel %vm956, %v6907, %v6908
  %v6968 = vsel %vm956, %v6906, %v6907
  %v6969 = vsel %vm956, %v6905, %v6906
  %v6970 = vsel %vm956, %v6904, %v6905
  %v6971 = vsel %vm956, %v6903, %v6904
  %v6972 = vsel %vm956, %v6902, %v6903
  %v6973 = vsel %vm956, %v6901, %v6902
  %v6974 = vsel %vm956, %v6900, %v6901
  %v6975 = vsel %vm956, %v6899, %v6900
  %v6976 = vsel %vm956, %v6898, %v6899
  %v6977 = vsel %vm956, %v6897, %v6898
  %v6978 = vsel %vm956, %v6896, %v6897
  %v6979 = vsel %vm956, %v6895, %v6896
  %v6980 = vsel %vm956, %v6894, %v6895
  %v6981 = vsel %vm956, %v6893, %v6894
  %v6982 = vsel %vm956, %v6892, %v6893
  %v6983 = vsel %vm956, %v6891, %v6892
  %v6984 = vsel %vm956, %v6890, %v6891
  %v6985 = vsel %vm956, %v6889, %v6890
  %v6986 = vsel %vm956, %v6888, %v6889
  %v6987 = vsel %vm956, %v6887, %v6888
  %v6988 = vsel %vm956, %v6886, %v6887
  %v6989 = vsel %vm956, %v6885, %v6886
  %v6990 = vsel %vm956, %v6884, %v6885
  %v6991 = vsel %vm956, %v6883, %v6884
  %v6992 = vsel %vm956, %v6882, %v6883
  %v6993 = vsel %vm956, %v6881, %v6882
  %v6994 = vsel %vm956, %v6880, %v6881
  %v6995 = vsel %vm956, %v6879, %v6880
  %v6996 = vsel %vm956, %v6878, %v6879
  %v6997 = vsel %vm956, %v6877, %v6878
  %v6998 = vsel %vm956, %v6876, %v6877
  %v6999 = vsel %vm956, %v6875, %v6876
  %v7000 = vsel %vm956, %v6874, %v6875
  %v7001 = vsel %vm956, %v6937, %v6874
  %7066 = vrot.lane.b32.xlu0 %v6872, 64
  %v7067 = vpop.permute.xlu0 %7066
  %7068 = vrot.lane.b32.xlu0 %v6871, 64
  %v7069 = vpop.permute.xlu0 %7068
  %7070 = vrot.lane.b32.xlu0 %v6870, 64
  %v7071 = vpop.permute.xlu0 %7070
  %7072 = vrot.lane.b32.xlu0 %v6869, 64
  %v7073 = vpop.permute.xlu0 %7072
  %7074 = vrot.lane.b32.xlu0 %v6868, 64
  %v7075 = vpop.permute.xlu0 %7074
  %7076 = vrot.lane.b32.xlu0 %v6867, 64
  %v7077 = vpop.permute.xlu0 %7076
  %7078 = vrot.lane.b32.xlu0 %v6866, 64
  %v7079 = vpop.permute.xlu0 %7078
  %7080 = vrot.lane.b32.xlu0 %v6865, 64
  %v7081 = vpop.permute.xlu0 %7080
  %7082 = vrot.lane.b32.xlu0 %v6864, 64
  %v7083 = vpop.permute.xlu0 %7082
  %7084 = vrot.lane.b32.xlu0 %v6863, 64
  %v7085 = vpop.permute.xlu0 %7084
  %7086 = vrot.lane.b32.xlu0 %v6862, 64
  %v7087 = vpop.permute.xlu0 %7086
  %7088 = vrot.lane.b32.xlu0 %v6861, 64
  %v7089 = vpop.permute.xlu0 %7088
  %7090 = vrot.lane.b32.xlu0 %v6860, 64
  %v7091 = vpop.permute.xlu0 %7090
  %7092 = vrot.lane.b32.xlu0 %v6859, 64
  %v7093 = vpop.permute.xlu0 %7092
  %7094 = vrot.lane.b32.xlu0 %v6858, 64
  %v7095 = vpop.permute.xlu0 %7094
  %7096 = vrot.lane.b32.xlu0 %v6857, 64
  %v7097 = vpop.permute.xlu0 %7096
  %7098 = vrot.lane.b32.xlu0 %v6856, 64
  %v7099 = vpop.permute.xlu0 %7098
  %7100 = vrot.lane.b32.xlu0 %v6855, 64
  %v7101 = vpop.permute.xlu0 %7100
  %7102 = vrot.lane.b32.xlu0 %v6854, 64
  %v7103 = vpop.permute.xlu0 %7102
  %7104 = vrot.lane.b32.xlu0 %v6853, 64
  %v7105 = vpop.permute.xlu0 %7104
  %7106 = vrot.lane.b32.xlu0 %v6852, 64
  %v7107 = vpop.permute.xlu0 %7106
  %7108 = vrot.lane.b32.xlu0 %v6851, 64
  %v7109 = vpop.permute.xlu0 %7108
  %7110 = vrot.lane.b32.xlu0 %v6850, 64
  %v7111 = vpop.permute.xlu0 %7110
  %7112 = vrot.lane.b32.xlu0 %v6849, 64
  %v7113 = vpop.permute.xlu0 %7112
  %7114 = vrot.lane.b32.xlu0 %v6848, 64
  %v7115 = vpop.permute.xlu0 %7114
  %7116 = vrot.lane.b32.xlu0 %v6847, 64
  %v7117 = vpop.permute.xlu0 %7116
  %7118 = vrot.lane.b32.xlu0 %v6846, 64
  %v7119 = vpop.permute.xlu0 %7118
  %7120 = vrot.lane.b32.xlu0 %v6845, 64
  %v7121 = vpop.permute.xlu0 %7120
  %7122 = vrot.lane.b32.xlu0 %v6844, 64
  %v7123 = vpop.permute.xlu0 %7122
  %7124 = vrot.lane.b32.xlu0 %v6843, 64
  %v7125 = vpop.permute.xlu0 %7124
  %7126 = vrot.lane.b32.xlu0 %v6842, 64
  %v7127 = vpop.permute.xlu0 %7126
  %7128 = vrot.lane.b32.xlu0 %v6841, 64
  %v7129 = vpop.permute.xlu0 %7128
  %7130 = vrot.lane.b32.xlu0 %v6840, 64
  %v7131 = vpop.permute.xlu0 %7130
  %7132 = vrot.lane.b32.xlu0 %v6839, 64
  %v7133 = vpop.permute.xlu0 %7132
  %7134 = vrot.lane.b32.xlu0 %v6838, 64
  %v7135 = vpop.permute.xlu0 %7134
  %7136 = vrot.lane.b32.xlu0 %v6837, 64
  %v7137 = vpop.permute.xlu0 %7136
  %7138 = vrot.lane.b32.xlu0 %v6836, 64
  %v7139 = vpop.permute.xlu0 %7138
  %7140 = vrot.lane.b32.xlu0 %v6835, 64
  %v7141 = vpop.permute.xlu0 %7140
  %7142 = vrot.lane.b32.xlu0 %v6834, 64
  %v7143 = vpop.permute.xlu0 %7142
  %7144 = vrot.lane.b32.xlu0 %v6833, 64
  %v7145 = vpop.permute.xlu0 %7144
  %7146 = vrot.lane.b32.xlu0 %v6832, 64
  %v7147 = vpop.permute.xlu0 %7146
  %7148 = vrot.lane.b32.xlu0 %v6831, 64
  %v7149 = vpop.permute.xlu0 %7148
  %7150 = vrot.lane.b32.xlu0 %v6830, 64
  %v7151 = vpop.permute.xlu0 %7150
  %7152 = vrot.lane.b32.xlu0 %v6829, 64
  %v7153 = vpop.permute.xlu0 %7152
  %7154 = vrot.lane.b32.xlu0 %v6828, 64
  %v7155 = vpop.permute.xlu0 %7154
  %7156 = vrot.lane.b32.xlu0 %v6827, 64
  %v7157 = vpop.permute.xlu0 %7156
  %7158 = vrot.lane.b32.xlu0 %v6826, 64
  %v7159 = vpop.permute.xlu0 %7158
  %7160 = vrot.lane.b32.xlu0 %v6825, 64
  %v7161 = vpop.permute.xlu0 %7160
  %7162 = vrot.lane.b32.xlu0 %v6824, 64
  %v7163 = vpop.permute.xlu0 %7162
  %7164 = vrot.lane.b32.xlu0 %v6823, 64
  %v7165 = vpop.permute.xlu0 %7164
  %7166 = vrot.lane.b32.xlu0 %v6822, 64
  %v7167 = vpop.permute.xlu0 %7166
  %7168 = vrot.lane.b32.xlu0 %v6821, 64
  %v7169 = vpop.permute.xlu0 %7168
  %7170 = vrot.lane.b32.xlu0 %v6820, 64
  %v7171 = vpop.permute.xlu0 %7170
  %7172 = vrot.lane.b32.xlu0 %v6819, 64
  %v7173 = vpop.permute.xlu0 %7172
  %7174 = vrot.lane.b32.xlu0 %v6818, 64
  %v7175 = vpop.permute.xlu0 %7174
  %7176 = vrot.lane.b32.xlu0 %v6817, 64
  %v7177 = vpop.permute.xlu0 %7176
  %7178 = vrot.lane.b32.xlu0 %v6816, 64
  %v7179 = vpop.permute.xlu0 %7178
  %7180 = vrot.lane.b32.xlu0 %v6815, 64
  %v7181 = vpop.permute.xlu0 %7180
  %7182 = vrot.lane.b32.xlu0 %v6814, 64
  %v7183 = vpop.permute.xlu0 %7182
  %7184 = vrot.lane.b32.xlu0 %v6813, 64
  %v7185 = vpop.permute.xlu0 %7184
  %7186 = vrot.lane.b32.xlu0 %v6812, 64
  %v7187 = vpop.permute.xlu0 %7186
  %7188 = vrot.lane.b32.xlu0 %v6811, 64
  %v7189 = vpop.permute.xlu0 %7188
  %7190 = vrot.lane.b32.xlu0 %v6810, 64
  %v7191 = vpop.permute.xlu0 %7190
  %7192 = vrot.lane.b32.xlu0 %v6873, 64
  %v7193 = vpop.permute.xlu0 %7192
  %7322 = vrot.lane.b32.xlu0 %v6684, 64
  %v7323 = vpop.permute.xlu0 %7322
  %7324 = vrot.lane.b32.xlu0 %v6685, 64
  %v7325 = vpop.permute.xlu0 %7324
  %7326 = vrot.lane.b32.xlu0 %v6686, 64
  %v7327 = vpop.permute.xlu0 %7326
  %7328 = vrot.lane.b32.xlu0 %v6687, 64
  %v7329 = vpop.permute.xlu0 %7328
  %7330 = vrot.lane.b32.xlu0 %v6688, 64
  %v7331 = vpop.permute.xlu0 %7330
  %7332 = vrot.lane.b32.xlu0 %v6689, 64
  %v7333 = vpop.permute.xlu0 %7332
  %7334 = vrot.lane.b32.xlu0 %v6690, 64
  %v7335 = vpop.permute.xlu0 %7334
  %7336 = vrot.lane.b32.xlu0 %v6691, 64
  %v7337 = vpop.permute.xlu0 %7336
  %7338 = vrot.lane.b32.xlu0 %v6692, 64
  %v7339 = vpop.permute.xlu0 %7338
  %7340 = vrot.lane.b32.xlu0 %v6693, 64
  %v7341 = vpop.permute.xlu0 %7340
  %7342 = vrot.lane.b32.xlu0 %v6694, 64
  %v7343 = vpop.permute.xlu0 %7342
  %7344 = vrot.lane.b32.xlu0 %v6695, 64
  %v7345 = vpop.permute.xlu0 %7344
  %7346 = vrot.lane.b32.xlu0 %v6696, 64
  %v7347 = vpop.permute.xlu0 %7346
  %7348 = vrot.lane.b32.xlu0 %v6697, 64
  %v7349 = vpop.permute.xlu0 %7348
  %7350 = vrot.lane.b32.xlu0 %v6698, 64
  %v7351 = vpop.permute.xlu0 %7350
  %7352 = vrot.lane.b32.xlu0 %v6699, 64
  %v7353 = vpop.permute.xlu0 %7352
  %7354 = vrot.lane.b32.xlu0 %v6700, 64
  %v7355 = vpop.permute.xlu0 %7354
  %7356 = vrot.lane.b32.xlu0 %v6701, 64
  %v7357 = vpop.permute.xlu0 %7356
  %7358 = vrot.lane.b32.xlu0 %v6702, 64
  %v7359 = vpop.permute.xlu0 %7358
  %7360 = vrot.lane.b32.xlu0 %v6703, 64
  %v7361 = vpop.permute.xlu0 %7360
  %7362 = vrot.lane.b32.xlu0 %v6704, 64
  %v7363 = vpop.permute.xlu0 %7362
  %7364 = vrot.lane.b32.xlu0 %v6705, 64
  %v7365 = vpop.permute.xlu0 %7364
  %7366 = vrot.lane.b32.xlu0 %v6706, 64
  %v7367 = vpop.permute.xlu0 %7366
  %7368 = vrot.lane.b32.xlu0 %v6707, 64
  %v7369 = vpop.permute.xlu0 %7368
  %7370 = vrot.lane.b32.xlu0 %v6708, 64
  %v7371 = vpop.permute.xlu0 %7370
  %7372 = vrot.lane.b32.xlu0 %v6709, 64
  %v7373 = vpop.permute.xlu0 %7372
  %7374 = vrot.lane.b32.xlu0 %v6710, 64
  %v7375 = vpop.permute.xlu0 %7374
  %7376 = vrot.lane.b32.xlu0 %v6711, 64
  %v7377 = vpop.permute.xlu0 %7376
  %7378 = vrot.lane.b32.xlu0 %v6712, 64
  %v7379 = vpop.permute.xlu0 %7378
  %7380 = vrot.lane.b32.xlu0 %v6713, 64
  %v7381 = vpop.permute.xlu0 %7380
  %7382 = vrot.lane.b32.xlu0 %v6714, 64
  %v7383 = vpop.permute.xlu0 %7382
  %7384 = vrot.lane.b32.xlu0 %v6715, 64
  %v7385 = vpop.permute.xlu0 %7384
  %7386 = vrot.lane.b32.xlu0 %v6716, 64
  %v7387 = vpop.permute.xlu0 %7386
  %7388 = vrot.lane.b32.xlu0 %v6717, 64
  %v7389 = vpop.permute.xlu0 %7388
  %7390 = vrot.lane.b32.xlu0 %v6718, 64
  %v7391 = vpop.permute.xlu0 %7390
  %7392 = vrot.lane.b32.xlu0 %v6719, 64
  %v7393 = vpop.permute.xlu0 %7392
  %7394 = vrot.lane.b32.xlu0 %v6720, 64
  %v7395 = vpop.permute.xlu0 %7394
  %7396 = vrot.lane.b32.xlu0 %v6721, 64
  %v7397 = vpop.permute.xlu0 %7396
  %7398 = vrot.lane.b32.xlu0 %v6722, 64
  %v7399 = vpop.permute.xlu0 %7398
  %7400 = vrot.lane.b32.xlu0 %v6723, 64
  %v7401 = vpop.permute.xlu0 %7400
  %7402 = vrot.lane.b32.xlu0 %v6724, 64
  %v7403 = vpop.permute.xlu0 %7402
  %7404 = vrot.lane.b32.xlu0 %v6725, 64
  %v7405 = vpop.permute.xlu0 %7404
  %7406 = vrot.lane.b32.xlu0 %v6726, 64
  %v7407 = vpop.permute.xlu0 %7406
  %7408 = vrot.lane.b32.xlu0 %v6727, 64
  %v7409 = vpop.permute.xlu0 %7408
  %7410 = vrot.lane.b32.xlu0 %v6728, 64
  %v7411 = vpop.permute.xlu0 %7410
  %7412 = vrot.lane.b32.xlu0 %v6729, 64
  %v7413 = vpop.permute.xlu0 %7412
  %7414 = vrot.lane.b32.xlu0 %v6730, 64
  %v7415 = vpop.permute.xlu0 %7414
  %7416 = vrot.lane.b32.xlu0 %v6731, 64
  %v7417 = vpop.permute.xlu0 %7416
  %7418 = vrot.lane.b32.xlu0 %v6732, 64
  %v7419 = vpop.permute.xlu0 %7418
  %7420 = vrot.lane.b32.xlu0 %v6733, 64
  %v7421 = vpop.permute.xlu0 %7420
  %7422 = vrot.lane.b32.xlu0 %v6734, 64
  %v7423 = vpop.permute.xlu0 %7422
  %7424 = vrot.lane.b32.xlu0 %v6735, 64
  %v7425 = vpop.permute.xlu0 %7424
  %7426 = vrot.lane.b32.xlu0 %v6736, 64
  %v7427 = vpop.permute.xlu0 %7426
  %7428 = vrot.lane.b32.xlu0 %v6737, 64
  %v7429 = vpop.permute.xlu0 %7428
  %7430 = vrot.lane.b32.xlu0 %v6738, 64
  %v7431 = vpop.permute.xlu0 %7430
  %7432 = vrot.lane.b32.xlu0 %v6739, 64
  %v7433 = vpop.permute.xlu0 %7432
  %7434 = vrot.lane.b32.xlu0 %v6740, 64
  %v7435 = vpop.permute.xlu0 %7434
  %7436 = vrot.lane.b32.xlu0 %v6741, 64
  %v7437 = vpop.permute.xlu0 %7436
  %7438 = vrot.lane.b32.xlu0 %v6742, 64
  %v7439 = vpop.permute.xlu0 %7438
  %7440 = vrot.lane.b32.xlu0 %v6743, 64
  %v7441 = vpop.permute.xlu0 %7440
  %7442 = vrot.lane.b32.xlu0 %v6744, 64
  %v7443 = vpop.permute.xlu0 %7442
  %7444 = vrot.lane.b32.xlu0 %v6745, 64
  %v7445 = vpop.permute.xlu0 %7444
  %7446 = vrot.lane.b32.xlu0 %v6682, 64
  %v7447 = vpop.permute.xlu0 %7446
  %7448 = vrot.lane.b32.xlu0 %v6683, 64
  %v7449 = vpop.permute.xlu0 %7448
  %7578 = vrot.lane.b32.xlu0 %v6998, 64
  %v7579 = vpop.permute.xlu0 %7578
  %7580 = vrot.lane.b32.xlu0 %v6997, 64
  %v7581 = vpop.permute.xlu0 %7580
  %7582 = vrot.lane.b32.xlu0 %v6996, 64
  %v7583 = vpop.permute.xlu0 %7582
  %7584 = vrot.lane.b32.xlu0 %v6995, 64
  %v7585 = vpop.permute.xlu0 %7584
  %7586 = vrot.lane.b32.xlu0 %v6994, 64
  %v7587 = vpop.permute.xlu0 %7586
  %7588 = vrot.lane.b32.xlu0 %v6993, 64
  %v7589 = vpop.permute.xlu0 %7588
  %7590 = vrot.lane.b32.xlu0 %v6992, 64
  %v7591 = vpop.permute.xlu0 %7590
  %7592 = vrot.lane.b32.xlu0 %v6991, 64
  %v7593 = vpop.permute.xlu0 %7592
  %7594 = vrot.lane.b32.xlu0 %v6990, 64
  %v7595 = vpop.permute.xlu0 %7594
  %7596 = vrot.lane.b32.xlu0 %v6989, 64
  %v7597 = vpop.permute.xlu0 %7596
  %7598 = vrot.lane.b32.xlu0 %v6988, 64
  %v7599 = vpop.permute.xlu0 %7598
  %7600 = vrot.lane.b32.xlu0 %v6987, 64
  %v7601 = vpop.permute.xlu0 %7600
  %7602 = vrot.lane.b32.xlu0 %v6986, 64
  %v7603 = vpop.permute.xlu0 %7602
  %7604 = vrot.lane.b32.xlu0 %v6985, 64
  %v7605 = vpop.permute.xlu0 %7604
  %7606 = vrot.lane.b32.xlu0 %v6984, 64
  %v7607 = vpop.permute.xlu0 %7606
  %7608 = vrot.lane.b32.xlu0 %v6983, 64
  %v7609 = vpop.permute.xlu0 %7608
  %7610 = vrot.lane.b32.xlu0 %v6982, 64
  %v7611 = vpop.permute.xlu0 %7610
  %7612 = vrot.lane.b32.xlu0 %v6981, 64
  %v7613 = vpop.permute.xlu0 %7612
  %7614 = vrot.lane.b32.xlu0 %v6980, 64
  %v7615 = vpop.permute.xlu0 %7614
  %7616 = vrot.lane.b32.xlu0 %v6979, 64
  %v7617 = vpop.permute.xlu0 %7616
  %7618 = vrot.lane.b32.xlu0 %v6978, 64
  %v7619 = vpop.permute.xlu0 %7618
  %7620 = vrot.lane.b32.xlu0 %v6977, 64
  %v7621 = vpop.permute.xlu0 %7620
  %7622 = vrot.lane.b32.xlu0 %v6976, 64
  %v7623 = vpop.permute.xlu0 %7622
  %7624 = vrot.lane.b32.xlu0 %v6975, 64
  %v7625 = vpop.permute.xlu0 %7624
  %7626 = vrot.lane.b32.xlu0 %v6974, 64
  %v7627 = vpop.permute.xlu0 %7626
  %7628 = vrot.lane.b32.xlu0 %v6973, 64
  %v7629 = vpop.permute.xlu0 %7628
  %7630 = vrot.lane.b32.xlu0 %v6972, 64
  %v7631 = vpop.permute.xlu0 %7630
  %7632 = vrot.lane.b32.xlu0 %v6971, 64
  %v7633 = vpop.permute.xlu0 %7632
  %7634 = vrot.lane.b32.xlu0 %v6970, 64
  %v7635 = vpop.permute.xlu0 %7634
  %7636 = vrot.lane.b32.xlu0 %v6969, 64
  %v7637 = vpop.permute.xlu0 %7636
  %7638 = vrot.lane.b32.xlu0 %v6968, 64
  %v7639 = vpop.permute.xlu0 %7638
  %7640 = vrot.lane.b32.xlu0 %v6967, 64
  %v7641 = vpop.permute.xlu0 %7640
  %7642 = vrot.lane.b32.xlu0 %v6966, 64
  %v7643 = vpop.permute.xlu0 %7642
  %7644 = vrot.lane.b32.xlu0 %v6965, 64
  %v7645 = vpop.permute.xlu0 %7644
  %7646 = vrot.lane.b32.xlu0 %v6964, 64
  %v7647 = vpop.permute.xlu0 %7646
  %7648 = vrot.lane.b32.xlu0 %v6963, 64
  %v7649 = vpop.permute.xlu0 %7648
  %7650 = vrot.lane.b32.xlu0 %v6962, 64
  %v7651 = vpop.permute.xlu0 %7650
  %7652 = vrot.lane.b32.xlu0 %v6961, 64
  %v7653 = vpop.permute.xlu0 %7652
  %7654 = vrot.lane.b32.xlu0 %v6960, 64
  %v7655 = vpop.permute.xlu0 %7654
  %7656 = vrot.lane.b32.xlu0 %v6959, 64
  %v7657 = vpop.permute.xlu0 %7656
  %7658 = vrot.lane.b32.xlu0 %v6958, 64
  %v7659 = vpop.permute.xlu0 %7658
  %7660 = vrot.lane.b32.xlu0 %v6957, 64
  %v7661 = vpop.permute.xlu0 %7660
  %7662 = vrot.lane.b32.xlu0 %v6956, 64
  %v7663 = vpop.permute.xlu0 %7662
  %7664 = vrot.lane.b32.xlu0 %v6955, 64
  %v7665 = vpop.permute.xlu0 %7664
  %7666 = vrot.lane.b32.xlu0 %v6954, 64
  %v7667 = vpop.permute.xlu0 %7666
  %7668 = vrot.lane.b32.xlu0 %v6953, 64
  %v7669 = vpop.permute.xlu0 %7668
  %7670 = vrot.lane.b32.xlu0 %v6952, 64
  %v7671 = vpop.permute.xlu0 %7670
  %7672 = vrot.lane.b32.xlu0 %v6951, 64
  %v7673 = vpop.permute.xlu0 %7672
  %7674 = vrot.lane.b32.xlu0 %v6950, 64
  %v7675 = vpop.permute.xlu0 %7674
  %7676 = vrot.lane.b32.xlu0 %v6949, 64
  %v7677 = vpop.permute.xlu0 %7676
  %7678 = vrot.lane.b32.xlu0 %v6948, 64
  %v7679 = vpop.permute.xlu0 %7678
  %7680 = vrot.lane.b32.xlu0 %v6947, 64
  %v7681 = vpop.permute.xlu0 %7680
  %7682 = vrot.lane.b32.xlu0 %v6946, 64
  %v7683 = vpop.permute.xlu0 %7682
  %7684 = vrot.lane.b32.xlu0 %v6945, 64
  %v7685 = vpop.permute.xlu0 %7684
  %7686 = vrot.lane.b32.xlu0 %v6944, 64
  %v7687 = vpop.permute.xlu0 %7686
  %7688 = vrot.lane.b32.xlu0 %v6943, 64
  %v7689 = vpop.permute.xlu0 %7688
  %7690 = vrot.lane.b32.xlu0 %v6942, 64
  %v7691 = vpop.permute.xlu0 %7690
  %7692 = vrot.lane.b32.xlu0 %v6941, 64
  %v7693 = vpop.permute.xlu0 %7692
  %7694 = vrot.lane.b32.xlu0 %v6940, 64
  %v7695 = vpop.permute.xlu0 %7694
  %7696 = vrot.lane.b32.xlu0 %v6939, 64
  %v7697 = vpop.permute.xlu0 %7696
  %7698 = vrot.lane.b32.xlu0 %v6938, 64
  %v7699 = vpop.permute.xlu0 %7698
  %7700 = vrot.lane.b32.xlu0 %v7001, 64
  %v7701 = vpop.permute.xlu0 %7700
  %7702 = vrot.lane.b32.xlu0 %v7000, 64
  %v7703 = vpop.permute.xlu0 %7702
  %7704 = vrot.lane.b32.xlu0 %v6999, 64
  %v7705 = vpop.permute.xlu0 %7704
  %v7770 = vsel %vm2430, %v6682, %v7067
  %v7771 = vsel %vm2430, %v6683, %v7069
  %v7772 = vsel %vm2430, %v6684, %v7071
  %v7773 = vsel %vm2430, %v6685, %v7073
  %v7774 = vsel %vm2430, %v6686, %v7075
  %v7775 = vsel %vm2430, %v6687, %v7077
  %v7776 = vsel %vm2430, %v6688, %v7079
  %v7777 = vsel %vm2430, %v6689, %v7081
  %v7778 = vsel %vm2430, %v6690, %v7083
  %v7779 = vsel %vm2430, %v6691, %v7085
  %v7780 = vsel %vm2430, %v6692, %v7087
  %v7781 = vsel %vm2430, %v6693, %v7089
  %v7782 = vsel %vm2430, %v6694, %v7091
  %v7783 = vsel %vm2430, %v6695, %v7093
  %v7784 = vsel %vm2430, %v6696, %v7095
  %v7785 = vsel %vm2430, %v6697, %v7097
  %v7786 = vsel %vm2430, %v6698, %v7099
  %v7787 = vsel %vm2430, %v6699, %v7101
  %v7788 = vsel %vm2430, %v6700, %v7103
  %v7789 = vsel %vm2430, %v6701, %v7105
  %v7790 = vsel %vm2430, %v6702, %v7107
  %v7791 = vsel %vm2430, %v6703, %v7109
  %v7792 = vsel %vm2430, %v6704, %v7111
  %v7793 = vsel %vm2430, %v6705, %v7113
  %v7794 = vsel %vm2430, %v6706, %v7115
  %v7795 = vsel %vm2430, %v6707, %v7117
  %v7796 = vsel %vm2430, %v6708, %v7119
  %v7797 = vsel %vm2430, %v6709, %v7121
  %v7798 = vsel %vm2430, %v6710, %v7123
  %v7799 = vsel %vm2430, %v6711, %v7125
  %v7800 = vsel %vm2430, %v6712, %v7127
  %v7801 = vsel %vm2430, %v6713, %v7129
  %v7802 = vsel %vm2430, %v6714, %v7131
  %v7803 = vsel %vm2430, %v6715, %v7133
  %v7804 = vsel %vm2430, %v6716, %v7135
  %v7805 = vsel %vm2430, %v6717, %v7137
  %v7806 = vsel %vm2430, %v6718, %v7139
  %v7807 = vsel %vm2430, %v6719, %v7141
  %v7808 = vsel %vm2430, %v6720, %v7143
  %v7809 = vsel %vm2430, %v6721, %v7145
  %v7810 = vsel %vm2430, %v6722, %v7147
  %v7811 = vsel %vm2430, %v6723, %v7149
  %v7812 = vsel %vm2430, %v6724, %v7151
  %v7813 = vsel %vm2430, %v6725, %v7153
  %v7814 = vsel %vm2430, %v6726, %v7155
  %v7815 = vsel %vm2430, %v6727, %v7157
  %v7816 = vsel %vm2430, %v6728, %v7159
  %v7817 = vsel %vm2430, %v6729, %v7161
  %v7818 = vsel %vm2430, %v6730, %v7163
  %v7819 = vsel %vm2430, %v6731, %v7165
  %v7820 = vsel %vm2430, %v6732, %v7167
  %v7821 = vsel %vm2430, %v6733, %v7169
  %v7822 = vsel %vm2430, %v6734, %v7171
  %v7823 = vsel %vm2430, %v6735, %v7173
  %v7824 = vsel %vm2430, %v6736, %v7175
  %v7825 = vsel %vm2430, %v6737, %v7177
  %v7826 = vsel %vm2430, %v6738, %v7179
  %v7827 = vsel %vm2430, %v6739, %v7181
  %v7828 = vsel %vm2430, %v6740, %v7183
  %v7829 = vsel %vm2430, %v6741, %v7185
  %v7830 = vsel %vm2430, %v6742, %v7187
  %v7831 = vsel %vm2430, %v6743, %v7189
  %v7832 = vsel %vm2430, %v6744, %v7191
  %v7833 = vsel %vm2430, %v6745, %v7193
  %v7834 = vsel %vm2430, %v7000, %v7323
  %v7835 = vsel %vm2430, %v6999, %v7325
  %v7836 = vsel %vm2430, %v6998, %v7327
  %v7837 = vsel %vm2430, %v6997, %v7329
  %v7838 = vsel %vm2430, %v6996, %v7331
  %v7839 = vsel %vm2430, %v6995, %v7333
  %v7840 = vsel %vm2430, %v6994, %v7335
  %v7841 = vsel %vm2430, %v6993, %v7337
  %v7842 = vsel %vm2430, %v6992, %v7339
  %v7843 = vsel %vm2430, %v6991, %v7341
  %v7844 = vsel %vm2430, %v6990, %v7343
  %v7845 = vsel %vm2430, %v6989, %v7345
  %v7846 = vsel %vm2430, %v6988, %v7347
  %v7847 = vsel %vm2430, %v6987, %v7349
  %v7848 = vsel %vm2430, %v6986, %v7351
  %v7849 = vsel %vm2430, %v6985, %v7353
  %v7850 = vsel %vm2430, %v6984, %v7355
  %v7851 = vsel %vm2430, %v6983, %v7357
  %v7852 = vsel %vm2430, %v6982, %v7359
  %v7853 = vsel %vm2430, %v6981, %v7361
  %v7854 = vsel %vm2430, %v6980, %v7363
  %v7855 = vsel %vm2430, %v6979, %v7365
  %v7856 = vsel %vm2430, %v6978, %v7367
  %v7857 = vsel %vm2430, %v6977, %v7369
  %v7858 = vsel %vm2430, %v6976, %v7371
  %v7859 = vsel %vm2430, %v6975, %v7373
  %v7860 = vsel %vm2430, %v6974, %v7375
  %v7861 = vsel %vm2430, %v6973, %v7377
  %v7862 = vsel %vm2430, %v6972, %v7379
  %v7863 = vsel %vm2430, %v6971, %v7381
  %v7864 = vsel %vm2430, %v6970, %v7383
  %v7865 = vsel %vm2430, %v6969, %v7385
  %v7866 = vsel %vm2430, %v6968, %v7387
  %v7867 = vsel %vm2430, %v6967, %v7389
  %v7868 = vsel %vm2430, %v6966, %v7391
  %v7869 = vsel %vm2430, %v6965, %v7393
  %v7870 = vsel %vm2430, %v6964, %v7395
  %v7871 = vsel %vm2430, %v6963, %v7397
  %v7872 = vsel %vm2430, %v6962, %v7399
  %v7873 = vsel %vm2430, %v6961, %v7401
  %v7874 = vsel %vm2430, %v6960, %v7403
  %v7875 = vsel %vm2430, %v6959, %v7405
  %v7876 = vsel %vm2430, %v6958, %v7407
  %v7877 = vsel %vm2430, %v6957, %v7409
  %v7878 = vsel %vm2430, %v6956, %v7411
  %v7879 = vsel %vm2430, %v6955, %v7413
  %v7880 = vsel %vm2430, %v6954, %v7415
  %v7881 = vsel %vm2430, %v6953, %v7417
  %v7882 = vsel %vm2430, %v6952, %v7419
  %v7883 = vsel %vm2430, %v6951, %v7421
  %v7884 = vsel %vm2430, %v6950, %v7423
  %v7885 = vsel %vm2430, %v6949, %v7425
  %v7886 = vsel %vm2430, %v6948, %v7427
  %v7887 = vsel %vm2430, %v6947, %v7429
  %v7888 = vsel %vm2430, %v6946, %v7431
  %v7889 = vsel %vm2430, %v6945, %v7433
  %v7890 = vsel %vm2430, %v6944, %v7435
  %v7891 = vsel %vm2430, %v6943, %v7437
  %v7892 = vsel %vm2430, %v6942, %v7439
  %v7893 = vsel %vm2430, %v6941, %v7441
  %v7894 = vsel %vm2430, %v6940, %v7443
  %v7895 = vsel %vm2430, %v6939, %v7445
  %v7896 = vsel %vm2430, %v6938, %v7447
  %v7897 = vsel %vm2430, %v7001, %v7449
  %v7898 = vsel %vm2430, %v6870, %v7579
  %v7899 = vsel %vm2430, %v6869, %v7581
  %v7900 = vsel %vm2430, %v6868, %v7583
  %v7901 = vsel %vm2430, %v6867, %v7585
  %v7902 = vsel %vm2430, %v6866, %v7587
  %v7903 = vsel %vm2430, %v6865, %v7589
  %v7904 = vsel %vm2430, %v6864, %v7591
  %v7905 = vsel %vm2430, %v6863, %v7593
  %v7906 = vsel %vm2430, %v6862, %v7595
  %v7907 = vsel %vm2430, %v6861, %v7597
  %v7908 = vsel %vm2430, %v6860, %v7599
  %v7909 = vsel %vm2430, %v6859, %v7601
  %v7910 = vsel %vm2430, %v6858, %v7603
  %v7911 = vsel %vm2430, %v6857, %v7605
  %v7912 = vsel %vm2430, %v6856, %v7607
  %v7913 = vsel %vm2430, %v6855, %v7609
  %v7914 = vsel %vm2430, %v6854, %v7611
  %v7915 = vsel %vm2430, %v6853, %v7613
  %v7916 = vsel %vm2430, %v6852, %v7615
  %v7917 = vsel %vm2430, %v6851, %v7617
  %v7918 = vsel %vm2430, %v6850, %v7619
  %v7919 = vsel %vm2430, %v6849, %v7621
  %v7920 = vsel %vm2430, %v6848, %v7623
  %v7921 = vsel %vm2430, %v6847, %v7625
  %v7922 = vsel %vm2430, %v6846, %v7627
  %v7923 = vsel %vm2430, %v6845, %v7629
  %v7924 = vsel %vm2430, %v6844, %v7631
  %v7925 = vsel %vm2430, %v6843, %v7633
  %v7926 = vsel %vm2430, %v6842, %v7635
  %v7927 = vsel %vm2430, %v6841, %v7637
  %v7928 = vsel %vm2430, %v6840, %v7639
  %v7929 = vsel %vm2430, %v6839, %v7641
  %v7930 = vsel %vm2430, %v6838, %v7643
  %v7931 = vsel %vm2430, %v6837, %v7645
  %v7932 = vsel %vm2430, %v6836, %v7647
  %v7933 = vsel %vm2430, %v6835, %v7649
  %v7934 = vsel %vm2430, %v6834, %v7651
  %v7935 = vsel %vm2430, %v6833, %v7653
  %v7936 = vsel %vm2430, %v6832, %v7655
  %v7937 = vsel %vm2430, %v6831, %v7657
  %v7938 = vsel %vm2430, %v6830, %v7659
  %v7939 = vsel %vm2430, %v6829, %v7661
  %v7940 = vsel %vm2430, %v6828, %v7663
  %v7941 = vsel %vm2430, %v6827, %v7665
  %v7942 = vsel %vm2430, %v6826, %v7667
  %v7943 = vsel %vm2430, %v6825, %v7669
  %v7944 = vsel %vm2430, %v6824, %v7671
  %v7945 = vsel %vm2430, %v6823, %v7673
  %v7946 = vsel %vm2430, %v6822, %v7675
  %v7947 = vsel %vm2430, %v6821, %v7677
  %v7948 = vsel %vm2430, %v6820, %v7679
  %v7949 = vsel %vm2430, %v6819, %v7681
  %v7950 = vsel %vm2430, %v6818, %v7683
  %v7951 = vsel %vm2430, %v6817, %v7685
  %v7952 = vsel %vm2430, %v6816, %v7687
  %v7953 = vsel %vm2430, %v6815, %v7689
  %v7954 = vsel %vm2430, %v6814, %v7691
  %v7955 = vsel %vm2430, %v6813, %v7693
  %v7956 = vsel %vm2430, %v6812, %v7695
  %v7957 = vsel %vm2430, %v6811, %v7697
  %v7958 = vsel %vm2430, %v6810, %v7699
  %v7959 = vsel %vm2430, %v6873, %v7701
  %v7960 = vsel %vm2430, %v6872, %v7703
  %v7961 = vsel %vm2430, %v6871, %v7705
  %v7962 = vld [vmem:[%s7] sm:$0xff]
  %v7963 = vld [vmem:[%s7 + $0x8] sm:$0xff]
  %v7964 = vld [vmem:[%s7 + $0x10] sm:$0xff]
  %v7965 = vld [vmem:[%s7 + $0x18] sm:$0xff]
  %v7966 = vld [vmem:[%s7 + $0x20] sm:$0xff]
  %v7967 = vld [vmem:[%s7 + $0x28] sm:$0xff]
  %v7968 = vld [vmem:[%s7 + $0x30] sm:$0xff]
  %v7969 = vld [vmem:[%s7 + $0x38] sm:$0xff]
  %v7970 = vld [vmem:[%s7 + $0x40] sm:$0xff]
  %v7971 = vld [vmem:[%s7 + $0x48] sm:$0xff]
  %v7972 = vld [vmem:[%s7 + $0x50] sm:$0xff]
  %v7973 = vld [vmem:[%s7 + $0x58] sm:$0xff]
  %v7974 = vld [vmem:[%s7 + $0x60] sm:$0xff]
  %v7975 = vld [vmem:[%s7 + $0x68] sm:$0xff]
  %v7976 = vld [vmem:[%s7 + $0x70] sm:$0xff]
  %v7977 = vld [vmem:[%s7 + $0x78] sm:$0xff]
  %v7978 = vld [vmem:[%s7 + $0x80] sm:$0xff]
  %v7979 = vld [vmem:[%s7 + $0x88] sm:$0xff]
  %v7980 = vld [vmem:[%s7 + $0x90] sm:$0xff]
  %v7981 = vld [vmem:[%s7 + $0x98] sm:$0xff]
  %v7982 = vld [vmem:[%s7 + $0xa0] sm:$0xff]
  %v7983 = vld [vmem:[%s7 + $0xa8] sm:$0xff]
  %v7984 = vld [vmem:[%s7 + $0xb0] sm:$0xff]
  %v7985 = vld [vmem:[%s7 + $0xb8] sm:$0xff]
  %v7986 = vld [vmem:[%s7 + $0xc0] sm:$0xff]
  %v7987 = vld [vmem:[%s7 + $0xc8] sm:$0xff]
  %v7988 = vld [vmem:[%s7 + $0xd0] sm:$0xff]
  %v7989 = vld [vmem:[%s7 + $0xd8] sm:$0xff]
  %v7990 = vld [vmem:[%s7 + $0xe0] sm:$0xff]
  %v7991 = vld [vmem:[%s7 + $0xe8] sm:$0xff]
  %v7992 = vld [vmem:[%s7 + $0xf0] sm:$0xff]
  %v7993 = vld [vmem:[%s7 + $0xf8] sm:$0xff]
  %v7994 = vld [vmem:[%s7 + $0x100] sm:$0xff]
  %v7995 = vld [vmem:[%s7 + $0x108] sm:$0xff]
  %v7996 = vld [vmem:[%s7 + $0x110] sm:$0xff]
  %v7997 = vld [vmem:[%s7 + $0x118] sm:$0xff]
  %v7998 = vld [vmem:[%s7 + $0x120] sm:$0xff]
  %v7999 = vld [vmem:[%s7 + $0x128] sm:$0xff]
  %v8000 = vld [vmem:[%s7 + $0x130] sm:$0xff]
  %v8001 = vld [vmem:[%s7 + $0x138] sm:$0xff]
  %v8002 = vld [vmem:[%s7 + $0x140] sm:$0xff]
  %v8003 = vld [vmem:[%s7 + $0x148] sm:$0xff]
  %v8004 = vld [vmem:[%s7 + $0x150] sm:$0xff]
  %v8005 = vld [vmem:[%s7 + $0x158] sm:$0xff]
  %v8006 = vld [vmem:[%s7 + $0x160] sm:$0xff]
  %v8007 = vld [vmem:[%s7 + $0x168] sm:$0xff]
  %v8008 = vld [vmem:[%s7 + $0x170] sm:$0xff]
  %v8009 = vld [vmem:[%s7 + $0x178] sm:$0xff]
  %v8010 = vld [vmem:[%s7 + $0x180] sm:$0xff]
  %v8011 = vld [vmem:[%s7 + $0x188] sm:$0xff]
  %v8012 = vld [vmem:[%s7 + $0x190] sm:$0xff]
  %v8013 = vld [vmem:[%s7 + $0x198] sm:$0xff]
  %v8014 = vld [vmem:[%s7 + $0x1a0] sm:$0xff]
  %v8015 = vld [vmem:[%s7 + $0x1a8] sm:$0xff]
  %v8016 = vld [vmem:[%s7 + $0x1b0] sm:$0xff]
  %v8017 = vld [vmem:[%s7 + $0x1b8] sm:$0xff]
  %v8018 = vld [vmem:[%s7 + $0x1c0] sm:$0xff]
  %v8019 = vld [vmem:[%s7 + $0x1c8] sm:$0xff]
  %v8020 = vld [vmem:[%s7 + $0x1d0] sm:$0xff]
  %v8021 = vld [vmem:[%s7 + $0x1d8] sm:$0xff]
  %v8022 = vld [vmem:[%s7 + $0x1e0] sm:$0xff]
  %v8023 = vld [vmem:[%s7 + $0x1e8] sm:$0xff]
  %v8024 = vld [vmem:[%s7 + $0x1f0] sm:$0xff]
  %v8025 = vld [vmem:[%s7 + $0x1f8] sm:$0xff]
  %v8026 = vld [vmem:[%s7 + $0x200] sm:$0xff]
  %v8027 = vld [vmem:[%s7 + $0x208] sm:$0xff]
  %v8028 = vld [vmem:[%s7 + $0x210] sm:$0xff]
  %v8029 = vld [vmem:[%s7 + $0x218] sm:$0xff]
  %v8030 = vld [vmem:[%s7 + $0x220] sm:$0xff]
  %v8031 = vld [vmem:[%s7 + $0x228] sm:$0xff]
  %v8032 = vld [vmem:[%s7 + $0x230] sm:$0xff]
  %v8033 = vld [vmem:[%s7 + $0x238] sm:$0xff]
  %v8034 = vld [vmem:[%s8] sm:$0x1]
  %v8036 = vlaneseq
  %v8037 = vshrl.u32 %v8036, 7
  %v8038 = vsub.s32 0, %v8037
  %v8039 = vrot.slane %v8034, %v8038
  %v8041 = vsel %vm2430, %v6996, 0
  %v8043 = vsel %vm2430, %v6995, 0
  %v8045 = vsel %vm2430, %v6994, 0
  %v8047 = vsel %vm2430, %v6993, 0
  %v8049 = vsel %vm2430, %v6992, 0
  %v8051 = vsel %vm2430, %v6991, 0
  %v8053 = vsel %vm2430, %v6990, 0
  %v8055 = vsel %vm2430, %v6989, 0
  %v8057 = vsel %vm2430, %v6988, 0
  %v8059 = vsel %vm2430, %v6987, 0
  %v8061 = vsel %vm2430, %v6986, 0
  %v8063 = vsel %vm2430, %v6985, 0
  %v8065 = vsel %vm2430, %v6984, 0
  %v8067 = vsel %vm2430, %v6983, 0
  %v8069 = vsel %vm2430, %v6982, 0
  %v8071 = vsel %vm2430, %v6981, 0
  %v8073 = vsel %vm2430, %v6980, 0
  %v8075 = vsel %vm2430, %v6979, 0
  %v8077 = vsel %vm2430, %v6978, 0
  %v8079 = vsel %vm2430, %v6977, 0
  %v8081 = vsel %vm2430, %v6976, 0
  %v8083 = vsel %vm2430, %v6975, 0
  %v8085 = vsel %vm2430, %v6974, 0
  %v8087 = vsel %vm2430, %v6973, 0
  %v8089 = vsel %vm2430, %v6972, 0
  %v8091 = vsel %vm2430, %v6971, 0
  %v8093 = vsel %vm2430, %v6970, 0
  %v8095 = vsel %vm2430, %v6969, 0
  %v8097 = vsel %vm2430, %v6968, 0
  %v8099 = vsel %vm2430, %v6967, 0
  %v8101 = vsel %vm2430, %v6966, 0
  %v8103 = vsel %vm2430, %v6965, 0
  %v8105 = vsel %vm2430, %v6964, 0
  %v8107 = vsel %vm2430, %v6963, 0
  %v8109 = vsel %vm2430, %v6962, 0
  %v8111 = vsel %vm2430, %v6961, 0
  %v8113 = vsel %vm2430, %v6960, 0
  %v8115 = vsel %vm2430, %v6959, 0
  %v8117 = vsel %vm2430, %v6958, 0
  %v8119 = vsel %vm2430, %v6957, 0
  %v8121 = vsel %vm2430, %v6956, 0
  %v8123 = vsel %vm2430, %v6955, 0
  %v8125 = vsel %vm2430, %v6954, 0
  %v8127 = vsel %vm2430, %v6953, 0
  %v8129 = vsel %vm2430, %v6952, 0
  %v8131 = vsel %vm2430, %v6951, 0
  %v8133 = vsel %vm2430, %v6950, 0
  %v8135 = vsel %vm2430, %v6949, 0
  %v8137 = vsel %vm2430, %v6948, 0
  %v8139 = vsel %vm2430, %v6947, 0
  %v8141 = vsel %vm2430, %v6946, 0
  %v8143 = vsel %vm2430, %v6945, 0
  %v8145 = vsel %vm2430, %v6944, 0
  %v8147 = vsel %vm2430, %v6943, 0
  %v8149 = vsel %vm2430, %v6942, 0
  %v8151 = vsel %vm2430, %v6941, 0
  %v8153 = vsel %vm2430, %v6940, 0
  %v8155 = vsel %vm2430, %v6939, 0
  %v8157 = vsel %vm2430, %v6938, 0
  %v8159 = vsel %vm2430, %v7001, 0
  %v8161 = vsel %vm2430, %v7000, 0
  %v8163 = vsel %vm2430, %v6999, 0
  %v8165 = vsel %vm2430, %v6998, 0
  %v8167 = vsel %vm2430, %v6997, 0
  %8169 = vmatprep.subr.mxu0 0.0
  %8170 = vmatpush1.msra.mxu0 %v7962
  %8171 = vmatprep.subr.mxu0 0.0
  %8172 = vmatpush1.msra.mxu0 %v7963
  %8173 = vmatprep.subr.mxu0 0.0
  %8174 = vmatpush1.msra.mxu0 %v7964
  %8175 = vmatprep.subr.mxu0 0.0
  %8176 = vmatpush1.msra.mxu0 %v7965
  %8177 = vmatprep.subr.mxu0 0.0
  %8178 = vmatpush1.msra.mxu0 %v7966
  %8179 = vmatprep.subr.mxu0 0.0
  %8180 = vmatpush1.msra.mxu0 %v7967
  %8181 = vmatprep.subr.mxu0 0.0
  %8182 = vmatpush1.msra.mxu0 %v7968
  %8183 = vmatprep.subr.mxu0 0.0
  %8184 = vmatpush1.msra.mxu0 %v7969
  %8185 = vmatprep.subr.mxu0 0.0
  %8186 = vmatpush1.msra.mxu0 %v7970
  %8187 = vmatprep.subr.mxu0 0.0
  %8188 = vmatpush1.msra.mxu0 %v7971
  %8189 = vmatprep.subr.mxu0 0.0
  %8190 = vmatpush1.msra.mxu0 %v7972
  %8191 = vmatprep.subr.mxu0 0.0
  %8192 = vmatpush1.msra.mxu0 %v7973
  %8193 = vmatprep.subr.mxu0 0.0
  %8194 = vmatpush1.msra.mxu0 %v7974
  %8195 = vmatprep.subr.mxu0 0.0
  %8196 = vmatpush1.msra.mxu0 %v7975
  %8197 = vmatprep.subr.mxu0 0.0
  %8198 = vmatpush1.msra.mxu0 %v7976
  %8199 = vmatprep.subr.mxu0 0.0
  %8200 = vmatpush1.msra.mxu0 %v7977
  %8201 = vmatprep.subr.mxu0 0.0
  %8202 = vmatpush1.msra.mxu0 %v7978
  %8203 = vmatprep.subr.mxu0 0.0
  %8204 = vmatpush1.msra.mxu0 %v7979
  %8205 = vmatprep.subr.mxu0 0.0
  %8206 = vmatpush1.msra.mxu0 %v7980
  %8207 = vmatprep.subr.mxu0 0.0
  %8208 = vmatpush1.msra.mxu0 %v7981
  %8209 = vmatprep.subr.mxu0 0.0
  %8210 = vmatpush1.msra.mxu0 %v7982
  %8211 = vmatprep.subr.mxu0 0.0
  %8212 = vmatpush1.msra.mxu0 %v7983
  %8213 = vmatprep.subr.mxu0 0.0
  %8214 = vmatpush1.msra.mxu0 %v7984
  %8215 = vmatprep.subr.mxu0 0.0
  %8216 = vmatpush1.msra.mxu0 %v7985
  %8217 = vmatprep.subr.mxu0 0.0
  %8218 = vmatpush1.msra.mxu0 %v7986
  %8219 = vmatprep.subr.mxu0 0.0
  %8220 = vmatpush1.msra.mxu0 %v7987
  %8221 = vmatprep.subr.mxu0 0.0
  %8222 = vmatpush1.msra.mxu0 %v7988
  %8223 = vmatprep.subr.mxu0 0.0
  %8224 = vmatpush1.msra.mxu0 %v7989
  %8225 = vmatprep.subr.mxu0 0.0
  %8226 = vmatpush1.msra.mxu0 %v7990
  %8227 = vmatprep.subr.mxu0 0.0
  %8228 = vmatpush1.msra.mxu0 %v7991
  %8229 = vmatprep.subr.mxu0 0.0
  %8230 = vmatpush1.msra.mxu0 %v7992
  %8231 = vmatprep.subr.mxu0 0.0
  %8232 = vmatpush1.msra.mxu0 %v7993
  %8233 = vmatprep.mubr.f32.mxu0 %v7834
  %8234 = vmatmul.mubr.f32.gmra.mrb[0].mxu0 %v7770
  %v8235 = vpop.f32.mrb[0].mxu0
  %v8236 = vadd.f32 %v8039, %v8235
  %v8237 = vpop.f32.mrb[0].mxu0
  %8238 = vmatprep.mubr.f32.mxu0 %v7835
  %8239 = vmatmul.mubr.f32.gmra.mrb[0].mxu0 %v7771
  %v8240 = vpop.f32.mrb[0].mxu0
  %v8241 = vadd.f32 %v8039, %v8240
  %v8242 = vpop.f32.mrb[0].mxu0
  %8243 = vmatprep.mubr.f32.mxu0 %v7836
  %8244 = vmatmul.mubr.f32.gmra.mrb[0].mxu0 %v7772
  %v8245 = vpop.f32.mrb[0].mxu0
  %v8246 = vadd.f32 %v8039, %v8245
  %v8247 = vpop.f32.mrb[0].mxu0
  %8248 = vmatprep.mubr.f32.mxu0 %v7837
  %8249 = vmatmul.mubr.f32.gmra.mrb[0].mxu0 %v7773
  %v8250 = vpop.f32.mrb[0].mxu0
  %v8251 = vadd.f32 %v8039, %v8250
  %v8252 = vpop.f32.mrb[0].mxu0
  %8253 = vmatprep.mubr.f32.mxu0 %v7838
  %8254 = vmatmul.mubr.f32.gmra.mrb[0].mxu0 %v7774
  %v8255 = vpop.f32.mrb[0].mxu0
  %v8256 = vadd.f32 %v8039, %v8255
  %v8257 = vpop.f32.mrb[0].mxu0
  %8258 = vmatprep.mubr.f32.mxu0 %v7839
  %8259 = vmatmul.mubr.f32.gmra.mrb[0].mxu0 %v7775
  %v8260 = vpop.f32.mrb[0].mxu0
  %v8261 = vadd.f32 %v8039, %v8260
  %v8262 = vpop.f32.mrb[0].mxu0
  %8263 = vmatprep.mubr.f32.mxu0 %v7840
  %8264 = vmatmul.mubr.f32.gmra.mrb[0].mxu0 %v7776
  %v8265 = vpop.f32.mrb[0].mxu0
  %v8266 = vadd.f32 %v8039, %v8265
  %v8267 = vpop.f32.mrb[0].mxu0
  %8268 = vmatprep.mubr.f32.mxu0 %v7841
  %8269 = vmatmul.mubr.f32.gmra.mrb[0].mxu0 %v7777
  %v8270 = vpop.f32.mrb[0].mxu0
  %v8271 = vadd.f32 %v8039, %v8270
  %v8272 = vpop.f32.mrb[0].mxu0
  %8273 = vmatprep.mubr.f32.mxu0 %v7842
  %8274 = vmatmul.mubr.f32.gmra.mrb[0].mxu0 %v7778
  %v8275 = vpop.f32.mrb[0].mxu0
  %v8276 = vadd.f32 %v8039, %v8275
  %v8277 = vpop.f32.mrb[0].mxu0
  %8278 = vmatprep.mubr.f32.mxu0 %v7843
  %8279 = vmatmul.mubr.f32.gmra.mrb[0].mxu0 %v7779
  %v8280 = vpop.f32.mrb[0].mxu0
  %v8281 = vadd.f32 %v8039, %v8280
  %v8282 = vpop.f32.mrb[0].mxu0
  %8283 = vmatprep.mubr.f32.mxu0 %v7844
  %8284 = vmatmul.mubr.f32.gmra.mrb[0].mxu0 %v7780
  %v8285 = vpop.f32.mrb[0].mxu0
  %v8286 = vadd.f32 %v8039, %v8285
  %v8287 = vpop.f32.mrb[0].mxu0
  %8288 = vmatprep.mubr.f32.mxu0 %v7845
  %8289 = vmatmul.mubr.f32.gmra.mrb[0].mxu0 %v7781
  %v8290 = vpop.f32.mrb[0].mxu0
  %v8291 = vadd.f32 %v8039, %v8290
  %v8292 = vpop.f32.mrb[0].mxu0
  %8293 = vmatprep.mubr.f32.mxu0 %v7846
  %8294 = vmatmul.mubr.f32.gmra.mrb[0].mxu0 %v7782
  %v8295 = vpop.f32.mrb[0].mxu0
  %v8296 = vadd.f32 %v8039, %v8295
  %v8297 = vpop.f32.mrb[0].mxu0
  %8298 = vmatprep.mubr.f32.mxu0 %v7847
  %8299 = vmatmul.mubr.f32.gmra.mrb[0].mxu0 %v7783
  %v8300 = vpop.f32.mrb[0].mxu0
  %v8301 = vadd.f32 %v8039, %v8300
  %v8302 = vpop.f32.mrb[0].mxu0
  %8303 = vmatprep.mubr.f32.mxu0 %v7848
  %8304 = vmatmul.mubr.f32.gmra.mrb[0].mxu0 %v7784
  %v8305 = vpop.f32.mrb[0].mxu0
  %v8306 = vadd.f32 %v8039, %v8305
  %v8307 = vpop.f32.mrb[0].mxu0
  %8308 = vmatprep.mubr.f32.mxu0 %v7849
  %8309 = vmatmul.mubr.f32.gmra.mrb[0].mxu0 %v7785
  %v8310 = vpop.f32.mrb[0].mxu0
  %v8311 = vadd.f32 %v8039, %v8310
  %v8312 = vpop.f32.mrb[0].mxu0
  %8313 = vmatprep.mubr.f32.mxu0 %v7850
  %8314 = vmatmul.mubr.f32.gmra.mrb[0].mxu0 %v7786
  %v8315 = vpop.f32.mrb[0].mxu0
  %v8316 = vadd.f32 %v8039, %v8315
  %v8317 = vpop.f32.mrb[0].mxu0
  %8318 = vmatprep.mubr.f32.mxu0 %v7851
  %8319 = vmatmul.mubr.f32.gmra.mrb[0].mxu0 %v7787
  %v8320 = vpop.f32.mrb[0].mxu0
  %v8321 = vadd.f32 %v8039, %v8320
  %v8322 = vpop.f32.mrb[0].mxu0
  %8323 = vmatprep.mubr.f32.mxu0 %v7852
  %8324 = vmatmul.mubr.f32.gmra.mrb[0].mxu0 %v7788
  %v8325 = vpop.f32.mrb[0].mxu0
  %v8326 = vadd.f32 %v8039, %v8325
  %v8327 = vpop.f32.mrb[0].mxu0
  %8328 = vmatprep.mubr.f32.mxu0 %v7853
  %8329 = vmatmul.mubr.f32.gmra.mrb[0].mxu0 %v7789
  %v8330 = vpop.f32.mrb[0].mxu0
  %v8331 = vadd.f32 %v8039, %v8330
  %v8332 = vpop.f32.mrb[0].mxu0
  %8333 = vmatprep.mubr.f32.mxu0 %v7854
  %8334 = vmatmul.mubr.f32.gmra.mrb[0].mxu0 %v7790
  %v8335 = vpop.f32.mrb[0].mxu0
  %v8336 = vadd.f32 %v8039, %v8335
  %v8337 = vpop.f32.mrb[0].mxu0
  %8338 = vmatprep.mubr.f32.mxu0 %v7855
  %8339 = vmatmul.mubr.f32.gmra.mrb[0].mxu0 %v7791
  %v8340 = vpop.f32.mrb[0].mxu0
  %v8341 = vadd.f32 %v8039, %v8340
  %v8342 = vpop.f32.mrb[0].mxu0
  %8343 = vmatprep.mubr.f32.mxu0 %v7856
  %8344 = vmatmul.mubr.f32.gmra.mrb[0].mxu0 %v7792
  %v8345 = vpop.f32.mrb[0].mxu0
  %v8346 = vadd.f32 %v8039, %v8345
  %v8347 = vpop.f32.mrb[0].mxu0
  %8348 = vmatprep.mubr.f32.mxu0 %v7857
  %8349 = vmatmul.mubr.f32.gmra.mrb[0].mxu0 %v7793
  %v8350 = vpop.f32.mrb[0].mxu0
  %v8351 = vadd.f32 %v8039, %v8350
  %v8352 = vpop.f32.mrb[0].mxu0
  %8353 = vmatprep.mubr.f32.mxu0 %v7858
  %8354 = vmatmul.mubr.f32.gmra.mrb[0].mxu0 %v7794
  %v8355 = vpop.f32.mrb[0].mxu0
  %v8356 = vadd.f32 %v8039, %v8355
  %v8357 = vpop.f32.mrb[0].mxu0
  %8358 = vmatprep.mubr.f32.mxu0 %v7859
  %8359 = vmatmul.mubr.f32.gmra.mrb[0].mxu0 %v7795
  %v8360 = vpop.f32.mrb[0].mxu0
  %v8361 = vadd.f32 %v8039, %v8360
  %v8362 = vpop.f32.mrb[0].mxu0
  %8363 = vmatprep.mubr.f32.mxu0 %v7860
  %8364 = vmatmul.mubr.f32.gmra.mrb[0].mxu0 %v7796
  %v8365 = vpop.f32.mrb[0].mxu0
  %v8366 = vadd.f32 %v8039, %v8365
  %v8367 = vpop.f32.mrb[0].mxu0
  %8368 = vmatprep.mubr.f32.mxu0 %v7861
  %8369 = vmatmul.mubr.f32.gmra.mrb[0].mxu0 %v7797
  %v8370 = vpop.f32.mrb[0].mxu0
  %v8371 = vadd.f32 %v8039, %v8370
  %v8372 = vpop.f32.mrb[0].mxu0
  %8373 = vmatprep.mubr.f32.mxu0 %v7862
  %8374 = vmatmul.mubr.f32.gmra.mrb[0].mxu0 %v7798
  %v8375 = vpop.f32.mrb[0].mxu0
  %v8376 = vadd.f32 %v8039, %v8375
  %v8377 = vpop.f32.mrb[0].mxu0
  %8378 = vmatprep.mubr.f32.mxu0 %v7863
  %8379 = vmatmul.mubr.f32.gmra.mrb[0].mxu0 %v7799
  %v8380 = vpop.f32.mrb[0].mxu0
  %v8381 = vadd.f32 %v8039, %v8380
  %v8382 = vpop.f32.mrb[0].mxu0
  %8383 = vmatprep.mubr.f32.mxu0 %v7864
  %8384 = vmatmul.mubr.f32.gmra.mrb[0].mxu0 %v7800
  %v8385 = vpop.f32.mrb[0].mxu0
  %v8386 = vadd.f32 %v8039, %v8385
  %v8387 = vpop.f32.mrb[0].mxu0
  %8388 = vmatprep.mubr.f32.mxu0 %v7865
  %8389 = vmatmul.mubr.f32.gmra.mrb[0].mxu0 %v7801
  %v8390 = vpop.f32.mrb[0].mxu0
  %v8391 = vadd.f32 %v8039, %v8390
  %v8392 = vpop.f32.mrb[0].mxu0
  %8393 = vmatprep.mubr.f32.mxu0 %v7866
  %8394 = vmatmul.mubr.f32.gmra.mrb[0].mxu0 %v7802
  %v8395 = vpop.f32.mrb[0].mxu0
  %v8396 = vadd.f32 %v8039, %v8395
  %v8397 = vpop.f32.mrb[0].mxu0
  %8398 = vmatprep.mubr.f32.mxu0 %v7867
  %8399 = vmatmul.mubr.f32.gmra.mrb[0].mxu0 %v7803
  %v8400 = vpop.f32.mrb[0].mxu0
  %v8401 = vadd.f32 %v8039, %v8400
  %v8402 = vpop.f32.mrb[0].mxu0
  %8403 = vmatprep.mubr.f32.mxu0 %v7868
  %8404 = vmatmul.mubr.f32.gmra.mrb[0].mxu0 %v7804
  %v8405 = vpop.f32.mrb[0].mxu0
  %v8406 = vadd.f32 %v8039, %v8405
  %v8407 = vpop.f32.mrb[0].mxu0
  %8408 = vmatprep.mubr.f32.mxu0 %v7869
  %8409 = vmatmul.mubr.f32.gmra.mrb[0].mxu0 %v7805
  %v8410 = vpop.f32.mrb[0].mxu0
  %v8411 = vadd.f32 %v8039, %v8410
  %v8412 = vpop.f32.mrb[0].mxu0
  %8413 = vmatprep.mubr.f32.mxu0 %v7870
  %8414 = vmatmul.mubr.f32.gmra.mrb[0].mxu0 %v7806
  %v8415 = vpop.f32.mrb[0].mxu0
  %v8416 = vadd.f32 %v8039, %v8415
  %v8417 = vpop.f32.mrb[0].mxu0
  %8418 = vmatprep.mubr.f32.mxu0 %v7871
  %8419 = vmatmul.mubr.f32.gmra.mrb[0].mxu0 %v7807
  %v8420 = vpop.f32.mrb[0].mxu0
  %v8421 = vadd.f32 %v8039, %v8420
  %v8422 = vpop.f32.mrb[0].mxu0
  %8423 = vmatprep.mubr.f32.mxu0 %v7872
  %8424 = vmatmul.mubr.f32.gmra.mrb[0].mxu0 %v7808
  %v8425 = vpop.f32.mrb[0].mxu0
  %v8426 = vadd.f32 %v8039, %v8425
  %v8427 = vpop.f32.mrb[0].mxu0
  %8428 = vmatprep.mubr.f32.mxu0 %v7873
  %8429 = vmatmul.mubr.f32.gmra.mrb[0].mxu0 %v7809
  %v8430 = vpop.f32.mrb[0].mxu0
  %v8431 = vadd.f32 %v8039, %v8430
  %v8432 = vpop.f32.mrb[0].mxu0
  %8433 = vmatprep.mubr.f32.mxu0 %v7874
  %8434 = vmatmul.mubr.f32.gmra.mrb[0].mxu0 %v7810
  %v8435 = vpop.f32.mrb[0].mxu0
  %v8436 = vadd.f32 %v8039, %v8435
  %v8437 = vpop.f32.mrb[0].mxu0
  %8438 = vmatprep.mubr.f32.mxu0 %v7875
  %8439 = vmatmul.mubr.f32.gmra.mrb[0].mxu0 %v7811
  %v8440 = vpop.f32.mrb[0].mxu0
  %v8441 = vadd.f32 %v8039, %v8440
  %v8442 = vpop.f32.mrb[0].mxu0
  %8443 = vmatprep.mubr.f32.mxu0 %v7876
  %8444 = vmatmul.mubr.f32.gmra.mrb[0].mxu0 %v7812
  %v8445 = vpop.f32.mrb[0].mxu0
  %v8446 = vadd.f32 %v8039, %v8445
  %v8447 = vpop.f32.mrb[0].mxu0
  %8448 = vmatprep.mubr.f32.mxu0 %v7877
  %8449 = vmatmul.mubr.f32.gmra.mrb[0].mxu0 %v7813
  %v8450 = vpop.f32.mrb[0].mxu0
  %v8451 = vadd.f32 %v8039, %v8450
  %v8452 = vpop.f32.mrb[0].mxu0
  %8453 = vmatprep.mubr.f32.mxu0 %v7878
  %8454 = vmatmul.mubr.f32.gmra.mrb[0].mxu0 %v7814
  %v8455 = vpop.f32.mrb[0].mxu0
  %v8456 = vadd.f32 %v8039, %v8455
  %v8457 = vpop.f32.mrb[0].mxu0
  %8458 = vmatprep.mubr.f32.mxu0 %v7879
  %8459 = vmatmul.mubr.f32.gmra.mrb[0].mxu0 %v7815
  %v8460 = vpop.f32.mrb[0].mxu0
  %v8461 = vadd.f32 %v8039, %v8460
  %v8462 = vpop.f32.mrb[0].mxu0
  %8463 = vmatprep.mubr.f32.mxu0 %v7880
  %8464 = vmatmul.mubr.f32.gmra.mrb[0].mxu0 %v7816
  %v8465 = vpop.f32.mrb[0].mxu0
  %v8466 = vadd.f32 %v8039, %v8465
  %v8467 = vpop.f32.mrb[0].mxu0
  %8468 = vmatprep.mubr.f32.mxu0 %v7881
  %8469 = vmatmul.mubr.f32.gmra.mrb[0].mxu0 %v7817
  %v8470 = vpop.f32.mrb[0].mxu0
  %v8471 = vadd.f32 %v8039, %v8470
  %v8472 = vpop.f32.mrb[0].mxu0
  %8473 = vmatprep.mubr.f32.mxu0 %v7882
  %8474 = vmatmul.mubr.f32.gmra.mrb[0].mxu0 %v7818
  %v8475 = vpop.f32.mrb[0].mxu0
  %v8476 = vadd.f32 %v8039, %v8475
  %v8477 = vpop.f32.mrb[0].mxu0
  %8478 = vmatprep.mubr.f32.mxu0 %v7883
  %8479 = vmatmul.mubr.f32.gmra.mrb[0].mxu0 %v7819
  %v8480 = vpop.f32.mrb[0].mxu0
  %v8481 = vadd.f32 %v8039, %v8480
  %v8482 = vpop.f32.mrb[0].mxu0
  %8483 = vmatprep.mubr.f32.mxu0 %v7884
  %8484 = vmatmul.mubr.f32.gmra.mrb[0].mxu0 %v7820
  %v8485 = vpop.f32.mrb[0].mxu0
  %v8486 = vadd.f32 %v8039, %v8485
  %v8487 = vpop.f32.mrb[0].mxu0
  %8488 = vmatprep.mubr.f32.mxu0 %v7885
  %8489 = vmatmul.mubr.f32.gmra.mrb[0].mxu0 %v7821
  %v8490 = vpop.f32.mrb[0].mxu0
  %v8491 = vadd.f32 %v8039, %v8490
  %v8492 = vpop.f32.mrb[0].mxu0
  %8493 = vmatprep.mubr.f32.mxu0 %v7886
  %8494 = vmatmul.mubr.f32.gmra.mrb[0].mxu0 %v7822
  %v8495 = vpop.f32.mrb[0].mxu0
  %v8496 = vadd.f32 %v8039, %v8495
  %v8497 = vpop.f32.mrb[0].mxu0
  %8498 = vmatprep.mubr.f32.mxu0 %v7887
  %8499 = vmatmul.mubr.f32.gmra.mrb[0].mxu0 %v7823
  %v8500 = vpop.f32.mrb[0].mxu0
  %v8501 = vadd.f32 %v8039, %v8500
  %v8502 = vpop.f32.mrb[0].mxu0
  %8503 = vmatprep.mubr.f32.mxu0 %v7888
  %8504 = vmatmul.mubr.f32.gmra.mrb[0].mxu0 %v7824
  %v8505 = vpop.f32.mrb[0].mxu0
  %v8506 = vadd.f32 %v8039, %v8505
  %v8507 = vpop.f32.mrb[0].mxu0
  %8508 = vmatprep.mubr.f32.mxu0 %v7889
  %8509 = vmatmul.mubr.f32.gmra.mrb[0].mxu0 %v7825
  %v8510 = vpop.f32.mrb[0].mxu0
  %v8511 = vadd.f32 %v8039, %v8510
  %v8512 = vpop.f32.mrb[0].mxu0
  %8513 = vmatprep.mubr.f32.mxu0 %v7890
  %8514 = vmatmul.mubr.f32.gmra.mrb[0].mxu0 %v7826
  %v8515 = vpop.f32.mrb[0].mxu0
  %v8516 = vadd.f32 %v8039, %v8515
  %v8517 = vpop.f32.mrb[0].mxu0
  %8518 = vmatprep.mubr.f32.mxu0 %v7891
  %8519 = vmatmul.mubr.f32.gmra.mrb[0].mxu0 %v7827
  %v8520 = vpop.f32.mrb[0].mxu0
  %v8521 = vadd.f32 %v8039, %v8520
  %v8522 = vpop.f32.mrb[0].mxu0
  %8523 = vmatprep.mubr.f32.mxu0 %v7892
  %8524 = vmatmul.mubr.f32.gmra.mrb[0].mxu0 %v7828
  %v8525 = vpop.f32.mrb[0].mxu0
  %v8526 = vadd.f32 %v8039, %v8525
  %v8527 = vpop.f32.mrb[0].mxu0
  %8528 = vmatprep.mubr.f32.mxu0 %v7893
  %8529 = vmatmul.mubr.f32.gmra.mrb[0].mxu0 %v7829
  %v8530 = vpop.f32.mrb[0].mxu0
  %v8531 = vadd.f32 %v8039, %v8530
  %v8532 = vpop.f32.mrb[0].mxu0
  %8533 = vmatprep.mubr.f32.mxu0 %v7894
  %8534 = vmatmul.mubr.f32.gmra.mrb[0].mxu0 %v7830
  %v8535 = vpop.f32.mrb[0].mxu0
  %v8536 = vadd.f32 %v8039, %v8535
  %v8537 = vpop.f32.mrb[0].mxu0
  %8538 = vmatprep.mubr.f32.mxu0 %v7895
  %8539 = vmatmul.mubr.f32.gmra.mrb[0].mxu0 %v7831
  %v8540 = vpop.f32.mrb[0].mxu0
  %v8541 = vadd.f32 %v8039, %v8540
  %v8542 = vpop.f32.mrb[0].mxu0
  %8543 = vmatprep.mubr.f32.mxu0 %v7896
  %8544 = vmatmul.mubr.f32.gmra.mrb[0].mxu0 %v7832
  %v8545 = vpop.f32.mrb[0].mxu0
  %v8546 = vadd.f32 %v8039, %v8545
  %v8547 = vpop.f32.mrb[0].mxu0
  %8548 = vmatprep.mubr.f32.mxu0 %v7897
  %8549 = vmatmul.mubr.f32.gmra.mrb[0].mxu0 %v7833
  %v8550 = vpop.f32.mrb[0].mxu0
  %v8551 = vadd.f32 %v8039, %v8550
  %v8552 = vpop.f32.mrb[0].mxu0
  %8553 = vdwg.mxu0
  %8554 = vmatprep.subr.mxu0 0.0
  %8555 = vmatpush1.msra.mxu0 %v7994
  %8556 = vmatprep.subr.mxu0 0.0
  %8557 = vmatpush1.msra.mxu0 %v7995
  %8558 = vmatprep.subr.mxu0 0.0
  %8559 = vmatpush1.msra.mxu0 %v7996
  %8560 = vmatprep.subr.mxu0 0.0
  %8561 = vmatpush1.msra.mxu0 %v7997
  %8562 = vmatprep.subr.mxu0 0.0
  %8563 = vmatpush1.msra.mxu0 %v7998
  %8564 = vmatprep.subr.mxu0 0.0
  %8565 = vmatpush1.msra.mxu0 %v7999
  %8566 = vmatprep.subr.mxu0 0.0
  %8567 = vmatpush1.msra.mxu0 %v8000
  %8568 = vmatprep.subr.mxu0 0.0
  %8569 = vmatpush1.msra.mxu0 %v8001
  %8570 = vmatprep.subr.mxu0 0.0
  %8571 = vmatpush1.msra.mxu0 %v8002
  %8572 = vmatprep.subr.mxu0 0.0
  %8573 = vmatpush1.msra.mxu0 %v8003
  %8574 = vmatprep.subr.mxu0 0.0
  %8575 = vmatpush1.msra.mxu0 %v8004
  %8576 = vmatprep.subr.mxu0 0.0
  %8577 = vmatpush1.msra.mxu0 %v8005
  %8578 = vmatprep.subr.mxu0 0.0
  %8579 = vmatpush1.msra.mxu0 %v8006
  %8580 = vmatprep.subr.mxu0 0.0
  %8581 = vmatpush1.msra.mxu0 %v8007
  %8582 = vmatprep.subr.mxu0 0.0
  %8583 = vmatpush1.msra.mxu0 %v8008
  %8584 = vmatprep.subr.mxu0 0.0
  %8585 = vmatpush1.msra.mxu0 %v8009
  %8586 = vmatprep.subr.mxu0 0.0
  %8587 = vmatpush1.msra.mxu0 %v8010
  %8588 = vmatprep.subr.mxu0 0.0
  %8589 = vmatpush1.msra.mxu0 %v8011
  %8590 = vmatprep.subr.mxu0 0.0
  %8591 = vmatpush1.msra.mxu0 %v8012
  %8592 = vmatprep.subr.mxu0 0.0
  %8593 = vmatpush1.msra.mxu0 %v8013
  %8594 = vmatprep.subr.mxu0 0.0
  %8595 = vmatpush1.msra.mxu0 %v8014
  %8596 = vmatprep.subr.mxu0 0.0
  %8597 = vmatpush1.msra.mxu0 %v8015
  %8598 = vmatprep.subr.mxu0 0.0
  %8599 = vmatpush1.msra.mxu0 %v8016
  %8600 = vmatprep.subr.mxu0 0.0
  %8601 = vmatpush1.msra.mxu0 %v8017
  %8602 = vmatprep.subr.mxu0 0.0
  %8603 = vmatpush1.msra.mxu0 %v8018
  %8604 = vmatprep.subr.mxu0 0.0
  %8605 = vmatpush1.msra.mxu0 %v8019
  %8606 = vmatprep.subr.mxu0 0.0
  %8607 = vmatpush1.msra.mxu0 %v8020
  %8608 = vmatprep.subr.mxu0 0.0
  %8609 = vmatpush1.msra.mxu0 %v8021
  %8610 = vmatprep.subr.mxu0 0.0
  %8611 = vmatpush1.msra.mxu0 %v8022
  %8612 = vmatprep.subr.mxu0 0.0
  %8613 = vmatpush1.msra.mxu0 %v8023
  %8614 = vmatprep.subr.mxu0 0.0
  %8615 = vmatpush1.msra.mxu0 %v8024
  %8616 = vmatprep.subr.mxu0 0.0
  %8617 = vmatpush1.msra.mxu0 %v8025
  %8618 = vmatprep.mubr.f32.mxu0 %v7774
  %8619 = vmatmul.mubr.f32.gmra.mrb[0].mxu0 %v7898
  %v8620 = vpop.f32.mrb[0].mxu0
  %v8621 = vadd.f32 %v8236, %v8620
  %v8622 = vpop.f32.mrb[0].mxu0
  %8623 = vmatprep.mubr.f32.mxu0 %v7775
  %8624 = vmatmul.mubr.f32.gmra.mrb[0].mxu0 %v7899
  %v8625 = vpop.f32.mrb[0].mxu0
  %v8626 = vadd.f32 %v8241, %v8625
  %v8627 = vpop.f32.mrb[0].mxu0
  %8628 = vmatprep.mubr.f32.mxu0 %v7776
  %8629 = vmatmul.mubr.f32.gmra.mrb[0].mxu0 %v7900
  %v8630 = vpop.f32.mrb[0].mxu0
  %v8631 = vadd.f32 %v8246, %v8630
  %v8632 = vpop.f32.mrb[0].mxu0
  %8633 = vmatprep.mubr.f32.mxu0 %v7777
  %8634 = vmatmul.mubr.f32.gmra.mrb[0].mxu0 %v7901
  %v8635 = vpop.f32.mrb[0].mxu0
  %v8636 = vadd.f32 %v8251, %v8635
  %v8637 = vpop.f32.mrb[0].mxu0
  %8638 = vmatprep.mubr.f32.mxu0 %v7778
  %8639 = vmatmul.mubr.f32.gmra.mrb[0].mxu0 %v7902
  %v8640 = vpop.f32.mrb[0].mxu0
  %v8641 = vadd.f32 %v8256, %v8640
  %v8642 = vpop.f32.mrb[0].mxu0
  %8643 = vmatprep.mubr.f32.mxu0 %v7779
  %8644 = vmatmul.mubr.f32.gmra.mrb[0].mxu0 %v7903
  %v8645 = vpop.f32.mrb[0].mxu0
  %v8646 = vadd.f32 %v8261, %v8645
  %v8647 = vpop.f32.mrb[0].mxu0
  %8648 = vmatprep.mubr.f32.mxu0 %v7780
  %8649 = vmatmul.mubr.f32.gmra.mrb[0].mxu0 %v7904
  %v8650 = vpop.f32.mrb[0].mxu0
  %v8651 = vadd.f32 %v8266, %v8650
  %v8652 = vpop.f32.mrb[0].mxu0
  %8653 = vmatprep.mubr.f32.mxu0 %v7781
  %8654 = vmatmul.mubr.f32.gmra.mrb[0].mxu0 %v7905
  %v8655 = vpop.f32.mrb[0].mxu0
  %v8656 = vadd.f32 %v8271, %v8655
  %v8657 = vpop.f32.mrb[0].mxu0
  %8658 = vmatprep.mubr.f32.mxu0 %v7782
  %8659 = vmatmul.mubr.f32.gmra.mrb[0].mxu0 %v7906
  %v8660 = vpop.f32.mrb[0].mxu0
  %v8661 = vadd.f32 %v8276, %v8660
  %v8662 = vpop.f32.mrb[0].mxu0
  %8663 = vmatprep.mubr.f32.mxu0 %v7783
  %8664 = vmatmul.mubr.f32.gmra.mrb[0].mxu0 %v7907
  %v8665 = vpop.f32.mrb[0].mxu0
  %v8666 = vadd.f32 %v8281, %v8665
  %v8667 = vpop.f32.mrb[0].mxu0
  %8668 = vmatprep.mubr.f32.mxu0 %v7784
  %8669 = vmatmul.mubr.f32.gmra.mrb[0].mxu0 %v7908
  %v8670 = vpop.f32.mrb[0].mxu0
  %v8671 = vadd.f32 %v8286, %v8670
  %v8672 = vpop.f32.mrb[0].mxu0
  %8673 = vmatprep.mubr.f32.mxu0 %v7785
  %8674 = vmatmul.mubr.f32.gmra.mrb[0].mxu0 %v7909
  %v8675 = vpop.f32.mrb[0].mxu0
  %v8676 = vadd.f32 %v8291, %v8675
  %v8677 = vpop.f32.mrb[0].mxu0
  %8678 = vmatprep.mubr.f32.mxu0 %v7786
  %8679 = vmatmul.mubr.f32.gmra.mrb[0].mxu0 %v7910
  %v8680 = vpop.f32.mrb[0].mxu0
  %v8681 = vadd.f32 %v8296, %v8680
  %v8682 = vpop.f32.mrb[0].mxu0
  %8683 = vmatprep.mubr.f32.mxu0 %v7787
  %8684 = vmatmul.mubr.f32.gmra.mrb[0].mxu0 %v7911
  %v8685 = vpop.f32.mrb[0].mxu0
  %v8686 = vadd.f32 %v8301, %v8685
  %v8687 = vpop.f32.mrb[0].mxu0
  %8688 = vmatprep.mubr.f32.mxu0 %v7788
  %8689 = vmatmul.mubr.f32.gmra.mrb[0].mxu0 %v7912
  %v8690 = vpop.f32.mrb[0].mxu0
  %v8691 = vadd.f32 %v8306, %v8690
  %v8692 = vpop.f32.mrb[0].mxu0
  %8693 = vmatprep.mubr.f32.mxu0 %v7789
  %8694 = vmatmul.mubr.f32.gmra.mrb[0].mxu0 %v7913
  %v8695 = vpop.f32.mrb[0].mxu0
  %v8696 = vadd.f32 %v8311, %v8695
  %v8697 = vpop.f32.mrb[0].mxu0
  %8698 = vmatprep.mubr.f32.mxu0 %v7790
  %8699 = vmatmul.mubr.f32.gmra.mrb[0].mxu0 %v7914
  %v8700 = vpop.f32.mrb[0].mxu0
  %v8701 = vadd.f32 %v8316, %v8700
  %v8702 = vpop.f32.mrb[0].mxu0
  %8703 = vmatprep.mubr.f32.mxu0 %v7791
  %8704 = vmatmul.mubr.f32.gmra.mrb[0].mxu0 %v7915
  %v8705 = vpop.f32.mrb[0].mxu0
  %v8706 = vadd.f32 %v8321, %v8705
  %v8707 = vpop.f32.mrb[0].mxu0
  %8708 = vmatprep.mubr.f32.mxu0 %v7792
  %8709 = vmatmul.mubr.f32.gmra.mrb[0].mxu0 %v7916
  %v8710 = vpop.f32.mrb[0].mxu0
  %v8711 = vadd.f32 %v8326, %v8710
  %v8712 = vpop.f32.mrb[0].mxu0
  %8713 = vmatprep.mubr.f32.mxu0 %v7793
  %8714 = vmatmul.mubr.f32.gmra.mrb[0].mxu0 %v7917
  %v8715 = vpop.f32.mrb[0].mxu0
  %v8716 = vadd.f32 %v8331, %v8715
  %v8717 = vpop.f32.mrb[0].mxu0
  %8718 = vmatprep.mubr.f32.mxu0 %v7794
  %8719 = vmatmul.mubr.f32.gmra.mrb[0].mxu0 %v7918
  %v8720 = vpop.f32.mrb[0].mxu0
  %v8721 = vadd.f32 %v8336, %v8720
  %v8722 = vpop.f32.mrb[0].mxu0
  %8723 = vmatprep.mubr.f32.mxu0 %v7795
  %8724 = vmatmul.mubr.f32.gmra.mrb[0].mxu0 %v7919
  %v8725 = vpop.f32.mrb[0].mxu0
  %v8726 = vadd.f32 %v8341, %v8725
  %v8727 = vpop.f32.mrb[0].mxu0
  %8728 = vmatprep.mubr.f32.mxu0 %v7796
  %8729 = vmatmul.mubr.f32.gmra.mrb[0].mxu0 %v7920
  %v8730 = vpop.f32.mrb[0].mxu0
  %v8731 = vadd.f32 %v8346, %v8730
  %v8732 = vpop.f32.mrb[0].mxu0
  %8733 = vmatprep.mubr.f32.mxu0 %v7797
  %8734 = vmatmul.mubr.f32.gmra.mrb[0].mxu0 %v7921
  %v8735 = vpop.f32.mrb[0].mxu0
  %v8736 = vadd.f32 %v8351, %v8735
  %v8737 = vpop.f32.mrb[0].mxu0
  %8738 = vmatprep.mubr.f32.mxu0 %v7798
  %8739 = vmatmul.mubr.f32.gmra.mrb[0].mxu0 %v7922
  %v8740 = vpop.f32.mrb[0].mxu0
  %v8741 = vadd.f32 %v8356, %v8740
  %v8742 = vpop.f32.mrb[0].mxu0
  %8743 = vmatprep.mubr.f32.mxu0 %v7799
  %8744 = vmatmul.mubr.f32.gmra.mrb[0].mxu0 %v7923
  %v8745 = vpop.f32.mrb[0].mxu0
  %v8746 = vadd.f32 %v8361, %v8745
  %v8747 = vpop.f32.mrb[0].mxu0
  %8748 = vmatprep.mubr.f32.mxu0 %v7800
  %8749 = vmatmul.mubr.f32.gmra.mrb[0].mxu0 %v7924
  %v8750 = vpop.f32.mrb[0].mxu0
  %v8751 = vadd.f32 %v8366, %v8750
  %v8752 = vpop.f32.mrb[0].mxu0
  %8753 = vmatprep.mubr.f32.mxu0 %v7801
  %8754 = vmatmul.mubr.f32.gmra.mrb[0].mxu0 %v7925
  %v8755 = vpop.f32.mrb[0].mxu0
  %v8756 = vadd.f32 %v8371, %v8755
  %v8757 = vpop.f32.mrb[0].mxu0
  %8758 = vmatprep.mubr.f32.mxu0 %v7802
  %8759 = vmatmul.mubr.f32.gmra.mrb[0].mxu0 %v7926
  %v8760 = vpop.f32.mrb[0].mxu0
  %v8761 = vadd.f32 %v8376, %v8760
  %v8762 = vpop.f32.mrb[0].mxu0
  %8763 = vmatprep.mubr.f32.mxu0 %v7803
  %8764 = vmatmul.mubr.f32.gmra.mrb[0].mxu0 %v7927
  %v8765 = vpop.f32.mrb[0].mxu0
  %v8766 = vadd.f32 %v8381, %v8765
  %v8767 = vpop.f32.mrb[0].mxu0
  %8768 = vmatprep.mubr.f32.mxu0 %v7804
  %8769 = vmatmul.mubr.f32.gmra.mrb[0].mxu0 %v7928
  %v8770 = vpop.f32.mrb[0].mxu0
  %v8771 = vadd.f32 %v8386, %v8770
  %v8772 = vpop.f32.mrb[0].mxu0
  %8773 = vmatprep.mubr.f32.mxu0 %v7805
  %8774 = vmatmul.mubr.f32.gmra.mrb[0].mxu0 %v7929
  %v8775 = vpop.f32.mrb[0].mxu0
  %v8776 = vadd.f32 %v8391, %v8775
  %v8777 = vpop.f32.mrb[0].mxu0
  %8778 = vmatprep.mubr.f32.mxu0 %v7806
  %8779 = vmatmul.mubr.f32.gmra.mrb[0].mxu0 %v7930
  %v8780 = vpop.f32.mrb[0].mxu0
  %v8781 = vadd.f32 %v8396, %v8780
  %v8782 = vpop.f32.mrb[0].mxu0
  %8783 = vmatprep.mubr.f32.mxu0 %v7807
  %8784 = vmatmul.mubr.f32.gmra.mrb[0].mxu0 %v7931
  %v8785 = vpop.f32.mrb[0].mxu0
  %v8786 = vadd.f32 %v8401, %v8785
  %v8787 = vpop.f32.mrb[0].mxu0
  %8788 = vmatprep.mubr.f32.mxu0 %v7808
  %8789 = vmatmul.mubr.f32.gmra.mrb[0].mxu0 %v7932
  %v8790 = vpop.f32.mrb[0].mxu0
  %v8791 = vadd.f32 %v8406, %v8790
  %v8792 = vpop.f32.mrb[0].mxu0
  %8793 = vmatprep.mubr.f32.mxu0 %v7809
  %8794 = vmatmul.mubr.f32.gmra.mrb[0].mxu0 %v7933
  %v8795 = vpop.f32.mrb[0].mxu0
  %v8796 = vadd.f32 %v8411, %v8795
  %v8797 = vpop.f32.mrb[0].mxu0
  %8798 = vmatprep.mubr.f32.mxu0 %v7810
  %8799 = vmatmul.mubr.f32.gmra.mrb[0].mxu0 %v7934
  %v8800 = vpop.f32.mrb[0].mxu0
  %v8801 = vadd.f32 %v8416, %v8800
  %v8802 = vpop.f32.mrb[0].mxu0
  %8803 = vmatprep.mubr.f32.mxu0 %v7811
  %8804 = vmatmul.mubr.f32.gmra.mrb[0].mxu0 %v7935
  %v8805 = vpop.f32.mrb[0].mxu0
  %v8806 = vadd.f32 %v8421, %v8805
  %v8807 = vpop.f32.mrb[0].mxu0
  %8808 = vmatprep.mubr.f32.mxu0 %v7812
  %8809 = vmatmul.mubr.f32.gmra.mrb[0].mxu0 %v7936
  %v8810 = vpop.f32.mrb[0].mxu0
  %v8811 = vadd.f32 %v8426, %v8810
  %v8812 = vpop.f32.mrb[0].mxu0
  %8813 = vmatprep.mubr.f32.mxu0 %v7813
  %8814 = vmatmul.mubr.f32.gmra.mrb[0].mxu0 %v7937
  %v8815 = vpop.f32.mrb[0].mxu0
  %v8816 = vadd.f32 %v8431, %v8815
  %v8817 = vpop.f32.mrb[0].mxu0
  %8818 = vmatprep.mubr.f32.mxu0 %v7814
  %8819 = vmatmul.mubr.f32.gmra.mrb[0].mxu0 %v7938
  %v8820 = vpop.f32.mrb[0].mxu0
  %v8821 = vadd.f32 %v8436, %v8820
  %v8822 = vpop.f32.mrb[0].mxu0
  %8823 = vmatprep.mubr.f32.mxu0 %v7815
  %8824 = vmatmul.mubr.f32.gmra.mrb[0].mxu0 %v7939
  %v8825 = vpop.f32.mrb[0].mxu0
  %v8826 = vadd.f32 %v8441, %v8825
  %v8827 = vpop.f32.mrb[0].mxu0
  %8828 = vmatprep.mubr.f32.mxu0 %v7816
  %8829 = vmatmul.mubr.f32.gmra.mrb[0].mxu0 %v7940
  %v8830 = vpop.f32.mrb[0].mxu0
  %v8831 = vadd.f32 %v8446, %v8830
  %v8832 = vpop.f32.mrb[0].mxu0
  %8833 = vmatprep.mubr.f32.mxu0 %v7817
  %8834 = vmatmul.mubr.f32.gmra.mrb[0].mxu0 %v7941
  %v8835 = vpop.f32.mrb[0].mxu0
  %v8836 = vadd.f32 %v8451, %v8835
  %v8837 = vpop.f32.mrb[0].mxu0
  %8838 = vmatprep.mubr.f32.mxu0 %v7818
  %8839 = vmatmul.mubr.f32.gmra.mrb[0].mxu0 %v7942
  %v8840 = vpop.f32.mrb[0].mxu0
  %v8841 = vadd.f32 %v8456, %v8840
  %v8842 = vpop.f32.mrb[0].mxu0
  %8843 = vmatprep.mubr.f32.mxu0 %v7819
  %8844 = vmatmul.mubr.f32.gmra.mrb[0].mxu0 %v7943
  %v8845 = vpop.f32.mrb[0].mxu0
  %v8846 = vadd.f32 %v8461, %v8845
  %v8847 = vpop.f32.mrb[0].mxu0
  %8848 = vmatprep.mubr.f32.mxu0 %v7820
  %8849 = vmatmul.mubr.f32.gmra.mrb[0].mxu0 %v7944
  %v8850 = vpop.f32.mrb[0].mxu0
  %v8851 = vadd.f32 %v8466, %v8850
  %v8852 = vpop.f32.mrb[0].mxu0
  %8853 = vmatprep.mubr.f32.mxu0 %v7821
  %8854 = vmatmul.mubr.f32.gmra.mrb[0].mxu0 %v7945
  %v8855 = vpop.f32.mrb[0].mxu0
  %v8856 = vadd.f32 %v8471, %v8855
  %v8857 = vpop.f32.mrb[0].mxu0
  %8858 = vmatprep.mubr.f32.mxu0 %v7822
  %8859 = vmatmul.mubr.f32.gmra.mrb[0].mxu0 %v7946
  %v8860 = vpop.f32.mrb[0].mxu0
  %v8861 = vadd.f32 %v8476, %v8860
  %v8862 = vpop.f32.mrb[0].mxu0
  %8863 = vmatprep.mubr.f32.mxu0 %v7823
  %8864 = vmatmul.mubr.f32.gmra.mrb[0].mxu0 %v7947
  %v8865 = vpop.f32.mrb[0].mxu0
  %v8866 = vadd.f32 %v8481, %v8865
  %v8867 = vpop.f32.mrb[0].mxu0
  %8868 = vmatprep.mubr.f32.mxu0 %v7824
  %8869 = vmatmul.mubr.f32.gmra.mrb[0].mxu0 %v7948
  %v8870 = vpop.f32.mrb[0].mxu0
  %v8871 = vadd.f32 %v8486, %v8870
  %v8872 = vpop.f32.mrb[0].mxu0
  %8873 = vmatprep.mubr.f32.mxu0 %v7825
  %8874 = vmatmul.mubr.f32.gmra.mrb[0].mxu0 %v7949
  %v8875 = vpop.f32.mrb[0].mxu0
  %v8876 = vadd.f32 %v8491, %v8875
  %v8877 = vpop.f32.mrb[0].mxu0
  %8878 = vmatprep.mubr.f32.mxu0 %v7826
  %8879 = vmatmul.mubr.f32.gmra.mrb[0].mxu0 %v7950
  %v8880 = vpop.f32.mrb[0].mxu0
  %v8881 = vadd.f32 %v8496, %v8880
  %v8882 = vpop.f32.mrb[0].mxu0
  %8883 = vmatprep.mubr.f32.mxu0 %v7827
  %8884 = vmatmul.mubr.f32.gmra.mrb[0].mxu0 %v7951
  %v8885 = vpop.f32.mrb[0].mxu0
  %v8886 = vadd.f32 %v8501, %v8885
  %v8887 = vpop.f32.mrb[0].mxu0
  %8888 = vmatprep.mubr.f32.mxu0 %v7828
  %8889 = vmatmul.mubr.f32.gmra.mrb[0].mxu0 %v7952
  %v8890 = vpop.f32.mrb[0].mxu0
  %v8891 = vadd.f32 %v8506, %v8890
  %v8892 = vpop.f32.mrb[0].mxu0
  %8893 = vmatprep.mubr.f32.mxu0 %v7829
  %8894 = vmatmul.mubr.f32.gmra.mrb[0].mxu0 %v7953
  %v8895 = vpop.f32.mrb[0].mxu0
  %v8896 = vadd.f32 %v8511, %v8895
  %v8897 = vpop.f32.mrb[0].mxu0
  %8898 = vmatprep.mubr.f32.mxu0 %v7830
  %8899 = vmatmul.mubr.f32.gmra.mrb[0].mxu0 %v7954
  %v8900 = vpop.f32.mrb[0].mxu0
  %v8901 = vadd.f32 %v8516, %v8900
  %v8902 = vpop.f32.mrb[0].mxu0
  %8903 = vmatprep.mubr.f32.mxu0 %v7831
  %8904 = vmatmul.mubr.f32.gmra.mrb[0].mxu0 %v7955
  %v8905 = vpop.f32.mrb[0].mxu0
  %v8906 = vadd.f32 %v8521, %v8905
  %v8907 = vpop.f32.mrb[0].mxu0
  %8908 = vmatprep.mubr.f32.mxu0 %v7832
  %8909 = vmatmul.mubr.f32.gmra.mrb[0].mxu0 %v7956
  %v8910 = vpop.f32.mrb[0].mxu0
  %v8911 = vadd.f32 %v8526, %v8910
  %v8912 = vpop.f32.mrb[0].mxu0
  %8913 = vmatprep.mubr.f32.mxu0 %v7833
  %8914 = vmatmul.mubr.f32.gmra.mrb[0].mxu0 %v7957
  %v8915 = vpop.f32.mrb[0].mxu0
  %v8916 = vadd.f32 %v8531, %v8915
  %v8917 = vpop.f32.mrb[0].mxu0
  %8918 = vmatprep.mubr.f32.mxu0 %v7770
  %8919 = vmatmul.mubr.f32.gmra.mrb[0].mxu0 %v7958
  %v8920 = vpop.f32.mrb[0].mxu0
  %v8921 = vadd.f32 %v8536, %v8920
  %v8922 = vpop.f32.mrb[0].mxu0
  %8923 = vmatprep.mubr.f32.mxu0 %v7771
  %8924 = vmatmul.mubr.f32.gmra.mrb[0].mxu0 %v7959
  %v8925 = vpop.f32.mrb[0].mxu0
  %v8926 = vadd.f32 %v8541, %v8925
  %v8927 = vpop.f32.mrb[0].mxu0
  %8928 = vmatprep.mubr.f32.mxu0 %v7772
  %8929 = vmatmul.mubr.f32.gmra.mrb[0].mxu0 %v7960
  %v8930 = vpop.f32.mrb[0].mxu0
  %v8931 = vadd.f32 %v8546, %v8930
  %v8932 = vpop.f32.mrb[0].mxu0
  %8933 = vmatprep.mubr.f32.mxu0 %v7773
  %8934 = vmatmul.mubr.f32.gmra.mrb[0].mxu0 %v7961
  %v8935 = vpop.f32.mrb[0].mxu0
  %v8936 = vadd.f32 %v8551, %v8935
  %v8937 = vpop.f32.mrb[0].mxu0
  %8938 = vdwg.mxu0
  %8939 = vmatprep.subr.mxu0 0.0
  %8940 = vmatpush1.msra.mxu0 %v8026
  %8941 = vmatprep.subr.mxu0 0.0
  %8942 = vmatpush1.msra.mxu0 %v8027
  %8943 = vmatprep.subr.mxu0 0.0
  %8944 = vmatpush1.msra.mxu0 %v8028
  %8945 = vmatprep.subr.mxu0 0.0
  %8946 = vmatpush1.msra.mxu0 %v8029
  %8947 = vmatprep.subr.mxu0 0.0
  %8948 = vmatpush1.msra.mxu0 %v8030
  %8949 = vmatprep.subr.mxu0 0.0
  %8950 = vmatpush1.msra.mxu0 %v8031
  %8951 = vmatprep.subr.mxu0 0.0
  %8952 = vmatpush1.msra.mxu0 %v8032
  %8953 = vmatprep.subr.mxu0 0.0
  %8954 = vmatpush1.msra.mxu0 %v8033
  %8955 = vmatprep.subr.mxu0 0.0
  %8956 = vmatpush1.msra.mxu0 0.0
  %8957 = vmatprep.subr.mxu0 0.0
  %8958 = vmatpush1.msra.mxu0 0.0
  %8959 = vmatprep.subr.mxu0 0.0
  %8960 = vmatpush1.msra.mxu0 0.0
  %8961 = vmatprep.subr.mxu0 0.0
  %8962 = vmatpush1.msra.mxu0 0.0
  %8963 = vmatprep.subr.mxu0 0.0
  %8964 = vmatpush1.msra.mxu0 0.0
  %8965 = vmatprep.subr.mxu0 0.0
  %8966 = vmatpush1.msra.mxu0 0.0
  %8967 = vmatprep.subr.mxu0 0.0
  %8968 = vmatpush1.msra.mxu0 0.0
  %8969 = vmatprep.subr.mxu0 0.0
  %8970 = vmatpush1.msra.mxu0 0.0
  %8971 = vmatprep.subr.mxu0 0.0
  %8972 = vmatpush1.msra.mxu0 0.0
  %8973 = vmatprep.subr.mxu0 0.0
  %8974 = vmatpush1.msra.mxu0 0.0
  %8975 = vmatprep.subr.mxu0 0.0
  %8976 = vmatpush1.msra.mxu0 0.0
  %8977 = vmatprep.subr.mxu0 0.0
  %8978 = vmatpush1.msra.mxu0 0.0
  %8979 = vmatprep.subr.mxu0 0.0
  %8980 = vmatpush1.msra.mxu0 0.0
  %8981 = vmatprep.subr.mxu0 0.0
  %8982 = vmatpush1.msra.mxu0 0.0
  %8983 = vmatprep.subr.mxu0 0.0
  %8984 = vmatpush1.msra.mxu0 0.0
  %8985 = vmatprep.subr.mxu0 0.0
  %8986 = vmatpush1.msra.mxu0 0.0
  %8987 = vmatprep.subr.mxu0 0.0
  %8988 = vmatpush1.msra.mxu0 0.0
  %8989 = vmatprep.subr.mxu0 0.0
  %8990 = vmatpush1.msra.mxu0 0.0
  %8991 = vmatprep.subr.mxu0 0.0
  %8992 = vmatpush1.msra.mxu0 0.0
  %8993 = vmatprep.subr.mxu0 0.0
  %8994 = vmatpush1.msra.mxu0 0.0
  %8995 = vmatprep.subr.mxu0 0.0
  %8996 = vmatpush1.msra.mxu0 0.0
  %8997 = vmatprep.subr.mxu0 0.0
  %8998 = vmatpush1.msra.mxu0 0.0
  %8999 = vmatprep.subr.mxu0 0.0
  %9000 = vmatpush1.msra.mxu0 0.0
  %9001 = vmatprep.subr.mxu0 0.0
  %9002 = vmatpush1.msra.mxu0 0.0
  %9003 = vmatprep.mubr.f32.mxu0 0.0
  %9004 = vmatmul.mubr.f32.gmra.mrb[0].mxu0 %v8041
  %v9005 = vpop.f32.mrb[0].mxu0
  %v9006 = vadd.f32 %v8621, %v9005
  %v9007 = vpop.f32.mrb[0].mxu0
  %9008 = vmatprep.mubr.f32.mxu0 0.0
  %9009 = vmatmul.mubr.f32.gmra.mrb[0].mxu0 %v8043
  %v9010 = vpop.f32.mrb[0].mxu0
  %v9011 = vadd.f32 %v8626, %v9010
  %v9012 = vpop.f32.mrb[0].mxu0
  %9013 = vmatprep.mubr.f32.mxu0 0.0
  %9014 = vmatmul.mubr.f32.gmra.mrb[0].mxu0 %v8045
  %v9015 = vpop.f32.mrb[0].mxu0
  %v9016 = vadd.f32 %v8631, %v9015
  %v9017 = vpop.f32.mrb[0].mxu0
  %9018 = vmatprep.mubr.f32.mxu0 0.0
  %9019 = vmatmul.mubr.f32.gmra.mrb[0].mxu0 %v8047
  %v9020 = vpop.f32.mrb[0].mxu0
  %v9021 = vadd.f32 %v8636, %v9020
  %v9022 = vpop.f32.mrb[0].mxu0
  %9023 = vmatprep.mubr.f32.mxu0 0.0
  %9024 = vmatmul.mubr.f32.gmra.mrb[0].mxu0 %v8049
  %v9025 = vpop.f32.mrb[0].mxu0
  %v9026 = vadd.f32 %v8641, %v9025
  %v9027 = vpop.f32.mrb[0].mxu0
  %9028 = vmatprep.mubr.f32.mxu0 0.0
  %9029 = vmatmul.mubr.f32.gmra.mrb[0].mxu0 %v8051
  %v9030 = vpop.f32.mrb[0].mxu0
  %v9031 = vadd.f32 %v8646, %v9030
  %v9032 = vpop.f32.mrb[0].mxu0
  %9033 = vmatprep.mubr.f32.mxu0 0.0
  %9034 = vmatmul.mubr.f32.gmra.mrb[0].mxu0 %v8053
  %v9035 = vpop.f32.mrb[0].mxu0
  %v9036 = vadd.f32 %v8651, %v9035
  %v9037 = vpop.f32.mrb[0].mxu0
  %9038 = vmatprep.mubr.f32.mxu0 0.0
  %9039 = vmatmul.mubr.f32.gmra.mrb[0].mxu0 %v8055
  %v9040 = vpop.f32.mrb[0].mxu0
  %v9041 = vadd.f32 %v8656, %v9040
  %v9042 = vpop.f32.mrb[0].mxu0
  %9043 = vmatprep.mubr.f32.mxu0 0.0
  %9044 = vmatmul.mubr.f32.gmra.mrb[0].mxu0 %v8057
  %v9045 = vpop.f32.mrb[0].mxu0
  %v9046 = vadd.f32 %v8661, %v9045
  %v9047 = vpop.f32.mrb[0].mxu0
  %9048 = vmatprep.mubr.f32.mxu0 0.0
  %9049 = vmatmul.mubr.f32.gmra.mrb[0].mxu0 %v8059
  %v9050 = vpop.f32.mrb[0].mxu0
  %v9051 = vadd.f32 %v8666, %v9050
  %v9052 = vpop.f32.mrb[0].mxu0
  %9053 = vmatprep.mubr.f32.mxu0 0.0
  %9054 = vmatmul.mubr.f32.gmra.mrb[0].mxu0 %v8061
  %v9055 = vpop.f32.mrb[0].mxu0
  %v9056 = vadd.f32 %v8671, %v9055
  %v9057 = vpop.f32.mrb[0].mxu0
  %9058 = vmatprep.mubr.f32.mxu0 0.0
  %9059 = vmatmul.mubr.f32.gmra.mrb[0].mxu0 %v8063
  %v9060 = vpop.f32.mrb[0].mxu0
  %v9061 = vadd.f32 %v8676, %v9060
  %v9062 = vpop.f32.mrb[0].mxu0
  %9063 = vmatprep.mubr.f32.mxu0 0.0
  %9064 = vmatmul.mubr.f32.gmra.mrb[0].mxu0 %v8065
  %v9065 = vpop.f32.mrb[0].mxu0
  %v9066 = vadd.f32 %v8681, %v9065
  %v9067 = vpop.f32.mrb[0].mxu0
  %9068 = vmatprep.mubr.f32.mxu0 0.0
  %9069 = vmatmul.mubr.f32.gmra.mrb[0].mxu0 %v8067
  %v9070 = vpop.f32.mrb[0].mxu0
  %v9071 = vadd.f32 %v8686, %v9070
  %v9072 = vpop.f32.mrb[0].mxu0
  %9073 = vmatprep.mubr.f32.mxu0 0.0
  %9074 = vmatmul.mubr.f32.gmra.mrb[0].mxu0 %v8069
  %v9075 = vpop.f32.mrb[0].mxu0
  %v9076 = vadd.f32 %v8691, %v9075
  %v9077 = vpop.f32.mrb[0].mxu0
  %9078 = vmatprep.mubr.f32.mxu0 0.0
  %9079 = vmatmul.mubr.f32.gmra.mrb[0].mxu0 %v8071
  %v9080 = vpop.f32.mrb[0].mxu0
  %v9081 = vadd.f32 %v8696, %v9080
  %v9082 = vpop.f32.mrb[0].mxu0
  %9083 = vmatprep.mubr.f32.mxu0 0.0
  %9084 = vmatmul.mubr.f32.gmra.mrb[0].mxu0 %v8073
  %v9085 = vpop.f32.mrb[0].mxu0
  %v9086 = vadd.f32 %v8701, %v9085
  %v9087 = vpop.f32.mrb[0].mxu0
  %9088 = vmatprep.mubr.f32.mxu0 0.0
  %9089 = vmatmul.mubr.f32.gmra.mrb[0].mxu0 %v8075
  %v9090 = vpop.f32.mrb[0].mxu0
  %v9091 = vadd.f32 %v8706, %v9090
  %v9092 = vpop.f32.mrb[0].mxu0
  %9093 = vmatprep.mubr.f32.mxu0 0.0
  %9094 = vmatmul.mubr.f32.gmra.mrb[0].mxu0 %v8077
  %v9095 = vpop.f32.mrb[0].mxu0
  %v9096 = vadd.f32 %v8711, %v9095
  %v9097 = vpop.f32.mrb[0].mxu0
  %9098 = vmatprep.mubr.f32.mxu0 0.0
  %9099 = vmatmul.mubr.f32.gmra.mrb[0].mxu0 %v8079
  %v9100 = vpop.f32.mrb[0].mxu0
  %v9101 = vadd.f32 %v8716, %v9100
  %v9102 = vpop.f32.mrb[0].mxu0
  %9103 = vmatprep.mubr.f32.mxu0 0.0
  %9104 = vmatmul.mubr.f32.gmra.mrb[0].mxu0 %v8081
  %v9105 = vpop.f32.mrb[0].mxu0
  %v9106 = vadd.f32 %v8721, %v9105
  %v9107 = vpop.f32.mrb[0].mxu0
  %9108 = vmatprep.mubr.f32.mxu0 0.0
  %9109 = vmatmul.mubr.f32.gmra.mrb[0].mxu0 %v8083
  %v9110 = vpop.f32.mrb[0].mxu0
  %v9111 = vadd.f32 %v8726, %v9110
  %v9112 = vpop.f32.mrb[0].mxu0
  %9113 = vmatprep.mubr.f32.mxu0 0.0
  %9114 = vmatmul.mubr.f32.gmra.mrb[0].mxu0 %v8085
  %v9115 = vpop.f32.mrb[0].mxu0
  %v9116 = vadd.f32 %v8731, %v9115
  %v9117 = vpop.f32.mrb[0].mxu0
  %9118 = vmatprep.mubr.f32.mxu0 0.0
  %9119 = vmatmul.mubr.f32.gmra.mrb[0].mxu0 %v8087
  %v9120 = vpop.f32.mrb[0].mxu0
  %v9121 = vadd.f32 %v8736, %v9120
  %v9122 = vpop.f32.mrb[0].mxu0
  %9123 = vmatprep.mubr.f32.mxu0 0.0
  %9124 = vmatmul.mubr.f32.gmra.mrb[0].mxu0 %v8089
  %v9125 = vpop.f32.mrb[0].mxu0
  %v9126 = vadd.f32 %v8741, %v9125
  %v9127 = vpop.f32.mrb[0].mxu0
  %9128 = vmatprep.mubr.f32.mxu0 0.0
  %9129 = vmatmul.mubr.f32.gmra.mrb[0].mxu0 %v8091
  %v9130 = vpop.f32.mrb[0].mxu0
  %v9131 = vadd.f32 %v8746, %v9130
  %v9132 = vpop.f32.mrb[0].mxu0
  %9133 = vmatprep.mubr.f32.mxu0 0.0
  %9134 = vmatmul.mubr.f32.gmra.mrb[0].mxu0 %v8093
  %v9135 = vpop.f32.mrb[0].mxu0
  %v9136 = vadd.f32 %v8751, %v9135
  %v9137 = vpop.f32.mrb[0].mxu0
  %9138 = vmatprep.mubr.f32.mxu0 0.0
  %9139 = vmatmul.mubr.f32.gmra.mrb[0].mxu0 %v8095
  %v9140 = vpop.f32.mrb[0].mxu0
  %v9141 = vadd.f32 %v8756, %v9140
  %v9142 = vpop.f32.mrb[0].mxu0
  %9143 = vmatprep.mubr.f32.mxu0 0.0
  %9144 = vmatmul.mubr.f32.gmra.mrb[0].mxu0 %v8097
  %v9145 = vpop.f32.mrb[0].mxu0
  %v9146 = vadd.f32 %v8761, %v9145
  %v9147 = vpop.f32.mrb[0].mxu0
  %9148 = vmatprep.mubr.f32.mxu0 0.0
  %9149 = vmatmul.mubr.f32.gmra.mrb[0].mxu0 %v8099
  %v9150 = vpop.f32.mrb[0].mxu0
  %v9151 = vadd.f32 %v8766, %v9150
  %v9152 = vpop.f32.mrb[0].mxu0
  %9153 = vmatprep.mubr.f32.mxu0 0.0
  %9154 = vmatmul.mubr.f32.gmra.mrb[0].mxu0 %v8101
  %v9155 = vpop.f32.mrb[0].mxu0
  %v9156 = vadd.f32 %v8771, %v9155
  %v9157 = vpop.f32.mrb[0].mxu0
  %9158 = vmatprep.mubr.f32.mxu0 0.0
  %9159 = vmatmul.mubr.f32.gmra.mrb[0].mxu0 %v8103
  %v9160 = vpop.f32.mrb[0].mxu0
  %v9161 = vadd.f32 %v8776, %v9160
  %v9162 = vpop.f32.mrb[0].mxu0
  %9163 = vmatprep.mubr.f32.mxu0 0.0
  %9164 = vmatmul.mubr.f32.gmra.mrb[0].mxu0 %v8105
  %v9165 = vpop.f32.mrb[0].mxu0
  %v9166 = vadd.f32 %v8781, %v9165
  %v9167 = vpop.f32.mrb[0].mxu0
  %9168 = vmatprep.mubr.f32.mxu0 0.0
  %9169 = vmatmul.mubr.f32.gmra.mrb[0].mxu0 %v8107
  %v9170 = vpop.f32.mrb[0].mxu0
  %v9171 = vadd.f32 %v8786, %v9170
  %v9172 = vpop.f32.mrb[0].mxu0
  %9173 = vmatprep.mubr.f32.mxu0 0.0
  %9174 = vmatmul.mubr.f32.gmra.mrb[0].mxu0 %v8109
  %v9175 = vpop.f32.mrb[0].mxu0
  %v9176 = vadd.f32 %v8791, %v9175
  %v9177 = vpop.f32.mrb[0].mxu0
  %9178 = vmatprep.mubr.f32.mxu0 0.0
  %9179 = vmatmul.mubr.f32.gmra.mrb[0].mxu0 %v8111
  %v9180 = vpop.f32.mrb[0].mxu0
  %v9181 = vadd.f32 %v8796, %v9180
  %v9182 = vpop.f32.mrb[0].mxu0
  %9183 = vmatprep.mubr.f32.mxu0 0.0
  %9184 = vmatmul.mubr.f32.gmra.mrb[0].mxu0 %v8113
  %v9185 = vpop.f32.mrb[0].mxu0
  %v9186 = vadd.f32 %v8801, %v9185
  %v9187 = vpop.f32.mrb[0].mxu0
  %9188 = vmatprep.mubr.f32.mxu0 0.0
  %9189 = vmatmul.mubr.f32.gmra.mrb[0].mxu0 %v8115
  %v9190 = vpop.f32.mrb[0].mxu0
  %v9191 = vadd.f32 %v8806, %v9190
  %v9192 = vpop.f32.mrb[0].mxu0
  %9193 = vmatprep.mubr.f32.mxu0 0.0
  %9194 = vmatmul.mubr.f32.gmra.mrb[0].mxu0 %v8117
  %v9195 = vpop.f32.mrb[0].mxu0
  %v9196 = vadd.f32 %v8811, %v9195
  %v9197 = vpop.f32.mrb[0].mxu0
  %9198 = vmatprep.mubr.f32.mxu0 0.0
  %9199 = vmatmul.mubr.f32.gmra.mrb[0].mxu0 %v8119
  %v9200 = vpop.f32.mrb[0].mxu0
  %v9201 = vadd.f32 %v8816, %v9200
  %v9202 = vpop.f32.mrb[0].mxu0
  %9203 = vmatprep.mubr.f32.mxu0 0.0
  %9204 = vmatmul.mubr.f32.gmra.mrb[0].mxu0 %v8121
  %v9205 = vpop.f32.mrb[0].mxu0
  %v9206 = vadd.f32 %v8821, %v9205
  %v9207 = vpop.f32.mrb[0].mxu0
  %9208 = vmatprep.mubr.f32.mxu0 0.0
  %9209 = vmatmul.mubr.f32.gmra.mrb[0].mxu0 %v8123
  %v9210 = vpop.f32.mrb[0].mxu0
  %v9211 = vadd.f32 %v8826, %v9210
  %v9212 = vpop.f32.mrb[0].mxu0
  %9213 = vmatprep.mubr.f32.mxu0 0.0
  %9214 = vmatmul.mubr.f32.gmra.mrb[0].mxu0 %v8125
  %v9215 = vpop.f32.mrb[0].mxu0
  %v9216 = vadd.f32 %v8831, %v9215
  %v9217 = vpop.f32.mrb[0].mxu0
  %9218 = vmatprep.mubr.f32.mxu0 0.0
  %9219 = vmatmul.mubr.f32.gmra.mrb[0].mxu0 %v8127
  %v9220 = vpop.f32.mrb[0].mxu0
  %v9221 = vadd.f32 %v8836, %v9220
  %v9222 = vpop.f32.mrb[0].mxu0
  %9223 = vmatprep.mubr.f32.mxu0 0.0
  %9224 = vmatmul.mubr.f32.gmra.mrb[0].mxu0 %v8129
  %v9225 = vpop.f32.mrb[0].mxu0
  %v9226 = vadd.f32 %v8841, %v9225
  %v9227 = vpop.f32.mrb[0].mxu0
  %9228 = vmatprep.mubr.f32.mxu0 0.0
  %9229 = vmatmul.mubr.f32.gmra.mrb[0].mxu0 %v8131
  %v9230 = vpop.f32.mrb[0].mxu0
  %v9231 = vadd.f32 %v8846, %v9230
  %v9232 = vpop.f32.mrb[0].mxu0
  %9233 = vmatprep.mubr.f32.mxu0 0.0
  %9234 = vmatmul.mubr.f32.gmra.mrb[0].mxu0 %v8133
  %v9235 = vpop.f32.mrb[0].mxu0
  %v9236 = vadd.f32 %v8851, %v9235
  %v9237 = vpop.f32.mrb[0].mxu0
  %9238 = vmatprep.mubr.f32.mxu0 0.0
  %9239 = vmatmul.mubr.f32.gmra.mrb[0].mxu0 %v8135
  %v9240 = vpop.f32.mrb[0].mxu0
  %v9241 = vadd.f32 %v8856, %v9240
  %v9242 = vpop.f32.mrb[0].mxu0
  %9243 = vmatprep.mubr.f32.mxu0 0.0
  %9244 = vmatmul.mubr.f32.gmra.mrb[0].mxu0 %v8137
  %v9245 = vpop.f32.mrb[0].mxu0
  %v9246 = vadd.f32 %v8861, %v9245
  %v9247 = vpop.f32.mrb[0].mxu0
  %9248 = vmatprep.mubr.f32.mxu0 0.0
  %9249 = vmatmul.mubr.f32.gmra.mrb[0].mxu0 %v8139
  %v9250 = vpop.f32.mrb[0].mxu0
  %v9251 = vadd.f32 %v8866, %v9250
  %v9252 = vpop.f32.mrb[0].mxu0
  %9253 = vmatprep.mubr.f32.mxu0 0.0
  %9254 = vmatmul.mubr.f32.gmra.mrb[0].mxu0 %v8141
  %v9255 = vpop.f32.mrb[0].mxu0
  %v9256 = vadd.f32 %v8871, %v9255
  %v9257 = vpop.f32.mrb[0].mxu0
  %9258 = vmatprep.mubr.f32.mxu0 0.0
  %9259 = vmatmul.mubr.f32.gmra.mrb[0].mxu0 %v8143
  %v9260 = vpop.f32.mrb[0].mxu0
  %v9261 = vadd.f32 %v8876, %v9260
  %v9262 = vpop.f32.mrb[0].mxu0
  %9263 = vmatprep.mubr.f32.mxu0 0.0
  %9264 = vmatmul.mubr.f32.gmra.mrb[0].mxu0 %v8145
  %v9265 = vpop.f32.mrb[0].mxu0
  %v9266 = vadd.f32 %v8881, %v9265
  %v9267 = vpop.f32.mrb[0].mxu0
  %9268 = vmatprep.mubr.f32.mxu0 0.0
  %9269 = vmatmul.mubr.f32.gmra.mrb[0].mxu0 %v8147
  %v9270 = vpop.f32.mrb[0].mxu0
  %v9271 = vadd.f32 %v8886, %v9270
  %v9272 = vpop.f32.mrb[0].mxu0
  %9273 = vmatprep.mubr.f32.mxu0 0.0
  %9274 = vmatmul.mubr.f32.gmra.mrb[0].mxu0 %v8149
  %v9275 = vpop.f32.mrb[0].mxu0
  %v9276 = vadd.f32 %v8891, %v9275
  %v9277 = vpop.f32.mrb[0].mxu0
  %9278 = vmatprep.mubr.f32.mxu0 0.0
  %9279 = vmatmul.mubr.f32.gmra.mrb[0].mxu0 %v8151
  %v9280 = vpop.f32.mrb[0].mxu0
  %v9281 = vadd.f32 %v8896, %v9280
  %v9282 = vpop.f32.mrb[0].mxu0
  %9283 = vmatprep.mubr.f32.mxu0 0.0
  %9284 = vmatmul.mubr.f32.gmra.mrb[0].mxu0 %v8153
  %v9285 = vpop.f32.mrb[0].mxu0
  %v9286 = vadd.f32 %v8901, %v9285
  %v9287 = vpop.f32.mrb[0].mxu0
  %9288 = vmatprep.mubr.f32.mxu0 0.0
  %9289 = vmatmul.mubr.f32.gmra.mrb[0].mxu0 %v8155
  %v9290 = vpop.f32.mrb[0].mxu0
  %v9291 = vadd.f32 %v8906, %v9290
  %v9292 = vpop.f32.mrb[0].mxu0
  %9293 = vmatprep.mubr.f32.mxu0 0.0
  %9294 = vmatmul.mubr.f32.gmra.mrb[0].mxu0 %v8157
  %v9295 = vpop.f32.mrb[0].mxu0
  %v9296 = vadd.f32 %v8911, %v9295
  %v9297 = vpop.f32.mrb[0].mxu0
  %9298 = vmatprep.mubr.f32.mxu0 0.0
  %9299 = vmatmul.mubr.f32.gmra.mrb[0].mxu0 %v8159
  %v9300 = vpop.f32.mrb[0].mxu0
  %v9301 = vadd.f32 %v8916, %v9300
  %v9302 = vpop.f32.mrb[0].mxu0
  %9303 = vmatprep.mubr.f32.mxu0 0.0
  %9304 = vmatmul.mubr.f32.gmra.mrb[0].mxu0 %v8161
  %v9305 = vpop.f32.mrb[0].mxu0
  %v9306 = vadd.f32 %v8921, %v9305
  %v9307 = vpop.f32.mrb[0].mxu0
  %9308 = vmatprep.mubr.f32.mxu0 0.0
  %9309 = vmatmul.mubr.f32.gmra.mrb[0].mxu0 %v8163
  %v9310 = vpop.f32.mrb[0].mxu0
  %v9311 = vadd.f32 %v8926, %v9310
  %v9312 = vpop.f32.mrb[0].mxu0
  %9313 = vmatprep.mubr.f32.mxu0 0.0
  %9314 = vmatmul.mubr.f32.gmra.mrb[0].mxu0 %v8165
  %v9315 = vpop.f32.mrb[0].mxu0
  %v9316 = vadd.f32 %v8931, %v9315
  %v9317 = vpop.f32.mrb[0].mxu0
  %9318 = vmatprep.mubr.f32.mxu0 0.0
  %9319 = vmatmul.mubr.f32.gmra.mrb[0].mxu0 %v8167
  %v9320 = vpop.f32.mrb[0].mxu0
  %v9321 = vadd.f32 %v8936, %v9320
  %v9322 = vpop.f32.mrb[0].mxu0
  %9323 = vdwg.mxu0
  %v9324 = vmax.f32 %v9006, 0.0
  %v9325 = vmax.f32 %v9011, 0.0
  %v9326 = vmax.f32 %v9016, 0.0
  %v9327 = vmax.f32 %v9021, 0.0
  %v9328 = vmax.f32 %v9026, 0.0
  %v9329 = vmax.f32 %v9031, 0.0
  %v9330 = vmax.f32 %v9036, 0.0
  %v9331 = vmax.f32 %v9041, 0.0
  %v9332 = vmax.f32 %v9046, 0.0
  %v9333 = vmax.f32 %v9051, 0.0
  %v9334 = vmax.f32 %v9056, 0.0
  %v9335 = vmax.f32 %v9061, 0.0
  %v9336 = vmax.f32 %v9066, 0.0
  %v9337 = vmax.f32 %v9071, 0.0
  %v9338 = vmax.f32 %v9076, 0.0
  %v9339 = vmax.f32 %v9081, 0.0
  %v9340 = vmax.f32 %v9086, 0.0
  %v9341 = vmax.f32 %v9091, 0.0
  %v9342 = vmax.f32 %v9096, 0.0
  %v9343 = vmax.f32 %v9101, 0.0
  %v9344 = vmax.f32 %v9106, 0.0
  %v9345 = vmax.f32 %v9111, 0.0
  %v9346 = vmax.f32 %v9116, 0.0
  %v9347 = vmax.f32 %v9121, 0.0
  %v9348 = vmax.f32 %v9126, 0.0
  %v9349 = vmax.f32 %v9131, 0.0
  %v9350 = vmax.f32 %v9136, 0.0
  %v9351 = vmax.f32 %v9141, 0.0
  %v9352 = vmax.f32 %v9146, 0.0
  %v9353 = vmax.f32 %v9151, 0.0
  %v9354 = vmax.f32 %v9156, 0.0
  %v9355 = vmax.f32 %v9161, 0.0
  %v9356 = vmax.f32 %v9166, 0.0
  %v9357 = vmax.f32 %v9171, 0.0
  %v9358 = vmax.f32 %v9176, 0.0
  %v9359 = vmax.f32 %v9181, 0.0
  %v9360 = vmax.f32 %v9186, 0.0
  %v9361 = vmax.f32 %v9191, 0.0
  %v9362 = vmax.f32 %v9196, 0.0
  %v9363 = vmax.f32 %v9201, 0.0
  %v9364 = vmax.f32 %v9206, 0.0
  %v9365 = vmax.f32 %v9211, 0.0
  %v9366 = vmax.f32 %v9216, 0.0
  %v9367 = vmax.f32 %v9221, 0.0
  %v9368 = vmax.f32 %v9226, 0.0
  %v9369 = vmax.f32 %v9231, 0.0
  %v9370 = vmax.f32 %v9236, 0.0
  %v9371 = vmax.f32 %v9241, 0.0
  %v9372 = vmax.f32 %v9246, 0.0
  %v9373 = vmax.f32 %v9251, 0.0
  %v9374 = vmax.f32 %v9256, 0.0
  %v9375 = vmax.f32 %v9261, 0.0
  %v9376 = vmax.f32 %v9266, 0.0
  %v9377 = vmax.f32 %v9271, 0.0
  %v9378 = vmax.f32 %v9276, 0.0
  %v9379 = vmax.f32 %v9281, 0.0
  %v9380 = vmax.f32 %v9286, 0.0
  %v9381 = vmax.f32 %v9291, 0.0
  %v9382 = vmax.f32 %v9296, 0.0
  %v9383 = vmax.f32 %v9301, 0.0
  %v9384 = vmax.f32 %v9306, 0.0
  %v9385 = vmax.f32 %v9311, 0.0
  %v9386 = vmax.f32 %v9316, 0.0
  %v9387 = vmax.f32 %v9321, 0.0
  %v9388 = vrot.slane %v9324, 1
  %v9389 = vrot.slane %v9325, 1
  %v9390 = vrot.slane %v9326, 1
  %v9391 = vrot.slane %v9327, 1
  %v9392 = vrot.slane %v9328, 1
  %v9393 = vrot.slane %v9329, 1
  %v9394 = vrot.slane %v9330, 1
  %v9395 = vrot.slane %v9331, 1
  %v9396 = vrot.slane %v9332, 1
  %v9397 = vrot.slane %v9333, 1
  %v9398 = vrot.slane %v9334, 1
  %v9399 = vrot.slane %v9335, 1
  %v9400 = vrot.slane %v9336, 1
  %v9401 = vrot.slane %v9337, 1
  %v9402 = vrot.slane %v9338, 1
  %v9403 = vrot.slane %v9339, 1
  %v9404 = vrot.slane %v9340, 1
  %v9405 = vrot.slane %v9341, 1
  %v9406 = vrot.slane %v9342, 1
  %v9407 = vrot.slane %v9343, 1
  %v9408 = vrot.slane %v9344, 1
  %v9409 = vrot.slane %v9345, 1
  %v9410 = vrot.slane %v9346, 1
  %v9411 = vrot.slane %v9347, 1
  %v9412 = vrot.slane %v9348, 1
  %v9413 = vrot.slane %v9349, 1
  %v9414 = vrot.slane %v9350, 1
  %v9415 = vrot.slane %v9351, 1
  %v9416 = vrot.slane %v9352, 1
  %v9417 = vrot.slane %v9353, 1
  %v9418 = vrot.slane %v9354, 1
  %v9419 = vrot.slane %v9355, 1
  %v9420 = vrot.slane %v9356, 1
  %v9421 = vrot.slane %v9357, 1
  %v9422 = vrot.slane %v9358, 1
  %v9423 = vrot.slane %v9359, 1
  %v9424 = vrot.slane %v9360, 1
  %v9425 = vrot.slane %v9361, 1
  %v9426 = vrot.slane %v9362, 1
  %v9427 = vrot.slane %v9363, 1
  %v9428 = vrot.slane %v9364, 1
  %v9429 = vrot.slane %v9365, 1
  %v9430 = vrot.slane %v9366, 1
  %v9431 = vrot.slane %v9367, 1
  %v9432 = vrot.slane %v9368, 1
  %v9433 = vrot.slane %v9369, 1
  %v9434 = vrot.slane %v9370, 1
  %v9435 = vrot.slane %v9371, 1
  %v9436 = vrot.slane %v9372, 1
  %v9437 = vrot.slane %v9373, 1
  %v9438 = vrot.slane %v9374, 1
  %v9439 = vrot.slane %v9375, 1
  %v9440 = vrot.slane %v9376, 1
  %v9441 = vrot.slane %v9377, 1
  %v9442 = vrot.slane %v9378, 1
  %v9443 = vrot.slane %v9379, 1
  %v9444 = vrot.slane %v9380, 1
  %v9445 = vrot.slane %v9381, 1
  %v9446 = vrot.slane %v9382, 1
  %v9447 = vrot.slane %v9383, 1
  %v9448 = vrot.slane %v9384, 1
  %v9449 = vrot.slane %v9385, 1
  %v9450 = vrot.slane %v9386, 1
  %v9451 = vrot.slane %v9387, 1
  %v9452 = vsel %vm827, %v9450, %v9451
  %v9453 = vsel %vm827, %v9449, %v9450
  %v9454 = vsel %vm827, %v9448, %v9449
  %v9455 = vsel %vm827, %v9447, %v9448
  %v9456 = vsel %vm827, %v9446, %v9447
  %v9457 = vsel %vm827, %v9445, %v9446
  %v9458 = vsel %vm827, %v9444, %v9445
  %v9459 = vsel %vm827, %v9443, %v9444
  %v9460 = vsel %vm827, %v9442, %v9443
  %v9461 = vsel %vm827, %v9441, %v9442
  %v9462 = vsel %vm827, %v9440, %v9441
  %v9463 = vsel %vm827, %v9439, %v9440
  %v9464 = vsel %vm827, %v9438, %v9439
  %v9465 = vsel %vm827, %v9437, %v9438
  %v9466 = vsel %vm827, %v9436, %v9437
  %v9467 = vsel %vm827, %v9435, %v9436
  %v9468 = vsel %vm827, %v9434, %v9435
  %v9469 = vsel %vm827, %v9433, %v9434
  %v9470 = vsel %vm827, %v9432, %v9433
  %v9471 = vsel %vm827, %v9431, %v9432
  %v9472 = vsel %vm827, %v9430, %v9431
  %v9473 = vsel %vm827, %v9429, %v9430
  %v9474 = vsel %vm827, %v9428, %v9429
  %v9475 = vsel %vm827, %v9427, %v9428
  %v9476 = vsel %vm827, %v9426, %v9427
  %v9477 = vsel %vm827, %v9425, %v9426
  %v9478 = vsel %vm827, %v9424, %v9425
  %v9479 = vsel %vm827, %v9423, %v9424
  %v9480 = vsel %vm827, %v9422, %v9423
  %v9481 = vsel %vm827, %v9421, %v9422
  %v9482 = vsel %vm827, %v9420, %v9421
  %v9483 = vsel %vm827, %v9419, %v9420
  %v9484 = vsel %vm827, %v9418, %v9419
  %v9485 = vsel %vm827, %v9417, %v9418
  %v9486 = vsel %vm827, %v9416, %v9417
  %v9487 = vsel %vm827, %v9415, %v9416
  %v9488 = vsel %vm827, %v9414, %v9415
  %v9489 = vsel %vm827, %v9413, %v9414
  %v9490 = vsel %vm827, %v9412, %v9413
  %v9491 = vsel %vm827, %v9411, %v9412
  %v9492 = vsel %vm827, %v9410, %v9411
  %v9493 = vsel %vm827, %v9409, %v9410
  %v9494 = vsel %vm827, %v9408, %v9409
  %v9495 = vsel %vm827, %v9407, %v9408
  %v9496 = vsel %vm827, %v9406, %v9407
  %v9497 = vsel %vm827, %v9405, %v9406
  %v9498 = vsel %vm827, %v9404, %v9405
  %v9499 = vsel %vm827, %v9403, %v9404
  %v9500 = vsel %vm827, %v9402, %v9403
  %v9501 = vsel %vm827, %v9401, %v9402
  %v9502 = vsel %vm827, %v9400, %v9401
  %v9503 = vsel %vm827, %v9399, %v9400
  %v9504 = vsel %vm827, %v9398, %v9399
  %v9505 = vsel %vm827, %v9397, %v9398
  %v9506 = vsel %vm827, %v9396, %v9397
  %v9507 = vsel %vm827, %v9395, %v9396
  %v9508 = vsel %vm827, %v9394, %v9395
  %v9509 = vsel %vm827, %v9393, %v9394
  %v9510 = vsel %vm827, %v9392, %v9393
  %v9511 = vsel %vm827, %v9391, %v9392
  %v9512 = vsel %vm827, %v9390, %v9391
  %v9513 = vsel %vm827, %v9389, %v9390
  %v9514 = vsel %vm827, %v9388, %v9389
  %v9515 = vsel %vm827, %v9451, %v9388
  %v9516 = vrot.slane %v9324, 2
  %v9517 = vrot.slane %v9325, 2
  %v9518 = vrot.slane %v9326, 2
  %v9519 = vrot.slane %v9327, 2
  %v9520 = vrot.slane %v9328, 2
  %v9521 = vrot.slane %v9329, 2
  %v9522 = vrot.slane %v9330, 2
  %v9523 = vrot.slane %v9331, 2
  %v9524 = vrot.slane %v9332, 2
  %v9525 = vrot.slane %v9333, 2
  %v9526 = vrot.slane %v9334, 2
  %v9527 = vrot.slane %v9335, 2
  %v9528 = vrot.slane %v9336, 2
  %v9529 = vrot.slane %v9337, 2
  %v9530 = vrot.slane %v9338, 2
  %v9531 = vrot.slane %v9339, 2
  %v9532 = vrot.slane %v9340, 2
  %v9533 = vrot.slane %v9341, 2
  %v9534 = vrot.slane %v9342, 2
  %v9535 = vrot.slane %v9343, 2
  %v9536 = vrot.slane %v9344, 2
  %v9537 = vrot.slane %v9345, 2
  %v9538 = vrot.slane %v9346, 2
  %v9539 = vrot.slane %v9347, 2
  %v9540 = vrot.slane %v9348, 2
  %v9541 = vrot.slane %v9349, 2
  %v9542 = vrot.slane %v9350, 2
  %v9543 = vrot.slane %v9351, 2
  %v9544 = vrot.slane %v9352, 2
  %v9545 = vrot.slane %v9353, 2
  %v9546 = vrot.slane %v9354, 2
  %v9547 = vrot.slane %v9355, 2
  %v9548 = vrot.slane %v9356, 2
  %v9549 = vrot.slane %v9357, 2
  %v9550 = vrot.slane %v9358, 2
  %v9551 = vrot.slane %v9359, 2
  %v9552 = vrot.slane %v9360, 2
  %v9553 = vrot.slane %v9361, 2
  %v9554 = vrot.slane %v9362, 2
  %v9555 = vrot.slane %v9363, 2
  %v9556 = vrot.slane %v9364, 2
  %v9557 = vrot.slane %v9365, 2
  %v9558 = vrot.slane %v9366, 2
  %v9559 = vrot.slane %v9367, 2
  %v9560 = vrot.slane %v9368, 2
  %v9561 = vrot.slane %v9369, 2
  %v9562 = vrot.slane %v9370, 2
  %v9563 = vrot.slane %v9371, 2
  %v9564 = vrot.slane %v9372, 2
  %v9565 = vrot.slane %v9373, 2
  %v9566 = vrot.slane %v9374, 2
  %v9567 = vrot.slane %v9375, 2
  %v9568 = vrot.slane %v9376, 2
  %v9569 = vrot.slane %v9377, 2
  %v9570 = vrot.slane %v9378, 2
  %v9571 = vrot.slane %v9379, 2
  %v9572 = vrot.slane %v9380, 2
  %v9573 = vrot.slane %v9381, 2
  %v9574 = vrot.slane %v9382, 2
  %v9575 = vrot.slane %v9383, 2
  %v9576 = vrot.slane %v9384, 2
  %v9577 = vrot.slane %v9385, 2
  %v9578 = vrot.slane %v9386, 2
  %v9579 = vrot.slane %v9387, 2
  %v9580 = vsel %vm956, %v9578, %v9579
  %v9581 = vsel %vm956, %v9577, %v9578
  %v9582 = vsel %vm956, %v9576, %v9577
  %v9583 = vsel %vm956, %v9575, %v9576
  %v9584 = vsel %vm956, %v9574, %v9575
  %v9585 = vsel %vm956, %v9573, %v9574
  %v9586 = vsel %vm956, %v9572, %v9573
  %v9587 = vsel %vm956, %v9571, %v9572
  %v9588 = vsel %vm956, %v9570, %v9571
  %v9589 = vsel %vm956, %v9569, %v9570
  %v9590 = vsel %vm956, %v9568, %v9569
  %v9591 = vsel %vm956, %v9567, %v9568
  %v9592 = vsel %vm956, %v9566, %v9567
  %v9593 = vsel %vm956, %v9565, %v9566
  %v9594 = vsel %vm956, %v9564, %v9565
  %v9595 = vsel %vm956, %v9563, %v9564
  %v9596 = vsel %vm956, %v9562, %v9563
  %v9597 = vsel %vm956, %v9561, %v9562
  %v9598 = vsel %vm956, %v9560, %v9561
  %v9599 = vsel %vm956, %v9559, %v9560
  %v9600 = vsel %vm956, %v9558, %v9559
  %v9601 = vsel %vm956, %v9557, %v9558
  %v9602 = vsel %vm956, %v9556, %v9557
  %v9603 = vsel %vm956, %v9555, %v9556
  %v9604 = vsel %vm956, %v9554, %v9555
  %v9605 = vsel %vm956, %v9553, %v9554
  %v9606 = vsel %vm956, %v9552, %v9553
  %v9607 = vsel %vm956, %v9551, %v9552
  %v9608 = vsel %vm956, %v9550, %v9551
  %v9609 = vsel %vm956, %v9549, %v9550
  %v9610 = vsel %vm956, %v9548, %v9549
  %v9611 = vsel %vm956, %v9547, %v9548
  %v9612 = vsel %vm956, %v9546, %v9547
  %v9613 = vsel %vm956, %v9545, %v9546
  %v9614 = vsel %vm956, %v9544, %v9545
  %v9615 = vsel %vm956, %v9543, %v9544
  %v9616 = vsel %vm956, %v9542, %v9543
  %v9617 = vsel %vm956, %v9541, %v9542
  %v9618 = vsel %vm956, %v9540, %v9541
  %v9619 = vsel %vm956, %v9539, %v9540
  %v9620 = vsel %vm956, %v9538, %v9539
  %v9621 = vsel %vm956, %v9537, %v9538
  %v9622 = vsel %vm956, %v9536, %v9537
  %v9623 = vsel %vm956, %v9535, %v9536
  %v9624 = vsel %vm956, %v9534, %v9535
  %v9625 = vsel %vm956, %v9533, %v9534
  %v9626 = vsel %vm956, %v9532, %v9533
  %v9627 = vsel %vm956, %v9531, %v9532
  %v9628 = vsel %vm956, %v9530, %v9531
  %v9629 = vsel %vm956, %v9529, %v9530
  %v9630 = vsel %vm956, %v9528, %v9529
  %v9631 = vsel %vm956, %v9527, %v9528
  %v9632 = vsel %vm956, %v9526, %v9527
  %v9633 = vsel %vm956, %v9525, %v9526
  %v9634 = vsel %vm956, %v9524, %v9525
  %v9635 = vsel %vm956, %v9523, %v9524
  %v9636 = vsel %vm956, %v9522, %v9523
  %v9637 = vsel %vm956, %v9521, %v9522
  %v9638 = vsel %vm956, %v9520, %v9521
  %v9639 = vsel %vm956, %v9519, %v9520
  %v9640 = vsel %vm956, %v9518, %v9519
  %v9641 = vsel %vm956, %v9517, %v9518
  %v9642 = vsel %vm956, %v9516, %v9517
  %v9643 = vsel %vm956, %v9579, %v9516
  %9708 = vrot.lane.b32.xlu0 %v9514, 32
  %v9709 = vpop.permute.xlu0 %9708
  %9710 = vrot.lane.b32.xlu0 %v9513, 32
  %v9711 = vpop.permute.xlu0 %9710
  %9712 = vrot.lane.b32.xlu0 %v9512, 32
  %v9713 = vpop.permute.xlu0 %9712
  %9714 = vrot.lane.b32.xlu0 %v9511, 32
  %v9715 = vpop.permute.xlu0 %9714
  %9716 = vrot.lane.b32.xlu0 %v9510, 32
  %v9717 = vpop.permute.xlu0 %9716
  %9718 = vrot.lane.b32.xlu0 %v9509, 32
  %v9719 = vpop.permute.xlu0 %9718
  %9720 = vrot.lane.b32.xlu0 %v9508, 32
  %v9721 = vpop.permute.xlu0 %9720
  %9722 = vrot.lane.b32.xlu0 %v9507, 32
  %v9723 = vpop.permute.xlu0 %9722
  %9724 = vrot.lane.b32.xlu0 %v9506, 32
  %v9725 = vpop.permute.xlu0 %9724
  %9726 = vrot.lane.b32.xlu0 %v9505, 32
  %v9727 = vpop.permute.xlu0 %9726
  %9728 = vrot.lane.b32.xlu0 %v9504, 32
  %v9729 = vpop.permute.xlu0 %9728
  %9730 = vrot.lane.b32.xlu0 %v9503, 32
  %v9731 = vpop.permute.xlu0 %9730
  %9732 = vrot.lane.b32.xlu0 %v9502, 32
  %v9733 = vpop.permute.xlu0 %9732
  %9734 = vrot.lane.b32.xlu0 %v9501, 32
  %v9735 = vpop.permute.xlu0 %9734
  %9736 = vrot.lane.b32.xlu0 %v9500, 32
  %v9737 = vpop.permute.xlu0 %9736
  %9738 = vrot.lane.b32.xlu0 %v9499, 32
  %v9739 = vpop.permute.xlu0 %9738
  %9740 = vrot.lane.b32.xlu0 %v9498, 32
  %v9741 = vpop.permute.xlu0 %9740
  %9742 = vrot.lane.b32.xlu0 %v9497, 32
  %v9743 = vpop.permute.xlu0 %9742
  %9744 = vrot.lane.b32.xlu0 %v9496, 32
  %v9745 = vpop.permute.xlu0 %9744
  %9746 = vrot.lane.b32.xlu0 %v9495, 32
  %v9747 = vpop.permute.xlu0 %9746
  %9748 = vrot.lane.b32.xlu0 %v9494, 32
  %v9749 = vpop.permute.xlu0 %9748
  %9750 = vrot.lane.b32.xlu0 %v9493, 32
  %v9751 = vpop.permute.xlu0 %9750
  %9752 = vrot.lane.b32.xlu0 %v9492, 32
  %v9753 = vpop.permute.xlu0 %9752
  %9754 = vrot.lane.b32.xlu0 %v9491, 32
  %v9755 = vpop.permute.xlu0 %9754
  %9756 = vrot.lane.b32.xlu0 %v9490, 32
  %v9757 = vpop.permute.xlu0 %9756
  %9758 = vrot.lane.b32.xlu0 %v9489, 32
  %v9759 = vpop.permute.xlu0 %9758
  %9760 = vrot.lane.b32.xlu0 %v9488, 32
  %v9761 = vpop.permute.xlu0 %9760
  %9762 = vrot.lane.b32.xlu0 %v9487, 32
  %v9763 = vpop.permute.xlu0 %9762
  %9764 = vrot.lane.b32.xlu0 %v9486, 32
  %v9765 = vpop.permute.xlu0 %9764
  %9766 = vrot.lane.b32.xlu0 %v9485, 32
  %v9767 = vpop.permute.xlu0 %9766
  %9768 = vrot.lane.b32.xlu0 %v9484, 32
  %v9769 = vpop.permute.xlu0 %9768
  %9770 = vrot.lane.b32.xlu0 %v9483, 32
  %v9771 = vpop.permute.xlu0 %9770
  %9772 = vrot.lane.b32.xlu0 %v9482, 32
  %v9773 = vpop.permute.xlu0 %9772
  %9774 = vrot.lane.b32.xlu0 %v9481, 32
  %v9775 = vpop.permute.xlu0 %9774
  %9776 = vrot.lane.b32.xlu0 %v9480, 32
  %v9777 = vpop.permute.xlu0 %9776
  %9778 = vrot.lane.b32.xlu0 %v9479, 32
  %v9779 = vpop.permute.xlu0 %9778
  %9780 = vrot.lane.b32.xlu0 %v9478, 32
  %v9781 = vpop.permute.xlu0 %9780
  %9782 = vrot.lane.b32.xlu0 %v9477, 32
  %v9783 = vpop.permute.xlu0 %9782
  %9784 = vrot.lane.b32.xlu0 %v9476, 32
  %v9785 = vpop.permute.xlu0 %9784
  %9786 = vrot.lane.b32.xlu0 %v9475, 32
  %v9787 = vpop.permute.xlu0 %9786
  %9788 = vrot.lane.b32.xlu0 %v9474, 32
  %v9789 = vpop.permute.xlu0 %9788
  %9790 = vrot.lane.b32.xlu0 %v9473, 32
  %v9791 = vpop.permute.xlu0 %9790
  %9792 = vrot.lane.b32.xlu0 %v9472, 32
  %v9793 = vpop.permute.xlu0 %9792
  %9794 = vrot.lane.b32.xlu0 %v9471, 32
  %v9795 = vpop.permute.xlu0 %9794
  %9796 = vrot.lane.b32.xlu0 %v9470, 32
  %v9797 = vpop.permute.xlu0 %9796
  %9798 = vrot.lane.b32.xlu0 %v9469, 32
  %v9799 = vpop.permute.xlu0 %9798
  %9800 = vrot.lane.b32.xlu0 %v9468, 32
  %v9801 = vpop.permute.xlu0 %9800
  %9802 = vrot.lane.b32.xlu0 %v9467, 32
  %v9803 = vpop.permute.xlu0 %9802
  %9804 = vrot.lane.b32.xlu0 %v9466, 32
  %v9805 = vpop.permute.xlu0 %9804
  %9806 = vrot.lane.b32.xlu0 %v9465, 32
  %v9807 = vpop.permute.xlu0 %9806
  %9808 = vrot.lane.b32.xlu0 %v9464, 32
  %v9809 = vpop.permute.xlu0 %9808
  %9810 = vrot.lane.b32.xlu0 %v9463, 32
  %v9811 = vpop.permute.xlu0 %9810
  %9812 = vrot.lane.b32.xlu0 %v9462, 32
  %v9813 = vpop.permute.xlu0 %9812
  %9814 = vrot.lane.b32.xlu0 %v9461, 32
  %v9815 = vpop.permute.xlu0 %9814
  %9816 = vrot.lane.b32.xlu0 %v9460, 32
  %v9817 = vpop.permute.xlu0 %9816
  %9818 = vrot.lane.b32.xlu0 %v9459, 32
  %v9819 = vpop.permute.xlu0 %9818
  %9820 = vrot.lane.b32.xlu0 %v9458, 32
  %v9821 = vpop.permute.xlu0 %9820
  %9822 = vrot.lane.b32.xlu0 %v9457, 32
  %v9823 = vpop.permute.xlu0 %9822
  %9824 = vrot.lane.b32.xlu0 %v9456, 32
  %v9825 = vpop.permute.xlu0 %9824
  %9826 = vrot.lane.b32.xlu0 %v9455, 32
  %v9827 = vpop.permute.xlu0 %9826
  %9828 = vrot.lane.b32.xlu0 %v9454, 32
  %v9829 = vpop.permute.xlu0 %9828
  %9830 = vrot.lane.b32.xlu0 %v9453, 32
  %v9831 = vpop.permute.xlu0 %9830
  %9832 = vrot.lane.b32.xlu0 %v9452, 32
  %v9833 = vpop.permute.xlu0 %9832
  %9834 = vrot.lane.b32.xlu0 %v9515, 32
  %v9835 = vpop.permute.xlu0 %9834
  %9964 = vrot.lane.b32.xlu0 %v9642, 64
  %v9965 = vpop.permute.xlu0 %9964
  %9966 = vrot.lane.b32.xlu0 %v9641, 64
  %v9967 = vpop.permute.xlu0 %9966
  %9968 = vrot.lane.b32.xlu0 %v9640, 64
  %v9969 = vpop.permute.xlu0 %9968
  %9970 = vrot.lane.b32.xlu0 %v9639, 64
  %v9971 = vpop.permute.xlu0 %9970
  %9972 = vrot.lane.b32.xlu0 %v9638, 64
  %v9973 = vpop.permute.xlu0 %9972
  %9974 = vrot.lane.b32.xlu0 %v9637, 64
  %v9975 = vpop.permute.xlu0 %9974
  %9976 = vrot.lane.b32.xlu0 %v9636, 64
  %v9977 = vpop.permute.xlu0 %9976
  %9978 = vrot.lane.b32.xlu0 %v9635, 64
  %v9979 = vpop.permute.xlu0 %9978
  %9980 = vrot.lane.b32.xlu0 %v9634, 64
  %v9981 = vpop.permute.xlu0 %9980
  %9982 = vrot.lane.b32.xlu0 %v9633, 64
  %v9983 = vpop.permute.xlu0 %9982
  %9984 = vrot.lane.b32.xlu0 %v9632, 64
  %v9985 = vpop.permute.xlu0 %9984
  %9986 = vrot.lane.b32.xlu0 %v9631, 64
  %v9987 = vpop.permute.xlu0 %9986
  %9988 = vrot.lane.b32.xlu0 %v9630, 64
  %v9989 = vpop.permute.xlu0 %9988
  %9990 = vrot.lane.b32.xlu0 %v9629, 64
  %v9991 = vpop.permute.xlu0 %9990
  %9992 = vrot.lane.b32.xlu0 %v9628, 64
  %v9993 = vpop.permute.xlu0 %9992
  %9994 = vrot.lane.b32.xlu0 %v9627, 64
  %v9995 = vpop.permute.xlu0 %9994
  %9996 = vrot.lane.b32.xlu0 %v9626, 64
  %v9997 = vpop.permute.xlu0 %9996
  %9998 = vrot.lane.b32.xlu0 %v9625, 64
  %v9999 = vpop.permute.xlu0 %9998
  %10000 = vrot.lane.b32.xlu0 %v9624, 64
  %v10001 = vpop.permute.xlu0 %10000
  %10002 = vrot.lane.b32.xlu0 %v9623, 64
  %v10003 = vpop.permute.xlu0 %10002
  %10004 = vrot.lane.b32.xlu0 %v9622, 64
  %v10005 = vpop.permute.xlu0 %10004
  %10006 = vrot.lane.b32.xlu0 %v9621, 64
  %v10007 = vpop.permute.xlu0 %10006
  %10008 = vrot.lane.b32.xlu0 %v9620, 64
  %v10009 = vpop.permute.xlu0 %10008
  %10010 = vrot.lane.b32.xlu0 %v9619, 64
  %v10011 = vpop.permute.xlu0 %10010
  %10012 = vrot.lane.b32.xlu0 %v9618, 64
  %v10013 = vpop.permute.xlu0 %10012
  %10014 = vrot.lane.b32.xlu0 %v9617, 64
  %v10015 = vpop.permute.xlu0 %10014
  %10016 = vrot.lane.b32.xlu0 %v9616, 64
  %v10017 = vpop.permute.xlu0 %10016
  %10018 = vrot.lane.b32.xlu0 %v9615, 64
  %v10019 = vpop.permute.xlu0 %10018
  %10020 = vrot.lane.b32.xlu0 %v9614, 64
  %v10021 = vpop.permute.xlu0 %10020
  %10022 = vrot.lane.b32.xlu0 %v9613, 64
  %v10023 = vpop.permute.xlu0 %10022
  %10024 = vrot.lane.b32.xlu0 %v9612, 64
  %v10025 = vpop.permute.xlu0 %10024
  %10026 = vrot.lane.b32.xlu0 %v9611, 64
  %v10027 = vpop.permute.xlu0 %10026
  %10028 = vrot.lane.b32.xlu0 %v9610, 64
  %v10029 = vpop.permute.xlu0 %10028
  %10030 = vrot.lane.b32.xlu0 %v9609, 64
  %v10031 = vpop.permute.xlu0 %10030
  %10032 = vrot.lane.b32.xlu0 %v9608, 64
  %v10033 = vpop.permute.xlu0 %10032
  %10034 = vrot.lane.b32.xlu0 %v9607, 64
  %v10035 = vpop.permute.xlu0 %10034
  %10036 = vrot.lane.b32.xlu0 %v9606, 64
  %v10037 = vpop.permute.xlu0 %10036
  %10038 = vrot.lane.b32.xlu0 %v9605, 64
  %v10039 = vpop.permute.xlu0 %10038
  %10040 = vrot.lane.b32.xlu0 %v9604, 64
  %v10041 = vpop.permute.xlu0 %10040
  %10042 = vrot.lane.b32.xlu0 %v9603, 64
  %v10043 = vpop.permute.xlu0 %10042
  %10044 = vrot.lane.b32.xlu0 %v9602, 64
  %v10045 = vpop.permute.xlu0 %10044
  %10046 = vrot.lane.b32.xlu0 %v9601, 64
  %v10047 = vpop.permute.xlu0 %10046
  %10048 = vrot.lane.b32.xlu0 %v9600, 64
  %v10049 = vpop.permute.xlu0 %10048
  %10050 = vrot.lane.b32.xlu0 %v9599, 64
  %v10051 = vpop.permute.xlu0 %10050
  %10052 = vrot.lane.b32.xlu0 %v9598, 64
  %v10053 = vpop.permute.xlu0 %10052
  %10054 = vrot.lane.b32.xlu0 %v9597, 64
  %v10055 = vpop.permute.xlu0 %10054
  %10056 = vrot.lane.b32.xlu0 %v9596, 64
  %v10057 = vpop.permute.xlu0 %10056
  %10058 = vrot.lane.b32.xlu0 %v9595, 64
  %v10059 = vpop.permute.xlu0 %10058
  %10060 = vrot.lane.b32.xlu0 %v9594, 64
  %v10061 = vpop.permute.xlu0 %10060
  %10062 = vrot.lane.b32.xlu0 %v9593, 64
  %v10063 = vpop.permute.xlu0 %10062
  %10064 = vrot.lane.b32.xlu0 %v9592, 64
  %v10065 = vpop.permute.xlu0 %10064
  %10066 = vrot.lane.b32.xlu0 %v9591, 64
  %v10067 = vpop.permute.xlu0 %10066
  %10068 = vrot.lane.b32.xlu0 %v9590, 64
  %v10069 = vpop.permute.xlu0 %10068
  %10070 = vrot.lane.b32.xlu0 %v9589, 64
  %v10071 = vpop.permute.xlu0 %10070
  %10072 = vrot.lane.b32.xlu0 %v9588, 64
  %v10073 = vpop.permute.xlu0 %10072
  %10074 = vrot.lane.b32.xlu0 %v9587, 64
  %v10075 = vpop.permute.xlu0 %10074
  %10076 = vrot.lane.b32.xlu0 %v9586, 64
  %v10077 = vpop.permute.xlu0 %10076
  %10078 = vrot.lane.b32.xlu0 %v9585, 64
  %v10079 = vpop.permute.xlu0 %10078
  %10080 = vrot.lane.b32.xlu0 %v9584, 64
  %v10081 = vpop.permute.xlu0 %10080
  %10082 = vrot.lane.b32.xlu0 %v9583, 64
  %v10083 = vpop.permute.xlu0 %10082
  %10084 = vrot.lane.b32.xlu0 %v9582, 64
  %v10085 = vpop.permute.xlu0 %10084
  %10086 = vrot.lane.b32.xlu0 %v9581, 64
  %v10087 = vpop.permute.xlu0 %10086
  %10088 = vrot.lane.b32.xlu0 %v9580, 64
  %v10089 = vpop.permute.xlu0 %10088
  %10090 = vrot.lane.b32.xlu0 %v9643, 64
  %v10091 = vpop.permute.xlu0 %10090
  %10220 = vrot.lane.b32.xlu0 %v9326, 96
  %v10221 = vpop.permute.xlu0 %10220
  %10222 = vrot.lane.b32.xlu0 %v9327, 96
  %v10223 = vpop.permute.xlu0 %10222
  %10224 = vrot.lane.b32.xlu0 %v9328, 96
  %v10225 = vpop.permute.xlu0 %10224
  %10226 = vrot.lane.b32.xlu0 %v9329, 96
  %v10227 = vpop.permute.xlu0 %10226
  %10228 = vrot.lane.b32.xlu0 %v9330, 96
  %v10229 = vpop.permute.xlu0 %10228
  %10230 = vrot.lane.b32.xlu0 %v9331, 96
  %v10231 = vpop.permute.xlu0 %10230
  %10232 = vrot.lane.b32.xlu0 %v9332, 96
  %v10233 = vpop.permute.xlu0 %10232
  %10234 = vrot.lane.b32.xlu0 %v9333, 96
  %v10235 = vpop.permute.xlu0 %10234
  %10236 = vrot.lane.b32.xlu0 %v9334, 96
  %v10237 = vpop.permute.xlu0 %10236
  %10238 = vrot.lane.b32.xlu0 %v9335, 96
  %v10239 = vpop.permute.xlu0 %10238
  %10240 = vrot.lane.b32.xlu0 %v9336, 96
  %v10241 = vpop.permute.xlu0 %10240
  %10242 = vrot.lane.b32.xlu0 %v9337, 96
  %v10243 = vpop.permute.xlu0 %10242
  %10244 = vrot.lane.b32.xlu0 %v9338, 96
  %v10245 = vpop.permute.xlu0 %10244
  %10246 = vrot.lane.b32.xlu0 %v9339, 96
  %v10247 = vpop.permute.xlu0 %10246
  %10248 = vrot.lane.b32.xlu0 %v9340, 96
  %v10249 = vpop.permute.xlu0 %10248
  %10250 = vrot.lane.b32.xlu0 %v9341, 96
  %v10251 = vpop.permute.xlu0 %10250
  %10252 = vrot.lane.b32.xlu0 %v9342, 96
  %v10253 = vpop.permute.xlu0 %10252
  %10254 = vrot.lane.b32.xlu0 %v9343, 96
  %v10255 = vpop.permute.xlu0 %10254
  %10256 = vrot.lane.b32.xlu0 %v9344, 96
  %v10257 = vpop.permute.xlu0 %10256
  %10258 = vrot.lane.b32.xlu0 %v9345, 96
  %v10259 = vpop.permute.xlu0 %10258
  %10260 = vrot.lane.b32.xlu0 %v9346, 96
  %v10261 = vpop.permute.xlu0 %10260
  %10262 = vrot.lane.b32.xlu0 %v9347, 96
  %v10263 = vpop.permute.xlu0 %10262
  %10264 = vrot.lane.b32.xlu0 %v9348, 96
  %v10265 = vpop.permute.xlu0 %10264
  %10266 = vrot.lane.b32.xlu0 %v9349, 96
  %v10267 = vpop.permute.xlu0 %10266
  %10268 = vrot.lane.b32.xlu0 %v9350, 96
  %v10269 = vpop.permute.xlu0 %10268
  %10270 = vrot.lane.b32.xlu0 %v9351, 96
  %v10271 = vpop.permute.xlu0 %10270
  %10272 = vrot.lane.b32.xlu0 %v9352, 96
  %v10273 = vpop.permute.xlu0 %10272
  %10274 = vrot.lane.b32.xlu0 %v9353, 96
  %v10275 = vpop.permute.xlu0 %10274
  %10276 = vrot.lane.b32.xlu0 %v9354, 96
  %v10277 = vpop.permute.xlu0 %10276
  %10278 = vrot.lane.b32.xlu0 %v9355, 96
  %v10279 = vpop.permute.xlu0 %10278
  %10280 = vrot.lane.b32.xlu0 %v9356, 96
  %v10281 = vpop.permute.xlu0 %10280
  %10282 = vrot.lane.b32.xlu0 %v9357, 96
  %v10283 = vpop.permute.xlu0 %10282
  %10284 = vrot.lane.b32.xlu0 %v9358, 96
  %v10285 = vpop.permute.xlu0 %10284
  %10286 = vrot.lane.b32.xlu0 %v9359, 96
  %v10287 = vpop.permute.xlu0 %10286
  %10288 = vrot.lane.b32.xlu0 %v9360, 96
  %v10289 = vpop.permute.xlu0 %10288
  %10290 = vrot.lane.b32.xlu0 %v9361, 96
  %v10291 = vpop.permute.xlu0 %10290
  %10292 = vrot.lane.b32.xlu0 %v9362, 96
  %v10293 = vpop.permute.xlu0 %10292
  %10294 = vrot.lane.b32.xlu0 %v9363, 96
  %v10295 = vpop.permute.xlu0 %10294
  %10296 = vrot.lane.b32.xlu0 %v9364, 96
  %v10297 = vpop.permute.xlu0 %10296
  %10298 = vrot.lane.b32.xlu0 %v9365, 96
  %v10299 = vpop.permute.xlu0 %10298
  %10300 = vrot.lane.b32.xlu0 %v9366, 96
  %v10301 = vpop.permute.xlu0 %10300
  %10302 = vrot.lane.b32.xlu0 %v9367, 96
  %v10303 = vpop.permute.xlu0 %10302
  %10304 = vrot.lane.b32.xlu0 %v9368, 96
  %v10305 = vpop.permute.xlu0 %10304
  %10306 = vrot.lane.b32.xlu0 %v9369, 96
  %v10307 = vpop.permute.xlu0 %10306
  %10308 = vrot.lane.b32.xlu0 %v9370, 96
  %v10309 = vpop.permute.xlu0 %10308
  %10310 = vrot.lane.b32.xlu0 %v9371, 96
  %v10311 = vpop.permute.xlu0 %10310
  %10312 = vrot.lane.b32.xlu0 %v9372, 96
  %v10313 = vpop.permute.xlu0 %10312
  %10314 = vrot.lane.b32.xlu0 %v9373, 96
  %v10315 = vpop.permute.xlu0 %10314
  %10316 = vrot.lane.b32.xlu0 %v9374, 96
  %v10317 = vpop.permute.xlu0 %10316
  %10318 = vrot.lane.b32.xlu0 %v9375, 96
  %v10319 = vpop.permute.xlu0 %10318
  %10320 = vrot.lane.b32.xlu0 %v9376, 96
  %v10321 = vpop.permute.xlu0 %10320
  %10322 = vrot.lane.b32.xlu0 %v9377, 96
  %v10323 = vpop.permute.xlu0 %10322
  %10324 = vrot.lane.b32.xlu0 %v9378, 96
  %v10325 = vpop.permute.xlu0 %10324
  %10326 = vrot.lane.b32.xlu0 %v9379, 96
  %v10327 = vpop.permute.xlu0 %10326
  %10328 = vrot.lane.b32.xlu0 %v9380, 96
  %v10329 = vpop.permute.xlu0 %10328
  %10330 = vrot.lane.b32.xlu0 %v9381, 96
  %v10331 = vpop.permute.xlu0 %10330
  %10332 = vrot.lane.b32.xlu0 %v9382, 96
  %v10333 = vpop.permute.xlu0 %10332
  %10334 = vrot.lane.b32.xlu0 %v9383, 96
  %v10335 = vpop.permute.xlu0 %10334
  %10336 = vrot.lane.b32.xlu0 %v9384, 96
  %v10337 = vpop.permute.xlu0 %10336
  %10338 = vrot.lane.b32.xlu0 %v9385, 96
  %v10339 = vpop.permute.xlu0 %10338
  %10340 = vrot.lane.b32.xlu0 %v9386, 96
  %v10341 = vpop.permute.xlu0 %10340
  %10342 = vrot.lane.b32.xlu0 %v9387, 96
  %v10343 = vpop.permute.xlu0 %10342
  %10344 = vrot.lane.b32.xlu0 %v9324, 96
  %v10345 = vpop.permute.xlu0 %10344
  %10346 = vrot.lane.b32.xlu0 %v9325, 96
  %v10347 = vpop.permute.xlu0 %10346
  %10412 = vrot.lane.b32.xlu0 %v9640, 32
  %v10413 = vpop.permute.xlu0 %10412
  %10414 = vrot.lane.b32.xlu0 %v9639, 32
  %v10415 = vpop.permute.xlu0 %10414
  %10416 = vrot.lane.b32.xlu0 %v9638, 32
  %v10417 = vpop.permute.xlu0 %10416
  %10418 = vrot.lane.b32.xlu0 %v9637, 32
  %v10419 = vpop.permute.xlu0 %10418
  %10420 = vrot.lane.b32.xlu0 %v9636, 32
  %v10421 = vpop.permute.xlu0 %10420
  %10422 = vrot.lane.b32.xlu0 %v9635, 32
  %v10423 = vpop.permute.xlu0 %10422
  %10424 = vrot.lane.b32.xlu0 %v9634, 32
  %v10425 = vpop.permute.xlu0 %10424
  %10426 = vrot.lane.b32.xlu0 %v9633, 32
  %v10427 = vpop.permute.xlu0 %10426
  %10428 = vrot.lane.b32.xlu0 %v9632, 32
  %v10429 = vpop.permute.xlu0 %10428
  %10430 = vrot.lane.b32.xlu0 %v9631, 32
  %v10431 = vpop.permute.xlu0 %10430
  %10432 = vrot.lane.b32.xlu0 %v9630, 32
  %v10433 = vpop.permute.xlu0 %10432
  %10434 = vrot.lane.b32.xlu0 %v9629, 32
  %v10435 = vpop.permute.xlu0 %10434
  %10436 = vrot.lane.b32.xlu0 %v9628, 32
  %v10437 = vpop.permute.xlu0 %10436
  %10438 = vrot.lane.b32.xlu0 %v9627, 32
  %v10439 = vpop.permute.xlu0 %10438
  %10440 = vrot.lane.b32.xlu0 %v9626, 32
  %v10441 = vpop.permute.xlu0 %10440
  %10442 = vrot.lane.b32.xlu0 %v9625, 32
  %v10443 = vpop.permute.xlu0 %10442
  %10444 = vrot.lane.b32.xlu0 %v9624, 32
  %v10445 = vpop.permute.xlu0 %10444
  %10446 = vrot.lane.b32.xlu0 %v9623, 32
  %v10447 = vpop.permute.xlu0 %10446
  %10448 = vrot.lane.b32.xlu0 %v9622, 32
  %v10449 = vpop.permute.xlu0 %10448
  %10450 = vrot.lane.b32.xlu0 %v9621, 32
  %v10451 = vpop.permute.xlu0 %10450
  %10452 = vrot.lane.b32.xlu0 %v9620, 32
  %v10453 = vpop.permute.xlu0 %10452
  %10454 = vrot.lane.b32.xlu0 %v9619, 32
  %v10455 = vpop.permute.xlu0 %10454
  %10456 = vrot.lane.b32.xlu0 %v9618, 32
  %v10457 = vpop.permute.xlu0 %10456
  %10458 = vrot.lane.b32.xlu0 %v9617, 32
  %v10459 = vpop.permute.xlu0 %10458
  %10460 = vrot.lane.b32.xlu0 %v9616, 32
  %v10461 = vpop.permute.xlu0 %10460
  %10462 = vrot.lane.b32.xlu0 %v9615, 32
  %v10463 = vpop.permute.xlu0 %10462
  %10464 = vrot.lane.b32.xlu0 %v9614, 32
  %v10465 = vpop.permute.xlu0 %10464
  %10466 = vrot.lane.b32.xlu0 %v9613, 32
  %v10467 = vpop.permute.xlu0 %10466
  %10468 = vrot.lane.b32.xlu0 %v9612, 32
  %v10469 = vpop.permute.xlu0 %10468
  %10470 = vrot.lane.b32.xlu0 %v9611, 32
  %v10471 = vpop.permute.xlu0 %10470
  %10472 = vrot.lane.b32.xlu0 %v9610, 32
  %v10473 = vpop.permute.xlu0 %10472
  %10474 = vrot.lane.b32.xlu0 %v9609, 32
  %v10475 = vpop.permute.xlu0 %10474
  %10476 = vrot.lane.b32.xlu0 %v9608, 32
  %v10477 = vpop.permute.xlu0 %10476
  %10478 = vrot.lane.b32.xlu0 %v9607, 32
  %v10479 = vpop.permute.xlu0 %10478
  %10480 = vrot.lane.b32.xlu0 %v9606, 32
  %v10481 = vpop.permute.xlu0 %10480
  %10482 = vrot.lane.b32.xlu0 %v9605, 32
  %v10483 = vpop.permute.xlu0 %10482
  %10484 = vrot.lane.b32.xlu0 %v9604, 32
  %v10485 = vpop.permute.xlu0 %10484
  %10486 = vrot.lane.b32.xlu0 %v9603, 32
  %v10487 = vpop.permute.xlu0 %10486
  %10488 = vrot.lane.b32.xlu0 %v9602, 32
  %v10489 = vpop.permute.xlu0 %10488
  %10490 = vrot.lane.b32.xlu0 %v9601, 32
  %v10491 = vpop.permute.xlu0 %10490
  %10492 = vrot.lane.b32.xlu0 %v9600, 32
  %v10493 = vpop.permute.xlu0 %10492
  %10494 = vrot.lane.b32.xlu0 %v9599, 32
  %v10495 = vpop.permute.xlu0 %10494
  %10496 = vrot.lane.b32.xlu0 %v9598, 32
  %v10497 = vpop.permute.xlu0 %10496
  %10498 = vrot.lane.b32.xlu0 %v9597, 32
  %v10499 = vpop.permute.xlu0 %10498
  %10500 = vrot.lane.b32.xlu0 %v9596, 32
  %v10501 = vpop.permute.xlu0 %10500
  %10502 = vrot.lane.b32.xlu0 %v9595, 32
  %v10503 = vpop.permute.xlu0 %10502
  %10504 = vrot.lane.b32.xlu0 %v9594, 32
  %v10505 = vpop.permute.xlu0 %10504
  %10506 = vrot.lane.b32.xlu0 %v9593, 32
  %v10507 = vpop.permute.xlu0 %10506
  %10508 = vrot.lane.b32.xlu0 %v9592, 32
  %v10509 = vpop.permute.xlu0 %10508
  %10510 = vrot.lane.b32.xlu0 %v9591, 32
  %v10511 = vpop.permute.xlu0 %10510
  %10512 = vrot.lane.b32.xlu0 %v9590, 32
  %v10513 = vpop.permute.xlu0 %10512
  %10514 = vrot.lane.b32.xlu0 %v9589, 32
  %v10515 = vpop.permute.xlu0 %10514
  %10516 = vrot.lane.b32.xlu0 %v9588, 32
  %v10517 = vpop.permute.xlu0 %10516
  %10518 = vrot.lane.b32.xlu0 %v9587, 32
  %v10519 = vpop.permute.xlu0 %10518
  %10520 = vrot.lane.b32.xlu0 %v9586, 32
  %v10521 = vpop.permute.xlu0 %10520
  %10522 = vrot.lane.b32.xlu0 %v9585, 32
  %v10523 = vpop.permute.xlu0 %10522
  %10524 = vrot.lane.b32.xlu0 %v9584, 32
  %v10525 = vpop.permute.xlu0 %10524
  %10526 = vrot.lane.b32.xlu0 %v9583, 32
  %v10527 = vpop.permute.xlu0 %10526
  %10528 = vrot.lane.b32.xlu0 %v9582, 32
  %v10529 = vpop.permute.xlu0 %10528
  %10530 = vrot.lane.b32.xlu0 %v9581, 32
  %v10531 = vpop.permute.xlu0 %10530
  %10532 = vrot.lane.b32.xlu0 %v9580, 32
  %v10533 = vpop.permute.xlu0 %10532
  %10534 = vrot.lane.b32.xlu0 %v9643, 32
  %v10535 = vpop.permute.xlu0 %10534
  %10536 = vrot.lane.b32.xlu0 %v9642, 32
  %v10537 = vpop.permute.xlu0 %10536
  %10538 = vrot.lane.b32.xlu0 %v9641, 32
  %v10539 = vpop.permute.xlu0 %10538
  %10604 = vrot.lane.b32.xlu0 %v9328, 64
  %v10605 = vpop.permute.xlu0 %10604
  %10606 = vrot.lane.b32.xlu0 %v9329, 64
  %v10607 = vpop.permute.xlu0 %10606
  %10608 = vrot.lane.b32.xlu0 %v9330, 64
  %v10609 = vpop.permute.xlu0 %10608
  %10610 = vrot.lane.b32.xlu0 %v9331, 64
  %v10611 = vpop.permute.xlu0 %10610
  %10612 = vrot.lane.b32.xlu0 %v9332, 64
  %v10613 = vpop.permute.xlu0 %10612
  %10614 = vrot.lane.b32.xlu0 %v9333, 64
  %v10615 = vpop.permute.xlu0 %10614
  %10616 = vrot.lane.b32.xlu0 %v9334, 64
  %v10617 = vpop.permute.xlu0 %10616
  %10618 = vrot.lane.b32.xlu0 %v9335, 64
  %v10619 = vpop.permute.xlu0 %10618
  %10620 = vrot.lane.b32.xlu0 %v9336, 64
  %v10621 = vpop.permute.xlu0 %10620
  %10622 = vrot.lane.b32.xlu0 %v9337, 64
  %v10623 = vpop.permute.xlu0 %10622
  %10624 = vrot.lane.b32.xlu0 %v9338, 64
  %v10625 = vpop.permute.xlu0 %10624
  %10626 = vrot.lane.b32.xlu0 %v9339, 64
  %v10627 = vpop.permute.xlu0 %10626
  %10628 = vrot.lane.b32.xlu0 %v9340, 64
  %v10629 = vpop.permute.xlu0 %10628
  %10630 = vrot.lane.b32.xlu0 %v9341, 64
  %v10631 = vpop.permute.xlu0 %10630
  %10632 = vrot.lane.b32.xlu0 %v9342, 64
  %v10633 = vpop.permute.xlu0 %10632
  %10634 = vrot.lane.b32.xlu0 %v9343, 64
  %v10635 = vpop.permute.xlu0 %10634
  %10636 = vrot.lane.b32.xlu0 %v9344, 64
  %v10637 = vpop.permute.xlu0 %10636
  %10638 = vrot.lane.b32.xlu0 %v9345, 64
  %v10639 = vpop.permute.xlu0 %10638
  %10640 = vrot.lane.b32.xlu0 %v9346, 64
  %v10641 = vpop.permute.xlu0 %10640
  %10642 = vrot.lane.b32.xlu0 %v9347, 64
  %v10643 = vpop.permute.xlu0 %10642
  %10644 = vrot.lane.b32.xlu0 %v9348, 64
  %v10645 = vpop.permute.xlu0 %10644
  %10646 = vrot.lane.b32.xlu0 %v9349, 64
  %v10647 = vpop.permute.xlu0 %10646
  %10648 = vrot.lane.b32.xlu0 %v9350, 64
  %v10649 = vpop.permute.xlu0 %10648
  %10650 = vrot.lane.b32.xlu0 %v9351, 64
  %v10651 = vpop.permute.xlu0 %10650
  %10652 = vrot.lane.b32.xlu0 %v9352, 64
  %v10653 = vpop.permute.xlu0 %10652
  %10654 = vrot.lane.b32.xlu0 %v9353, 64
  %v10655 = vpop.permute.xlu0 %10654
  %10656 = vrot.lane.b32.xlu0 %v9354, 64
  %v10657 = vpop.permute.xlu0 %10656
  %10658 = vrot.lane.b32.xlu0 %v9355, 64
  %v10659 = vpop.permute.xlu0 %10658
  %10660 = vrot.lane.b32.xlu0 %v9356, 64
  %v10661 = vpop.permute.xlu0 %10660
  %10662 = vrot.lane.b32.xlu0 %v9357, 64
  %v10663 = vpop.permute.xlu0 %10662
  %10664 = vrot.lane.b32.xlu0 %v9358, 64
  %v10665 = vpop.permute.xlu0 %10664
  %10666 = vrot.lane.b32.xlu0 %v9359, 64
  %v10667 = vpop.permute.xlu0 %10666
  %10668 = vrot.lane.b32.xlu0 %v9360, 64
  %v10669 = vpop.permute.xlu0 %10668
  %10670 = vrot.lane.b32.xlu0 %v9361, 64
  %v10671 = vpop.permute.xlu0 %10670
  %10672 = vrot.lane.b32.xlu0 %v9362, 64
  %v10673 = vpop.permute.xlu0 %10672
  %10674 = vrot.lane.b32.xlu0 %v9363, 64
  %v10675 = vpop.permute.xlu0 %10674
  %10676 = vrot.lane.b32.xlu0 %v9364, 64
  %v10677 = vpop.permute.xlu0 %10676
  %10678 = vrot.lane.b32.xlu0 %v9365, 64
  %v10679 = vpop.permute.xlu0 %10678
  %10680 = vrot.lane.b32.xlu0 %v9366, 64
  %v10681 = vpop.permute.xlu0 %10680
  %10682 = vrot.lane.b32.xlu0 %v9367, 64
  %v10683 = vpop.permute.xlu0 %10682
  %10684 = vrot.lane.b32.xlu0 %v9368, 64
  %v10685 = vpop.permute.xlu0 %10684
  %10686 = vrot.lane.b32.xlu0 %v9369, 64
  %v10687 = vpop.permute.xlu0 %10686
  %10688 = vrot.lane.b32.xlu0 %v9370, 64
  %v10689 = vpop.permute.xlu0 %10688
  %10690 = vrot.lane.b32.xlu0 %v9371, 64
  %v10691 = vpop.permute.xlu0 %10690
  %10692 = vrot.lane.b32.xlu0 %v9372, 64
  %v10693 = vpop.permute.xlu0 %10692
  %10694 = vrot.lane.b32.xlu0 %v9373, 64
  %v10695 = vpop.permute.xlu0 %10694
  %10696 = vrot.lane.b32.xlu0 %v9374, 64
  %v10697 = vpop.permute.xlu0 %10696
  %10698 = vrot.lane.b32.xlu0 %v9375, 64
  %v10699 = vpop.permute.xlu0 %10698
  %10700 = vrot.lane.b32.xlu0 %v9376, 64
  %v10701 = vpop.permute.xlu0 %10700
  %10702 = vrot.lane.b32.xlu0 %v9377, 64
  %v10703 = vpop.permute.xlu0 %10702
  %10704 = vrot.lane.b32.xlu0 %v9378, 64
  %v10705 = vpop.permute.xlu0 %10704
  %10706 = vrot.lane.b32.xlu0 %v9379, 64
  %v10707 = vpop.permute.xlu0 %10706
  %10708 = vrot.lane.b32.xlu0 %v9380, 64
  %v10709 = vpop.permute.xlu0 %10708
  %10710 = vrot.lane.b32.xlu0 %v9381, 64
  %v10711 = vpop.permute.xlu0 %10710
  %10712 = vrot.lane.b32.xlu0 %v9382, 64
  %v10713 = vpop.permute.xlu0 %10712
  %10714 = vrot.lane.b32.xlu0 %v9383, 64
  %v10715 = vpop.permute.xlu0 %10714
  %10716 = vrot.lane.b32.xlu0 %v9384, 64
  %v10717 = vpop.permute.xlu0 %10716
  %10718 = vrot.lane.b32.xlu0 %v9385, 64
  %v10719 = vpop.permute.xlu0 %10718
  %10720 = vrot.lane.b32.xlu0 %v9386, 64
  %v10721 = vpop.permute.xlu0 %10720
  %10722 = vrot.lane.b32.xlu0 %v9387, 64
  %v10723 = vpop.permute.xlu0 %10722
  %10724 = vrot.lane.b32.xlu0 %v9324, 64
  %v10725 = vpop.permute.xlu0 %10724
  %10726 = vrot.lane.b32.xlu0 %v9325, 64
  %v10727 = vpop.permute.xlu0 %10726
  %10728 = vrot.lane.b32.xlu0 %v9326, 64
  %v10729 = vpop.permute.xlu0 %10728
  %10730 = vrot.lane.b32.xlu0 %v9327, 64
  %v10731 = vpop.permute.xlu0 %10730
  %10796 = vrot.lane.b32.xlu0 %v9510, 96
  %v10797 = vpop.permute.xlu0 %10796
  %10798 = vrot.lane.b32.xlu0 %v9509, 96
  %v10799 = vpop.permute.xlu0 %10798
  %10800 = vrot.lane.b32.xlu0 %v9508, 96
  %v10801 = vpop.permute.xlu0 %10800
  %10802 = vrot.lane.b32.xlu0 %v9507, 96
  %v10803 = vpop.permute.xlu0 %10802
  %10804 = vrot.lane.b32.xlu0 %v9506, 96
  %v10805 = vpop.permute.xlu0 %10804
  %10806 = vrot.lane.b32.xlu0 %v9505, 96
  %v10807 = vpop.permute.xlu0 %10806
  %10808 = vrot.lane.b32.xlu0 %v9504, 96
  %v10809 = vpop.permute.xlu0 %10808
  %10810 = vrot.lane.b32.xlu0 %v9503, 96
  %v10811 = vpop.permute.xlu0 %10810
  %10812 = vrot.lane.b32.xlu0 %v9502, 96
  %v10813 = vpop.permute.xlu0 %10812
  %10814 = vrot.lane.b32.xlu0 %v9501, 96
  %v10815 = vpop.permute.xlu0 %10814
  %10816 = vrot.lane.b32.xlu0 %v9500, 96
  %v10817 = vpop.permute.xlu0 %10816
  %10818 = vrot.lane.b32.xlu0 %v9499, 96
  %v10819 = vpop.permute.xlu0 %10818
  %10820 = vrot.lane.b32.xlu0 %v9498, 96
  %v10821 = vpop.permute.xlu0 %10820
  %10822 = vrot.lane.b32.xlu0 %v9497, 96
  %v10823 = vpop.permute.xlu0 %10822
  %10824 = vrot.lane.b32.xlu0 %v9496, 96
  %v10825 = vpop.permute.xlu0 %10824
  %10826 = vrot.lane.b32.xlu0 %v9495, 96
  %v10827 = vpop.permute.xlu0 %10826
  %10828 = vrot.lane.b32.xlu0 %v9494, 96
  %v10829 = vpop.permute.xlu0 %10828
  %10830 = vrot.lane.b32.xlu0 %v9493, 96
  %v10831 = vpop.permute.xlu0 %10830
  %10832 = vrot.lane.b32.xlu0 %v9492, 96
  %v10833 = vpop.permute.xlu0 %10832
  %10834 = vrot.lane.b32.xlu0 %v9491, 96
  %v10835 = vpop.permute.xlu0 %10834
  %10836 = vrot.lane.b32.xlu0 %v9490, 96
  %v10837 = vpop.permute.xlu0 %10836
  %10838 = vrot.lane.b32.xlu0 %v9489, 96
  %v10839 = vpop.permute.xlu0 %10838
  %10840 = vrot.lane.b32.xlu0 %v9488, 96
  %v10841 = vpop.permute.xlu0 %10840
  %10842 = vrot.lane.b32.xlu0 %v9487, 96
  %v10843 = vpop.permute.xlu0 %10842
  %10844 = vrot.lane.b32.xlu0 %v9486, 96
  %v10845 = vpop.permute.xlu0 %10844
  %10846 = vrot.lane.b32.xlu0 %v9485, 96
  %v10847 = vpop.permute.xlu0 %10846
  %10848 = vrot.lane.b32.xlu0 %v9484, 96
  %v10849 = vpop.permute.xlu0 %10848
  %10850 = vrot.lane.b32.xlu0 %v9483, 96
  %v10851 = vpop.permute.xlu0 %10850
  %10852 = vrot.lane.b32.xlu0 %v9482, 96
  %v10853 = vpop.permute.xlu0 %10852
  %10854 = vrot.lane.b32.xlu0 %v9481, 96
  %v10855 = vpop.permute.xlu0 %10854
  %10856 = vrot.lane.b32.xlu0 %v9480, 96
  %v10857 = vpop.permute.xlu0 %10856
  %10858 = vrot.lane.b32.xlu0 %v9479, 96
  %v10859 = vpop.permute.xlu0 %10858
  %10860 = vrot.lane.b32.xlu0 %v9478, 96
  %v10861 = vpop.permute.xlu0 %10860
  %10862 = vrot.lane.b32.xlu0 %v9477, 96
  %v10863 = vpop.permute.xlu0 %10862
  %10864 = vrot.lane.b32.xlu0 %v9476, 96
  %v10865 = vpop.permute.xlu0 %10864
  %10866 = vrot.lane.b32.xlu0 %v9475, 96
  %v10867 = vpop.permute.xlu0 %10866
  %10868 = vrot.lane.b32.xlu0 %v9474, 96
  %v10869 = vpop.permute.xlu0 %10868
  %10870 = vrot.lane.b32.xlu0 %v9473, 96
  %v10871 = vpop.permute.xlu0 %10870
  %10872 = vrot.lane.b32.xlu0 %v9472, 96
  %v10873 = vpop.permute.xlu0 %10872
  %10874 = vrot.lane.b32.xlu0 %v9471, 96
  %v10875 = vpop.permute.xlu0 %10874
  %10876 = vrot.lane.b32.xlu0 %v9470, 96
  %v10877 = vpop.permute.xlu0 %10876
  %10878 = vrot.lane.b32.xlu0 %v9469, 96
  %v10879 = vpop.permute.xlu0 %10878
  %10880 = vrot.lane.b32.xlu0 %v9468, 96
  %v10881 = vpop.permute.xlu0 %10880
  %10882 = vrot.lane.b32.xlu0 %v9467, 96
  %v10883 = vpop.permute.xlu0 %10882
  %10884 = vrot.lane.b32.xlu0 %v9466, 96
  %v10885 = vpop.permute.xlu0 %10884
  %10886 = vrot.lane.b32.xlu0 %v9465, 96
  %v10887 = vpop.permute.xlu0 %10886
  %10888 = vrot.lane.b32.xlu0 %v9464, 96
  %v10889 = vpop.permute.xlu0 %10888
  %10890 = vrot.lane.b32.xlu0 %v9463, 96
  %v10891 = vpop.permute.xlu0 %10890
  %10892 = vrot.lane.b32.xlu0 %v9462, 96
  %v10893 = vpop.permute.xlu0 %10892
  %10894 = vrot.lane.b32.xlu0 %v9461, 96
  %v10895 = vpop.permute.xlu0 %10894
  %10896 = vrot.lane.b32.xlu0 %v9460, 96
  %v10897 = vpop.permute.xlu0 %10896
  %10898 = vrot.lane.b32.xlu0 %v9459, 96
  %v10899 = vpop.permute.xlu0 %10898
  %10900 = vrot.lane.b32.xlu0 %v9458, 96
  %v10901 = vpop.permute.xlu0 %10900
  %10902 = vrot.lane.b32.xlu0 %v9457, 96
  %v10903 = vpop.permute.xlu0 %10902
  %10904 = vrot.lane.b32.xlu0 %v9456, 96
  %v10905 = vpop.permute.xlu0 %10904
  %10906 = vrot.lane.b32.xlu0 %v9455, 96
  %v10907 = vpop.permute.xlu0 %10906
  %10908 = vrot.lane.b32.xlu0 %v9454, 96
  %v10909 = vpop.permute.xlu0 %10908
  %10910 = vrot.lane.b32.xlu0 %v9453, 96
  %v10911 = vpop.permute.xlu0 %10910
  %10912 = vrot.lane.b32.xlu0 %v9452, 96
  %v10913 = vpop.permute.xlu0 %10912
  %10914 = vrot.lane.b32.xlu0 %v9515, 96
  %v10915 = vpop.permute.xlu0 %10914
  %10916 = vrot.lane.b32.xlu0 %v9514, 96
  %v10917 = vpop.permute.xlu0 %10916
  %10918 = vrot.lane.b32.xlu0 %v9513, 96
  %v10919 = vpop.permute.xlu0 %10918
  %10920 = vrot.lane.b32.xlu0 %v9512, 96
  %v10921 = vpop.permute.xlu0 %10920
  %10922 = vrot.lane.b32.xlu0 %v9511, 96
  %v10923 = vpop.permute.xlu0 %10922
  %v10988 = vsel %vm2365, %v9324, %v9709
  %v10989 = vsel %vm2365, %v9325, %v9711
  %v10990 = vsel %vm2365, %v9326, %v9713
  %v10991 = vsel %vm2365, %v9327, %v9715
  %v10992 = vsel %vm2365, %v9328, %v9717
  %v10993 = vsel %vm2365, %v9329, %v9719
  %v10994 = vsel %vm2365, %v9330, %v9721
  %v10995 = vsel %vm2365, %v9331, %v9723
  %v10996 = vsel %vm2365, %v9332, %v9725
  %v10997 = vsel %vm2365, %v9333, %v9727
  %v10998 = vsel %vm2365, %v9334, %v9729
  %v10999 = vsel %vm2365, %v9335, %v9731
  %v11000 = vsel %vm2365, %v9336, %v9733
  %v11001 = vsel %vm2365, %v9337, %v9735
  %v11002 = vsel %vm2365, %v9338, %v9737
  %v11003 = vsel %vm2365, %v9339, %v9739
  %v11004 = vsel %vm2365, %v9340, %v9741
  %v11005 = vsel %vm2365, %v9341, %v9743
  %v11006 = vsel %vm2365, %v9342, %v9745
  %v11007 = vsel %vm2365, %v9343, %v9747
  %v11008 = vsel %vm2365, %v9344, %v9749
  %v11009 = vsel %vm2365, %v9345, %v9751
  %v11010 = vsel %vm2365, %v9346, %v9753
  %v11011 = vsel %vm2365, %v9347, %v9755
  %v11012 = vsel %vm2365, %v9348, %v9757
  %v11013 = vsel %vm2365, %v9349, %v9759
  %v11014 = vsel %vm2365, %v9350, %v9761
  %v11015 = vsel %vm2365, %v9351, %v9763
  %v11016 = vsel %vm2365, %v9352, %v9765
  %v11017 = vsel %vm2365, %v9353, %v9767
  %v11018 = vsel %vm2365, %v9354, %v9769
  %v11019 = vsel %vm2365, %v9355, %v9771
  %v11020 = vsel %vm2365, %v9356, %v9773
  %v11021 = vsel %vm2365, %v9357, %v9775
  %v11022 = vsel %vm2365, %v9358, %v9777
  %v11023 = vsel %vm2365, %v9359, %v9779
  %v11024 = vsel %vm2365, %v9360, %v9781
  %v11025 = vsel %vm2365, %v9361, %v9783
  %v11026 = vsel %vm2365, %v9362, %v9785
  %v11027 = vsel %vm2365, %v9363, %v9787
  %v11028 = vsel %vm2365, %v9364, %v9789
  %v11029 = vsel %vm2365, %v9365, %v9791
  %v11030 = vsel %vm2365, %v9366, %v9793
  %v11031 = vsel %vm2365, %v9367, %v9795
  %v11032 = vsel %vm2365, %v9368, %v9797
  %v11033 = vsel %vm2365, %v9369, %v9799
  %v11034 = vsel %vm2365, %v9370, %v9801
  %v11035 = vsel %vm2365, %v9371, %v9803
  %v11036 = vsel %vm2365, %v9372, %v9805
  %v11037 = vsel %vm2365, %v9373, %v9807
  %v11038 = vsel %vm2365, %v9374, %v9809
  %v11039 = vsel %vm2365, %v9375, %v9811
  %v11040 = vsel %vm2365, %v9376, %v9813
  %v11041 = vsel %vm2365, %v9377, %v9815
  %v11042 = vsel %vm2365, %v9378, %v9817
  %v11043 = vsel %vm2365, %v9379, %v9819
  %v11044 = vsel %vm2365, %v9380, %v9821
  %v11045 = vsel %vm2365, %v9381, %v9823
  %v11046 = vsel %vm2365, %v9382, %v9825
  %v11047 = vsel %vm2365, %v9383, %v9827
  %v11048 = vsel %vm2365, %v9384, %v9829
  %v11049 = vsel %vm2365, %v9385, %v9831
  %v11050 = vsel %vm2365, %v9386, %v9833
  %v11051 = vsel %vm2365, %v9387, %v9835
  %v11052 = vsel %vm2430, %v10988, %v9965
  %v11053 = vsel %vm2430, %v10989, %v9967
  %v11054 = vsel %vm2430, %v10990, %v9969
  %v11055 = vsel %vm2430, %v10991, %v9971
  %v11056 = vsel %vm2430, %v10992, %v9973
  %v11057 = vsel %vm2430, %v10993, %v9975
  %v11058 = vsel %vm2430, %v10994, %v9977
  %v11059 = vsel %vm2430, %v10995, %v9979
  %v11060 = vsel %vm2430, %v10996, %v9981
  %v11061 = vsel %vm2430, %v10997, %v9983
  %v11062 = vsel %vm2430, %v10998, %v9985
  %v11063 = vsel %vm2430, %v10999, %v9987
  %v11064 = vsel %vm2430, %v11000, %v9989
  %v11065 = vsel %vm2430, %v11001, %v9991
  %v11066 = vsel %vm2430, %v11002, %v9993
  %v11067 = vsel %vm2430, %v11003, %v9995
  %v11068 = vsel %vm2430, %v11004, %v9997
  %v11069 = vsel %vm2430, %v11005, %v9999
  %v11070 = vsel %vm2430, %v11006, %v10001
  %v11071 = vsel %vm2430, %v11007, %v10003
  %v11072 = vsel %vm2430, %v11008, %v10005
  %v11073 = vsel %vm2430, %v11009, %v10007
  %v11074 = vsel %vm2430, %v11010, %v10009
  %v11075 = vsel %vm2430, %v11011, %v10011
  %v11076 = vsel %vm2430, %v11012, %v10013
  %v11077 = vsel %vm2430, %v11013, %v10015
  %v11078 = vsel %vm2430, %v11014, %v10017
  %v11079 = vsel %vm2430, %v11015, %v10019
  %v11080 = vsel %vm2430, %v11016, %v10021
  %v11081 = vsel %vm2430, %v11017, %v10023
  %v11082 = vsel %vm2430, %v11018, %v10025
  %v11083 = vsel %vm2430, %v11019, %v10027
  %v11084 = vsel %vm2430, %v11020, %v10029
  %v11085 = vsel %vm2430, %v11021, %v10031
  %v11086 = vsel %vm2430, %v11022, %v10033
  %v11087 = vsel %vm2430, %v11023, %v10035
  %v11088 = vsel %vm2430, %v11024, %v10037
  %v11089 = vsel %vm2430, %v11025, %v10039
  %v11090 = vsel %vm2430, %v11026, %v10041
  %v11091 = vsel %vm2430, %v11027, %v10043
  %v11092 = vsel %vm2430, %v11028, %v10045
  %v11093 = vsel %vm2430, %v11029, %v10047
  %v11094 = vsel %vm2430, %v11030, %v10049
  %v11095 = vsel %vm2430, %v11031, %v10051
  %v11096 = vsel %vm2430, %v11032, %v10053
  %v11097 = vsel %vm2430, %v11033, %v10055
  %v11098 = vsel %vm2430, %v11034, %v10057
  %v11099 = vsel %vm2430, %v11035, %v10059
  %v11100 = vsel %vm2430, %v11036, %v10061
  %v11101 = vsel %vm2430, %v11037, %v10063
  %v11102 = vsel %vm2430, %v11038, %v10065
  %v11103 = vsel %vm2430, %v11039, %v10067
  %v11104 = vsel %vm2430, %v11040, %v10069
  %v11105 = vsel %vm2430, %v11041, %v10071
  %v11106 = vsel %vm2430, %v11042, %v10073
  %v11107 = vsel %vm2430, %v11043, %v10075
  %v11108 = vsel %vm2430, %v11044, %v10077
  %v11109 = vsel %vm2430, %v11045, %v10079
  %v11110 = vsel %vm2430, %v11046, %v10081
  %v11111 = vsel %vm2430, %v11047, %v10083
  %v11112 = vsel %vm2430, %v11048, %v10085
  %v11113 = vsel %vm2430, %v11049, %v10087
  %v11114 = vsel %vm2430, %v11050, %v10089
  %v11115 = vsel %vm2430, %v11051, %v10091
  %v11116 = vsel %vm2495, %v11052, %v10221
  %v11117 = vsel %vm2495, %v11053, %v10223
  %v11118 = vsel %vm2495, %v11054, %v10225
  %v11119 = vsel %vm2495, %v11055, %v10227
  %v11120 = vsel %vm2495, %v11056, %v10229
  %v11121 = vsel %vm2495, %v11057, %v10231
  %v11122 = vsel %vm2495, %v11058, %v10233
  %v11123 = vsel %vm2495, %v11059, %v10235
  %v11124 = vsel %vm2495, %v11060, %v10237
  %v11125 = vsel %vm2495, %v11061, %v10239
  %v11126 = vsel %vm2495, %v11062, %v10241
  %v11127 = vsel %vm2495, %v11063, %v10243
  %v11128 = vsel %vm2495, %v11064, %v10245
  %v11129 = vsel %vm2495, %v11065, %v10247
  %v11130 = vsel %vm2495, %v11066, %v10249
  %v11131 = vsel %vm2495, %v11067, %v10251
  %v11132 = vsel %vm2495, %v11068, %v10253
  %v11133 = vsel %vm2495, %v11069, %v10255
  %v11134 = vsel %vm2495, %v11070, %v10257
  %v11135 = vsel %vm2495, %v11071, %v10259
  %v11136 = vsel %vm2495, %v11072, %v10261
  %v11137 = vsel %vm2495, %v11073, %v10263
  %v11138 = vsel %vm2495, %v11074, %v10265
  %v11139 = vsel %vm2495, %v11075, %v10267
  %v11140 = vsel %vm2495, %v11076, %v10269
  %v11141 = vsel %vm2495, %v11077, %v10271
  %v11142 = vsel %vm2495, %v11078, %v10273
  %v11143 = vsel %vm2495, %v11079, %v10275
  %v11144 = vsel %vm2495, %v11080, %v10277
  %v11145 = vsel %vm2495, %v11081, %v10279
  %v11146 = vsel %vm2495, %v11082, %v10281
  %v11147 = vsel %vm2495, %v11083, %v10283
  %v11148 = vsel %vm2495, %v11084, %v10285
  %v11149 = vsel %vm2495, %v11085, %v10287
  %v11150 = vsel %vm2495, %v11086, %v10289
  %v11151 = vsel %vm2495, %v11087, %v10291
  %v11152 = vsel %vm2495, %v11088, %v10293
  %v11153 = vsel %vm2495, %v11089, %v10295
  %v11154 = vsel %vm2495, %v11090, %v10297
  %v11155 = vsel %vm2495, %v11091, %v10299
  %v11156 = vsel %vm2495, %v11092, %v10301
  %v11157 = vsel %vm2495, %v11093, %v10303
  %v11158 = vsel %vm2495, %v11094, %v10305
  %v11159 = vsel %vm2495, %v11095, %v10307
  %v11160 = vsel %vm2495, %v11096, %v10309
  %v11161 = vsel %vm2495, %v11097, %v10311
  %v11162 = vsel %vm2495, %v11098, %v10313
  %v11163 = vsel %vm2495, %v11099, %v10315
  %v11164 = vsel %vm2495, %v11100, %v10317
  %v11165 = vsel %vm2495, %v11101, %v10319
  %v11166 = vsel %vm2495, %v11102, %v10321
  %v11167 = vsel %vm2495, %v11103, %v10323
  %v11168 = vsel %vm2495, %v11104, %v10325
  %v11169 = vsel %vm2495, %v11105, %v10327
  %v11170 = vsel %vm2495, %v11106, %v10329
  %v11171 = vsel %vm2495, %v11107, %v10331
  %v11172 = vsel %vm2495, %v11108, %v10333
  %v11173 = vsel %vm2495, %v11109, %v10335
  %v11174 = vsel %vm2495, %v11110, %v10337
  %v11175 = vsel %vm2495, %v11111, %v10339
  %v11176 = vsel %vm2495, %v11112, %v10341
  %v11177 = vsel %vm2495, %v11113, %v10343
  %v11178 = vsel %vm2495, %v11114, %v10345
  %v11179 = vsel %vm2495, %v11115, %v10347
  %v11180 = vsel %vm2365, %v9512, %v10413
  %v11181 = vsel %vm2365, %v9511, %v10415
  %v11182 = vsel %vm2365, %v9510, %v10417
  %v11183 = vsel %vm2365, %v9509, %v10419
  %v11184 = vsel %vm2365, %v9508, %v10421
  %v11185 = vsel %vm2365, %v9507, %v10423
  %v11186 = vsel %vm2365, %v9506, %v10425
  %v11187 = vsel %vm2365, %v9505, %v10427
  %v11188 = vsel %vm2365, %v9504, %v10429
  %v11189 = vsel %vm2365, %v9503, %v10431
  %v11190 = vsel %vm2365, %v9502, %v10433
  %v11191 = vsel %vm2365, %v9501, %v10435
  %v11192 = vsel %vm2365, %v9500, %v10437
  %v11193 = vsel %vm2365, %v9499, %v10439
  %v11194 = vsel %vm2365, %v9498, %v10441
  %v11195 = vsel %vm2365, %v9497, %v10443
  %v11196 = vsel %vm2365, %v9496, %v10445
  %v11197 = vsel %vm2365, %v9495, %v10447
  %v11198 = vsel %vm2365, %v9494, %v10449
  %v11199 = vsel %vm2365, %v9493, %v10451
  %v11200 = vsel %vm2365, %v9492, %v10453
  %v11201 = vsel %vm2365, %v9491, %v10455
  %v11202 = vsel %vm2365, %v9490, %v10457
  %v11203 = vsel %vm2365, %v9489, %v10459
  %v11204 = vsel %vm2365, %v9488, %v10461
  %v11205 = vsel %vm2365, %v9487, %v10463
  %v11206 = vsel %vm2365, %v9486, %v10465
  %v11207 = vsel %vm2365, %v9485, %v10467
  %v11208 = vsel %vm2365, %v9484, %v10469
  %v11209 = vsel %vm2365, %v9483, %v10471
  %v11210 = vsel %vm2365, %v9482, %v10473
  %v11211 = vsel %vm2365, %v9481, %v10475
  %v11212 = vsel %vm2365, %v9480, %v10477
  %v11213 = vsel %vm2365, %v9479, %v10479
  %v11214 = vsel %vm2365, %v9478, %v10481
  %v11215 = vsel %vm2365, %v9477, %v10483
  %v11216 = vsel %vm2365, %v9476, %v10485
  %v11217 = vsel %vm2365, %v9475, %v10487
  %v11218 = vsel %vm2365, %v9474, %v10489
  %v11219 = vsel %vm2365, %v9473, %v10491
  %v11220 = vsel %vm2365, %v9472, %v10493
  %v11221 = vsel %vm2365, %v9471, %v10495
  %v11222 = vsel %vm2365, %v9470, %v10497
  %v11223 = vsel %vm2365, %v9469, %v10499
  %v11224 = vsel %vm2365, %v9468, %v10501
  %v11225 = vsel %vm2365, %v9467, %v10503
  %v11226 = vsel %vm2365, %v9466, %v10505
  %v11227 = vsel %vm2365, %v9465, %v10507
  %v11228 = vsel %vm2365, %v9464, %v10509
  %v11229 = vsel %vm2365, %v9463, %v10511
  %v11230 = vsel %vm2365, %v9462, %v10513
  %v11231 = vsel %vm2365, %v9461, %v10515
  %v11232 = vsel %vm2365, %v9460, %v10517
  %v11233 = vsel %vm2365, %v9459, %v10519
  %v11234 = vsel %vm2365, %v9458, %v10521
  %v11235 = vsel %vm2365, %v9457, %v10523
  %v11236 = vsel %vm2365, %v9456, %v10525
  %v11237 = vsel %vm2365, %v9455, %v10527
  %v11238 = vsel %vm2365, %v9454, %v10529
  %v11239 = vsel %vm2365, %v9453, %v10531
  %v11240 = vsel %vm2365, %v9452, %v10533
  %v11241 = vsel %vm2365, %v9515, %v10535
  %v11242 = vsel %vm2365, %v9514, %v10537
  %v11243 = vsel %vm2365, %v9513, %v10539
  %v11244 = vsel %vm2430, %v11180, %v10605
  %v11245 = vsel %vm2430, %v11181, %v10607
  %v11246 = vsel %vm2430, %v11182, %v10609
  %v11247 = vsel %vm2430, %v11183, %v10611
  %v11248 = vsel %vm2430, %v11184, %v10613
  %v11249 = vsel %vm2430, %v11185, %v10615
  %v11250 = vsel %vm2430, %v11186, %v10617
  %v11251 = vsel %vm2430, %v11187, %v10619
  %v11252 = vsel %vm2430, %v11188, %v10621
  %v11253 = vsel %vm2430, %v11189, %v10623
  %v11254 = vsel %vm2430, %v11190, %v10625
  %v11255 = vsel %vm2430, %v11191, %v10627
  %v11256 = vsel %vm2430, %v11192, %v10629
  %v11257 = vsel %vm2430, %v11193, %v10631
  %v11258 = vsel %vm2430, %v11194, %v10633
  %v11259 = vsel %vm2430, %v11195, %v10635
  %v11260 = vsel %vm2430, %v11196, %v10637
  %v11261 = vsel %vm2430, %v11197, %v10639
  %v11262 = vsel %vm2430, %v11198, %v10641
  %v11263 = vsel %vm2430, %v11199, %v10643
  %v11264 = vsel %vm2430, %v11200, %v10645
  %v11265 = vsel %vm2430, %v11201, %v10647
  %v11266 = vsel %vm2430, %v11202, %v10649
  %v11267 = vsel %vm2430, %v11203, %v10651
  %v11268 = vsel %vm2430, %v11204, %v10653
  %v11269 = vsel %vm2430, %v11205, %v10655
  %v11270 = vsel %vm2430, %v11206, %v10657
  %v11271 = vsel %vm2430, %v11207, %v10659
  %v11272 = vsel %vm2430, %v11208, %v10661
  %v11273 = vsel %vm2430, %v11209, %v10663
  %v11274 = vsel %vm2430, %v11210, %v10665
  %v11275 = vsel %vm2430, %v11211, %v10667
  %v11276 = vsel %vm2430, %v11212, %v10669
  %v11277 = vsel %vm2430, %v11213, %v10671
  %v11278 = vsel %vm2430, %v11214, %v10673
  %v11279 = vsel %vm2430, %v11215, %v10675
  %v11280 = vsel %vm2430, %v11216, %v10677
  %v11281 = vsel %vm2430, %v11217, %v10679
  %v11282 = vsel %vm2430, %v11218, %v10681
  %v11283 = vsel %vm2430, %v11219, %v10683
  %v11284 = vsel %vm2430, %v11220, %v10685
  %v11285 = vsel %vm2430, %v11221, %v10687
  %v11286 = vsel %vm2430, %v11222, %v10689
  %v11287 = vsel %vm2430, %v11223, %v10691
  %v11288 = vsel %vm2430, %v11224, %v10693
  %v11289 = vsel %vm2430, %v11225, %v10695
  %v11290 = vsel %vm2430, %v11226, %v10697
  %v11291 = vsel %vm2430, %v11227, %v10699
  %v11292 = vsel %vm2430, %v11228, %v10701
  %v11293 = vsel %vm2430, %v11229, %v10703
  %v11294 = vsel %vm2430, %v11230, %v10705
  %v11295 = vsel %vm2430, %v11231, %v10707
  %v11296 = vsel %vm2430, %v11232, %v10709
  %v11297 = vsel %vm2430, %v11233, %v10711
  %v11298 = vsel %vm2430, %v11234, %v10713
  %v11299 = vsel %vm2430, %v11235, %v10715
  %v11300 = vsel %vm2430, %v11236, %v10717
  %v11301 = vsel %vm2430, %v11237, %v10719
  %v11302 = vsel %vm2430, %v11238, %v10721
  %v11303 = vsel %vm2430, %v11239, %v10723
  %v11304 = vsel %vm2430, %v11240, %v10725
  %v11305 = vsel %vm2430, %v11241, %v10727
  %v11306 = vsel %vm2430, %v11242, %v10729
  %v11307 = vsel %vm2430, %v11243, %v10731
  %v11308 = vsel %vm2495, %v11244, %v10797
  %v11309 = vsel %vm2495, %v11245, %v10799
  %v11310 = vsel %vm2495, %v11246, %v10801
  %v11311 = vsel %vm2495, %v11247, %v10803
  %v11312 = vsel %vm2495, %v11248, %v10805
  %v11313 = vsel %vm2495, %v11249, %v10807
  %v11314 = vsel %vm2495, %v11250, %v10809
  %v11315 = vsel %vm2495, %v11251, %v10811
  %v11316 = vsel %vm2495, %v11252, %v10813
  %v11317 = vsel %vm2495, %v11253, %v10815
  %v11318 = vsel %vm2495, %v11254, %v10817
  %v11319 = vsel %vm2495, %v11255, %v10819
  %v11320 = vsel %vm2495, %v11256, %v10821
  %v11321 = vsel %vm2495, %v11257, %v10823
  %v11322 = vsel %vm2495, %v11258, %v10825
  %v11323 = vsel %vm2495, %v11259, %v10827
  %v11324 = vsel %vm2495, %v11260, %v10829
  %v11325 = vsel %vm2495, %v11261, %v10831
  %v11326 = vsel %vm2495, %v11262, %v10833
  %v11327 = vsel %vm2495, %v11263, %v10835
  %v11328 = vsel %vm2495, %v11264, %v10837
  %v11329 = vsel %vm2495, %v11265, %v10839
  %v11330 = vsel %vm2495, %v11266, %v10841
  %v11331 = vsel %vm2495, %v11267, %v10843
  %v11332 = vsel %vm2495, %v11268, %v10845
  %v11333 = vsel %vm2495, %v11269, %v10847
  %v11334 = vsel %vm2495, %v11270, %v10849
  %v11335 = vsel %vm2495, %v11271, %v10851
  %v11336 = vsel %vm2495, %v11272, %v10853
  %v11337 = vsel %vm2495, %v11273, %v10855
  %v11338 = vsel %vm2495, %v11274, %v10857
  %v11339 = vsel %vm2495, %v11275, %v10859
  %v11340 = vsel %vm2495, %v11276, %v10861
  %v11341 = vsel %vm2495, %v11277, %v10863
  %v11342 = vsel %vm2495, %v11278, %v10865
  %v11343 = vsel %vm2495, %v11279, %v10867
  %v11344 = vsel %vm2495, %v11280, %v10869
  %v11345 = vsel %vm2495, %v11281, %v10871
  %v11346 = vsel %vm2495, %v11282, %v10873
  %v11347 = vsel %vm2495, %v11283, %v10875
  %v11348 = vsel %vm2495, %v11284, %v10877
  %v11349 = vsel %vm2495, %v11285, %v10879
  %v11350 = vsel %vm2495, %v11286, %v10881
  %v11351 = vsel %vm2495, %v11287, %v10883
  %v11352 = vsel %vm2495, %v11288, %v10885
  %v11353 = vsel %vm2495, %v11289, %v10887
  %v11354 = vsel %vm2495, %v11290, %v10889
  %v11355 = vsel %vm2495, %v11291, %v10891
  %v11356 = vsel %vm2495, %v11292, %v10893
  %v11357 = vsel %vm2495, %v11293, %v10895
  %v11358 = vsel %vm2495, %v11294, %v10897
  %v11359 = vsel %vm2495, %v11295, %v10899
  %v11360 = vsel %vm2495, %v11296, %v10901
  %v11361 = vsel %vm2495, %v11297, %v10903
  %v11362 = vsel %vm2495, %v11298, %v10905
  %v11363 = vsel %vm2495, %v11299, %v10907
  %v11364 = vsel %vm2495, %v11300, %v10909
  %v11365 = vsel %vm2495, %v11301, %v10911
  %v11366 = vsel %vm2495, %v11302, %v10913
  %v11367 = vsel %vm2495, %v11303, %v10915
  %v11368 = vsel %vm2495, %v11304, %v10917
  %v11369 = vsel %vm2495, %v11305, %v10919
  %v11370 = vsel %vm2495, %v11306, %v10921
  %v11371 = vsel %vm2495, %v11307, %v10923
  %v11372 = vld [vmem:[%s9] sm:$0xff]
  %v11373 = vld [vmem:[%s9 + $0x8] sm:$0xff]
  %v11374 = vld [vmem:[%s9 + $0x10] sm:$0xff]
  %v11375 = vld [vmem:[%s9 + $0x18] sm:$0xff]
  %v11376 = vld [vmem:[%s9 + $0x20] sm:$0xff]
  %v11377 = vld [vmem:[%s9 + $0x28] sm:$0xff]
  %v11378 = vld [vmem:[%s9 + $0x30] sm:$0xff]
  %v11379 = vld [vmem:[%s9 + $0x38] sm:$0xff]
  %v11380 = vld [vmem:[%s9 + $0x40] sm:$0xff]
  %v11381 = vld [vmem:[%s9 + $0x48] sm:$0xff]
  %v11382 = vld [vmem:[%s9 + $0x50] sm:$0xff]
  %v11383 = vld [vmem:[%s9 + $0x58] sm:$0xff]
  %v11384 = vld [vmem:[%s9 + $0x60] sm:$0xff]
  %v11385 = vld [vmem:[%s9 + $0x68] sm:$0xff]
  %v11386 = vld [vmem:[%s9 + $0x70] sm:$0xff]
  %v11387 = vld [vmem:[%s9 + $0x78] sm:$0xff]
  %v11388 = vld [vmem:[%s9 + $0x80] sm:$0xff]
  %v11389 = vld [vmem:[%s9 + $0x88] sm:$0xff]
  %v11390 = vld [vmem:[%s9 + $0x90] sm:$0xff]
  %v11391 = vld [vmem:[%s9 + $0x98] sm:$0xff]
  %v11392 = vld [vmem:[%s9 + $0xa0] sm:$0xff]
  %v11393 = vld [vmem:[%s9 + $0xa8] sm:$0xff]
  %v11394 = vld [vmem:[%s9 + $0xb0] sm:$0xff]
  %v11395 = vld [vmem:[%s9 + $0xb8] sm:$0xff]
  %v11396 = vld [vmem:[%s9 + $0xc0] sm:$0xff]
  %v11397 = vld [vmem:[%s9 + $0xc8] sm:$0xff]
  %v11398 = vld [vmem:[%s9 + $0xd0] sm:$0xff]
  %v11399 = vld [vmem:[%s9 + $0xd8] sm:$0xff]
  %v11400 = vld [vmem:[%s9 + $0xe0] sm:$0xff]
  %v11401 = vld [vmem:[%s9 + $0xe8] sm:$0xff]
  %v11402 = vld [vmem:[%s9 + $0xf0] sm:$0xff]
  %v11403 = vld [vmem:[%s9 + $0xf8] sm:$0xff]
  %v11404 = vld [vmem:[%s9 + $0x100] sm:$0xff]
  %v11405 = vld [vmem:[%s9 + $0x108] sm:$0xff]
  %v11406 = vld [vmem:[%s9 + $0x110] sm:$0xff]
  %v11407 = vld [vmem:[%s9 + $0x118] sm:$0xff]
  %v11408 = vld [vmem:[#allocation2] sm:$0x1]
  %v11410 = vlaneseq
  %v11411 = vshrl.u32 %v11410, 7
  %v11412 = vsub.s32 0, %v11411
  %v11413 = vrot.slane %v11408, %v11412
  %v11415 = vsel %vm2365, %v9638, 0
  %v11417 = vsel %vm2365, %v9637, 0
  %v11419 = vsel %vm2365, %v9636, 0
  %v11421 = vsel %vm2365, %v9635, 0
  %v11423 = vsel %vm2365, %v9634, 0
  %v11425 = vsel %vm2365, %v9633, 0
  %v11427 = vsel %vm2365, %v9632, 0
  %v11429 = vsel %vm2365, %v9631, 0
  %v11431 = vsel %vm2365, %v9630, 0
  %v11433 = vsel %vm2365, %v9629, 0
  %v11435 = vsel %vm2365, %v9628, 0
  %v11437 = vsel %vm2365, %v9627, 0
  %v11439 = vsel %vm2365, %v9626, 0
  %v11441 = vsel %vm2365, %v9625, 0
  %v11443 = vsel %vm2365, %v9624, 0
  %v11445 = vsel %vm2365, %v9623, 0
  %v11447 = vsel %vm2365, %v9622, 0
  %v11449 = vsel %vm2365, %v9621, 0
  %v11451 = vsel %vm2365, %v9620, 0
  %v11453 = vsel %vm2365, %v9619, 0
  %v11455 = vsel %vm2365, %v9618, 0
  %v11457 = vsel %vm2365, %v9617, 0
  %v11459 = vsel %vm2365, %v9616, 0
  %v11461 = vsel %vm2365, %v9615, 0
  %v11463 = vsel %vm2365, %v9614, 0
  %v11465 = vsel %vm2365, %v9613, 0
  %v11467 = vsel %vm2365, %v9612, 0
  %v11469 = vsel %vm2365, %v9611, 0
  %v11471 = vsel %vm2365, %v9610, 0
  %v11473 = vsel %vm2365, %v9609, 0
  %v11475 = vsel %vm2365, %v9608, 0
  %v11477 = vsel %vm2365, %v9607, 0
  %v11479 = vsel %vm2365, %v9606, 0
  %v11481 = vsel %vm2365, %v9605, 0
  %v11483 = vsel %vm2365, %v9604, 0
  %v11485 = vsel %vm2365, %v9603, 0
  %v11487 = vsel %vm2365, %v9602, 0
  %v11489 = vsel %vm2365, %v9601, 0
  %v11491 = vsel %vm2365, %v9600, 0
  %v11493 = vsel %vm2365, %v9599, 0
  %v11495 = vsel %vm2365, %v9598, 0
  %v11497 = vsel %vm2365, %v9597, 0
  %v11499 = vsel %vm2365, %v9596, 0
  %v11501 = vsel %vm2365, %v9595, 0
  %v11503 = vsel %vm2365, %v9594, 0
  %v11505 = vsel %vm2365, %v9593, 0
  %v11507 = vsel %vm2365, %v9592, 0
  %v11509 = vsel %vm2365, %v9591, 0
  %v11511 = vsel %vm2365, %v9590, 0
  %v11513 = vsel %vm2365, %v9589, 0
  %v11515 = vsel %vm2365, %v9588, 0
  %v11517 = vsel %vm2365, %v9587, 0
  %v11519 = vsel %vm2365, %v9586, 0
  %v11521 = vsel %vm2365, %v9585, 0
  %v11523 = vsel %vm2365, %v9584, 0
  %v11525 = vsel %vm2365, %v9583, 0
  %v11527 = vsel %vm2365, %v9582, 0
  %v11529 = vsel %vm2365, %v9581, 0
  %v11531 = vsel %vm2365, %v9580, 0
  %v11533 = vsel %vm2365, %v9643, 0
  %v11535 = vsel %vm2365, %v9642, 0
  %v11537 = vsel %vm2365, %v9641, 0
  %v11539 = vsel %vm2365, %v9640, 0
  %v11541 = vsel %vm2365, %v9639, 0
  %11543 = vmatprep.subr.mxu0 0.0
  %11544 = vmatpush1.msra.mxu0 %v11372
  %11545 = vmatprep.subr.mxu0 0.0
  %11546 = vmatpush1.msra.mxu0 %v11373
  %11547 = vmatprep.subr.mxu0 0.0
  %11548 = vmatpush1.msra.mxu0 %v11374
  %11549 = vmatprep.subr.mxu0 0.0
  %11550 = vmatpush1.msra.mxu0 %v11375
  %11551 = vmatprep.subr.mxu0 0.0
  %11552 = vmatpush1.msra.mxu0 %v11376
  %11553 = vmatprep.subr.mxu0 0.0
  %11554 = vmatpush1.msra.mxu0 %v11377
  %11555 = vmatprep.subr.mxu0 0.0
  %11556 = vmatpush1.msra.mxu0 %v11378
  %11557 = vmatprep.subr.mxu0 0.0
  %11558 = vmatpush1.msra.mxu0 %v11379
  %11559 = vmatprep.subr.mxu0 0.0
  %11560 = vmatpush1.msra.mxu0 %v11380
  %11561 = vmatprep.subr.mxu0 0.0
  %11562 = vmatpush1.msra.mxu0 %v11381
  %11563 = vmatprep.subr.mxu0 0.0
  %11564 = vmatpush1.msra.mxu0 %v11382
  %11565 = vmatprep.subr.mxu0 0.0
  %11566 = vmatpush1.msra.mxu0 %v11383
  %11567 = vmatprep.subr.mxu0 0.0
  %11568 = vmatpush1.msra.mxu0 %v11384
  %11569 = vmatprep.subr.mxu0 0.0
  %11570 = vmatpush1.msra.mxu0 %v11385
  %11571 = vmatprep.subr.mxu0 0.0
  %11572 = vmatpush1.msra.mxu0 %v11386
  %11573 = vmatprep.subr.mxu0 0.0
  %11574 = vmatpush1.msra.mxu0 %v11387
  %11575 = vmatprep.subr.mxu0 0.0
  %11576 = vmatpush1.msra.mxu0 %v11388
  %11577 = vmatprep.subr.mxu0 0.0
  %11578 = vmatpush1.msra.mxu0 %v11389
  %11579 = vmatprep.subr.mxu0 0.0
  %11580 = vmatpush1.msra.mxu0 %v11390
  %11581 = vmatprep.subr.mxu0 0.0
  %11582 = vmatpush1.msra.mxu0 %v11391
  %11583 = vmatprep.subr.mxu0 0.0
  %11584 = vmatpush1.msra.mxu0 %v11392
  %11585 = vmatprep.subr.mxu0 0.0
  %11586 = vmatpush1.msra.mxu0 %v11393
  %11587 = vmatprep.subr.mxu0 0.0
  %11588 = vmatpush1.msra.mxu0 %v11394
  %11589 = vmatprep.subr.mxu0 0.0
  %11590 = vmatpush1.msra.mxu0 %v11395
  %11591 = vmatprep.subr.mxu0 0.0
  %11592 = vmatpush1.msra.mxu0 %v11396
  %11593 = vmatprep.subr.mxu0 0.0
  %11594 = vmatpush1.msra.mxu0 %v11397
  %11595 = vmatprep.subr.mxu0 0.0
  %11596 = vmatpush1.msra.mxu0 %v11398
  %11597 = vmatprep.subr.mxu0 0.0
  %11598 = vmatpush1.msra.mxu0 %v11399
  %11599 = vmatprep.subr.mxu0 0.0
  %11600 = vmatpush1.msra.mxu0 %v11400
  %11601 = vmatprep.subr.mxu0 0.0
  %11602 = vmatpush1.msra.mxu0 %v11401
  %11603 = vmatprep.subr.mxu0 0.0
  %11604 = vmatpush1.msra.mxu0 %v11402
  %11605 = vmatprep.subr.mxu0 0.0
  %11606 = vmatpush1.msra.mxu0 %v11403
  %11607 = vmatprep.mubr.f32.mxu0 %v11308
  %11608 = vmatmul.mubr.f32.gmra.mrb[0].mxu0 %v11116
  %v11609 = vpop.f32.mrb[0].mxu0
  %v11610 = vadd.f32 %v11413, %v11609
  %v11611 = vpop.f32.mrb[0].mxu0
  %11612 = vmatprep.mubr.f32.mxu0 %v11309
  %11613 = vmatmul.mubr.f32.gmra.mrb[0].mxu0 %v11117
  %v11614 = vpop.f32.mrb[0].mxu0
  %v11615 = vadd.f32 %v11413, %v11614
  %v11616 = vpop.f32.mrb[0].mxu0
  %11617 = vmatprep.mubr.f32.mxu0 %v11310
  %11618 = vmatmul.mubr.f32.gmra.mrb[0].mxu0 %v11118
  %v11619 = vpop.f32.mrb[0].mxu0
  %v11620 = vadd.f32 %v11413, %v11619
  %v11621 = vpop.f32.mrb[0].mxu0
  %11622 = vmatprep.mubr.f32.mxu0 %v11311
  %11623 = vmatmul.mubr.f32.gmra.mrb[0].mxu0 %v11119
  %v11624 = vpop.f32.mrb[0].mxu0
  %v11625 = vadd.f32 %v11413, %v11624
  %v11626 = vpop.f32.mrb[0].mxu0
  %11627 = vmatprep.mubr.f32.mxu0 %v11312
  %11628 = vmatmul.mubr.f32.gmra.mrb[0].mxu0 %v11120
  %v11629 = vpop.f32.mrb[0].mxu0
  %v11630 = vadd.f32 %v11413, %v11629
  %v11631 = vpop.f32.mrb[0].mxu0
  %11632 = vmatprep.mubr.f32.mxu0 %v11313
  %11633 = vmatmul.mubr.f32.gmra.mrb[0].mxu0 %v11121
  %v11634 = vpop.f32.mrb[0].mxu0
  %v11635 = vadd.f32 %v11413, %v11634
  %v11636 = vpop.f32.mrb[0].mxu0
  %11637 = vmatprep.mubr.f32.mxu0 %v11314
  %11638 = vmatmul.mubr.f32.gmra.mrb[0].mxu0 %v11122
  %v11639 = vpop.f32.mrb[0].mxu0
  %v11640 = vadd.f32 %v11413, %v11639
  %v11641 = vpop.f32.mrb[0].mxu0
  %11642 = vmatprep.mubr.f32.mxu0 %v11315
  %11643 = vmatmul.mubr.f32.gmra.mrb[0].mxu0 %v11123
  %v11644 = vpop.f32.mrb[0].mxu0
  %v11645 = vadd.f32 %v11413, %v11644
  %v11646 = vpop.f32.mrb[0].mxu0
  %11647 = vmatprep.mubr.f32.mxu0 %v11316
  %11648 = vmatmul.mubr.f32.gmra.mrb[0].mxu0 %v11124
  %v11649 = vpop.f32.mrb[0].mxu0
  %v11650 = vadd.f32 %v11413, %v11649
  %v11651 = vpop.f32.mrb[0].mxu0
  %11652 = vmatprep.mubr.f32.mxu0 %v11317
  %11653 = vmatmul.mubr.f32.gmra.mrb[0].mxu0 %v11125
  %v11654 = vpop.f32.mrb[0].mxu0
  %v11655 = vadd.f32 %v11413, %v11654
  %v11656 = vpop.f32.mrb[0].mxu0
  %11657 = vmatprep.mubr.f32.mxu0 %v11318
  %11658 = vmatmul.mubr.f32.gmra.mrb[0].mxu0 %v11126
  %v11659 = vpop.f32.mrb[0].mxu0
  %v11660 = vadd.f32 %v11413, %v11659
  %v11661 = vpop.f32.mrb[0].mxu0
  %11662 = vmatprep.mubr.f32.mxu0 %v11319
  %11663 = vmatmul.mubr.f32.gmra.mrb[0].mxu0 %v11127
  %v11664 = vpop.f32.mrb[0].mxu0
  %v11665 = vadd.f32 %v11413, %v11664
  %v11666 = vpop.f32.mrb[0].mxu0
  %11667 = vmatprep.mubr.f32.mxu0 %v11320
  %11668 = vmatmul.mubr.f32.gmra.mrb[0].mxu0 %v11128
  %v11669 = vpop.f32.mrb[0].mxu0
  %v11670 = vadd.f32 %v11413, %v11669
  %v11671 = vpop.f32.mrb[0].mxu0
  %11672 = vmatprep.mubr.f32.mxu0 %v11321
  %11673 = vmatmul.mubr.f32.gmra.mrb[0].mxu0 %v11129
  %v11674 = vpop.f32.mrb[0].mxu0
  %v11675 = vadd.f32 %v11413, %v11674
  %v11676 = vpop.f32.mrb[0].mxu0
  %11677 = vmatprep.mubr.f32.mxu0 %v11322
  %11678 = vmatmul.mubr.f32.gmra.mrb[0].mxu0 %v11130
  %v11679 = vpop.f32.mrb[0].mxu0
  %v11680 = vadd.f32 %v11413, %v11679
  %v11681 = vpop.f32.mrb[0].mxu0
  %11682 = vmatprep.mubr.f32.mxu0 %v11323
  %11683 = vmatmul.mubr.f32.gmra.mrb[0].mxu0 %v11131
  %v11684 = vpop.f32.mrb[0].mxu0
  %v11685 = vadd.f32 %v11413, %v11684
  %v11686 = vpop.f32.mrb[0].mxu0
  %11687 = vmatprep.mubr.f32.mxu0 %v11324
  %11688 = vmatmul.mubr.f32.gmra.mrb[0].mxu0 %v11132
  %v11689 = vpop.f32.mrb[0].mxu0
  %v11690 = vadd.f32 %v11413, %v11689
  %v11691 = vpop.f32.mrb[0].mxu0
  %11692 = vmatprep.mubr.f32.mxu0 %v11325
  %11693 = vmatmul.mubr.f32.gmra.mrb[0].mxu0 %v11133
  %v11694 = vpop.f32.mrb[0].mxu0
  %v11695 = vadd.f32 %v11413, %v11694
  %v11696 = vpop.f32.mrb[0].mxu0
  %11697 = vmatprep.mubr.f32.mxu0 %v11326
  %11698 = vmatmul.mubr.f32.gmra.mrb[0].mxu0 %v11134
  %v11699 = vpop.f32.mrb[0].mxu0
  %v11700 = vadd.f32 %v11413, %v11699
  %v11701 = vpop.f32.mrb[0].mxu0
  %11702 = vmatprep.mubr.f32.mxu0 %v11327
  %11703 = vmatmul.mubr.f32.gmra.mrb[0].mxu0 %v11135
  %v11704 = vpop.f32.mrb[0].mxu0
  %v11705 = vadd.f32 %v11413, %v11704
  %v11706 = vpop.f32.mrb[0].mxu0
  %11707 = vmatprep.mubr.f32.mxu0 %v11328
  %11708 = vmatmul.mubr.f32.gmra.mrb[0].mxu0 %v11136
  %v11709 = vpop.f32.mrb[0].mxu0
  %v11710 = vadd.f32 %v11413, %v11709
  %v11711 = vpop.f32.mrb[0].mxu0
  %11712 = vmatprep.mubr.f32.mxu0 %v11329
  %11713 = vmatmul.mubr.f32.gmra.mrb[0].mxu0 %v11137
  %v11714 = vpop.f32.mrb[0].mxu0
  %v11715 = vadd.f32 %v11413, %v11714
  %v11716 = vpop.f32.mrb[0].mxu0
  %11717 = vmatprep.mubr.f32.mxu0 %v11330
  %11718 = vmatmul.mubr.f32.gmra.mrb[0].mxu0 %v11138
  %v11719 = vpop.f32.mrb[0].mxu0
  %v11720 = vadd.f32 %v11413, %v11719
  %v11721 = vpop.f32.mrb[0].mxu0
  %11722 = vmatprep.mubr.f32.mxu0 %v11331
  %11723 = vmatmul.mubr.f32.gmra.mrb[0].mxu0 %v11139
  %v11724 = vpop.f32.mrb[0].mxu0
  %v11725 = vadd.f32 %v11413, %v11724
  %v11726 = vpop.f32.mrb[0].mxu0
  %11727 = vmatprep.mubr.f32.mxu0 %v11332
  %11728 = vmatmul.mubr.f32.gmra.mrb[0].mxu0 %v11140
  %v11729 = vpop.f32.mrb[0].mxu0
  %v11730 = vadd.f32 %v11413, %v11729
  %v11731 = vpop.f32.mrb[0].mxu0
  %11732 = vmatprep.mubr.f32.mxu0 %v11333
  %11733 = vmatmul.mubr.f32.gmra.mrb[0].mxu0 %v11141
  %v11734 = vpop.f32.mrb[0].mxu0
  %v11735 = vadd.f32 %v11413, %v11734
  %v11736 = vpop.f32.mrb[0].mxu0
  %11737 = vmatprep.mubr.f32.mxu0 %v11334
  %11738 = vmatmul.mubr.f32.gmra.mrb[0].mxu0 %v11142
  %v11739 = vpop.f32.mrb[0].mxu0
  %v11740 = vadd.f32 %v11413, %v11739
  %v11741 = vpop.f32.mrb[0].mxu0
  %11742 = vmatprep.mubr.f32.mxu0 %v11335
  %11743 = vmatmul.mubr.f32.gmra.mrb[0].mxu0 %v11143
  %v11744 = vpop.f32.mrb[0].mxu0
  %v11745 = vadd.f32 %v11413, %v11744
  %v11746 = vpop.f32.mrb[0].mxu0
  %11747 = vmatprep.mubr.f32.mxu0 %v11336
  %11748 = vmatmul.mubr.f32.gmra.mrb[0].mxu0 %v11144
  %v11749 = vpop.f32.mrb[0].mxu0
  %v11750 = vadd.f32 %v11413, %v11749
  %v11751 = vpop.f32.mrb[0].mxu0
  %11752 = vmatprep.mubr.f32.mxu0 %v11337
  %11753 = vmatmul.mubr.f32.gmra.mrb[0].mxu0 %v11145
  %v11754 = vpop.f32.mrb[0].mxu0
  %v11755 = vadd.f32 %v11413, %v11754
  %v11756 = vpop.f32.mrb[0].mxu0
  %11757 = vmatprep.mubr.f32.mxu0 %v11338
  %11758 = vmatmul.mubr.f32.gmra.mrb[0].mxu0 %v11146
  %v11759 = vpop.f32.mrb[0].mxu0
  %v11760 = vadd.f32 %v11413, %v11759
  %v11761 = vpop.f32.mrb[0].mxu0
  %11762 = vmatprep.mubr.f32.mxu0 %v11339
  %11763 = vmatmul.mubr.f32.gmra.mrb[0].mxu0 %v11147
  %v11764 = vpop.f32.mrb[0].mxu0
  %v11765 = vadd.f32 %v11413, %v11764
  %v11766 = vpop.f32.mrb[0].mxu0
  %11767 = vmatprep.mubr.f32.mxu0 %v11340
  %11768 = vmatmul.mubr.f32.gmra.mrb[0].mxu0 %v11148
  %v11769 = vpop.f32.mrb[0].mxu0
  %v11770 = vadd.f32 %v11413, %v11769
  %v11771 = vpop.f32.mrb[0].mxu0
  %11772 = vmatprep.mubr.f32.mxu0 %v11341
  %11773 = vmatmul.mubr.f32.gmra.mrb[0].mxu0 %v11149
  %v11774 = vpop.f32.mrb[0].mxu0
  %v11775 = vadd.f32 %v11413, %v11774
  %v11776 = vpop.f32.mrb[0].mxu0
  %11777 = vmatprep.mubr.f32.mxu0 %v11342
  %11778 = vmatmul.mubr.f32.gmra.mrb[0].mxu0 %v11150
  %v11779 = vpop.f32.mrb[0].mxu0
  %v11780 = vadd.f32 %v11413, %v11779
  %v11781 = vpop.f32.mrb[0].mxu0
  %11782 = vmatprep.mubr.f32.mxu0 %v11343
  %11783 = vmatmul.mubr.f32.gmra.mrb[0].mxu0 %v11151
  %v11784 = vpop.f32.mrb[0].mxu0
  %v11785 = vadd.f32 %v11413, %v11784
  %v11786 = vpop.f32.mrb[0].mxu0
  %11787 = vmatprep.mubr.f32.mxu0 %v11344
  %11788 = vmatmul.mubr.f32.gmra.mrb[0].mxu0 %v11152
  %v11789 = vpop.f32.mrb[0].mxu0
  %v11790 = vadd.f32 %v11413, %v11789
  %v11791 = vpop.f32.mrb[0].mxu0
  %11792 = vmatprep.mubr.f32.mxu0 %v11345
  %11793 = vmatmul.mubr.f32.gmra.mrb[0].mxu0 %v11153
  %v11794 = vpop.f32.mrb[0].mxu0
  %v11795 = vadd.f32 %v11413, %v11794
  %v11796 = vpop.f32.mrb[0].mxu0
  %11797 = vmatprep.mubr.f32.mxu0 %v11346
  %11798 = vmatmul.mubr.f32.gmra.mrb[0].mxu0 %v11154
  %v11799 = vpop.f32.mrb[0].mxu0
  %v11800 = vadd.f32 %v11413, %v11799
  %v11801 = vpop.f32.mrb[0].mxu0
  %11802 = vmatprep.mubr.f32.mxu0 %v11347
  %11803 = vmatmul.mubr.f32.gmra.mrb[0].mxu0 %v11155
  %v11804 = vpop.f32.mrb[0].mxu0
  %v11805 = vadd.f32 %v11413, %v11804
  %v11806 = vpop.f32.mrb[0].mxu0
  %11807 = vmatprep.mubr.f32.mxu0 %v11348
  %11808 = vmatmul.mubr.f32.gmra.mrb[0].mxu0 %v11156
  %v11809 = vpop.f32.mrb[0].mxu0
  %v11810 = vadd.f32 %v11413, %v11809
  %v11811 = vpop.f32.mrb[0].mxu0
  %11812 = vmatprep.mubr.f32.mxu0 %v11349
  %11813 = vmatmul.mubr.f32.gmra.mrb[0].mxu0 %v11157
  %v11814 = vpop.f32.mrb[0].mxu0
  %v11815 = vadd.f32 %v11413, %v11814
  %v11816 = vpop.f32.mrb[0].mxu0
  %11817 = vmatprep.mubr.f32.mxu0 %v11350
  %11818 = vmatmul.mubr.f32.gmra.mrb[0].mxu0 %v11158
  %v11819 = vpop.f32.mrb[0].mxu0
  %v11820 = vadd.f32 %v11413, %v11819
  %v11821 = vpop.f32.mrb[0].mxu0
  %11822 = vmatprep.mubr.f32.mxu0 %v11351
  %11823 = vmatmul.mubr.f32.gmra.mrb[0].mxu0 %v11159
  %v11824 = vpop.f32.mrb[0].mxu0
  %v11825 = vadd.f32 %v11413, %v11824
  %v11826 = vpop.f32.mrb[0].mxu0
  %11827 = vmatprep.mubr.f32.mxu0 %v11352
  %11828 = vmatmul.mubr.f32.gmra.mrb[0].mxu0 %v11160
  %v11829 = vpop.f32.mrb[0].mxu0
  %v11830 = vadd.f32 %v11413, %v11829
  %v11831 = vpop.f32.mrb[0].mxu0
  %11832 = vmatprep.mubr.f32.mxu0 %v11353
  %11833 = vmatmul.mubr.f32.gmra.mrb[0].mxu0 %v11161
  %v11834 = vpop.f32.mrb[0].mxu0
  %v11835 = vadd.f32 %v11413, %v11834
  %v11836 = vpop.f32.mrb[0].mxu0
  %11837 = vmatprep.mubr.f32.mxu0 %v11354
  %11838 = vmatmul.mubr.f32.gmra.mrb[0].mxu0 %v11162
  %v11839 = vpop.f32.mrb[0].mxu0
  %v11840 = vadd.f32 %v11413, %v11839
  %v11841 = vpop.f32.mrb[0].mxu0
  %11842 = vmatprep.mubr.f32.mxu0 %v11355
  %11843 = vmatmul.mubr.f32.gmra.mrb[0].mxu0 %v11163
  %v11844 = vpop.f32.mrb[0].mxu0
  %v11845 = vadd.f32 %v11413, %v11844
  %v11846 = vpop.f32.mrb[0].mxu0
  %11847 = vmatprep.mubr.f32.mxu0 %v11356
  %11848 = vmatmul.mubr.f32.gmra.mrb[0].mxu0 %v11164
  %v11849 = vpop.f32.mrb[0].mxu0
  %v11850 = vadd.f32 %v11413, %v11849
  %v11851 = vpop.f32.mrb[0].mxu0
  %11852 = vmatprep.mubr.f32.mxu0 %v11357
  %11853 = vmatmul.mubr.f32.gmra.mrb[0].mxu0 %v11165
  %v11854 = vpop.f32.mrb[0].mxu0
  %v11855 = vadd.f32 %v11413, %v11854
  %v11856 = vpop.f32.mrb[0].mxu0
  %11857 = vmatprep.mubr.f32.mxu0 %v11358
  %11858 = vmatmul.mubr.f32.gmra.mrb[0].mxu0 %v11166
  %v11859 = vpop.f32.mrb[0].mxu0
  %v11860 = vadd.f32 %v11413, %v11859
  %v11861 = vpop.f32.mrb[0].mxu0
  %11862 = vmatprep.mubr.f32.mxu0 %v11359
  %11863 = vmatmul.mubr.f32.gmra.mrb[0].mxu0 %v11167
  %v11864 = vpop.f32.mrb[0].mxu0
  %v11865 = vadd.f32 %v11413, %v11864
  %v11866 = vpop.f32.mrb[0].mxu0
  %11867 = vmatprep.mubr.f32.mxu0 %v11360
  %11868 = vmatmul.mubr.f32.gmra.mrb[0].mxu0 %v11168
  %v11869 = vpop.f32.mrb[0].mxu0
  %v11870 = vadd.f32 %v11413, %v11869
  %v11871 = vpop.f32.mrb[0].mxu0
  %11872 = vmatprep.mubr.f32.mxu0 %v11361
  %11873 = vmatmul.mubr.f32.gmra.mrb[0].mxu0 %v11169
  %v11874 = vpop.f32.mrb[0].mxu0
  %v11875 = vadd.f32 %v11413, %v11874
  %v11876 = vpop.f32.mrb[0].mxu0
  %11877 = vmatprep.mubr.f32.mxu0 %v11362
  %11878 = vmatmul.mubr.f32.gmra.mrb[0].mxu0 %v11170
  %v11879 = vpop.f32.mrb[0].mxu0
  %v11880 = vadd.f32 %v11413, %v11879
  %v11881 = vpop.f32.mrb[0].mxu0
  %11882 = vmatprep.mubr.f32.mxu0 %v11363
  %11883 = vmatmul.mubr.f32.gmra.mrb[0].mxu0 %v11171
  %v11884 = vpop.f32.mrb[0].mxu0
  %v11885 = vadd.f32 %v11413, %v11884
  %v11886 = vpop.f32.mrb[0].mxu0
  %11887 = vmatprep.mubr.f32.mxu0 %v11364
  %11888 = vmatmul.mubr.f32.gmra.mrb[0].mxu0 %v11172
  %v11889 = vpop.f32.mrb[0].mxu0
  %v11890 = vadd.f32 %v11413, %v11889
  %v11891 = vpop.f32.mrb[0].mxu0
  %11892 = vmatprep.mubr.f32.mxu0 %v11365
  %11893 = vmatmul.mubr.f32.gmra.mrb[0].mxu0 %v11173
  %v11894 = vpop.f32.mrb[0].mxu0
  %v11895 = vadd.f32 %v11413, %v11894
  %v11896 = vpop.f32.mrb[0].mxu0
  %11897 = vmatprep.mubr.f32.mxu0 %v11366
  %11898 = vmatmul.mubr.f32.gmra.mrb[0].mxu0 %v11174
  %v11899 = vpop.f32.mrb[0].mxu0
  %v11900 = vadd.f32 %v11413, %v11899
  %v11901 = vpop.f32.mrb[0].mxu0
  %11902 = vmatprep.mubr.f32.mxu0 %v11367
  %11903 = vmatmul.mubr.f32.gmra.mrb[0].mxu0 %v11175
  %v11904 = vpop.f32.mrb[0].mxu0
  %v11905 = vadd.f32 %v11413, %v11904
  %v11906 = vpop.f32.mrb[0].mxu0
  %11907 = vmatprep.mubr.f32.mxu0 %v11368
  %11908 = vmatmul.mubr.f32.gmra.mrb[0].mxu0 %v11176
  %v11909 = vpop.f32.mrb[0].mxu0
  %v11910 = vadd.f32 %v11413, %v11909
  %v11911 = vpop.f32.mrb[0].mxu0
  %11912 = vmatprep.mubr.f32.mxu0 %v11369
  %11913 = vmatmul.mubr.f32.gmra.mrb[0].mxu0 %v11177
  %v11914 = vpop.f32.mrb[0].mxu0
  %v11915 = vadd.f32 %v11413, %v11914
  %v11916 = vpop.f32.mrb[0].mxu0
  %11917 = vmatprep.mubr.f32.mxu0 %v11370
  %11918 = vmatmul.mubr.f32.gmra.mrb[0].mxu0 %v11178
  %v11919 = vpop.f32.mrb[0].mxu0
  %v11920 = vadd.f32 %v11413, %v11919
  %v11921 = vpop.f32.mrb[0].mxu0
  %11922 = vmatprep.mubr.f32.mxu0 %v11371
  %11923 = vmatmul.mubr.f32.gmra.mrb[0].mxu0 %v11179
  %v11924 = vpop.f32.mrb[0].mxu0
  %v11925 = vadd.f32 %v11413, %v11924
  %v11926 = vpop.f32.mrb[0].mxu0
  %11927 = vdwg.mxu0
  %11928 = vmatprep.subr.mxu0 0.0
  %11929 = vmatpush1.msra.mxu0 %v11404
  %11930 = vmatprep.subr.mxu0 0.0
  %11931 = vmatpush1.msra.mxu0 %v11405
  %11932 = vmatprep.subr.mxu0 0.0
  %11933 = vmatpush1.msra.mxu0 %v11406
  %11934 = vmatprep.subr.mxu0 0.0
  %11935 = vmatpush1.msra.mxu0 %v11407
  %11936 = vmatprep.subr.mxu0 0.0
  %11937 = vmatpush1.msra.mxu0 0.0
  %11938 = vmatprep.subr.mxu0 0.0
  %11939 = vmatpush1.msra.mxu0 0.0
  %11940 = vmatprep.subr.mxu0 0.0
  %11941 = vmatpush1.msra.mxu0 0.0
  %11942 = vmatprep.subr.mxu0 0.0
  %11943 = vmatpush1.msra.mxu0 0.0
  %11944 = vmatprep.subr.mxu0 0.0
  %11945 = vmatpush1.msra.mxu0 0.0
  %11946 = vmatprep.subr.mxu0 0.0
  %11947 = vmatpush1.msra.mxu0 0.0
  %11948 = vmatprep.subr.mxu0 0.0
  %11949 = vmatpush1.msra.mxu0 0.0
  %11950 = vmatprep.subr.mxu0 0.0
  %11951 = vmatpush1.msra.mxu0 0.0
  %11952 = vmatprep.subr.mxu0 0.0
  %11953 = vmatpush1.msra.mxu0 0.0
  %11954 = vmatprep.subr.mxu0 0.0
  %11955 = vmatpush1.msra.mxu0 0.0
  %11956 = vmatprep.subr.mxu0 0.0
  %11957 = vmatpush1.msra.mxu0 0.0
  %11958 = vmatprep.subr.mxu0 0.0
  %11959 = vmatpush1.msra.mxu0 0.0
  %11960 = vmatprep.subr.mxu0 0.0
  %11961 = vmatpush1.msra.mxu0 0.0
  %11962 = vmatprep.subr.mxu0 0.0
  %11963 = vmatpush1.msra.mxu0 0.0
  %11964 = vmatprep.subr.mxu0 0.0
  %11965 = vmatpush1.msra.mxu0 0.0
  %11966 = vmatprep.subr.mxu0 0.0
  %11967 = vmatpush1.msra.mxu0 0.0
  %11968 = vmatprep.subr.mxu0 0.0
  %11969 = vmatpush1.msra.mxu0 0.0
  %11970 = vmatprep.subr.mxu0 0.0
  %11971 = vmatpush1.msra.mxu0 0.0
  %11972 = vmatprep.subr.mxu0 0.0
  %11973 = vmatpush1.msra.mxu0 0.0
  %11974 = vmatprep.subr.mxu0 0.0
  %11975 = vmatpush1.msra.mxu0 0.0
  %11976 = vmatprep.subr.mxu0 0.0
  %11977 = vmatpush1.msra.mxu0 0.0
  %11978 = vmatprep.subr.mxu0 0.0
  %11979 = vmatpush1.msra.mxu0 0.0
  %11980 = vmatprep.subr.mxu0 0.0
  %11981 = vmatpush1.msra.mxu0 0.0
  %11982 = vmatprep.subr.mxu0 0.0
  %11983 = vmatpush1.msra.mxu0 0.0
  %11984 = vmatprep.subr.mxu0 0.0
  %11985 = vmatpush1.msra.mxu0 0.0
  %11986 = vmatprep.subr.mxu0 0.0
  %11987 = vmatpush1.msra.mxu0 0.0
  %11988 = vmatprep.subr.mxu0 0.0
  %11989 = vmatpush1.msra.mxu0 0.0
  %11990 = vmatprep.subr.mxu0 0.0
  %11991 = vmatpush1.msra.mxu0 0.0
  %11992 = vmatprep.mubr.f32.mxu0 0.0
  %11993 = vmatmul.mubr.f32.gmra.mrb[0].mxu0 %v11415
  %v11994 = vpop.f32.mrb[0].mxu0
  %v11995 = vadd.f32 %v11610, %v11994
  %v11996 = vpop.f32.mrb[0].mxu0
  %11997 = vmatprep.mubr.f32.mxu0 0.0
  %11998 = vmatmul.mubr.f32.gmra.mrb[0].mxu0 %v11417
  %v11999 = vpop.f32.mrb[0].mxu0
  %v12000 = vadd.f32 %v11615, %v11999
  %v12001 = vpop.f32.mrb[0].mxu0
  %12002 = vmatprep.mubr.f32.mxu0 0.0
  %12003 = vmatmul.mubr.f32.gmra.mrb[0].mxu0 %v11419
  %v12004 = vpop.f32.mrb[0].mxu0
  %v12005 = vadd.f32 %v11620, %v12004
  %v12006 = vpop.f32.mrb[0].mxu0
  %12007 = vmatprep.mubr.f32.mxu0 0.0
  %12008 = vmatmul.mubr.f32.gmra.mrb[0].mxu0 %v11421
  %v12009 = vpop.f32.mrb[0].mxu0
  %v12010 = vadd.f32 %v11625, %v12009
  %v12011 = vpop.f32.mrb[0].mxu0
  %12012 = vmatprep.mubr.f32.mxu0 0.0
  %12013 = vmatmul.mubr.f32.gmra.mrb[0].mxu0 %v11423
  %v12014 = vpop.f32.mrb[0].mxu0
  %v12015 = vadd.f32 %v11630, %v12014
  %v12016 = vpop.f32.mrb[0].mxu0
  %12017 = vmatprep.mubr.f32.mxu0 0.0
  %12018 = vmatmul.mubr.f32.gmra.mrb[0].mxu0 %v11425
  %v12019 = vpop.f32.mrb[0].mxu0
  %v12020 = vadd.f32 %v11635, %v12019
  %v12021 = vpop.f32.mrb[0].mxu0
  %12022 = vmatprep.mubr.f32.mxu0 0.0
  %12023 = vmatmul.mubr.f32.gmra.mrb[0].mxu0 %v11427
  %v12024 = vpop.f32.mrb[0].mxu0
  %v12025 = vadd.f32 %v11640, %v12024
  %v12026 = vpop.f32.mrb[0].mxu0
  %12027 = vmatprep.mubr.f32.mxu0 0.0
  %12028 = vmatmul.mubr.f32.gmra.mrb[0].mxu0 %v11429
  %v12029 = vpop.f32.mrb[0].mxu0
  %v12030 = vadd.f32 %v11645, %v12029
  %v12031 = vpop.f32.mrb[0].mxu0
  %12032 = vmatprep.mubr.f32.mxu0 0.0
  %12033 = vmatmul.mubr.f32.gmra.mrb[0].mxu0 %v11431
  %v12034 = vpop.f32.mrb[0].mxu0
  %v12035 = vadd.f32 %v11650, %v12034
  %v12036 = vpop.f32.mrb[0].mxu0
  %12037 = vmatprep.mubr.f32.mxu0 0.0
  %12038 = vmatmul.mubr.f32.gmra.mrb[0].mxu0 %v11433
  %v12039 = vpop.f32.mrb[0].mxu0
  %v12040 = vadd.f32 %v11655, %v12039
  %v12041 = vpop.f32.mrb[0].mxu0
  %12042 = vmatprep.mubr.f32.mxu0 0.0
  %12043 = vmatmul.mubr.f32.gmra.mrb[0].mxu0 %v11435
  %v12044 = vpop.f32.mrb[0].mxu0
  %v12045 = vadd.f32 %v11660, %v12044
  %v12046 = vpop.f32.mrb[0].mxu0
  %12047 = vmatprep.mubr.f32.mxu0 0.0
  %12048 = vmatmul.mubr.f32.gmra.mrb[0].mxu0 %v11437
  %v12049 = vpop.f32.mrb[0].mxu0
  %v12050 = vadd.f32 %v11665, %v12049
  %v12051 = vpop.f32.mrb[0].mxu0
  %12052 = vmatprep.mubr.f32.mxu0 0.0
  %12053 = vmatmul.mubr.f32.gmra.mrb[0].mxu0 %v11439
  %v12054 = vpop.f32.mrb[0].mxu0
  %v12055 = vadd.f32 %v11670, %v12054
  %v12056 = vpop.f32.mrb[0].mxu0
  %12057 = vmatprep.mubr.f32.mxu0 0.0
  %12058 = vmatmul.mubr.f32.gmra.mrb[0].mxu0 %v11441
  %v12059 = vpop.f32.mrb[0].mxu0
  %v12060 = vadd.f32 %v11675, %v12059
  %v12061 = vpop.f32.mrb[0].mxu0
  %12062 = vmatprep.mubr.f32.mxu0 0.0
  %12063 = vmatmul.mubr.f32.gmra.mrb[0].mxu0 %v11443
  %v12064 = vpop.f32.mrb[0].mxu0
  %v12065 = vadd.f32 %v11680, %v12064
  %v12066 = vpop.f32.mrb[0].mxu0
  %12067 = vmatprep.mubr.f32.mxu0 0.0
  %12068 = vmatmul.mubr.f32.gmra.mrb[0].mxu0 %v11445
  %v12069 = vpop.f32.mrb[0].mxu0
  %v12070 = vadd.f32 %v11685, %v12069
  %v12071 = vpop.f32.mrb[0].mxu0
  %12072 = vmatprep.mubr.f32.mxu0 0.0
  %12073 = vmatmul.mubr.f32.gmra.mrb[0].mxu0 %v11447
  %v12074 = vpop.f32.mrb[0].mxu0
  %v12075 = vadd.f32 %v11690, %v12074
  %v12076 = vpop.f32.mrb[0].mxu0
  %12077 = vmatprep.mubr.f32.mxu0 0.0
  %12078 = vmatmul.mubr.f32.gmra.mrb[0].mxu0 %v11449
  %v12079 = vpop.f32.mrb[0].mxu0
  %v12080 = vadd.f32 %v11695, %v12079
  %v12081 = vpop.f32.mrb[0].mxu0
  %12082 = vmatprep.mubr.f32.mxu0 0.0
  %12083 = vmatmul.mubr.f32.gmra.mrb[0].mxu0 %v11451
  %v12084 = vpop.f32.mrb[0].mxu0
  %v12085 = vadd.f32 %v11700, %v12084
  %v12086 = vpop.f32.mrb[0].mxu0
  %12087 = vmatprep.mubr.f32.mxu0 0.0
  %12088 = vmatmul.mubr.f32.gmra.mrb[0].mxu0 %v11453
  %v12089 = vpop.f32.mrb[0].mxu0
  %v12090 = vadd.f32 %v11705, %v12089
  %v12091 = vpop.f32.mrb[0].mxu0
  %12092 = vmatprep.mubr.f32.mxu0 0.0
  %12093 = vmatmul.mubr.f32.gmra.mrb[0].mxu0 %v11455
  %v12094 = vpop.f32.mrb[0].mxu0
  %v12095 = vadd.f32 %v11710, %v12094
  %v12096 = vpop.f32.mrb[0].mxu0
  %12097 = vmatprep.mubr.f32.mxu0 0.0
  %12098 = vmatmul.mubr.f32.gmra.mrb[0].mxu0 %v11457
  %v12099 = vpop.f32.mrb[0].mxu0
  %v12100 = vadd.f32 %v11715, %v12099
  %v12101 = vpop.f32.mrb[0].mxu0
  %12102 = vmatprep.mubr.f32.mxu0 0.0
  %12103 = vmatmul.mubr.f32.gmra.mrb[0].mxu0 %v11459
  %v12104 = vpop.f32.mrb[0].mxu0
  %v12105 = vadd.f32 %v11720, %v12104
  %v12106 = vpop.f32.mrb[0].mxu0
  %12107 = vmatprep.mubr.f32.mxu0 0.0
  %12108 = vmatmul.mubr.f32.gmra.mrb[0].mxu0 %v11461
  %v12109 = vpop.f32.mrb[0].mxu0
  %v12110 = vadd.f32 %v11725, %v12109
  %v12111 = vpop.f32.mrb[0].mxu0
  %12112 = vmatprep.mubr.f32.mxu0 0.0
  %12113 = vmatmul.mubr.f32.gmra.mrb[0].mxu0 %v11463
  %v12114 = vpop.f32.mrb[0].mxu0
  %v12115 = vadd.f32 %v11730, %v12114
  %v12116 = vpop.f32.mrb[0].mxu0
  %12117 = vmatprep.mubr.f32.mxu0 0.0
  %12118 = vmatmul.mubr.f32.gmra.mrb[0].mxu0 %v11465
  %v12119 = vpop.f32.mrb[0].mxu0
  %v12120 = vadd.f32 %v11735, %v12119
  %v12121 = vpop.f32.mrb[0].mxu0
  %12122 = vmatprep.mubr.f32.mxu0 0.0
  %12123 = vmatmul.mubr.f32.gmra.mrb[0].mxu0 %v11467
  %v12124 = vpop.f32.mrb[0].mxu0
  %v12125 = vadd.f32 %v11740, %v12124
  %v12126 = vpop.f32.mrb[0].mxu0
  %12127 = vmatprep.mubr.f32.mxu0 0.0
  %12128 = vmatmul.mubr.f32.gmra.mrb[0].mxu0 %v11469
  %v12129 = vpop.f32.mrb[0].mxu0
  %v12130 = vadd.f32 %v11745, %v12129
  %v12131 = vpop.f32.mrb[0].mxu0
  %12132 = vmatprep.mubr.f32.mxu0 0.0
  %12133 = vmatmul.mubr.f32.gmra.mrb[0].mxu0 %v11471
  %v12134 = vpop.f32.mrb[0].mxu0
  %v12135 = vadd.f32 %v11750, %v12134
  %v12136 = vpop.f32.mrb[0].mxu0
  %12137 = vmatprep.mubr.f32.mxu0 0.0
  %12138 = vmatmul.mubr.f32.gmra.mrb[0].mxu0 %v11473
  %v12139 = vpop.f32.mrb[0].mxu0
  %v12140 = vadd.f32 %v11755, %v12139
  %v12141 = vpop.f32.mrb[0].mxu0
  %12142 = vmatprep.mubr.f32.mxu0 0.0
  %12143 = vmatmul.mubr.f32.gmra.mrb[0].mxu0 %v11475
  %v12144 = vpop.f32.mrb[0].mxu0
  %v12145 = vadd.f32 %v11760, %v12144
  %v12146 = vpop.f32.mrb[0].mxu0
  %12147 = vmatprep.mubr.f32.mxu0 0.0
  %12148 = vmatmul.mubr.f32.gmra.mrb[0].mxu0 %v11477
  %v12149 = vpop.f32.mrb[0].mxu0
  %v12150 = vadd.f32 %v11765, %v12149
  %v12151 = vpop.f32.mrb[0].mxu0
  %12152 = vmatprep.mubr.f32.mxu0 0.0
  %12153 = vmatmul.mubr.f32.gmra.mrb[0].mxu0 %v11479
  %v12154 = vpop.f32.mrb[0].mxu0
  %v12155 = vadd.f32 %v11770, %v12154
  %v12156 = vpop.f32.mrb[0].mxu0
  %12157 = vmatprep.mubr.f32.mxu0 0.0
  %12158 = vmatmul.mubr.f32.gmra.mrb[0].mxu0 %v11481
  %v12159 = vpop.f32.mrb[0].mxu0
  %v12160 = vadd.f32 %v11775, %v12159
  %v12161 = vpop.f32.mrb[0].mxu0
  %12162 = vmatprep.mubr.f32.mxu0 0.0
  %12163 = vmatmul.mubr.f32.gmra.mrb[0].mxu0 %v11483
  %v12164 = vpop.f32.mrb[0].mxu0
  %v12165 = vadd.f32 %v11780, %v12164
  %v12166 = vpop.f32.mrb[0].mxu0
  %12167 = vmatprep.mubr.f32.mxu0 0.0
  %12168 = vmatmul.mubr.f32.gmra.mrb[0].mxu0 %v11485
  %v12169 = vpop.f32.mrb[0].mxu0
  %v12170 = vadd.f32 %v11785, %v12169
  %v12171 = vpop.f32.mrb[0].mxu0
  %12172 = vmatprep.mubr.f32.mxu0 0.0
  %12173 = vmatmul.mubr.f32.gmra.mrb[0].mxu0 %v11487
  %v12174 = vpop.f32.mrb[0].mxu0
  %v12175 = vadd.f32 %v11790, %v12174
  %v12176 = vpop.f32.mrb[0].mxu0
  %12177 = vmatprep.mubr.f32.mxu0 0.0
  %12178 = vmatmul.mubr.f32.gmra.mrb[0].mxu0 %v11489
  %v12179 = vpop.f32.mrb[0].mxu0
  %v12180 = vadd.f32 %v11795, %v12179
  %v12181 = vpop.f32.mrb[0].mxu0
  %12182 = vmatprep.mubr.f32.mxu0 0.0
  %12183 = vmatmul.mubr.f32.gmra.mrb[0].mxu0 %v11491
  %v12184 = vpop.f32.mrb[0].mxu0
  %v12185 = vadd.f32 %v11800, %v12184
  %v12186 = vpop.f32.mrb[0].mxu0
  %12187 = vmatprep.mubr.f32.mxu0 0.0
  %12188 = vmatmul.mubr.f32.gmra.mrb[0].mxu0 %v11493
  %v12189 = vpop.f32.mrb[0].mxu0
  %v12190 = vadd.f32 %v11805, %v12189
  %v12191 = vpop.f32.mrb[0].mxu0
  %12192 = vmatprep.mubr.f32.mxu0 0.0
  %12193 = vmatmul.mubr.f32.gmra.mrb[0].mxu0 %v11495
  %v12194 = vpop.f32.mrb[0].mxu0
  %v12195 = vadd.f32 %v11810, %v12194
  %v12196 = vpop.f32.mrb[0].mxu0
  %12197 = vmatprep.mubr.f32.mxu0 0.0
  %12198 = vmatmul.mubr.f32.gmra.mrb[0].mxu0 %v11497
  %v12199 = vpop.f32.mrb[0].mxu0
  %v12200 = vadd.f32 %v11815, %v12199
  %v12201 = vpop.f32.mrb[0].mxu0
  %12202 = vmatprep.mubr.f32.mxu0 0.0
  %12203 = vmatmul.mubr.f32.gmra.mrb[0].mxu0 %v11499
  %v12204 = vpop.f32.mrb[0].mxu0
  %v12205 = vadd.f32 %v11820, %v12204
  %v12206 = vpop.f32.mrb[0].mxu0
  %12207 = vmatprep.mubr.f32.mxu0 0.0
  %12208 = vmatmul.mubr.f32.gmra.mrb[0].mxu0 %v11501
  %v12209 = vpop.f32.mrb[0].mxu0
  %v12210 = vadd.f32 %v11825, %v12209
  %v12211 = vpop.f32.mrb[0].mxu0
  %12212 = vmatprep.mubr.f32.mxu0 0.0
  %12213 = vmatmul.mubr.f32.gmra.mrb[0].mxu0 %v11503
  %v12214 = vpop.f32.mrb[0].mxu0
  %v12215 = vadd.f32 %v11830, %v12214
  %v12216 = vpop.f32.mrb[0].mxu0
  %12217 = vmatprep.mubr.f32.mxu0 0.0
  %12218 = vmatmul.mubr.f32.gmra.mrb[0].mxu0 %v11505
  %v12219 = vpop.f32.mrb[0].mxu0
  %v12220 = vadd.f32 %v11835, %v12219
  %v12221 = vpop.f32.mrb[0].mxu0
  %12222 = vmatprep.mubr.f32.mxu0 0.0
  %12223 = vmatmul.mubr.f32.gmra.mrb[0].mxu0 %v11507
  %v12224 = vpop.f32.mrb[0].mxu0
  %v12225 = vadd.f32 %v11840, %v12224
  %v12226 = vpop.f32.mrb[0].mxu0
  %12227 = vmatprep.mubr.f32.mxu0 0.0
  %12228 = vmatmul.mubr.f32.gmra.mrb[0].mxu0 %v11509
  %v12229 = vpop.f32.mrb[0].mxu0
  %v12230 = vadd.f32 %v11845, %v12229
  %v12231 = vpop.f32.mrb[0].mxu0
  %12232 = vmatprep.mubr.f32.mxu0 0.0
  %12233 = vmatmul.mubr.f32.gmra.mrb[0].mxu0 %v11511
  %v12234 = vpop.f32.mrb[0].mxu0
  %v12235 = vadd.f32 %v11850, %v12234
  %v12236 = vpop.f32.mrb[0].mxu0
  %12237 = vmatprep.mubr.f32.mxu0 0.0
  %12238 = vmatmul.mubr.f32.gmra.mrb[0].mxu0 %v11513
  %v12239 = vpop.f32.mrb[0].mxu0
  %v12240 = vadd.f32 %v11855, %v12239
  %v12241 = vpop.f32.mrb[0].mxu0
  %12242 = vmatprep.mubr.f32.mxu0 0.0
  %12243 = vmatmul.mubr.f32.gmra.mrb[0].mxu0 %v11515
  %v12244 = vpop.f32.mrb[0].mxu0
  %v12245 = vadd.f32 %v11860, %v12244
  %v12246 = vpop.f32.mrb[0].mxu0
  %12247 = vmatprep.mubr.f32.mxu0 0.0
  %12248 = vmatmul.mubr.f32.gmra.mrb[0].mxu0 %v11517
  %v12249 = vpop.f32.mrb[0].mxu0
  %v12250 = vadd.f32 %v11865, %v12249
  %v12251 = vpop.f32.mrb[0].mxu0
  %12252 = vmatprep.mubr.f32.mxu0 0.0
  %12253 = vmatmul.mubr.f32.gmra.mrb[0].mxu0 %v11519
  %v12254 = vpop.f32.mrb[0].mxu0
  %v12255 = vadd.f32 %v11870, %v12254
  %v12256 = vpop.f32.mrb[0].mxu0
  %12257 = vmatprep.mubr.f32.mxu0 0.0
  %12258 = vmatmul.mubr.f32.gmra.mrb[0].mxu0 %v11521
  %v12259 = vpop.f32.mrb[0].mxu0
  %v12260 = vadd.f32 %v11875, %v12259
  %v12261 = vpop.f32.mrb[0].mxu0
  %12262 = vmatprep.mubr.f32.mxu0 0.0
  %12263 = vmatmul.mubr.f32.gmra.mrb[0].mxu0 %v11523
  %v12264 = vpop.f32.mrb[0].mxu0
  %v12265 = vadd.f32 %v11880, %v12264
  %v12266 = vpop.f32.mrb[0].mxu0
  %12267 = vmatprep.mubr.f32.mxu0 0.0
  %12268 = vmatmul.mubr.f32.gmra.mrb[0].mxu0 %v11525
  %v12269 = vpop.f32.mrb[0].mxu0
  %v12270 = vadd.f32 %v11885, %v12269
  %v12271 = vpop.f32.mrb[0].mxu0
  %12272 = vmatprep.mubr.f32.mxu0 0.0
  %12273 = vmatmul.mubr.f32.gmra.mrb[0].mxu0 %v11527
  %v12274 = vpop.f32.mrb[0].mxu0
  %v12275 = vadd.f32 %v11890, %v12274
  %v12276 = vpop.f32.mrb[0].mxu0
  %12277 = vmatprep.mubr.f32.mxu0 0.0
  %12278 = vmatmul.mubr.f32.gmra.mrb[0].mxu0 %v11529
  %v12279 = vpop.f32.mrb[0].mxu0
  %v12280 = vadd.f32 %v11895, %v12279
  %v12281 = vpop.f32.mrb[0].mxu0
  %12282 = vmatprep.mubr.f32.mxu0 0.0
  %12283 = vmatmul.mubr.f32.gmra.mrb[0].mxu0 %v11531
  %v12284 = vpop.f32.mrb[0].mxu0
  %v12285 = vadd.f32 %v11900, %v12284
  %v12286 = vpop.f32.mrb[0].mxu0
  %12287 = vmatprep.mubr.f32.mxu0 0.0
  %12288 = vmatmul.mubr.f32.gmra.mrb[0].mxu0 %v11533
  %v12289 = vpop.f32.mrb[0].mxu0
  %v12290 = vadd.f32 %v11905, %v12289
  %v12291 = vpop.f32.mrb[0].mxu0
  %12292 = vmatprep.mubr.f32.mxu0 0.0
  %12293 = vmatmul.mubr.f32.gmra.mrb[0].mxu0 %v11535
  %v12294 = vpop.f32.mrb[0].mxu0
  %v12295 = vadd.f32 %v11910, %v12294
  %v12296 = vpop.f32.mrb[0].mxu0
  %12297 = vmatprep.mubr.f32.mxu0 0.0
  %12298 = vmatmul.mubr.f32.gmra.mrb[0].mxu0 %v11537
  %v12299 = vpop.f32.mrb[0].mxu0
  %v12300 = vadd.f32 %v11915, %v12299
  %v12301 = vpop.f32.mrb[0].mxu0
  %12302 = vmatprep.mubr.f32.mxu0 0.0
  %12303 = vmatmul.mubr.f32.gmra.mrb[0].mxu0 %v11539
  %v12304 = vpop.f32.mrb[0].mxu0
  %v12305 = vadd.f32 %v11920, %v12304
  %v12306 = vpop.f32.mrb[0].mxu0
  %12307 = vmatprep.mubr.f32.mxu0 0.0
  %12308 = vmatmul.mubr.f32.gmra.mrb[0].mxu0 %v11541
  %v12309 = vpop.f32.mrb[0].mxu0
  %v12310 = vadd.f32 %v11925, %v12309
  %v12311 = vpop.f32.mrb[0].mxu0
  %12312 = vdwg.mxu0
  %vm12313 = vcmask 7168
  %12314 = vst.msk [vmem:[%s11] sm:$0xff] %vm12313, %v11995
  %12315 = vst.msk [vmem:[%s11 + $0x8] sm:$0xff] %vm12313, %v12000
  %12316 = vst.msk [vmem:[%s11 + $0x10] sm:$0xff] %vm12313, %v12005
  %12317 = vst.msk [vmem:[%s11 + $0x18] sm:$0xff] %vm12313, %v12010
  %12318 = vst.msk [vmem:[%s11 + $0x20] sm:$0xff] %vm12313, %v12015
  %12319 = vst.msk [vmem:[%s11 + $0x28] sm:$0xff] %vm12313, %v12020
  %12320 = vst.msk [vmem:[%s11 + $0x30] sm:$0xff] %vm12313, %v12025
  %12321 = vst.msk [vmem:[%s11 + $0x38] sm:$0xff] %vm12313, %v12030
  %12322 = vst.msk [vmem:[%s11 + $0x40] sm:$0xff] %vm12313, %v12035
  %12323 = vst.msk [vmem:[%s11 + $0x48] sm:$0xff] %vm12313, %v12040
  %12324 = vst.msk [vmem:[%s11 + $0x50] sm:$0xff] %vm12313, %v12045
  %12325 = vst.msk [vmem:[%s11 + $0x58] sm:$0xff] %vm12313, %v12050
  %12326 = vst.msk [vmem:[%s11 + $0x60] sm:$0xff] %vm12313, %v12055
  %12327 = vst.msk [vmem:[%s11 + $0x68] sm:$0xff] %vm12313, %v12060
  %12328 = vst.msk [vmem:[%s11 + $0x70] sm:$0xff] %vm12313, %v12065
  %12329 = vst.msk [vmem:[%s11 + $0x78] sm:$0xff] %vm12313, %v12070
  %12330 = vst.msk [vmem:[%s11 + $0x80] sm:$0xff] %vm12313, %v12075
  %12331 = vst.msk [vmem:[%s11 + $0x88] sm:$0xff] %vm12313, %v12080
  %12332 = vst.msk [vmem:[%s11 + $0x90] sm:$0xff] %vm12313, %v12085
  %12333 = vst.msk [vmem:[%s11 + $0x98] sm:$0xff] %vm12313, %v12090
  %12334 = vst.msk [vmem:[%s11 + $0xa0] sm:$0xff] %vm12313, %v12095
  %12335 = vst.msk [vmem:[%s11 + $0xa8] sm:$0xff] %vm12313, %v12100
  %12336 = vst.msk [vmem:[%s11 + $0xb0] sm:$0xff] %vm12313, %v12105
  %12337 = vst.msk [vmem:[%s11 + $0xb8] sm:$0xff] %vm12313, %v12110
  %12338 = vst.msk [vmem:[%s11 + $0xc0] sm:$0xff] %vm12313, %v12115
  %12339 = vst.msk [vmem:[%s11 + $0xc8] sm:$0xff] %vm12313, %v12120
  %12340 = vst.msk [vmem:[%s11 + $0xd0] sm:$0xff] %vm12313, %v12125
  %12341 = vst.msk [vmem:[%s11 + $0xd8] sm:$0xff] %vm12313, %v12130
  %12342 = vst.msk [vmem:[%s11 + $0xe0] sm:$0xff] %vm12313, %v12135
  %12343 = vst.msk [vmem:[%s11 + $0xe8] sm:$0xff] %vm12313, %v12140
  %12344 = vst.msk [vmem:[%s11 + $0xf0] sm:$0xff] %vm12313, %v12145
  %12345 = vst.msk [vmem:[%s11 + $0xf8] sm:$0xff] %vm12313, %v12150
  %12346 = vst.msk [vmem:[%s11 + $0x100] sm:$0xff] %vm12313, %v12155
  %12347 = vst.msk [vmem:[%s11 + $0x108] sm:$0xff] %vm12313, %v12160
  %12348 = vst.msk [vmem:[%s11 + $0x110] sm:$0xff] %vm12313, %v12165
  %12349 = vst.msk [vmem:[%s11 + $0x118] sm:$0xff] %vm12313, %v12170
  %12350 = vst.msk [vmem:[%s11 + $0x120] sm:$0xff] %vm12313, %v12175
  %12351 = vst.msk [vmem:[%s11 + $0x128] sm:$0xff] %vm12313, %v12180
  %12352 = vst.msk [vmem:[%s11 + $0x130] sm:$0xff] %vm12313, %v12185
  %12353 = vst.msk [vmem:[%s11 + $0x138] sm:$0xff] %vm12313, %v12190
  %12354 = vst.msk [vmem:[%s11 + $0x140] sm:$0xff] %vm12313, %v12195
  %12355 = vst.msk [vmem:[%s11 + $0x148] sm:$0xff] %vm12313, %v12200
  %12356 = vst.msk [vmem:[%s11 + $0x150] sm:$0xff] %vm12313, %v12205
  %12357 = vst.msk [vmem:[%s11 + $0x158] sm:$0xff] %vm12313, %v12210
  %12358 = vst.msk [vmem:[%s11 + $0x160] sm:$0xff] %vm12313, %v12215
  %12359 = vst.msk [vmem:[%s11 + $0x168] sm:$0xff] %vm12313, %v12220
  %12360 = vst.msk [vmem:[%s11 + $0x170] sm:$0xff] %vm12313, %v12225
  %12361 = vst.msk [vmem:[%s11 + $0x178] sm:$0xff] %vm12313, %v12230
  %12362 = vst.msk [vmem:[%s11 + $0x180] sm:$0xff] %vm12313, %v12235
  %12363 = vst.msk [vmem:[%s11 + $0x188] sm:$0xff] %vm12313, %v12240
  %12364 = vst.msk [vmem:[%s11 + $0x190] sm:$0xff] %vm12313, %v12245
  %12365 = vst.msk [vmem:[%s11 + $0x198] sm:$0xff] %vm12313, %v12250
  %12366 = vst.msk [vmem:[%s11 + $0x1a0] sm:$0xff] %vm12313, %v12255
  %12367 = vst.msk [vmem:[%s11 + $0x1a8] sm:$0xff] %vm12313, %v12260
  %12368 = vst.msk [vmem:[%s11 + $0x1b0] sm:$0xff] %vm12313, %v12265
  %12369 = vst.msk [vmem:[%s11 + $0x1b8] sm:$0xff] %vm12313, %v12270
  %12370 = vst.msk [vmem:[%s11 + $0x1c0] sm:$0xff] %vm12313, %v12275
  %12371 = vst.msk [vmem:[%s11 + $0x1c8] sm:$0xff] %vm12313, %v12280
  %12372 = vst.msk [vmem:[%s11 + $0x1d0] sm:$0xff] %vm12313, %v12285
  %12373 = vst.msk [vmem:[%s11 + $0x1d8] sm:$0xff] %vm12313, %v12290
  %12374 = vst.msk [vmem:[%s11 + $0x1e0] sm:$0xff] %vm12313, %v12295
  %12375 = vst.msk [vmem:[%s11 + $0x1e8] sm:$0xff] %vm12313, %v12300
  %12376 = vst.msk [vmem:[%s11 + $0x1f0] sm:$0xff] %vm12313, %v12305
  %12377 = vst.msk [vmem:[%s11 + $0x1f8] sm:$0xff] %vm12313, %v12310
  // Predicated region
  $region46: #{baseline_forward.1} parent=0 // pred_check
    _
  $region47: #{baseline_forward.1} parent=0 // pred_check_branch
    %12379 = sbr.rel (0) target = $region49
  $region48: #{baseline_forward.1} parent=0 // pred_region
    _
  $region49: #{baseline_forward.1} parent=0 // pred_fallthru
    _
  // Predicated region
  $region50: #{baseline_forward.1} parent=0 // pred_check
    _
  $region51: #{baseline_forward.1} parent=0 // pred_check_branch
    %12381 = sbr.rel (0) target = $region53
  $region52: #{baseline_forward.1} parent=0 // pred_region
    _
  $region53: #{baseline_forward.1} parent=0 // pred_fallthru
    _

</llo_original>
